<compile_context>
chip_gen: v6e
topology: v6e:2x2x1
jax: 0.10.0
libtpu: 0.0.40
codegen_flags: <defaults>
</compile_context>

<pallas_src>
import functools
import math

import jax
import jax.numpy as jnp
from jax.experimental import pallas as pl
from jax.experimental.pallas import tpu as pltpu

BN_EPS = 1e-5
VMEM_BUDGET_BYTES = 24 * 1024 * 1024   # tile budget, conservative for v7x (32 MiB scoped)
VMEM_LIMIT_BYTES = 32 * 1024 * 1024    # explicit scoped-VMEM limit (safe on v5e/v6e/v7x)
HEADS_TM_MAX = 256                     # per review: 256-512 (v6e/v5e could go higher)
LINEAR_TM_MAX = 1024


# ------------------------------ small helpers -------------------------------

def _round_up(x, m):
    return (x + m - 1) // m * m


def _pad_cols(x, cp):
    c = x.shape[1]
    if c == cp:
        return x
    return jnp.pad(x, ((0, 0), (0, cp - c)))


def _block_diag(mats):
    rows = sum(m.shape[0] for m in mats)
    cols = sum(m.shape[1] for m in mats)
    out = jnp.zeros((rows, cols), jnp.float32)
    r = c = 0
    for m in mats:
        out = out.at[r:r + m.shape[0], c:c + m.shape[1]].set(m)
        r += m.shape[0]
        c += m.shape[1]
    return out


def _linear_tm(M, cin, cout, tm_max):
    # double-buffered x and out blocks + f32 accumulator row
    per_row = 2 * (4 * cin + 2 * cout) + 4 * cout
    tm = tm_max
    while tm > 8 and tm * per_row > VMEM_BUDGET_BYTES:
        tm //= 2
    return max(8, min(tm, _round_up(M, 8)))


def _heads_tm(M, S, Cf, f_widths, weight_bytes, tm_max):
    fmax = max(f_widths)
    per_row = 2 * S * (2 * Cf + 32)                        # kgf bf16 + kgx f32, x2 buffers
    per_row += 2 * (2 * Cf + 32 + 4 + 2 * f_widths[-1])    # qf, qx, mask, out block
    per_row += S * fmax * 10                               # live f32 h + bf16 copies
    budget = max(VMEM_BUDGET_BYTES - 2 * weight_bytes, per_row * 8)
    tm = tm_max
    while tm > 8 and tm * per_row > budget:
        tm //= 2
    return max(8, min(tm, _round_up(M, 8)))


# ----------------------------- Pallas kernels ------------------------------

def _linear_kernel(x_ref, w_ref, b_ref, o_ref, *, relu):
    # y = x @ w + b ; bf16 operands (cast in-kernel, no extra XLA pass), f32 acc.
    x = x_ref[...].astype(jnp.bfloat16)
    y = jnp.dot(x, w_ref[...], preferred_element_type=jnp.float32) + b_ref[...]
    if relu:
        y = jnp.maximum(y, 0.0)
    o_ref[...] = y.astype(o_ref.dtype)


def linear_pallas(x, w, b, *, relu=False, out_dtype=jnp.bfloat16,
                  tm_max=LINEAR_TM_MAX):
    M, cin = x.shape
    cout = w.shape[1]
    tm = _linear_tm(M, cin, cout, tm_max)
    row = lambda i: (i, 0)
    const = lambda i: (0, 0)
    return pl.pallas_call(
        functools.partial(_linear_kernel, relu=relu),
        out_shape=jax.ShapeDtypeStruct((M, cout), out_dtype),
        grid=(pl.cdiv(M, tm),),                      # ragged last block is masked
        in_specs=[pl.BlockSpec((tm, cin), row),
                  pl.BlockSpec((cin, cout), const),
                  pl.BlockSpec((1, cout), const)],
        out_specs=pl.BlockSpec((tm, cout), row),
        compiler_params=pltpu.CompilerParams(
            dimension_semantics=("parallel",),
            vmem_limit_bytes=VMEM_LIMIT_BYTES),
    )(x, w, b)


def _make_heads_kernel(n_mid):
    # refs: kgf (tm*S,Cf) bf16, kgx (tm*S,8) f32, qf (tm,Cf) bf16, qx (tm,8) f32,
    #       mask (tm,1) f32, wk0 (Cf,F0) bf16, wq0 (Cf,F0) bf16,
    #       wdx (8,F0) f32, wqx (8,F0) f32, b0 (1,F0) f32,
    #       [w_j bf16, b_j f32] * n_mid, out_w (Fl,Dp) bf16, out_b (1,Dp) f32,
    #       o (tm,Dp)
    def kernel(*refs):
        (kgf_ref, kgx_ref, qf_ref, qx_ref, mask_ref,
         wk0_ref, wq0_ref, wdx_ref, wqx_ref, b0_ref) = refs[:10]
        wout_ref, bout_ref, o_ref = refs[-3], refs[-2], refs[-1]
        mid = refs[10:-3]

        MS, _ = kgf_ref.shape
        tm = qf_ref.shape[0]
        S = MS // tm

        # Layer 0, fused over heads (block-diag weights) with the algebraic
        # split: no lane-axis concat and no broadcast of Q over nsample.
        # Features go through the MXU in bf16; the xyz terms stay f32 so the
        # relative geometry (k_xyz - q_xyz) keeps full precision.
        hk = jnp.dot(kgf_ref[...], wk0_ref[...],
                     preferred_element_type=jnp.float32)
        hk = hk + jnp.dot(kgx_ref[...], wdx_ref[...],
                          preferred_element_type=jnp.float32)
        hq = jnp.dot(qf_ref[...], wq0_ref[...],
                     preferred_element_type=jnp.float32)
        hq = hq + jnp.dot(qx_ref[...], wqx_ref[...],
                          preferred_element_type=jnp.float32)
        F0 = hk.shape[-1]
        h = hk.reshape(tm, S, F0) + hq[:, None, :]
        h = h * mask_ref[...][:, :, None]        # x[knn_empty] = 0 (pre-BN-bias)
        h = jnp.maximum(h + b0_ref[...], 0.0)    # BN scale folded into weights
        h = h.reshape(tm * S, F0)

        for j in range(n_mid):                   # remaining MLP layers
            w = mid[2 * j]
            b = mid[2 * j + 1]
            h = jnp.dot(h.astype(jnp.bfloat16), w[...],
                        preferred_element_type=jnp.float32)
            h = jnp.maximum(h + b[...], 0.0)

        Fl = h.shape[-1]
        hm = jnp.max(h.reshape(tm, S, Fl), axis=1)   # max over nsample

        # fused out_conv (+ folded BN) + ReLU epilogue, lane-dense output
        y = jnp.dot(hm.astype(jnp.bfloat16), wout_ref[...],
                    preferred_element_type=jnp.float32) + bout_ref[...]
        o_ref[...] = jnp.maximum(y, 0.0).astype(o_ref.dtype)
    return kernel


def dknn_heads_pallas(kgf, kgx, qf, qx, mask, p, nsample, out_dtype,
                      tm_max=HEADS_TM_MAX):
    MS, Cf = kgf.shape
    M = qf.shape[0]
    S = nsample
    assert MS == M * S
    Dp = p['out_w'].shape[1]
    f_widths = [p['wk0'].shape[1]] + [w.shape[1] for w, _ in p['mid']] + [Dp]
    weights = [p['wk0'], p['wq0'], p['wdx'], p['wqx'], p['b0'],
               p['out_w'], p['out_b']] + [a for wb in p['mid'] for a in wb]
    wbytes = sum(int(a.size) * a.dtype.itemsize for a in weights)
    tm = _heads_tm(M, S, Cf, f_widths, wbytes, tm_max)

    row = lambda i: (i, 0)
    const = lambda i: (0, 0)
    in_specs = [
        pl.BlockSpec((tm * S, Cf), row),
        pl.BlockSpec((tm * S, kgx.shape[1]), row),
        pl.BlockSpec((tm, Cf), row),
        pl.BlockSpec((tm, qx.shape[1]), row),
        pl.BlockSpec((tm, 1), row),
        pl.BlockSpec(p['wk0'].shape, const),
        pl.BlockSpec(p['wq0'].shape, const),
        pl.BlockSpec(p['wdx'].shape, const),
        pl.BlockSpec(p['wqx'].shape, const),
        pl.BlockSpec(p['b0'].shape, const),
    ]
    args = [kgf, kgx, qf, qx, mask,
            p['wk0'], p['wq0'], p['wdx'], p['wqx'], p['b0']]
    # TODO(synk): coalesce per-layer biases into one array and single-buffer the
    # invariant weight blocks (pipeline_mode) to trim per-step DMA descriptors.
    for w, b in p['mid']:
        in_specs += [pl.BlockSpec(w.shape, const), pl.BlockSpec(b.shape, const)]
        args += [w, b]
    in_specs += [pl.BlockSpec(p['out_w'].shape, const),
                 pl.BlockSpec(p['out_b'].shape, const)]
    args += [p['out_w'], p['out_b']]

    return pl.pallas_call(
        _make_heads_kernel(len(p['mid'])),
        out_shape=jax.ShapeDtypeStruct((M, Dp), out_dtype),
        grid=(pl.cdiv(M, tm),),
        in_specs=in_specs,
        out_specs=pl.BlockSpec((tm, Dp), row),
        compiler_params=pltpu.CompilerParams(
            dimension_semantics=("parallel",),
            vmem_limit_bytes=VMEM_LIMIT_BYTES),
    )(*args)


# --------------------------- range-view KNN query ---------------------------

def rv_query_jax(radius, nsample, dilation, query_range, xyz, q_xyz, q_coords, rv_map):
    # TODO(synk): the CUDA `rv_rand_query_wrapper` samples neighbours at random;
    # this deterministic version takes the first `nsample` hits in scan order
    # and zero-fills remaining slots (matching the .zero_() init).
    # TODO(synk): at realistic point counts move this into a Pallas kernel
    # (q_coords scalar-prefetched, rv_map window DMA); the XLA scatter serializes.
    B, H, W, P = rv_map.shape
    N = xyz.shape[0]
    M = q_xyz.shape[0]
    hr, wr = query_range
    hd, wd = dilation
    dh = jnp.arange(-hr, hr + 1, dtype=jnp.int32) * hd
    dw = jnp.arange(-wr, wr + 1, dtype=jnp.int32) * wd
    rows = q_coords[:, 1:2] + dh[None, :]
    cols = q_coords[:, 2:3] + dw[None, :]
    valid_r = (rows >= 0) & (rows < H)
    valid_c = (cols >= 0) & (cols < W)
    rows_c = jnp.clip(rows, 0, H - 1)
    cols_c = jnp.clip(cols, 0, W - 1)
    bidx = q_coords[:, 0]
    cand = rv_map[bidx[:, None, None], rows_c[:, :, None], cols_c[:, None, :]]  # (M,Kh,Kw,P)
    valid = valid_r[:, :, None, None] & valid_c[:, None, :, None] & (cand >= 0)
    K = cand.shape[1] * cand.shape[2] * cand.shape[3]
    cand = cand.reshape(M, K)
    valid = valid.reshape(M, K)
    cand_xyz = xyz[jnp.clip(cand, 0, N - 1)]
    d2 = jnp.sum((cand_xyz - q_xyz[:, None, :]) ** 2, axis=-1)   # padded lanes are 0
    in_ball = valid & (d2 < radius * radius)
    order = jnp.cumsum(in_ball.astype(jnp.int32), axis=1) - 1
    pos = jnp.where(in_ball & (order < nsample), order, nsample)  # overflow -> dump slot
    idx_full = jnp.zeros((M, nsample + 1), jnp.int32)
    idx_full = idx_full.at[jnp.arange(M)[:, None], pos].set(cand.astype(jnp.int32))
    idx = idx_full[:, :nsample]
    empty = jnp.sum(in_ball, axis=1) == 0
    idx = jnp.where(empty[:, None], 0, idx)
    return idx, empty


# ------------------------------ layer / decoder -----------------------------

def dknn_layer_forward(p, cfg, src_xyz8, src_feats, dst_xyz8, dst_feats,
                       dst_rv_coords, rv_map, out_dtype):
    Kf = linear_pallas(src_feats, p['k_w'], p['k_b'])     # (N, d_model) bf16
    Qf = linear_pallas(dst_feats, p['q_w'], p['q_b'])     # (M, d_model) bf16

    knn_idx, knn_empty = rv_query_jax(cfg['radius'], cfg['nsample'],
                                      cfg['dilation'], cfg['query_range'],
                                      src_xyz8, dst_xyz8, dst_rv_coords, rv_map)
    idx = knn_idx.reshape(-1)
    # TODO(synk): fuse this gather into the heads kernel (K resident in VMEM, or
    # a manual double-buffered DMA gather with K in pl.ANY) to drop the HBM
    # round-trip of the (M*nsample, d_model) tensor.  It is already flat (no
    # in-kernel relayout) and bf16 (half the traffic of the f32 version).
    kgf = Kf[idx]                      # (M*S, d_model) bf16
    kgx = src_xyz8[idx]                # (M*S, 8) f32 geometry
    mask = jnp.where(knn_empty, 0.0, 1.0).astype(jnp.float32)[:, None]

    return dknn_heads_pallas(kgf, kgx, Qf, dst_xyz8, mask, p,
                             cfg['nsample'], out_dtype)


def dynamic_knn_decoder(params, cfgs, src_xyz, src_feats, dst_xyz, dst_feats,
                        dst_rv_coords, rv_map):
    # xyz stays f32 end-to-end (relative-geometry precision); padded once to 8
    # lanes for friendlier DMA / distance math.
    src_xyz8 = _pad_cols(src_xyz, 8)
    dst_xyz8 = _pad_cols(dst_xyz, 8)
    feats = dst_feats
    for i, (p, cfg) in enumerate(zip(params, cfgs)):
        out_dtype = jnp.float32 if i == len(params) - 1 else jnp.bfloat16
        feats = dknn_layer_forward(p, cfg, src_xyz8, src_feats, dst_xyz8, feats,
                                   dst_rv_coords, rv_map, out_dtype)
    return feats[:, :cfgs[-1]['d_model']]


# ----------------------------- parameter init -------------------------------

def _bn_fold(c, gamma=None, beta=None, mean=None, var=None):
    # eval-mode BN fold (default = module's deterministic init); done in f32.
    gamma = jnp.ones((c,), jnp.float32) if gamma is None else gamma
    beta = jnp.zeros((c,), jnp.float32) if beta is None else beta
    mean = jnp.zeros((c,), jnp.float32) if mean is None else mean
    var = jnp.ones((c,), jnp.float32) if var is None else var
    scale = gamma / jnp.sqrt(var + BN_EPS)
    bias = beta - mean * scale
    return scale, bias


def init_dknn_layer(key, cin_k, cin_q, cin_q_pad, d_model, dim_ff, nhead, use_xyz):
    ds = d_model // nhead
    nx = 3 if use_xyz else 0
    c1 = ds + nx
    n_layers = len(dim_ff)
    F0 = dim_ff[0]
    F0t = nhead * F0
    Dp = _round_up(d_model, 128)        # lane-dense output width
    keys = iter(jax.random.split(key, 8 + nhead * n_layers))

    def kaiming(k, fan_in, fan_out):
        return jax.random.normal(k, (fan_in, fan_out)) * math.sqrt(2.0 / fan_in)

    # fc_q / fc_k (plain nn.Linear, bias=True); xyz never enters these.
    wq = jax.random.normal(next(keys), (cin_q, d_model)) / math.sqrt(cin_q)
    bq = 0.01 * jax.random.normal(next(keys), (d_model,))
    wk = jax.random.normal(next(keys), (cin_k, d_model)) / math.sqrt(cin_k)
    bk = 0.01 * jax.random.normal(next(keys), (d_model,))
    # layers > 0 consume the previous layer's lane-dense padded output; the
    # extra weight rows are zero so padded columns are ignored.
    q_w = jnp.zeros((cin_q_pad, d_model), jnp.float32).at[:cin_q, :].set(wq)

    # per-head MLP stacks (Conv1d 1x1 no bias + BN + ReLU)
    head_w = [[kaiming(next(keys), 2 * c1 if j == 0 else dim_ff[j - 1], dim_ff[j])
               for j in range(n_layers)] for _ in range(nhead)]

    # layer 0: algebraic split, fused over heads.  row blocks of W0 per head:
    #   [A (ds, K-feat) | B (3, dxyz) | C (ds, Q-feat) | D (3, q_xyz)]
    #   x @ W0 = K A + Q (C-A) + kx B + qx (D-B)
    wk0 = jnp.zeros((d_model, F0t), jnp.float32)
    wq0 = jnp.zeros((d_model, F0t), jnp.float32)
    wdx = jnp.zeros((8, F0t), jnp.float32)
    wqx = jnp.zeros((8, F0t), jnp.float32)
    b0 = jnp.zeros((1, F0t), jnp.float32)
    for h in range(nhead):
        w0 = head_w[h][0]
        s0, bb0 = _bn_fold(F0)
        cs = slice(h * F0, (h + 1) * F0)
        A = w0[:ds] * s0[None, :]
        C = w0[c1:c1 + ds] * s0[None, :]
        wk0 = wk0.at[h * ds:(h + 1) * ds, cs].set(A)
        wq0 = wq0.at[h * ds:(h + 1) * ds, cs].set(C - A)
        if use_xyz:
            Bm = w0[ds:c1] * s0[None, :]
            Dm = w0[c1 + ds:] * s0[None, :]
            wdx = wdx.at[:3, cs].set(Bm)
            wqx = wqx.at[:3, cs].set(Dm - Bm)
        b0 = b0.at[0, cs].set(bb0)

    # remaining MLP layers: block-diagonal over heads, BN scale folded into W.
    mid = []
    for j in range(1, n_layers):
        Fj = dim_ff[j]
        blocks, bs = [], []
        for h in range(nhead):
            s, bb = _bn_fold(Fj)
            blocks.append(head_w[h][j] * s[None, :])
            bs.append(bb)
        mid.append((_block_diag(blocks).astype(jnp.bfloat16),
                    jnp.concatenate(bs)[None, :]))

    # out_conv (1x1, no bias) + folded BN, padded to lane-dense Dp columns.
    Fl = dim_ff[-1]
    wout = kaiming(next(keys), nhead * Fl, d_model)
    s_out, bo = _bn_fold(d_model)
    wout = wout * s_out[None, :]
    out_w = jnp.zeros((nhead * Fl, Dp), jnp.float32).at[:, :d_model].set(wout)
    out_b = jnp.zeros((1, Dp), jnp.float32).at[0, :d_model].set(bo)

    return dict(q_w=q_w.astype(jnp.bfloat16), q_b=bq[None, :].astype(jnp.float32),
                k_w=wk.astype(jnp.bfloat16), k_b=bk[None, :].astype(jnp.float32),
                wk0=wk0.astype(jnp.bfloat16), wq0=wq0.astype(jnp.bfloat16),
                wdx=wdx, wqx=wqx, b0=b0, mid=mid,
                out_w=out_w.astype(jnp.bfloat16), out_b=out_b)


def init_decoder(key, in_channels, d_models, dim_ffs, nheads, use_xyz):
    params = []
    keys = jax.random.split(key, len(d_models))
    cin_k, cin_q = in_channels
    cin_q_pad = cin_q
    for i in range(len(d_models)):
        params.append(init_dknn_layer(keys[i], cin_k, cin_q, cin_q_pad,
                                      d_models[i], dim_ffs[i], nheads[i], use_xyz))
        cin_q = d_models[i]
        cin_q_pad = _round_up(d_models[i], 128)  # next layer eats lane-dense output
    return params


# ---------------------------------- main ------------------------------------

if __name__ == "__main__":
    key = jax.random.PRNGKey(0)
    kx, kf, kq, kp = jax.random.split(key, 4)

    # Small shapes; M is not a tile multiple to exercise the ragged-block path.
    N = 128               # source points
    M = 96                # query (dst) points
    C_K = 16              # src feature channels
    C_Q = 16              # dst feature channels (first layer)
    B, RV_H, RV_W, P = 1, 16, 8, 2

    d_models = [64, 64]
    dim_ffs = [[64, 64], [64, 64]]    # nhead*dim_ff = 128 -> lane-aligned
    radii = [1.6, 3.2]
    nsamples = [8, 8]
    dilations = [(1, 1), (1, 1)]
    query_ranges = [(1, 1), (2, 2)]
    nheads = [2, 2]
    use_xyz = True

    cfgs = [dict(d_model=d_models[i], nhead=nheads[i], radius=radii[i],
                 nsample=nsamples[i], dilation=dilations[i],
                 query_range=query_ranges[i], use_xyz=use_xyz)
            for i in range(len(d_models))]

    # Range-view map: one point per pixel (slot 0), slot 1 empty (-1).
    rows = jnp.arange(N, dtype=jnp.int32) // RV_W
    cols = jnp.arange(N, dtype=jnp.int32) % RV_W
    rv_map = -jnp.ones((B, RV_H, RV_W, P), dtype=jnp.int32)
    rv_map = rv_map.at[0, rows, cols, 0].set(jnp.arange(N, dtype=jnp.int32))
    src_rv_coords = jnp.stack([jnp.zeros(N, jnp.int32), rows, cols], axis=1)

    # Points roughly laid out on the range-view grid.
    src_xyz = jnp.stack([cols.astype(jnp.float32), rows.astype(jnp.float32),
                         jnp.zeros(N, jnp.float32)], axis=1)
    src_xyz = src_xyz + 0.1 * jax.random.normal(kx, (N, 3), jnp.float32)
    src_feats = jax.random.normal(kf, (N, C_K), jnp.float32)

    dst_xyz = src_xyz[:M]
    dst_rv_coords = src_rv_coords[:M]
    dst_feats = jax.random.normal(kq, (M, C_Q), jnp.float32)

    params = init_decoder(kp, [C_K, C_Q], d_models, dim_ffs, nheads, use_xyz)

    decoder_fn = jax.jit(lambda prm, *a: dynamic_knn_decoder(prm, cfgs, *a))
    out = decoder_fn(params, src_xyz, src_feats, dst_xyz, dst_feats,
                     dst_rv_coords, rv_map)
    out = jax.block_until_ready(out)
    assert out.shape == (M, d_models[-1])
    assert bool(jnp.all(jnp.isfinite(out)))
    print("KERNEL_OK")
</pallas_src>

<mosaic_0001>
module attributes {stable_mosaic.version = 11 : i64} {
  func.func @_linear_kernel(%arg0: i32, %arg1: memref<96x16xf32, #tpu.memory_space<vmem>>, %arg2: memref<16x64xbf16, #tpu.memory_space<vmem>>, %arg3: memref<1x64xf32, #tpu.memory_space<vmem>>, %arg4: memref<96x64xbf16, #tpu.memory_space<vmem>>) attributes {dimension_semantics = [#tpu.dimension_semantics<parallel>], iteration_bounds = array<i64: 1>, scalar_prefetch = 0 : i64, scratch_operands = 0 : i64, tpu.core_type = #tpu.core_type<tc>, window_params = [{transform_indices = @transform_0, window_bounds = array<i64: 96, 16>}, {pipeline_mode = #tpu.pipeline_mode<synchronous>, transform_indices = @transform_1, window_bounds = array<i64: 16, 64>}, {pipeline_mode = #tpu.pipeline_mode<synchronous>, transform_indices = @transform_2, window_bounds = array<i64: 1, 64>}, {transform_indices = @transform_3, window_bounds = array<i64: 96, 64>}]} {
    %c0 = arith.constant 0 : index
    %c0_0 = arith.constant 0 : index
    %0 = vector.load %arg1[%c0, %c0_0] : memref<96x16xf32, #tpu.memory_space<vmem>>, vector<96x16xf32>
    %1 = arith.truncf %0 : vector<96x16xf32> to vector<96x16xbf16>
    %c0_1 = arith.constant 0 : index
    %c0_2 = arith.constant 0 : index
    %2 = vector.load %arg2[%c0_1, %c0_2] : memref<16x64xbf16, #tpu.memory_space<vmem>>, vector<16x64xbf16>
    %cst = arith.constant dense<0.000000e+00> : vector<96x64xf32>
    %3 = tpu.matmul %1, %2, %cst {dimension_numbers = #tpu.dot_dimension_numbers<[1], [0], [0], [1], [0, 0, 1, 1], [], []>} : vector<96x16xbf16>, vector<16x64xbf16>, vector<96x64xf32> -> vector<96x64xf32>
    %c0_3 = arith.constant 0 : index
    %c0_4 = arith.constant 0 : index
    %4 = vector.load %arg3[%c0_3, %c0_4] : memref<1x64xf32, #tpu.memory_space<vmem>>, vector<1x64xf32>
    %5 = vector.broadcast %4 : vector<1x64xf32> to vector<96x64xf32>
    %6 = arith.addf %3, %5 : vector<96x64xf32>
    %7 = arith.truncf %6 : vector<96x64xf32> to vector<96x64xbf16>
    %c0_5 = arith.constant 0 : index
    %c0_6 = arith.constant 0 : index
    %8 = vector.load %arg4[%c0_5, %c0_6] : memref<96x64xbf16, #tpu.memory_space<vmem>>, vector<96x64xbf16>
    tpu.vector_store %arg4[%c0_5, %c0_6], %7 {strides = array<i32>} : memref<96x64xbf16, #tpu.memory_space<vmem>>, vector<96x64xbf16>,
    return
  }
  func.func @transform_0(%arg0: i32) -> (i32, i32) {
    %c0_i32 = arith.constant 0 : i32
    %c0_i32_0 = arith.constant 0 : i32
    return %arg0, %c0_i32 : i32, i32
  }
  func.func @transform_1(%arg0: i32) -> (i32, i32) {
    %c0_i32 = arith.constant 0 : i32
    %c0_i32_0 = arith.constant 0 : i32
    %c0_i32_1 = arith.constant 0 : i32
    return %c0_i32, %c0_i32_0 : i32, i32
  }
  func.func @transform_2(%arg0: i32) -> (i32, i32) {
    %c0_i32 = arith.constant 0 : i32
    %c0_i32_0 = arith.constant 0 : i32
    %c0_i32_1 = arith.constant 0 : i32
    return %c0_i32, %c0_i32_0 : i32, i32
  }
  func.func @transform_3(%arg0: i32) -> (i32, i32) {
    %c0_i32 = arith.constant 0 : i32
    %c0_i32_0 = arith.constant 0 : i32
    return %arg0, %c0_i32 : i32, i32
  }
}

module attributes {stable_mosaic.version = 11 : i64} {
  func.func @_linear_kernel(%arg0: i32, %arg1: memref<128x16xf32, #tpu.memory_space<vmem>>, %arg2: memref<16x64xbf16, #tpu.memory_space<vmem>>, %arg3: memref<1x64xf32, #tpu.memory_space<vmem>>, %arg4: memref<128x64xbf16, #tpu.memory_space<vmem>>) attributes {dimension_semantics = [#tpu.dimension_semantics<parallel>], iteration_bounds = array<i64: 1>, scalar_prefetch = 0 : i64, scratch_operands = 0 : i64, tpu.core_type = #tpu.core_type<tc>, window_params = [{transform_indices = @transform_0, window_bounds = array<i64: 128, 16>}, {pipeline_mode = #tpu.pipeline_mode<synchronous>, transform_indices = @transform_1, window_bounds = array<i64: 16, 64>}, {pipeline_mode = #tpu.pipeline_mode<synchronous>, transform_indices = @transform_2, window_bounds = array<i64: 1, 64>}, {transform_indices = @transform_3, window_bounds = array<i64: 128, 64>}]} {
    %c0 = arith.constant 0 : index
    %c0_0 = arith.constant 0 : index
    %0 = vector.load %arg1[%c0, %c0_0] : memref<128x16xf32, #tpu.memory_space<vmem>>, vector<128x16xf32>
    %1 = arith.truncf %0 : vector<128x16xf32> to vector<128x16xbf16>
    %c0_1 = arith.constant 0 : index
    %c0_2 = arith.constant 0 : index
    %2 = vector.load %arg2[%c0_1, %c0_2] : memref<16x64xbf16, #tpu.memory_space<vmem>>, vector<16x64xbf16>
    %cst = arith.constant dense<0.000000e+00> : vector<128x64xf32>
    %3 = tpu.matmul %1, %2, %cst {dimension_numbers = #tpu.dot_dimension_numbers<[1], [0], [0], [1], [0, 0, 1, 1], [], []>} : vector<128x16xbf16>, vector<16x64xbf16>, vector<128x64xf32> -> vector<128x64xf32>
    %c0_3 = arith.constant 0 : index
    %c0_4 = arith.constant 0 : index
    %4 = vector.load %arg3[%c0_3, %c0_4] : memref<1x64xf32, #tpu.memory_space<vmem>>, vector<1x64xf32>
    %5 = vector.broadcast %4 : vector<1x64xf32> to vector<128x64xf32>
    %6 = arith.addf %3, %5 : vector<128x64xf32>
    %7 = arith.truncf %6 : vector<128x64xf32> to vector<128x64xbf16>
    %c0_5 = arith.constant 0 : index
    %c0_6 = arith.constant 0 : index
    %8 = vector.load %arg4[%c0_5, %c0_6] : memref<128x64xbf16, #tpu.memory_space<vmem>>, vector<128x64xbf16>
    tpu.vector_store %arg4[%c0_5, %c0_6], %7 {strides = array<i32>} : memref<128x64xbf16, #tpu.memory_space<vmem>>, vector<128x64xbf16>,
    return
  }
  func.func @transform_0(%arg0: i32) -> (i32, i32) {
    %c0_i32 = arith.constant 0 : i32
    %c0_i32_0 = arith.constant 0 : i32
    return %arg0, %c0_i32 : i32, i32
  }
  func.func @transform_1(%arg0: i32) -> (i32, i32) {
    %c0_i32 = arith.constant 0 : i32
    %c0_i32_0 = arith.constant 0 : i32
    %c0_i32_1 = arith.constant 0 : i32
    return %c0_i32, %c0_i32_0 : i32, i32
  }
  func.func @transform_2(%arg0: i32) -> (i32, i32) {
    %c0_i32 = arith.constant 0 : i32
    %c0_i32_0 = arith.constant 0 : i32
    %c0_i32_1 = arith.constant 0 : i32
    return %c0_i32, %c0_i32_0 : i32, i32
  }
  func.func @transform_3(%arg0: i32) -> (i32, i32) {
    %c0_i32 = arith.constant 0 : i32
    %c0_i32_0 = arith.constant 0 : i32
    return %arg0, %c0_i32 : i32, i32
  }
}

module attributes {stable_mosaic.version = 11 : i64} {
  func.func @kernel(%arg0: i32, %arg1: memref<768x64xbf16, #tpu.memory_space<vmem>>, %arg2: memref<768x8xf32, #tpu.memory_space<vmem>>, %arg3: memref<96x64xbf16, #tpu.memory_space<vmem>>, %arg4: memref<96x8xf32, #tpu.memory_space<vmem>>, %arg5: memref<96x1xf32, #tpu.memory_space<vmem>>, %arg6: memref<64x128xbf16, #tpu.memory_space<vmem>>, %arg7: memref<64x128xbf16, #tpu.memory_space<vmem>>, %arg8: memref<8x128xf32, #tpu.memory_space<vmem>>, %arg9: memref<8x128xf32, #tpu.memory_space<vmem>>, %arg10: memref<1x128xf32, #tpu.memory_space<vmem>>, %arg11: memref<128x128xbf16, #tpu.memory_space<vmem>>, %arg12: memref<1x128xf32, #tpu.memory_space<vmem>>, %arg13: memref<128x128xbf16, #tpu.memory_space<vmem>>, %arg14: memref<1x128xf32, #tpu.memory_space<vmem>>, %arg15: memref<96x128xbf16, #tpu.memory_space<vmem>>) attributes {dimension_semantics = [#tpu.dimension_semantics<parallel>], iteration_bounds = array<i64: 1>, scalar_prefetch = 0 : i64, scratch_operands = 0 : i64, tpu.core_type = #tpu.core_type<tc>, window_params = [{transform_indices = @transform_0, window_bounds = array<i64: 768, 64>}, {transform_indices = @transform_1, window_bounds = array<i64: 768, 8>}, {transform_indices = @transform_2, window_bounds = array<i64: 96, 64>}, {transform_indices = @transform_3, window_bounds = array<i64: 96, 8>}, {transform_indices = @transform_4, window_bounds = array<i64: 96, 1>}, {pipeline_mode = #tpu.pipeline_mode<synchronous>, transform_indices = @transform_5, window_bounds = array<i64: 64, 128>}, {pipeline_mode = #tpu.pipeline_mode<synchronous>, transform_indices = @transform_6, window_bounds = array<i64: 64, 128>}, {pipeline_mode = #tpu.pipeline_mode<synchronous>, transform_indices = @transform_7, window_bounds = array<i64: 8, 128>}, {pipeline_mode = #tpu.pipeline_mode<synchronous>, transform_indices = @transform_8, window_bounds = array<i64: 8, 128>}, {pipeline_mode = #tpu.pipeline_mode<synchronous>, transform_indices = @transform_9, window_bounds = array<i64: 1, 128>}, {pipeline_mode = #tpu.pipeline_mode<synchronous>, transform_indices = @transform_10, window_bounds = array<i64: 128, 128>}, {pipeline_mode = #tpu.pipeline_mode<synchronous>, transform_indices = @transform_11, window_bounds = array<i64: 1, 128>}, {pipeline_mode = #tpu.pipeline_mode<synchronous>, transform_indices = @transform_12, window_bounds = array<i64: 128, 128>}, {pipeline_mode = #tpu.pipeline_mode<synchronous>, transform_indices = @transform_13, window_bounds = array<i64: 1, 128>}, {transform_indices = @transform_14, window_bounds = array<i64: 96, 128>}]} {
    %c0 = arith.constant 0 : index
    %c0_0 = arith.constant 0 : index
    %0 = vector.load %arg1[%c0, %c0_0] : memref<768x64xbf16, #tpu.memory_space<vmem>>, vector<768x64xbf16>
    %c0_1 = arith.constant 0 : index
    %c0_2 = arith.constant 0 : index
    %1 = vector.load %arg6[%c0_1, %c0_2] : memref<64x128xbf16, #tpu.memory_space<vmem>>, vector<64x128xbf16>
    %cst = arith.constant dense<0.000000e+00> : vector<768x128xf32>
    %2 = tpu.matmul %0, %1, %cst {dimension_numbers = #tpu.dot_dimension_numbers<[1], [0], [0], [1], [0, 0, 1, 1], [], []>} : vector<768x64xbf16>, vector<64x128xbf16>, vector<768x128xf32> -> vector<768x128xf32>
    %c0_3 = arith.constant 0 : index
    %c0_4 = arith.constant 0 : index
    %3 = vector.load %arg2[%c0_3, %c0_4] : memref<768x8xf32, #tpu.memory_space<vmem>>, vector<768x8xf32>
    %c0_5 = arith.constant 0 : index
    %c0_6 = arith.constant 0 : index
    %4 = vector.load %arg8[%c0_5, %c0_6] : memref<8x128xf32, #tpu.memory_space<vmem>>, vector<8x128xf32>
    %cst_7 = arith.constant dense<0.000000e+00> : vector<768x128xf32>
    %5 = tpu.matmul %3, %4, %cst_7 {dimension_numbers = #tpu.dot_dimension_numbers<[1], [0], [0], [1], [0, 0, 1, 1], [], []>} : vector<768x8xf32>, vector<8x128xf32>, vector<768x128xf32> -> vector<768x128xf32>
    %6 = arith.addf %2, %5 : vector<768x128xf32>
    %c0_8 = arith.constant 0 : index
    %c0_9 = arith.constant 0 : index
    %7 = vector.load %arg3[%c0_8, %c0_9] : memref<96x64xbf16, #tpu.memory_space<vmem>>, vector<96x64xbf16>
    %c0_10 = arith.constant 0 : index
    %c0_11 = arith.constant 0 : index
    %8 = vector.load %arg7[%c0_10, %c0_11] : memref<64x128xbf16, #tpu.memory_space<vmem>>, vector<64x128xbf16>
    %cst_12 = arith.constant dense<0.000000e+00> : vector<96x128xf32>
    %9 = tpu.matmul %7, %8, %cst_12 {dimension_numbers = #tpu.dot_dimension_numbers<[1], [0], [0], [1], [0, 0, 1, 1], [], []>} : vector<96x64xbf16>, vector<64x128xbf16>, vector<96x128xf32> -> vector<96x128xf32>
    %c0_13 = arith.constant 0 : index
    %c0_14 = arith.constant 0 : index
    %10 = vector.load %arg4[%c0_13, %c0_14] : memref<96x8xf32, #tpu.memory_space<vmem>>, vector<96x8xf32>
    %c0_15 = arith.constant 0 : index
    %c0_16 = arith.constant 0 : index
    %11 = vector.load %arg9[%c0_15, %c0_16] : memref<8x128xf32, #tpu.memory_space<vmem>>, vector<8x128xf32>
    %cst_17 = arith.constant dense<0.000000e+00> : vector<96x128xf32>
    %12 = tpu.matmul %10, %11, %cst_17 {dimension_numbers = #tpu.dot_dimension_numbers<[1], [0], [0], [1], [0, 0, 1, 1], [], []>} : vector<96x8xf32>, vector<8x128xf32>, vector<96x128xf32> -> vector<96x128xf32>
    %13 = arith.addf %9, %12 : vector<96x128xf32>
    %14 = vector.shape_cast %6 : vector<768x128xf32> to vector<96x8x128xf32>
    %15 = vector.shape_cast %13 : vector<96x128xf32> to vector<96x1x128xf32>
    %16 = vector.broadcast %15 : vector<96x1x128xf32> to vector<96x8x128xf32>
    %17 = arith.addf %14, %16 : vector<96x8x128xf32>
    %c0_18 = arith.constant 0 : index
    %c0_19 = arith.constant 0 : index
    %18 = vector.load %arg5[%c0_18, %c0_19] : memref<96x1xf32, #tpu.memory_space<vmem>>, vector<96x1xf32>
    %19 = vector.shape_cast %18 : vector<96x1xf32> to vector<96x1x1xf32>
    %20 = vector.broadcast %19 : vector<96x1x1xf32> to vector<96x8x128xf32>
    %21 = arith.mulf %17, %20 : vector<96x8x128xf32>
    %c0_20 = arith.constant 0 : index
    %c0_21 = arith.constant 0 : index
    %22 = vector.load %arg10[%c0_20, %c0_21] : memref<1x128xf32, #tpu.memory_space<vmem>>, vector<1x128xf32>
    %23 = vector.shape_cast %22 : vector<1x128xf32> to vector<1x1x128xf32>
    %24 = vector.broadcast %23 : vector<1x1x128xf32> to vector<96x8x128xf32>
    %25 = arith.addf %21, %24 : vector<96x8x128xf32>
    %cst_22 = arith.constant 0.000000e+00 : f32
    %26 = vector.broadcast %cst_22 : f32 to vector<96x8x128xf32>
    %27 = arith.maximumf %25, %26 : vector<96x8x128xf32>
    %28 = vector.shape_cast %27 : vector<96x8x128xf32> to vector<768x128xf32>
    %29 = arith.truncf %28 : vector<768x128xf32> to vector<768x128xbf16>
    %c0_23 = arith.constant 0 : index
    %c0_24 = arith.constant 0 : index
    %30 = vector.load %arg11[%c0_23, %c0_24] : memref<128x128xbf16, #tpu.memory_space<vmem>>, vector<128x128xbf16>
    %cst_25 = arith.constant dense<0.000000e+00> : vector<768x128xf32>
    %31 = tpu.matmul %29, %30, %cst_25 {dimension_numbers = #tpu.dot_dimension_numbers<[1], [0], [0], [1], [0, 0, 1, 1], [], []>} : vector<768x128xbf16>, vector<128x128xbf16>, vector<768x128xf32> -> vector<768x128xf32>
    %c0_26 = arith.constant 0 : index
    %c0_27 = arith.constant 0 : index
    %32 = vector.load %arg12[%c0_26, %c0_27] : memref<1x128xf32, #tpu.memory_space<vmem>>, vector<1x128xf32>
    %33 = vector.broadcast %32 : vector<1x128xf32> to vector<768x128xf32>
    %34 = arith.addf %31, %33 : vector<768x128xf32>
    %cst_28 = arith.constant 0.000000e+00 : f32
    %35 = vector.broadcast %cst_28 : f32 to vector<768x128xf32>
    %36 = arith.maximumf %34, %35 : vector<768x128xf32>
    %37 = vector.shape_cast %36 : vector<768x128xf32> to vector<96x8x128xf32>
    %cst_29 = arith.constant dense<0xFF800000> : vector<96x128xf32>
    %38 = vector.multi_reduction <maximumf>, %37, %cst_29 [1] : vector<96x8x128xf32> to vector<96x128xf32>
    %39 = arith.truncf %38 : vector<96x128xf32> to vector<96x128xbf16>
    %c0_30 = arith.constant 0 : index
    %c0_31 = arith.constant 0 : index
    %40 = vector.load %arg13[%c0_30, %c0_31] : memref<128x128xbf16, #tpu.memory_space<vmem>>, vector<128x128xbf16>
    %cst_32 = arith.constant dense<0.000000e+00> : vector<96x128xf32>
    %41 = tpu.matmul %39, %40, %cst_32 {dimension_numbers = #tpu.dot_dimension_numbers<[1], [0], [0], [1], [0, 0, 1, 1], [], []>} : vector<96x128xbf16>, vector<128x128xbf16>, vector<96x128xf32> -> vector<96x128xf32>
    %c0_33 = arith.constant 0 : index
    %c0_34 = arith.constant 0 : index
    %42 = vector.load %arg14[%c0_33, %c0_34] : memref<1x128xf32, #tpu.memory_space<vmem>>, vector<1x128xf32>
    %43 = vector.broadcast %42 : vector<1x128xf32> to vector<96x128xf32>
    %44 = arith.addf %41, %43 : vector<96x128xf32>
    %cst_35 = arith.constant 0.000000e+00 : f32
    %45 = vector.broadcast %cst_35 : f32 to vector<96x128xf32>
    %46 = arith.maximumf %44, %45 : vector<96x128xf32>
    %47 = arith.truncf %46 : vector<96x128xf32> to vector<96x128xbf16>
    %c0_36 = arith.constant 0 : index
    %c0_37 = arith.constant 0 : index
    %48 = vector.load %arg15[%c0_36, %c0_37] : memref<96x128xbf16, #tpu.memory_space<vmem>>, vector<96x128xbf16>
    tpu.vector_store %arg15[%c0_36, %c0_37], %47 {strides = array<i32>} : memref<96x128xbf16, #tpu.memory_space<vmem>>, vector<96x128xbf16>,
    return
  }
  func.func @transform_0(%arg0: i32) -> (i32, i32) {
    %c0_i32 = arith.constant 0 : i32
    %c0_i32_0 = arith.constant 0 : i32
    return %arg0, %c0_i32 : i32, i32
  }
  func.func @transform_1(%arg0: i32) -> (i32, i32) {
    %c0_i32 = arith.constant 0 : i32
    %c0_i32_0 = arith.constant 0 : i32
    return %arg0, %c0_i32 : i32, i32
  }
  func.func @transform_2(%arg0: i32) -> (i32, i32) {
    %c0_i32 = arith.constant 0 : i32
    %c0_i32_0 = arith.constant 0 : i32
    return %arg0, %c0_i32 : i32, i32
  }
  func.func @transform_3(%arg0: i32) -> (i32, i32) {
    %c0_i32 = arith.constant 0 : i32
    %c0_i32_0 = arith.constant 0 : i32
    return %arg0, %c0_i32 : i32, i32
  }
  func.func @transform_4(%arg0: i32) -> (i32, i32) {
    %c0_i32 = arith.constant 0 : i32
    %c0_i32_0 = arith.constant 0 : i32
    return %arg0, %c0_i32 : i32, i32
  }
  func.func @transform_5(%arg0: i32) -> (i32, i32) {
    %c0_i32 = arith.constant 0 : i32
    %c0_i32_0 = arith.constant 0 : i32
    %c0_i32_1 = arith.constant 0 : i32
    return %c0_i32, %c0_i32_0 : i32, i32
  }
  func.func @transform_6(%arg0: i32) -> (i32, i32) {
    %c0_i32 = arith.constant 0 : i32
    %c0_i32_0 = arith.constant 0 : i32
    %c0_i32_1 = arith.constant 0 : i32
    return %c0_i32, %c0_i32_0 : i32, i32
  }
  func.func @transform_7(%arg0: i32) -> (i32, i32) {
    %c0_i32 = arith.constant 0 : i32
    %c0_i32_0 = arith.constant 0 : i32
    %c0_i32_1 = arith.constant 0 : i32
    return %c0_i32, %c0_i32_0 : i32, i32
  }
  func.func @transform_8(%arg0: i32) -> (i32, i32) {
    %c0_i32 = arith.constant 0 : i32
    %c0_i32_0 = arith.constant 0 : i32
    %c0_i32_1 = arith.constant 0 : i32
    return %c0_i32, %c0_i32_0 : i32, i32
  }
  func.func @transform_9(%arg0: i32) -> (i32, i32) {
    %c0_i32 = arith.constant 0 : i32
    %c0_i32_0 = arith.constant 0 : i32
    %c0_i32_1 = arith.constant 0 : i32
    return %c0_i32, %c0_i32_0 : i32, i32
  }
  func.func @transform_10(%arg0: i32) -> (i32, i32) {
    %c0_i32 = arith.constant 0 : i32
    %c0_i32_0 = arith.constant 0 : i32
    %c0_i32_1 = arith.constant 0 : i32
    return %c0_i32, %c0_i32_0 : i32, i32
  }
  func.func @transform_11(%arg0: i32) -> (i32, i32) {
    %c0_i32 = arith.constant 0 : i32
    %c0_i32_0 = arith.constant 0 : i32
    %c0_i32_1 = arith.constant 0 : i32
    return %c0_i32, %c0_i32_0 : i32, i32
  }
  func.func @transform_12(%arg0: i32) -> (i32, i32) {
    %c0_i32 = arith.constant 0 : i32
    %c0_i32_0 = arith.constant 0 : i32
    %c0_i32_1 = arith.constant 0 : i32
    return %c0_i32, %c0_i32_0 : i32, i32
  }
  func.func @transform_13(%arg0: i32) -> (i32, i32) {
    %c0_i32 = arith.constant 0 : i32
    %c0_i32_0 = arith.constant 0 : i32
    %c0_i32_1 = arith.constant 0 : i32
    return %c0_i32, %c0_i32_0 : i32, i32
  }
  func.func @transform_14(%arg0: i32) -> (i32, i32) {
    %c0_i32 = arith.constant 0 : i32
    %c0_i32_0 = arith.constant 0 : i32
    return %arg0, %c0_i32 : i32, i32
  }
}

module attributes {stable_mosaic.version = 11 : i64} {
  func.func @_linear_kernel(%arg0: i32, %arg1: memref<96x128xbf16, #tpu.memory_space<vmem>>, %arg2: memref<128x64xbf16, #tpu.memory_space<vmem>>, %arg3: memref<1x64xf32, #tpu.memory_space<vmem>>, %arg4: memref<96x64xbf16, #tpu.memory_space<vmem>>) attributes {dimension_semantics = [#tpu.dimension_semantics<parallel>], iteration_bounds = array<i64: 1>, scalar_prefetch = 0 : i64, scratch_operands = 0 : i64, tpu.core_type = #tpu.core_type<tc>, window_params = [{transform_indices = @transform_0, window_bounds = array<i64: 96, 128>}, {pipeline_mode = #tpu.pipeline_mode<synchronous>, transform_indices = @transform_1, window_bounds = array<i64: 128, 64>}, {pipeline_mode = #tpu.pipeline_mode<synchronous>, transform_indices = @transform_2, window_bounds = array<i64: 1, 64>}, {transform_indices = @transform_3, window_bounds = array<i64: 96, 64>}]} {
    %c0 = arith.constant 0 : index
    %c0_0 = arith.constant 0 : index
    %0 = vector.load %arg1[%c0, %c0_0] : memref<96x128xbf16, #tpu.memory_space<vmem>>, vector<96x128xbf16>
    %c0_1 = arith.constant 0 : index
    %c0_2 = arith.constant 0 : index
    %1 = vector.load %arg2[%c0_1, %c0_2] : memref<128x64xbf16, #tpu.memory_space<vmem>>, vector<128x64xbf16>
    %cst = arith.constant dense<0.000000e+00> : vector<96x64xf32>
    %2 = tpu.matmul %0, %1, %cst {dimension_numbers = #tpu.dot_dimension_numbers<[1], [0], [0], [1], [0, 0, 1, 1], [], []>} : vector<96x128xbf16>, vector<128x64xbf16>, vector<96x64xf32> -> vector<96x64xf32>
    %c0_3 = arith.constant 0 : index
    %c0_4 = arith.constant 0 : index
    %3 = vector.load %arg3[%c0_3, %c0_4] : memref<1x64xf32, #tpu.memory_space<vmem>>, vector<1x64xf32>
    %4 = vector.broadcast %3 : vector<1x64xf32> to vector<96x64xf32>
    %5 = arith.addf %2, %4 : vector<96x64xf32>
    %6 = arith.truncf %5 : vector<96x64xf32> to vector<96x64xbf16>
    %c0_5 = arith.constant 0 : index
    %c0_6 = arith.constant 0 : index
    %7 = vector.load %arg4[%c0_5, %c0_6] : memref<96x64xbf16, #tpu.memory_space<vmem>>, vector<96x64xbf16>
    tpu.vector_store %arg4[%c0_5, %c0_6], %6 {strides = array<i32>} : memref<96x64xbf16, #tpu.memory_space<vmem>>, vector<96x64xbf16>,
    return
  }
  func.func @transform_0(%arg0: i32) -> (i32, i32) {
    %c0_i32 = arith.constant 0 : i32
    %c0_i32_0 = arith.constant 0 : i32
    return %arg0, %c0_i32 : i32, i32
  }
  func.func @transform_1(%arg0: i32) -> (i32, i32) {
    %c0_i32 = arith.constant 0 : i32
    %c0_i32_0 = arith.constant 0 : i32
    %c0_i32_1 = arith.constant 0 : i32
    return %c0_i32, %c0_i32_0 : i32, i32
  }
  func.func @transform_2(%arg0: i32) -> (i32, i32) {
    %c0_i32 = arith.constant 0 : i32
    %c0_i32_0 = arith.constant 0 : i32
    %c0_i32_1 = arith.constant 0 : i32
    return %c0_i32, %c0_i32_0 : i32, i32
  }
  func.func @transform_3(%arg0: i32) -> (i32, i32) {
    %c0_i32 = arith.constant 0 : i32
    %c0_i32_0 = arith.constant 0 : i32
    return %arg0, %c0_i32 : i32, i32
  }
}

module attributes {stable_mosaic.version = 11 : i64} {
  func.func @kernel(%arg0: i32, %arg1: memref<768x64xbf16, #tpu.memory_space<vmem>>, %arg2: memref<768x8xf32, #tpu.memory_space<vmem>>, %arg3: memref<96x64xbf16, #tpu.memory_space<vmem>>, %arg4: memref<96x8xf32, #tpu.memory_space<vmem>>, %arg5: memref<96x1xf32, #tpu.memory_space<vmem>>, %arg6: memref<64x128xbf16, #tpu.memory_space<vmem>>, %arg7: memref<64x128xbf16, #tpu.memory_space<vmem>>, %arg8: memref<8x128xf32, #tpu.memory_space<vmem>>, %arg9: memref<8x128xf32, #tpu.memory_space<vmem>>, %arg10: memref<1x128xf32, #tpu.memory_space<vmem>>, %arg11: memref<128x128xbf16, #tpu.memory_space<vmem>>, %arg12: memref<1x128xf32, #tpu.memory_space<vmem>>, %arg13: memref<128x128xbf16, #tpu.memory_space<vmem>>, %arg14: memref<1x128xf32, #tpu.memory_space<vmem>>, %arg15: memref<96x128xf32, #tpu.memory_space<vmem>>) attributes {dimension_semantics = [#tpu.dimension_semantics<parallel>], iteration_bounds = array<i64: 1>, scalar_prefetch = 0 : i64, scratch_operands = 0 : i64, tpu.core_type = #tpu.core_type<tc>, window_params = [{transform_indices = @transform_0, window_bounds = array<i64: 768, 64>}, {transform_indices = @transform_1, window_bounds = array<i64: 768, 8>}, {transform_indices = @transform_2, window_bounds = array<i64: 96, 64>}, {transform_indices = @transform_3, window_bounds = array<i64: 96, 8>}, {transform_indices = @transform_4, window_bounds = array<i64: 96, 1>}, {pipeline_mode = #tpu.pipeline_mode<synchronous>, transform_indices = @transform_5, window_bounds = array<i64: 64, 128>}, {pipeline_mode = #tpu.pipeline_mode<synchronous>, transform_indices = @transform_6, window_bounds = array<i64: 64, 128>}, {pipeline_mode = #tpu.pipeline_mode<synchronous>, transform_indices = @transform_7, window_bounds = array<i64: 8, 128>}, {pipeline_mode = #tpu.pipeline_mode<synchronous>, transform_indices = @transform_8, window_bounds = array<i64: 8, 128>}, {pipeline_mode = #tpu.pipeline_mode<synchronous>, transform_indices = @transform_9, window_bounds = array<i64: 1, 128>}, {pipeline_mode = #tpu.pipeline_mode<synchronous>, transform_indices = @transform_10, window_bounds = array<i64: 128, 128>}, {pipeline_mode = #tpu.pipeline_mode<synchronous>, transform_indices = @transform_11, window_bounds = array<i64: 1, 128>}, {pipeline_mode = #tpu.pipeline_mode<synchronous>, transform_indices = @transform_12, window_bounds = array<i64: 128, 128>}, {pipeline_mode = #tpu.pipeline_mode<synchronous>, transform_indices = @transform_13, window_bounds = array<i64: 1, 128>}, {transform_indices = @transform_14, window_bounds = array<i64: 96, 128>}]} {
    %c0 = arith.constant 0 : index
    %c0_0 = arith.constant 0 : index
    %0 = vector.load %arg1[%c0, %c0_0] : memref<768x64xbf16, #tpu.memory_space<vmem>>, vector<768x64xbf16>
    %c0_1 = arith.constant 0 : index
    %c0_2 = arith.constant 0 : index
    %1 = vector.load %arg6[%c0_1, %c0_2] : memref<64x128xbf16, #tpu.memory_space<vmem>>, vector<64x128xbf16>
    %cst = arith.constant dense<0.000000e+00> : vector<768x128xf32>
    %2 = tpu.matmul %0, %1, %cst {dimension_numbers = #tpu.dot_dimension_numbers<[1], [0], [0], [1], [0, 0, 1, 1], [], []>} : vector<768x64xbf16>, vector<64x128xbf16>, vector<768x128xf32> -> vector<768x128xf32>
    %c0_3 = arith.constant 0 : index
    %c0_4 = arith.constant 0 : index
    %3 = vector.load %arg2[%c0_3, %c0_4] : memref<768x8xf32, #tpu.memory_space<vmem>>, vector<768x8xf32>
    %c0_5 = arith.constant 0 : index
    %c0_6 = arith.constant 0 : index
    %4 = vector.load %arg8[%c0_5, %c0_6] : memref<8x128xf32, #tpu.memory_space<vmem>>, vector<8x128xf32>
    %cst_7 = arith.constant dense<0.000000e+00> : vector<768x128xf32>
    %5 = tpu.matmul %3, %4, %cst_7 {dimension_numbers = #tpu.dot_dimension_numbers<[1], [0], [0], [1], [0, 0, 1, 1], [], []>} : vector<768x8xf32>, vector<8x128xf32>, vector<768x128xf32> -> vector<768x128xf32>
    %6 = arith.addf %2, %5 : vector<768x128xf32>
    %c0_8 = arith.constant 0 : index
    %c0_9 = arith.constant 0 : index
    %7 = vector.load %arg3[%c0_8, %c0_9] : memref<96x64xbf16, #tpu.memory_space<vmem>>, vector<96x64xbf16>
    %c0_10 = arith.constant 0 : index
    %c0_11 = arith.constant 0 : index
    %8 = vector.load %arg7[%c0_10, %c0_11] : memref<64x128xbf16, #tpu.memory_space<vmem>>, vector<64x128xbf16>
    %cst_12 = arith.constant dense<0.000000e+00> : vector<96x128xf32>
    %9 = tpu.matmul %7, %8, %cst_12 {dimension_numbers = #tpu.dot_dimension_numbers<[1], [0], [0], [1], [0, 0, 1, 1], [], []>} : vector<96x64xbf16>, vector<64x128xbf16>, vector<96x128xf32> -> vector<96x128xf32>
    %c0_13 = arith.constant 0 : index
    %c0_14 = arith.constant 0 : index
    %10 = vector.load %arg4[%c0_13, %c0_14] : memref<96x8xf32, #tpu.memory_space<vmem>>, vector<96x8xf32>
    %c0_15 = arith.constant 0 : index
    %c0_16 = arith.constant 0 : index
    %11 = vector.load %arg9[%c0_15, %c0_16] : memref<8x128xf32, #tpu.memory_space<vmem>>, vector<8x128xf32>
    %cst_17 = arith.constant dense<0.000000e+00> : vector<96x128xf32>
    %12 = tpu.matmul %10, %11, %cst_17 {dimension_numbers = #tpu.dot_dimension_numbers<[1], [0], [0], [1], [0, 0, 1, 1], [], []>} : vector<96x8xf32>, vector<8x128xf32>, vector<96x128xf32> -> vector<96x128xf32>
    %13 = arith.addf %9, %12 : vector<96x128xf32>
    %14 = vector.shape_cast %6 : vector<768x128xf32> to vector<96x8x128xf32>
    %15 = vector.shape_cast %13 : vector<96x128xf32> to vector<96x1x128xf32>
    %16 = vector.broadcast %15 : vector<96x1x128xf32> to vector<96x8x128xf32>
    %17 = arith.addf %14, %16 : vector<96x8x128xf32>
    %c0_18 = arith.constant 0 : index
    %c0_19 = arith.constant 0 : index
    %18 = vector.load %arg5[%c0_18, %c0_19] : memref<96x1xf32, #tpu.memory_space<vmem>>, vector<96x1xf32>
    %19 = vector.shape_cast %18 : vector<96x1xf32> to vector<96x1x1xf32>
    %20 = vector.broadcast %19 : vector<96x1x1xf32> to vector<96x8x128xf32>
    %21 = arith.mulf %17, %20 : vector<96x8x128xf32>
    %c0_20 = arith.constant 0 : index
    %c0_21 = arith.constant 0 : index
    %22 = vector.load %arg10[%c0_20, %c0_21] : memref<1x128xf32, #tpu.memory_space<vmem>>, vector<1x128xf32>
    %23 = vector.shape_cast %22 : vector<1x128xf32> to vector<1x1x128xf32>
    %24 = vector.broadcast %23 : vector<1x1x128xf32> to vector<96x8x128xf32>
    %25 = arith.addf %21, %24 : vector<96x8x128xf32>
    %cst_22 = arith.constant 0.000000e+00 : f32
    %26 = vector.broadcast %cst_22 : f32 to vector<96x8x128xf32>
    %27 = arith.maximumf %25, %26 : vector<96x8x128xf32>
    %28 = vector.shape_cast %27 : vector<96x8x128xf32> to vector<768x128xf32>
    %29 = arith.truncf %28 : vector<768x128xf32> to vector<768x128xbf16>
    %c0_23 = arith.constant 0 : index
    %c0_24 = arith.constant 0 : index
    %30 = vector.load %arg11[%c0_23, %c0_24] : memref<128x128xbf16, #tpu.memory_space<vmem>>, vector<128x128xbf16>
    %cst_25 = arith.constant dense<0.000000e+00> : vector<768x128xf32>
    %31 = tpu.matmul %29, %30, %cst_25 {dimension_numbers = #tpu.dot_dimension_numbers<[1], [0], [0], [1], [0, 0, 1, 1], [], []>} : vector<768x128xbf16>, vector<128x128xbf16>, vector<768x128xf32> -> vector<768x128xf32>
    %c0_26 = arith.constant 0 : index
    %c0_27 = arith.constant 0 : index
    %32 = vector.load %arg12[%c0_26, %c0_27] : memref<1x128xf32, #tpu.memory_space<vmem>>, vector<1x128xf32>
    %33 = vector.broadcast %32 : vector<1x128xf32> to vector<768x128xf32>
    %34 = arith.addf %31, %33 : vector<768x128xf32>
    %cst_28 = arith.constant 0.000000e+00 : f32
    %35 = vector.broadcast %cst_28 : f32 to vector<768x128xf32>
    %36 = arith.maximumf %34, %35 : vector<768x128xf32>
    %37 = vector.shape_cast %36 : vector<768x128xf32> to vector<96x8x128xf32>
    %cst_29 = arith.constant dense<0xFF800000> : vector<96x128xf32>
    %38 = vector.multi_reduction <maximumf>, %37, %cst_29 [1] : vector<96x8x128xf32> to vector<96x128xf32>
    %39 = arith.truncf %38 : vector<96x128xf32> to vector<96x128xbf16>
    %c0_30 = arith.constant 0 : index
    %c0_31 = arith.constant 0 : index
    %40 = vector.load %arg13[%c0_30, %c0_31] : memref<128x128xbf16, #tpu.memory_space<vmem>>, vector<128x128xbf16>
    %cst_32 = arith.constant dense<0.000000e+00> : vector<96x128xf32>
    %41 = tpu.matmul %39, %40, %cst_32 {dimension_numbers = #tpu.dot_dimension_numbers<[1], [0], [0], [1], [0, 0, 1, 1], [], []>} : vector<96x128xbf16>, vector<128x128xbf16>, vector<96x128xf32> -> vector<96x128xf32>
    %c0_33 = arith.constant 0 : index
    %c0_34 = arith.constant 0 : index
    %42 = vector.load %arg14[%c0_33, %c0_34] : memref<1x128xf32, #tpu.memory_space<vmem>>, vector<1x128xf32>
    %43 = vector.broadcast %42 : vector<1x128xf32> to vector<96x128xf32>
    %44 = arith.addf %41, %43 : vector<96x128xf32>
    %cst_35 = arith.constant 0.000000e+00 : f32
    %45 = vector.broadcast %cst_35 : f32 to vector<96x128xf32>
    %46 = arith.maximumf %44, %45 : vector<96x128xf32>
    %c0_36 = arith.constant 0 : index
    %c0_37 = arith.constant 0 : index
    %47 = vector.load %arg15[%c0_36, %c0_37] : memref<96x128xf32, #tpu.memory_space<vmem>>, vector<96x128xf32>
    tpu.vector_store %arg15[%c0_36, %c0_37], %46 {strides = array<i32>} : memref<96x128xf32, #tpu.memory_space<vmem>>, vector<96x128xf32>,
    return
  }
  func.func @transform_0(%arg0: i32) -> (i32, i32) {
    %c0_i32 = arith.constant 0 : i32
    %c0_i32_0 = arith.constant 0 : i32
    return %arg0, %c0_i32 : i32, i32
  }
  func.func @transform_1(%arg0: i32) -> (i32, i32) {
    %c0_i32 = arith.constant 0 : i32
    %c0_i32_0 = arith.constant 0 : i32
    return %arg0, %c0_i32 : i32, i32
  }
  func.func @transform_2(%arg0: i32) -> (i32, i32) {
    %c0_i32 = arith.constant 0 : i32
    %c0_i32_0 = arith.constant 0 : i32
    return %arg0, %c0_i32 : i32, i32
  }
  func.func @transform_3(%arg0: i32) -> (i32, i32) {
    %c0_i32 = arith.constant 0 : i32
    %c0_i32_0 = arith.constant 0 : i32
    return %arg0, %c0_i32 : i32, i32
  }
  func.func @transform_4(%arg0: i32) -> (i32, i32) {
    %c0_i32 = arith.constant 0 : i32
    %c0_i32_0 = arith.constant 0 : i32
    return %arg0, %c0_i32 : i32, i32
  }
  func.func @transform_5(%arg0: i32) -> (i32, i32) {
    %c0_i32 = arith.constant 0 : i32
    %c0_i32_0 = arith.constant 0 : i32
    %c0_i32_1 = arith.constant 0 : i32
    return %c0_i32, %c0_i32_0 : i32, i32
  }
  func.func @transform_6(%arg0: i32) -> (i32, i32) {
    %c0_i32 = arith.constant 0 : i32
    %c0_i32_0 = arith.constant 0 : i32
    %c0_i32_1 = arith.constant 0 : i32
    return %c0_i32, %c0_i32_0 : i32, i32
  }
  func.func @transform_7(%arg0: i32) -> (i32, i32) {
    %c0_i32 = arith.constant 0 : i32
    %c0_i32_0 = arith.constant 0 : i32
    %c0_i32_1 = arith.constant 0 : i32
    return %c0_i32, %c0_i32_0 : i32, i32
  }
  func.func @transform_8(%arg0: i32) -> (i32, i32) {
    %c0_i32 = arith.constant 0 : i32
    %c0_i32_0 = arith.constant 0 : i32
    %c0_i32_1 = arith.constant 0 : i32
    return %c0_i32, %c0_i32_0 : i32, i32
  }
  func.func @transform_9(%arg0: i32) -> (i32, i32) {
    %c0_i32 = arith.constant 0 : i32
    %c0_i32_0 = arith.constant 0 : i32
    %c0_i32_1 = arith.constant 0 : i32
    return %c0_i32, %c0_i32_0 : i32, i32
  }
  func.func @transform_10(%arg0: i32) -> (i32, i32) {
    %c0_i32 = arith.constant 0 : i32
    %c0_i32_0 = arith.constant 0 : i32
    %c0_i32_1 = arith.constant 0 : i32
    return %c0_i32, %c0_i32_0 : i32, i32
  }
  func.func @transform_11(%arg0: i32) -> (i32, i32) {
    %c0_i32 = arith.constant 0 : i32
    %c0_i32_0 = arith.constant 0 : i32
    %c0_i32_1 = arith.constant 0 : i32
    return %c0_i32, %c0_i32_0 : i32, i32
  }
  func.func @transform_12(%arg0: i32) -> (i32, i32) {
    %c0_i32 = arith.constant 0 : i32
    %c0_i32_0 = arith.constant 0 : i32
    %c0_i32_1 = arith.constant 0 : i32
    return %c0_i32, %c0_i32_0 : i32, i32
  }
  func.func @transform_13(%arg0: i32) -> (i32, i32) {
    %c0_i32 = arith.constant 0 : i32
    %c0_i32_0 = arith.constant 0 : i32
    %c0_i32_1 = arith.constant 0 : i32
    return %c0_i32, %c0_i32_0 : i32, i32
  }
  func.func @transform_14(%arg0: i32) -> (i32, i32) {
    %c0_i32 = arith.constant 0 : i32
    %c0_i32_0 = arith.constant 0 : i32
    return %arg0, %c0_i32 : i32, i32
  }
}

</mosaic_0001>

<llo_original>
// kernel: _lambda_.6
$region0: #{_lambda_.6}
  #allocation0 [shape = 'u32[]', space=smem, size = 0x4, offset = 0x4, fixed_abs, tag = 'smem constant byte address 0x4 - core index']
  #allocation1 [shape = 'u32[144,128]{1,0:T(1,128)}', space=vmem, size = 0x12000, scoped, tag = 'internal scratch']
  %s0 = inlined_call_operand.vmem [shape: f32[128,16], index: 0, kind: input, shape index: {}]
  %s1 = inlined_call_operand.hbm [shape: bf16[16,64], index: 1, kind: input, shape index: {}]
  %s2 = inlined_call_operand.hbm [shape: f32[1,64], index: 2, kind: input, shape index: {}]
  %s3 = inlined_call_operand.vmem [shape: bf16[128,64], index: 3, kind: output, shape index: {}]
  %s4 = sld [smem:[#allocation0]]
  $region30: #{_lambda_.6} parent=0
    _
  %s6 = ssub.s32 1, %s4
  %s7 = scalar_select 0, %s6, %s4
  $region1: #{_lambda_.6} parent=0
    #allocation2 [shape = 'u8[4096]{0}', space=vmem, size = 0x1000, scoped, tag = 'input window, operand 1, single buffered']
    #allocation3 [shape = 's32[1]{0}', space=sflag, size = 0x4, scoped, tag = 'scoped memory for _lambda_.6']
    #allocation4 [shape = 'u8[512]{0}', space=vmem, size = 0x400, scoped, tag = 'input window, operand 2, single buffered']
    #allocation5 [shape = 's32[1]{0}', space=sflag, size = 0x4, scoped, tag = 'scoped memory for _lambda_.6']
    %8 = vsyncpa [#allocation3], 0
    %9 = vsyncpa [#allocation5], 0
    // Predicated region
    $region2: #{_lambda_.6} parent=1 // pred_check
      _
    $region3: #{_lambda_.6} parent=1 // pred_check_branch
      %11 = sbr.rel (0) target = $region5
    $region4: #{_lambda_.6} parent=1 // pred_region
      _
    $region5: #{_lambda_.6} parent=1 // pred_fallthru
      _
    // Predicated region
    $region6: #{_lambda_.6} parent=1 // pred_check
      _
    $region7: #{_lambda_.6} parent=1 // pred_check_branch
      %13 = sbr.rel (0) target = $region9
    $region8: #{_lambda_.6} parent=1 // pred_region
      %s15 = ssub.s32 128, 128
      %16 = vsyncadd [#allocation3], %s15
      %s17 = sshll.u32 [#allocation2], 4
      %s18 = int_to_ptr.vmem [resolvable:$true] %s17
      %23 = dma.hbm_to_vmem [thread:$0]  %s1, 128, %s18, [#allocation3], 64, 64, 4
    $region9: #{_lambda_.6} parent=1 // pred_fallthru
      _
    // Predicated region
    $region10: #{_lambda_.6} parent=1 // pred_check
      _
    $region11: #{_lambda_.6} parent=1 // pred_check_branch
      %25 = sbr.rel (0) target = $region13
    $region12: #{_lambda_.6} parent=1 // pred_region
      %s27 = ssub.s32 16, 16
      %28 = vsyncadd [#allocation5], %s27
      %s30 = sshll.u32 [#allocation4], 4
      %s31 = int_to_ptr.vmem [resolvable:$true] %s30
      %33 = dma.hbm_to_vmem [thread:$0]  %s2, 16, %s31, [#allocation5]
    $region13: #{_lambda_.6} parent=1 // pred_fallthru
      _
    // Predicated region
    $region14: #{_lambda_.6} parent=1 // pred_check
      _
    $region15: #{_lambda_.6} parent=1 // pred_check_branch
      %35 = sbr.rel (0) target = $region17
    $region16: #{_lambda_.6} parent=1 // pred_region
      %36 = dma.done [#allocation3], 128
    $region17: #{_lambda_.6} parent=1 // pred_fallthru
      _
    // Predicated region
    $region18: #{_lambda_.6} parent=1 // pred_check
      _
    $region19: #{_lambda_.6} parent=1 // pred_check_branch
      %38 = sbr.rel (0) target = $region21
    $region20: #{_lambda_.6} parent=1 // pred_region
      %39 = dma.done [#allocation5], 16
    $region21: #{_lambda_.6} parent=1 // pred_fallthru
      _
    %v41 = vld [vmem:[%s0] sm:$0xff]
    %v42 = vld [vmem:[%s0 + $0x8] sm:$0xff]
    %v43 = vld [vmem:[%s0 + $0x10] sm:$0xff]
    %v44 = vld [vmem:[%s0 + $0x18] sm:$0xff]
    %v45 = vld [vmem:[%s0 + $0x20] sm:$0xff]
    %v46 = vld [vmem:[%s0 + $0x28] sm:$0xff]
    %v47 = vld [vmem:[%s0 + $0x30] sm:$0xff]
    %v48 = vld [vmem:[%s0 + $0x38] sm:$0xff]
    %v49 = vld [vmem:[%s0 + $0x40] sm:$0xff]
    %v50 = vld [vmem:[%s0 + $0x48] sm:$0xff]
    %v51 = vld [vmem:[%s0 + $0x50] sm:$0xff]
    %v52 = vld [vmem:[%s0 + $0x58] sm:$0xff]
    %v53 = vld [vmem:[%s0 + $0x60] sm:$0xff]
    %v54 = vld [vmem:[%s0 + $0x68] sm:$0xff]
    %v55 = vld [vmem:[%s0 + $0x70] sm:$0xff]
    %v56 = vld [vmem:[%s0 + $0x78] sm:$0xff]
    %v57 = vpack.c.bf16 %v42, %v41
    %v58 = vpack.c.bf16 %v44, %v43
    %v59 = vpack.c.bf16 %v46, %v45
    %v60 = vpack.c.bf16 %v48, %v47
    %v61 = vpack.c.bf16 %v50, %v49
    %v62 = vpack.c.bf16 %v52, %v51
    %v63 = vpack.c.bf16 %v54, %v53
    %v64 = vpack.c.bf16 %v56, %v55
    %v65 = vld [vmem:[#allocation2] sm:$0xf]
    %v66 = vld [vmem:[#allocation2 + $0x4] sm:$0xf]
    %v67 = vld [vmem:[#allocation4] sm:$0x1]
    %v69 = vlaneseq
    %v70 = vshrl.u32 %v69, 7
    %v71 = vsub.s32 0, %v70
    %v72 = vrot.slane %v67, %v71
    %v76 = vunpack.c.l.b16 %v65
    %v77 = vunpack.c.l.b16 %v66
    %v78 = vpack.c.b16 %v77, %v76
    %vm80 = vcmask 130048
    %v82 = vsel %vm80, %v57, 0
    %v85 = vsel %vm80, %v58, 0
    %v88 = vsel %vm80, %v59, 0
    %v91 = vsel %vm80, %v60, 0
    %v94 = vsel %vm80, %v61, 0
    %v97 = vsel %vm80, %v62, 0
    %v100 = vsel %vm80, %v63, 0
    %v103 = vsel %vm80, %v64, 0
    %105 = vmatprep.subr.bf16.mxu0 0
    %106 = vmatpush1.bf16.msra.mxu0 0
    %107 = vmatprep.subr.bf16.mxu0 0
    %108 = vmatpush1.bf16.msra.mxu0 0
    %109 = vmatprep.subr.bf16.mxu0 0
    %110 = vmatpush1.bf16.msra.mxu0 0
    %111 = vmatprep.subr.bf16.mxu0 0
    %112 = vmatpush1.bf16.msra.mxu0 0
    %113 = vmatprep.subr.bf16.mxu0 0
    %114 = vmatpush1.bf16.msra.mxu0 0
    %115 = vmatprep.subr.bf16.mxu0 0
    %116 = vmatpush1.bf16.msra.mxu0 0
    %117 = vmatprep.subr.bf16.mxu0 0
    %118 = vmatpush1.bf16.msra.mxu0 0
    %119 = vmatprep.subr.bf16.mxu0 0
    %120 = vmatpush1.bf16.msra.mxu0 %v78
    %121 = vmatprep.subr.bf16.mxu0 0
    %122 = vmatpush2.bf16.msra.mxu0 0
    %123 = vmatprep.subr.bf16.mxu0 0
    %124 = vmatpush2.bf16.msra.mxu0 0
    %125 = vmatprep.subr.bf16.mxu0 0
    %126 = vmatpush2.bf16.msra.mxu0 0
    %127 = vmatprep.subr.bf16.mxu0 0
    %128 = vmatpush2.bf16.msra.mxu0 0
    %129 = vmatprep.subr.bf16.mxu0 0
    %130 = vmatpush2.bf16.msra.mxu0 0
    %131 = vmatprep.subr.bf16.mxu0 0
    %132 = vmatpush2.bf16.msra.mxu0 0
    %133 = vmatprep.subr.bf16.mxu0 0
    %134 = vmatpush2.bf16.msra.mxu0 0
    %135 = vmatprep.subr.bf16.mxu0 0
    %136 = vmatpush2.bf16.msra.mxu0 0
    %137 = vmatprep.mubr.bf16.mxu0 0
    %138 = vmatmul.mubr.bf16.gmra.mxu0 %v82
    %v139 = vpop.f32.mrf.mxu0
    %v140 = vadd.f32 %v72, %v139
    %v141 = vpop.f32.mrf.mxu0
    %v142 = vpop.f32.mrf.mxu0
    %v143 = vadd.f32 %v72, %v142
    %v144 = vpop.f32.mrf.mxu0
    %145 = vmatprep.mubr.bf16.mxu0 0
    %146 = vmatmul.mubr.bf16.gmra.mxu0 %v85
    %v147 = vpop.f32.mrf.mxu0
    %v148 = vadd.f32 %v72, %v147
    %v149 = vpop.f32.mrf.mxu0
    %v150 = vpop.f32.mrf.mxu0
    %v151 = vadd.f32 %v72, %v150
    %v152 = vpop.f32.mrf.mxu0
    %153 = vmatprep.mubr.bf16.mxu0 0
    %154 = vmatmul.mubr.bf16.gmra.mxu0 %v88
    %v155 = vpop.f32.mrf.mxu0
    %v156 = vadd.f32 %v72, %v155
    %v157 = vpop.f32.mrf.mxu0
    %v158 = vpop.f32.mrf.mxu0
    %v159 = vadd.f32 %v72, %v158
    %v160 = vpop.f32.mrf.mxu0
    %161 = vmatprep.mubr.bf16.mxu0 0
    %162 = vmatmul.mubr.bf16.gmra.mxu0 %v91
    %v163 = vpop.f32.mrf.mxu0
    %v164 = vadd.f32 %v72, %v163
    %v165 = vpop.f32.mrf.mxu0
    %v166 = vpop.f32.mrf.mxu0
    %v167 = vadd.f32 %v72, %v166
    %v168 = vpop.f32.mrf.mxu0
    %169 = vmatprep.mubr.bf16.mxu0 0
    %170 = vmatmul.mubr.bf16.gmra.mxu0 %v94
    %v171 = vpop.f32.mrf.mxu0
    %v172 = vadd.f32 %v72, %v171
    %v173 = vpop.f32.mrf.mxu0
    %v174 = vpop.f32.mrf.mxu0
    %v175 = vadd.f32 %v72, %v174
    %v176 = vpop.f32.mrf.mxu0
    %177 = vmatprep.mubr.bf16.mxu0 0
    %178 = vmatmul.mubr.bf16.gmra.mxu0 %v97
    %v179 = vpop.f32.mrf.mxu0
    %v180 = vadd.f32 %v72, %v179
    %v181 = vpop.f32.mrf.mxu0
    %v182 = vpop.f32.mrf.mxu0
    %v183 = vadd.f32 %v72, %v182
    %v184 = vpop.f32.mrf.mxu0
    %185 = vmatprep.mubr.bf16.mxu0 0
    %186 = vmatmul.mubr.bf16.gmra.mxu0 %v100
    %v187 = vpop.f32.mrf.mxu0
    %v188 = vadd.f32 %v72, %v187
    %v189 = vpop.f32.mrf.mxu0
    %v190 = vpop.f32.mrf.mxu0
    %v191 = vadd.f32 %v72, %v190
    %v192 = vpop.f32.mrf.mxu0
    %193 = vmatprep.mubr.bf16.mxu0 0
    %194 = vmatmul.mubr.bf16.gmra.mxu0 %v103
    %v195 = vpop.f32.mrf.mxu0
    %v196 = vadd.f32 %v72, %v195
    %v197 = vpop.f32.mrf.mxu0
    %v198 = vpop.f32.mrf.mxu0
    %v199 = vadd.f32 %v72, %v198
    %v200 = vpop.f32.mrf.mxu0
    %201 = vdwg.mxu0
    %v202 = vpack.c.bf16 %v143, %v140
    %v203 = vpack.c.bf16 %v151, %v148
    %v204 = vpack.c.bf16 %v159, %v156
    %v205 = vpack.c.bf16 %v167, %v164
    %v206 = vpack.c.bf16 %v175, %v172
    %v207 = vpack.c.bf16 %v183, %v180
    %v208 = vpack.c.bf16 %v191, %v188
    %v209 = vpack.c.bf16 %v199, %v196
    %v218 = vunpack.c.l.b16 %v202
    %v219 = vunpack.c.h.b16 %v202
    %v220 = vunpack.c.l.b16 %v203
    %v221 = vunpack.c.h.b16 %v203
    %v222 = vunpack.c.l.b16 %v204
    %v223 = vunpack.c.h.b16 %v204
    %v224 = vunpack.c.l.b16 %v205
    %v225 = vunpack.c.h.b16 %v205
    %v226 = vunpack.c.l.b16 %v206
    %v227 = vunpack.c.h.b16 %v206
    %v228 = vunpack.c.l.b16 %v207
    %v229 = vunpack.c.h.b16 %v207
    %v230 = vunpack.c.l.b16 %v208
    %v231 = vunpack.c.h.b16 %v208
    %v232 = vunpack.c.l.b16 %v209
    %v233 = vunpack.c.h.b16 %v209
    %v234 = vpack.c.b16 %v218, %v218
    %v235 = vpack.c.b16 %v219, %v219
    %v236 = vpack.c.b16 %v220, %v220
    %v237 = vpack.c.b16 %v221, %v221
    %v238 = vpack.c.b16 %v222, %v222
    %v239 = vpack.c.b16 %v223, %v223
    %v240 = vpack.c.b16 %v224, %v224
    %v241 = vpack.c.b16 %v225, %v225
    %v242 = vpack.c.b16 %v226, %v226
    %v243 = vpack.c.b16 %v227, %v227
    %v244 = vpack.c.b16 %v228, %v228
    %v245 = vpack.c.b16 %v229, %v229
    %v246 = vpack.c.b16 %v230, %v230
    %v247 = vpack.c.b16 %v231, %v231
    %v248 = vpack.c.b16 %v232, %v232
    %v249 = vpack.c.b16 %v233, %v233
    %vm266 = vcmask 519168
    %267 = vst.msk [vmem:[%s3] sm:$0xf] %vm266, %v234
    %268 = vst.msk [vmem:[%s3 + $0x4] sm:$0xf] %vm266, %v235
    %269 = vst.msk [vmem:[%s3 + $0x8] sm:$0xf] %vm266, %v236
    %270 = vst.msk [vmem:[%s3 + $0xc] sm:$0xf] %vm266, %v237
    %271 = vst.msk [vmem:[%s3 + $0x10] sm:$0xf] %vm266, %v238
    %272 = vst.msk [vmem:[%s3 + $0x14] sm:$0xf] %vm266, %v239
    %273 = vst.msk [vmem:[%s3 + $0x18] sm:$0xf] %vm266, %v240
    %274 = vst.msk [vmem:[%s3 + $0x1c] sm:$0xf] %vm266, %v241
    %275 = vst.msk [vmem:[%s3 + $0x20] sm:$0xf] %vm266, %v242
    %276 = vst.msk [vmem:[%s3 + $0x24] sm:$0xf] %vm266, %v243
    %277 = vst.msk [vmem:[%s3 + $0x28] sm:$0xf] %vm266, %v244
    %278 = vst.msk [vmem:[%s3 + $0x2c] sm:$0xf] %vm266, %v245
    %279 = vst.msk [vmem:[%s3 + $0x30] sm:$0xf] %vm266, %v246
    %280 = vst.msk [vmem:[%s3 + $0x34] sm:$0xf] %vm266, %v247
    %281 = vst.msk [vmem:[%s3 + $0x38] sm:$0xf] %vm266, %v248
    %282 = vst.msk [vmem:[%s3 + $0x3c] sm:$0xf] %vm266, %v249
    // Predicated region
    $region22: #{_lambda_.6} parent=1 // pred_check
      _
    $region23: #{_lambda_.6} parent=1 // pred_check_branch
      %284 = sbr.rel (0) target = $region25
    $region24: #{_lambda_.6} parent=1 // pred_region
      _
    $region25: #{_lambda_.6} parent=1 // pred_fallthru
      _
    // Predicated region
    $region26: #{_lambda_.6} parent=1 // pred_check
      _
    $region27: #{_lambda_.6} parent=1 // pred_check_branch
      %286 = sbr.rel (0) target = $region29
    $region28: #{_lambda_.6} parent=1 // pred_region
      _
    $region29: #{_lambda_.6} parent=1 // pred_fallthru
      _
    %287 = vsyncpa [#allocation3], 1
    %288 = vsyncpa [#allocation5], 1

// kernel: _lambda_.7
$region0: #{_lambda_.7}
  #allocation0 [shape = 'u32[]', space=smem, size = 0x4, offset = 0x4, fixed_abs, tag = 'smem constant byte address 0x4 - core index']
  #allocation1 [shape = 'u32[144,128]{1,0:T(1,128)}', space=vmem, size = 0x12000, scoped, tag = 'internal scratch']
  %s0 = inlined_call_operand.vmem [shape: f32[96,16], index: 0, kind: input, shape index: {}]
  %s1 = inlined_call_operand.hbm [shape: bf16[16,64], index: 1, kind: input, shape index: {}]
  %s2 = inlined_call_operand.hbm [shape: f32[1,64], index: 2, kind: input, shape index: {}]
  %s3 = inlined_call_operand.vmem [shape: bf16[96,64], index: 3, kind: output, shape index: {}]
  %s4 = sld [smem:[#allocation0]]
  $region30: #{_lambda_.7} parent=0
    _
  %s6 = ssub.s32 1, %s4
  %s7 = scalar_select 0, %s6, %s4
  $region1: #{_lambda_.7} parent=0
    #allocation2 [shape = 'u8[4096]{0}', space=vmem, size = 0x1000, scoped, tag = 'input window, operand 1, single buffered']
    #allocation3 [shape = 's32[1]{0}', space=sflag, size = 0x4, scoped, tag = 'scoped memory for _lambda_.7']
    #allocation4 [shape = 'u8[512]{0}', space=vmem, size = 0x400, scoped, tag = 'input window, operand 2, single buffered']
    #allocation5 [shape = 's32[1]{0}', space=sflag, size = 0x4, scoped, tag = 'scoped memory for _lambda_.7']
    %8 = vsyncpa [#allocation3], 0
    %9 = vsyncpa [#allocation5], 0
    // Predicated region
    $region2: #{_lambda_.7} parent=1 // pred_check
      _
    $region3: #{_lambda_.7} parent=1 // pred_check_branch
      %11 = sbr.rel (0) target = $region5
    $region4: #{_lambda_.7} parent=1 // pred_region
      _
    $region5: #{_lambda_.7} parent=1 // pred_fallthru
      _
    // Predicated region
    $region6: #{_lambda_.7} parent=1 // pred_check
      _
    $region7: #{_lambda_.7} parent=1 // pred_check_branch
      %13 = sbr.rel (0) target = $region9
    $region8: #{_lambda_.7} parent=1 // pred_region
      %s15 = ssub.s32 128, 128
      %16 = vsyncadd [#allocation3], %s15
      %s17 = sshll.u32 [#allocation2], 4
      %s18 = int_to_ptr.vmem [resolvable:$true] %s17
      %23 = dma.hbm_to_vmem [thread:$0]  %s1, 128, %s18, [#allocation3], 64, 64, 4
    $region9: #{_lambda_.7} parent=1 // pred_fallthru
      _
    // Predicated region
    $region10: #{_lambda_.7} parent=1 // pred_check
      _
    $region11: #{_lambda_.7} parent=1 // pred_check_branch
      %25 = sbr.rel (0) target = $region13
    $region12: #{_lambda_.7} parent=1 // pred_region
      %s27 = ssub.s32 16, 16
      %28 = vsyncadd [#allocation5], %s27
      %s30 = sshll.u32 [#allocation4], 4
      %s31 = int_to_ptr.vmem [resolvable:$true] %s30
      %33 = dma.hbm_to_vmem [thread:$0]  %s2, 16, %s31, [#allocation5]
    $region13: #{_lambda_.7} parent=1 // pred_fallthru
      _
    // Predicated region
    $region14: #{_lambda_.7} parent=1 // pred_check
      _
    $region15: #{_lambda_.7} parent=1 // pred_check_branch
      %35 = sbr.rel (0) target = $region17
    $region16: #{_lambda_.7} parent=1 // pred_region
      %36 = dma.done [#allocation3], 128
    $region17: #{_lambda_.7} parent=1 // pred_fallthru
      _
    // Predicated region
    $region18: #{_lambda_.7} parent=1 // pred_check
      _
    $region19: #{_lambda_.7} parent=1 // pred_check_branch
      %38 = sbr.rel (0) target = $region21
    $region20: #{_lambda_.7} parent=1 // pred_region
      %39 = dma.done [#allocation5], 16
    $region21: #{_lambda_.7} parent=1 // pred_fallthru
      _
    %v41 = vld [vmem:[%s0] sm:$0xff]
    %v42 = vld [vmem:[%s0 + $0x8] sm:$0xff]
    %v43 = vld [vmem:[%s0 + $0x10] sm:$0xff]
    %v44 = vld [vmem:[%s0 + $0x18] sm:$0xff]
    %v45 = vld [vmem:[%s0 + $0x20] sm:$0xff]
    %v46 = vld [vmem:[%s0 + $0x28] sm:$0xff]
    %v47 = vld [vmem:[%s0 + $0x30] sm:$0xff]
    %v48 = vld [vmem:[%s0 + $0x38] sm:$0xff]
    %v49 = vld [vmem:[%s0 + $0x40] sm:$0xff]
    %v50 = vld [vmem:[%s0 + $0x48] sm:$0xff]
    %v51 = vld [vmem:[%s0 + $0x50] sm:$0xff]
    %v52 = vld [vmem:[%s0 + $0x58] sm:$0xff]
    %v53 = vpack.c.bf16 %v42, %v41
    %v54 = vpack.c.bf16 %v44, %v43
    %v55 = vpack.c.bf16 %v46, %v45
    %v56 = vpack.c.bf16 %v48, %v47
    %v57 = vpack.c.bf16 %v50, %v49
    %v58 = vpack.c.bf16 %v52, %v51
    %v59 = vld [vmem:[#allocation2] sm:$0xf]
    %v60 = vld [vmem:[#allocation2 + $0x4] sm:$0xf]
    %v61 = vld [vmem:[#allocation4] sm:$0x1]
    %v63 = vlaneseq
    %v64 = vshrl.u32 %v63, 7
    %v65 = vsub.s32 0, %v64
    %v66 = vrot.slane %v61, %v65
    %v70 = vunpack.c.l.b16 %v59
    %v71 = vunpack.c.l.b16 %v60
    %v72 = vpack.c.b16 %v71, %v70
    %vm74 = vcmask 130048
    %v76 = vsel %vm74, %v53, 0
    %v79 = vsel %vm74, %v54, 0
    %v82 = vsel %vm74, %v55, 0
    %v85 = vsel %vm74, %v56, 0
    %v88 = vsel %vm74, %v57, 0
    %v91 = vsel %vm74, %v58, 0
    %93 = vmatprep.subr.bf16.mxu0 0
    %94 = vmatpush1.bf16.msra.mxu0 0
    %95 = vmatprep.subr.bf16.mxu0 0
    %96 = vmatpush1.bf16.msra.mxu0 0
    %97 = vmatprep.subr.bf16.mxu0 0
    %98 = vmatpush1.bf16.msra.mxu0 0
    %99 = vmatprep.subr.bf16.mxu0 0
    %100 = vmatpush1.bf16.msra.mxu0 0
    %101 = vmatprep.subr.bf16.mxu0 0
    %102 = vmatpush1.bf16.msra.mxu0 0
    %103 = vmatprep.subr.bf16.mxu0 0
    %104 = vmatpush1.bf16.msra.mxu0 0
    %105 = vmatprep.subr.bf16.mxu0 0
    %106 = vmatpush1.bf16.msra.mxu0 0
    %107 = vmatprep.subr.bf16.mxu0 0
    %108 = vmatpush1.bf16.msra.mxu0 %v72
    %109 = vmatprep.subr.bf16.mxu0 0
    %110 = vmatpush2.bf16.msra.mxu0 0
    %111 = vmatprep.subr.bf16.mxu0 0
    %112 = vmatpush2.bf16.msra.mxu0 0
    %113 = vmatprep.subr.bf16.mxu0 0
    %114 = vmatpush2.bf16.msra.mxu0 0
    %115 = vmatprep.subr.bf16.mxu0 0
    %116 = vmatpush2.bf16.msra.mxu0 0
    %117 = vmatprep.subr.bf16.mxu0 0
    %118 = vmatpush2.bf16.msra.mxu0 0
    %119 = vmatprep.subr.bf16.mxu0 0
    %120 = vmatpush2.bf16.msra.mxu0 0
    %121 = vmatprep.subr.bf16.mxu0 0
    %122 = vmatpush2.bf16.msra.mxu0 0
    %123 = vmatprep.subr.bf16.mxu0 0
    %124 = vmatpush2.bf16.msra.mxu0 0
    %125 = vmatprep.mubr.bf16.mxu0 0
    %126 = vmatmul.mubr.bf16.gmra.mxu0 %v76
    %v127 = vpop.f32.mrf.mxu0
    %v128 = vadd.f32 %v66, %v127
    %v129 = vpop.f32.mrf.mxu0
    %v130 = vpop.f32.mrf.mxu0
    %v131 = vadd.f32 %v66, %v130
    %v132 = vpop.f32.mrf.mxu0
    %133 = vmatprep.mubr.bf16.mxu0 0
    %134 = vmatmul.mubr.bf16.gmra.mxu0 %v79
    %v135 = vpop.f32.mrf.mxu0
    %v136 = vadd.f32 %v66, %v135
    %v137 = vpop.f32.mrf.mxu0
    %v138 = vpop.f32.mrf.mxu0
    %v139 = vadd.f32 %v66, %v138
    %v140 = vpop.f32.mrf.mxu0
    %141 = vmatprep.mubr.bf16.mxu0 0
    %142 = vmatmul.mubr.bf16.gmra.mxu0 %v82
    %v143 = vpop.f32.mrf.mxu0
    %v144 = vadd.f32 %v66, %v143
    %v145 = vpop.f32.mrf.mxu0
    %v146 = vpop.f32.mrf.mxu0
    %v147 = vadd.f32 %v66, %v146
    %v148 = vpop.f32.mrf.mxu0
    %149 = vmatprep.mubr.bf16.mxu0 0
    %150 = vmatmul.mubr.bf16.gmra.mxu0 %v85
    %v151 = vpop.f32.mrf.mxu0
    %v152 = vadd.f32 %v66, %v151
    %v153 = vpop.f32.mrf.mxu0
    %v154 = vpop.f32.mrf.mxu0
    %v155 = vadd.f32 %v66, %v154
    %v156 = vpop.f32.mrf.mxu0
    %157 = vmatprep.mubr.bf16.mxu0 0
    %158 = vmatmul.mubr.bf16.gmra.mxu0 %v88
    %v159 = vpop.f32.mrf.mxu0
    %v160 = vadd.f32 %v66, %v159
    %v161 = vpop.f32.mrf.mxu0
    %v162 = vpop.f32.mrf.mxu0
    %v163 = vadd.f32 %v66, %v162
    %v164 = vpop.f32.mrf.mxu0
    %165 = vmatprep.mubr.bf16.mxu0 0
    %166 = vmatmul.mubr.bf16.gmra.mxu0 %v91
    %v167 = vpop.f32.mrf.mxu0
    %v168 = vadd.f32 %v66, %v167
    %v169 = vpop.f32.mrf.mxu0
    %v170 = vpop.f32.mrf.mxu0
    %v171 = vadd.f32 %v66, %v170
    %v172 = vpop.f32.mrf.mxu0
    %173 = vdwg.mxu0
    %v174 = vpack.c.bf16 %v131, %v128
    %v175 = vpack.c.bf16 %v139, %v136
    %v176 = vpack.c.bf16 %v147, %v144
    %v177 = vpack.c.bf16 %v155, %v152
    %v178 = vpack.c.bf16 %v163, %v160
    %v179 = vpack.c.bf16 %v171, %v168
    %v186 = vunpack.c.l.b16 %v174
    %v187 = vunpack.c.h.b16 %v174
    %v188 = vunpack.c.l.b16 %v175
    %v189 = vunpack.c.h.b16 %v175
    %v190 = vunpack.c.l.b16 %v176
    %v191 = vunpack.c.h.b16 %v176
    %v192 = vunpack.c.l.b16 %v177
    %v193 = vunpack.c.h.b16 %v177
    %v194 = vunpack.c.l.b16 %v178
    %v195 = vunpack.c.h.b16 %v178
    %v196 = vunpack.c.l.b16 %v179
    %v197 = vunpack.c.h.b16 %v179
    %v198 = vpack.c.b16 %v186, %v186
    %v199 = vpack.c.b16 %v187, %v187
    %v200 = vpack.c.b16 %v188, %v188
    %v201 = vpack.c.b16 %v189, %v189
    %v202 = vpack.c.b16 %v190, %v190
    %v203 = vpack.c.b16 %v191, %v191
    %v204 = vpack.c.b16 %v192, %v192
    %v205 = vpack.c.b16 %v193, %v193
    %v206 = vpack.c.b16 %v194, %v194
    %v207 = vpack.c.b16 %v195, %v195
    %v208 = vpack.c.b16 %v196, %v196
    %v209 = vpack.c.b16 %v197, %v197
    %vm222 = vcmask 519168
    %223 = vst.msk [vmem:[%s3] sm:$0xf] %vm222, %v198
    %224 = vst.msk [vmem:[%s3 + $0x4] sm:$0xf] %vm222, %v199
    %225 = vst.msk [vmem:[%s3 + $0x8] sm:$0xf] %vm222, %v200
    %226 = vst.msk [vmem:[%s3 + $0xc] sm:$0xf] %vm222, %v201
    %227 = vst.msk [vmem:[%s3 + $0x10] sm:$0xf] %vm222, %v202
    %228 = vst.msk [vmem:[%s3 + $0x14] sm:$0xf] %vm222, %v203
    %229 = vst.msk [vmem:[%s3 + $0x18] sm:$0xf] %vm222, %v204
    %230 = vst.msk [vmem:[%s3 + $0x1c] sm:$0xf] %vm222, %v205
    %231 = vst.msk [vmem:[%s3 + $0x20] sm:$0xf] %vm222, %v206
    %232 = vst.msk [vmem:[%s3 + $0x24] sm:$0xf] %vm222, %v207
    %233 = vst.msk [vmem:[%s3 + $0x28] sm:$0xf] %vm222, %v208
    %234 = vst.msk [vmem:[%s3 + $0x2c] sm:$0xf] %vm222, %v209
    // Predicated region
    $region22: #{_lambda_.7} parent=1 // pred_check
      _
    $region23: #{_lambda_.7} parent=1 // pred_check_branch
      %236 = sbr.rel (0) target = $region25
    $region24: #{_lambda_.7} parent=1 // pred_region
      _
    $region25: #{_lambda_.7} parent=1 // pred_fallthru
      _
    // Predicated region
    $region26: #{_lambda_.7} parent=1 // pred_check
      _
    $region27: #{_lambda_.7} parent=1 // pred_check_branch
      %238 = sbr.rel (0) target = $region29
    $region28: #{_lambda_.7} parent=1 // pred_region
      _
    $region29: #{_lambda_.7} parent=1 // pred_fallthru
      _
    %239 = vsyncpa [#allocation3], 1
    %240 = vsyncpa [#allocation5], 1

// kernel: _lambda_.10
$region0: #{_lambda_.10}
  #allocation0 [shape = 'u32[]', space=smem, size = 0x4, offset = 0x4, fixed_abs, tag = 'smem constant byte address 0x4 - core index']
  #allocation1 [shape = 'u32[144,128]{1,0:T(1,128)}', space=vmem, size = 0x12000, scoped, tag = 'internal scratch']
  %s0 = inlined_call_operand.vmem [shape: bf16[96,128], index: 0, kind: input, shape index: {}]
  %s1 = inlined_call_operand.vmem [shape: bf16[128,64], index: 1, kind: input, shape index: {}]
  %s2 = inlined_call_operand.vmem [shape: f32[1,64], index: 2, kind: input, shape index: {}]
  %s3 = inlined_call_operand.vmem [shape: bf16[96,64], index: 3, kind: output, shape index: {}]
  %s4 = sld [smem:[#allocation0]]
  $region22: #{_lambda_.10} parent=0
    _
  %s6 = ssub.s32 1, %s4
  %s7 = scalar_select 0, %s6, %s4
  // Predicated region
  $region2: #{_lambda_.10} parent=0 // pred_check
    _
  $region3: #{_lambda_.10} parent=0 // pred_check_branch
    %9 = sbr.rel (0) target = $region5
  $region4: #{_lambda_.10} parent=0 // pred_region
    _
  $region5: #{_lambda_.10} parent=0 // pred_fallthru
    _
  // Predicated region
  $region6: #{_lambda_.10} parent=0 // pred_check
    _
  $region7: #{_lambda_.10} parent=0 // pred_check_branch
    %11 = sbr.rel (0) target = $region9
  $region8: #{_lambda_.10} parent=0 // pred_region
    _
  $region9: #{_lambda_.10} parent=0 // pred_fallthru
    _
  // Predicated region
  $region10: #{_lambda_.10} parent=0 // pred_check
    _
  $region11: #{_lambda_.10} parent=0 // pred_check_branch
    %13 = sbr.rel (0) target = $region13
  $region12: #{_lambda_.10} parent=0 // pred_region
    _
  $region13: #{_lambda_.10} parent=0 // pred_fallthru
    _
  %v15 = vld [vmem:[%s0] sm:$0xf]
  %v16 = vld [vmem:[%s0 + $0x4] sm:$0xf]
  %v17 = vld [vmem:[%s0 + $0x8] sm:$0xf]
  %v18 = vld [vmem:[%s0 + $0xc] sm:$0xf]
  %v19 = vld [vmem:[%s0 + $0x10] sm:$0xf]
  %v20 = vld [vmem:[%s0 + $0x14] sm:$0xf]
  %v21 = vld [vmem:[%s0 + $0x18] sm:$0xf]
  %v22 = vld [vmem:[%s0 + $0x1c] sm:$0xf]
  %v23 = vld [vmem:[%s0 + $0x20] sm:$0xf]
  %v24 = vld [vmem:[%s0 + $0x24] sm:$0xf]
  %v25 = vld [vmem:[%s0 + $0x28] sm:$0xf]
  %v26 = vld [vmem:[%s0 + $0x2c] sm:$0xf]
  %v27 = vld [vmem:[%s1] sm:$0xf]
  %v28 = vld [vmem:[%s1 + $0x4] sm:$0xf]
  %v29 = vld [vmem:[%s1 + $0x8] sm:$0xf]
  %v30 = vld [vmem:[%s1 + $0xc] sm:$0xf]
  %v31 = vld [vmem:[%s1 + $0x10] sm:$0xf]
  %v32 = vld [vmem:[%s1 + $0x14] sm:$0xf]
  %v33 = vld [vmem:[%s1 + $0x18] sm:$0xf]
  %v34 = vld [vmem:[%s1 + $0x1c] sm:$0xf]
  %v35 = vld [vmem:[%s1 + $0x20] sm:$0xf]
  %v36 = vld [vmem:[%s1 + $0x24] sm:$0xf]
  %v37 = vld [vmem:[%s1 + $0x28] sm:$0xf]
  %v38 = vld [vmem:[%s1 + $0x2c] sm:$0xf]
  %v39 = vld [vmem:[%s1 + $0x30] sm:$0xf]
  %v40 = vld [vmem:[%s1 + $0x34] sm:$0xf]
  %v41 = vld [vmem:[%s1 + $0x38] sm:$0xf]
  %v42 = vld [vmem:[%s1 + $0x3c] sm:$0xf]
  %v43 = vld [vmem:[%s2] sm:$0x1]
  %v45 = vlaneseq
  %v46 = vshrl.u32 %v45, 7
  %v47 = vsub.s32 0, %v46
  %v48 = vrot.slane %v43, %v47
  %v62 = vunpack.c.l.b16 %v15
  %v63 = vunpack.c.l.b16 %v16
  %v64 = vunpack.c.l.b16 %v17
  %v65 = vunpack.c.l.b16 %v18
  %v66 = vunpack.c.l.b16 %v19
  %v67 = vunpack.c.l.b16 %v20
  %v68 = vunpack.c.l.b16 %v21
  %v69 = vunpack.c.l.b16 %v22
  %v70 = vunpack.c.l.b16 %v23
  %v71 = vunpack.c.l.b16 %v24
  %v72 = vunpack.c.l.b16 %v25
  %v73 = vunpack.c.l.b16 %v26
  %v74 = vpack.c.b16 %v63, %v62
  %v75 = vpack.c.b16 %v65, %v64
  %v76 = vpack.c.b16 %v67, %v66
  %v77 = vpack.c.b16 %v69, %v68
  %v78 = vpack.c.b16 %v71, %v70
  %v79 = vpack.c.b16 %v73, %v72
  %v102 = vunpack.c.l.b16 %v27
  %v103 = vunpack.c.l.b16 %v28
  %v104 = vunpack.c.l.b16 %v29
  %v105 = vunpack.c.l.b16 %v30
  %v106 = vunpack.c.l.b16 %v31
  %v107 = vunpack.c.l.b16 %v32
  %v108 = vunpack.c.l.b16 %v33
  %v109 = vunpack.c.l.b16 %v34
  %v110 = vunpack.c.l.b16 %v35
  %v111 = vunpack.c.l.b16 %v36
  %v112 = vunpack.c.l.b16 %v37
  %v113 = vunpack.c.l.b16 %v38
  %v114 = vunpack.c.l.b16 %v39
  %v115 = vunpack.c.l.b16 %v40
  %v116 = vunpack.c.l.b16 %v41
  %v117 = vunpack.c.l.b16 %v42
  %v118 = vpack.c.b16 %v103, %v102
  %v119 = vpack.c.b16 %v105, %v104
  %v120 = vpack.c.b16 %v107, %v106
  %v121 = vpack.c.b16 %v109, %v108
  %v122 = vpack.c.b16 %v111, %v110
  %v123 = vpack.c.b16 %v113, %v112
  %v124 = vpack.c.b16 %v115, %v114
  %v125 = vpack.c.b16 %v117, %v116
  %134 = vmatprep.subr.bf16.mxu0 0
  %135 = vmatpush1.bf16.msra.mxu0 %v125
  %136 = vmatprep.subr.bf16.mxu0 0
  %137 = vmatpush1.bf16.msra.mxu0 %v124
  %138 = vmatprep.subr.bf16.mxu0 0
  %139 = vmatpush1.bf16.msra.mxu0 %v123
  %140 = vmatprep.subr.bf16.mxu0 0
  %141 = vmatpush1.bf16.msra.mxu0 %v122
  %142 = vmatprep.subr.bf16.mxu0 0
  %143 = vmatpush1.bf16.msra.mxu0 %v121
  %144 = vmatprep.subr.bf16.mxu0 0
  %145 = vmatpush1.bf16.msra.mxu0 %v120
  %146 = vmatprep.subr.bf16.mxu0 0
  %147 = vmatpush1.bf16.msra.mxu0 %v119
  %148 = vmatprep.subr.bf16.mxu0 0
  %149 = vmatpush1.bf16.msra.mxu0 %v118
  %150 = vmatprep.subr.bf16.mxu0 0
  %151 = vmatpush2.bf16.msra.mxu0 0
  %152 = vmatprep.subr.bf16.mxu0 0
  %153 = vmatpush2.bf16.msra.mxu0 0
  %154 = vmatprep.subr.bf16.mxu0 0
  %155 = vmatpush2.bf16.msra.mxu0 0
  %156 = vmatprep.subr.bf16.mxu0 0
  %157 = vmatpush2.bf16.msra.mxu0 0
  %158 = vmatprep.subr.bf16.mxu0 0
  %159 = vmatpush2.bf16.msra.mxu0 0
  %160 = vmatprep.subr.bf16.mxu0 0
  %161 = vmatpush2.bf16.msra.mxu0 0
  %162 = vmatprep.subr.bf16.mxu0 0
  %163 = vmatpush2.bf16.msra.mxu0 0
  %164 = vmatprep.subr.bf16.mxu0 0
  %165 = vmatpush2.bf16.msra.mxu0 0
  %166 = vmatprep.mubr.bf16.mxu0 0
  %167 = vmatmul.mubr.bf16.gmra.mxu0 %v74
  %v168 = vpop.f32.mrf.mxu0
  %v169 = vadd.f32 %v48, %v168
  %v170 = vpop.f32.mrf.mxu0
  %v171 = vpop.f32.mrf.mxu0
  %v172 = vadd.f32 %v48, %v171
  %v173 = vpop.f32.mrf.mxu0
  %174 = vmatprep.mubr.bf16.mxu0 0
  %175 = vmatmul.mubr.bf16.gmra.mxu0 %v75
  %v176 = vpop.f32.mrf.mxu0
  %v177 = vadd.f32 %v48, %v176
  %v178 = vpop.f32.mrf.mxu0
  %v179 = vpop.f32.mrf.mxu0
  %v180 = vadd.f32 %v48, %v179
  %v181 = vpop.f32.mrf.mxu0
  %182 = vmatprep.mubr.bf16.mxu0 0
  %183 = vmatmul.mubr.bf16.gmra.mxu0 %v76
  %v184 = vpop.f32.mrf.mxu0
  %v185 = vadd.f32 %v48, %v184
  %v186 = vpop.f32.mrf.mxu0
  %v187 = vpop.f32.mrf.mxu0
  %v188 = vadd.f32 %v48, %v187
  %v189 = vpop.f32.mrf.mxu0
  %190 = vmatprep.mubr.bf16.mxu0 0
  %191 = vmatmul.mubr.bf16.gmra.mxu0 %v77
  %v192 = vpop.f32.mrf.mxu0
  %v193 = vadd.f32 %v48, %v192
  %v194 = vpop.f32.mrf.mxu0
  %v195 = vpop.f32.mrf.mxu0
  %v196 = vadd.f32 %v48, %v195
  %v197 = vpop.f32.mrf.mxu0
  %198 = vmatprep.mubr.bf16.mxu0 0
  %199 = vmatmul.mubr.bf16.gmra.mxu0 %v78
  %v200 = vpop.f32.mrf.mxu0
  %v201 = vadd.f32 %v48, %v200
  %v202 = vpop.f32.mrf.mxu0
  %v203 = vpop.f32.mrf.mxu0
  %v204 = vadd.f32 %v48, %v203
  %v205 = vpop.f32.mrf.mxu0
  %206 = vmatprep.mubr.bf16.mxu0 0
  %207 = vmatmul.mubr.bf16.gmra.mxu0 %v79
  %v208 = vpop.f32.mrf.mxu0
  %v209 = vadd.f32 %v48, %v208
  %v210 = vpop.f32.mrf.mxu0
  %v211 = vpop.f32.mrf.mxu0
  %v212 = vadd.f32 %v48, %v211
  %v213 = vpop.f32.mrf.mxu0
  %214 = vdwg.mxu0
  %v215 = vpack.c.bf16 %v172, %v169
  %v216 = vpack.c.bf16 %v180, %v177
  %v217 = vpack.c.bf16 %v188, %v185
  %v218 = vpack.c.bf16 %v196, %v193
  %v219 = vpack.c.bf16 %v204, %v201
  %v220 = vpack.c.bf16 %v212, %v209
  %v227 = vunpack.c.l.b16 %v215
  %v228 = vunpack.c.h.b16 %v215
  %v229 = vunpack.c.l.b16 %v216
  %v230 = vunpack.c.h.b16 %v216
  %v231 = vunpack.c.l.b16 %v217
  %v232 = vunpack.c.h.b16 %v217
  %v233 = vunpack.c.l.b16 %v218
  %v234 = vunpack.c.h.b16 %v218
  %v235 = vunpack.c.l.b16 %v219
  %v236 = vunpack.c.h.b16 %v219
  %v237 = vunpack.c.l.b16 %v220
  %v238 = vunpack.c.h.b16 %v220
  %v239 = vpack.c.b16 %v227, %v227
  %v240 = vpack.c.b16 %v228, %v228
  %v241 = vpack.c.b16 %v229, %v229
  %v242 = vpack.c.b16 %v230, %v230
  %v243 = vpack.c.b16 %v231, %v231
  %v244 = vpack.c.b16 %v232, %v232
  %v245 = vpack.c.b16 %v233, %v233
  %v246 = vpack.c.b16 %v234, %v234
  %v247 = vpack.c.b16 %v235, %v235
  %v248 = vpack.c.b16 %v236, %v236
  %v249 = vpack.c.b16 %v237, %v237
  %v250 = vpack.c.b16 %v238, %v238
  %vm263 = vcmask 519168
  %264 = vst.msk [vmem:[%s3] sm:$0xf] %vm263, %v239
  %265 = vst.msk [vmem:[%s3 + $0x4] sm:$0xf] %vm263, %v240
  %266 = vst.msk [vmem:[%s3 + $0x8] sm:$0xf] %vm263, %v241
  %267 = vst.msk [vmem:[%s3 + $0xc] sm:$0xf] %vm263, %v242
  %268 = vst.msk [vmem:[%s3 + $0x10] sm:$0xf] %vm263, %v243
  %269 = vst.msk [vmem:[%s3 + $0x14] sm:$0xf] %vm263, %v244
  %270 = vst.msk [vmem:[%s3 + $0x18] sm:$0xf] %vm263, %v245
  %271 = vst.msk [vmem:[%s3 + $0x1c] sm:$0xf] %vm263, %v246
  %272 = vst.msk [vmem:[%s3 + $0x20] sm:$0xf] %vm263, %v247
  %273 = vst.msk [vmem:[%s3 + $0x24] sm:$0xf] %vm263, %v248
  %274 = vst.msk [vmem:[%s3 + $0x28] sm:$0xf] %vm263, %v249
  %275 = vst.msk [vmem:[%s3 + $0x2c] sm:$0xf] %vm263, %v250
  // Predicated region
  $region14: #{_lambda_.10} parent=0 // pred_check
    _
  $region15: #{_lambda_.10} parent=0 // pred_check_branch
    %277 = sbr.rel (0) target = $region17
  $region16: #{_lambda_.10} parent=0 // pred_region
    _
  $region17: #{_lambda_.10} parent=0 // pred_fallthru
    _
  // Predicated region
  $region18: #{_lambda_.10} parent=0 // pred_check
    _
  $region19: #{_lambda_.10} parent=0 // pred_check_branch
    %279 = sbr.rel (0) target = $region21
  $region20: #{_lambda_.10} parent=0 // pred_region
    _
  $region21: #{_lambda_.10} parent=0 // pred_fallthru
    _

// kernel: _lambda_.8
$region0: #{_lambda_.8}
  #allocation0 [shape = 'u32[]', space=smem, size = 0x4, offset = 0x4, fixed_abs, tag = 'smem constant byte address 0x4 - core index']
  #allocation1 [shape = 'u32[144,128]{1,0:T(1,128)}', space=vmem, size = 0x12000, scoped, tag = 'internal scratch']
  %s0 = inlined_call_operand.vmem [shape: bf16[768,64], index: 0, kind: input, shape index: {}]
  %s1 = inlined_call_operand.vmem [shape: f32[768,8], index: 1, kind: input, shape index: {}]
  %s2 = inlined_call_operand.vmem [shape: bf16[96,64], index: 2, kind: input, shape index: {}]
  %s3 = inlined_call_operand.vmem [shape: f32[96,8], index: 3, kind: input, shape index: {}]
  %s4 = inlined_call_operand.vmem [shape: f32[96,1], index: 4, kind: input, shape index: {}]
  %s5 = inlined_call_operand.vmem [shape: bf16[64,128], index: 5, kind: input, shape index: {}]
  %s6 = inlined_call_operand.vmem [shape: bf16[64,128], index: 6, kind: input, shape index: {}]
  %s7 = inlined_call_operand.vmem [shape: f32[8,128], index: 7, kind: input, shape index: {}]
  %s8 = inlined_call_operand.vmem [shape: f32[8,128], index: 8, kind: input, shape index: {}]
  %s9 = inlined_call_operand.vmem [shape: f32[1,128], index: 9, kind: input, shape index: {}]
  %s10 = inlined_call_operand.vmem [shape: bf16[128,128], index: 10, kind: input, shape index: {}]
  %s11 = inlined_call_operand.vmem [shape: f32[1,128], index: 11, kind: input, shape index: {}]
  %s12 = inlined_call_operand.vmem [shape: bf16[128,128], index: 12, kind: input, shape index: {}]
  %s13 = inlined_call_operand.vmem [shape: f32[1,128], index: 13, kind: input, shape index: {}]
  %s14 = inlined_call_operand.vmem [shape: bf16[96,128], index: 14, kind: output, shape index: {}]
  %s15 = sld [smem:[#allocation0]]
  $region66: #{_lambda_.8} parent=0
    _
  %s17 = ssub.s32 1, %s15
  %s18 = scalar_select 0, %s17, %s15
  // Predicated region
  $region2: #{_lambda_.8} parent=0 // pred_check
    _
  $region3: #{_lambda_.8} parent=0 // pred_check_branch
    %20 = sbr.rel (0) target = $region5
  $region4: #{_lambda_.8} parent=0 // pred_region
    _
  $region5: #{_lambda_.8} parent=0 // pred_fallthru
    _
  // Predicated region
  $region6: #{_lambda_.8} parent=0 // pred_check
    _
  $region7: #{_lambda_.8} parent=0 // pred_check_branch
    %22 = sbr.rel (0) target = $region9
  $region8: #{_lambda_.8} parent=0 // pred_region
    _
  $region9: #{_lambda_.8} parent=0 // pred_fallthru
    _
  // Predicated region
  $region10: #{_lambda_.8} parent=0 // pred_check
    _
  $region11: #{_lambda_.8} parent=0 // pred_check_branch
    %24 = sbr.rel (0) target = $region13
  $region12: #{_lambda_.8} parent=0 // pred_region
    _
  $region13: #{_lambda_.8} parent=0 // pred_fallthru
    _
  // Predicated region
  $region14: #{_lambda_.8} parent=0 // pred_check
    _
  $region15: #{_lambda_.8} parent=0 // pred_check_branch
    %26 = sbr.rel (0) target = $region17
  $region16: #{_lambda_.8} parent=0 // pred_region
    _
  $region17: #{_lambda_.8} parent=0 // pred_fallthru
    _
  // Predicated region
  $region18: #{_lambda_.8} parent=0 // pred_check
    _
  $region19: #{_lambda_.8} parent=0 // pred_check_branch
    %28 = sbr.rel (0) target = $region21
  $region20: #{_lambda_.8} parent=0 // pred_region
    _
  $region21: #{_lambda_.8} parent=0 // pred_fallthru
    _
  // Predicated region
  $region22: #{_lambda_.8} parent=0 // pred_check
    _
  $region23: #{_lambda_.8} parent=0 // pred_check_branch
    %30 = sbr.rel (0) target = $region25
  $region24: #{_lambda_.8} parent=0 // pred_region
    _
  $region25: #{_lambda_.8} parent=0 // pred_fallthru
    _
  // Predicated region
  $region26: #{_lambda_.8} parent=0 // pred_check
    _
  $region27: #{_lambda_.8} parent=0 // pred_check_branch
    %32 = sbr.rel (0) target = $region29
  $region28: #{_lambda_.8} parent=0 // pred_region
    _
  $region29: #{_lambda_.8} parent=0 // pred_fallthru
    _
  // Predicated region
  $region30: #{_lambda_.8} parent=0 // pred_check
    _
  $region31: #{_lambda_.8} parent=0 // pred_check_branch
    %34 = sbr.rel (0) target = $region33
  $region32: #{_lambda_.8} parent=0 // pred_region
    _
  $region33: #{_lambda_.8} parent=0 // pred_fallthru
    _
  // Predicated region
  $region34: #{_lambda_.8} parent=0 // pred_check
    _
  $region35: #{_lambda_.8} parent=0 // pred_check_branch
    %36 = sbr.rel (0) target = $region37
  $region36: #{_lambda_.8} parent=0 // pred_region
    _
  $region37: #{_lambda_.8} parent=0 // pred_fallthru
    _
  // Predicated region
  $region38: #{_lambda_.8} parent=0 // pred_check
    _
  $region39: #{_lambda_.8} parent=0 // pred_check_branch
    %38 = sbr.rel (0) target = $region41
  $region40: #{_lambda_.8} parent=0 // pred_region
    _
  $region41: #{_lambda_.8} parent=0 // pred_fallthru
    _
  // Predicated region
  $region42: #{_lambda_.8} parent=0 // pred_check
    _
  $region43: #{_lambda_.8} parent=0 // pred_check_branch
    %40 = sbr.rel (0) target = $region45
  $region44: #{_lambda_.8} parent=0 // pred_region
    _
  $region45: #{_lambda_.8} parent=0 // pred_fallthru
    _
  // Predicated region
  $region46: #{_lambda_.8} parent=0 // pred_check
    _
  $region47: #{_lambda_.8} parent=0 // pred_check_branch
    %42 = sbr.rel (0) target = $region49
  $region48: #{_lambda_.8} parent=0 // pred_region
    _
  $region49: #{_lambda_.8} parent=0 // pred_fallthru
    _
  // Predicated region
  $region50: #{_lambda_.8} parent=0 // pred_check
    _
  $region51: #{_lambda_.8} parent=0 // pred_check_branch
    %44 = sbr.rel (0) target = $region53
  $region52: #{_lambda_.8} parent=0 // pred_region
    _
  $region53: #{_lambda_.8} parent=0 // pred_fallthru
    _
  // Predicated region
  $region54: #{_lambda_.8} parent=0 // pred_check
    _
  $region55: #{_lambda_.8} parent=0 // pred_check_branch
    %46 = sbr.rel (0) target = $region57
  $region56: #{_lambda_.8} parent=0 // pred_region
    _
  $region57: #{_lambda_.8} parent=0 // pred_fallthru
    _
  %v48 = vld [vmem:[%s0] sm:$0xf]
  %v49 = vld [vmem:[%s0 + $0x4] sm:$0xf]
  %v50 = vld [vmem:[%s0 + $0x8] sm:$0xf]
  %v51 = vld [vmem:[%s0 + $0xc] sm:$0xf]
  %v52 = vld [vmem:[%s0 + $0x10] sm:$0xf]
  %v53 = vld [vmem:[%s0 + $0x14] sm:$0xf]
  %v54 = vld [vmem:[%s0 + $0x18] sm:$0xf]
  %v55 = vld [vmem:[%s0 + $0x1c] sm:$0xf]
  %v56 = vld [vmem:[%s0 + $0x20] sm:$0xf]
  %v57 = vld [vmem:[%s0 + $0x24] sm:$0xf]
  %v58 = vld [vmem:[%s0 + $0x28] sm:$0xf]
  %v59 = vld [vmem:[%s0 + $0x2c] sm:$0xf]
  %v60 = vld [vmem:[%s0 + $0x30] sm:$0xf]
  %v61 = vld [vmem:[%s0 + $0x34] sm:$0xf]
  %v62 = vld [vmem:[%s0 + $0x38] sm:$0xf]
  %v63 = vld [vmem:[%s0 + $0x3c] sm:$0xf]
  %v64 = vld [vmem:[%s0 + $0x40] sm:$0xf]
  %v65 = vld [vmem:[%s0 + $0x44] sm:$0xf]
  %v66 = vld [vmem:[%s0 + $0x48] sm:$0xf]
  %v67 = vld [vmem:[%s0 + $0x4c] sm:$0xf]
  %v68 = vld [vmem:[%s0 + $0x50] sm:$0xf]
  %v69 = vld [vmem:[%s0 + $0x54] sm:$0xf]
  %v70 = vld [vmem:[%s0 + $0x58] sm:$0xf]
  %v71 = vld [vmem:[%s0 + $0x5c] sm:$0xf]
  %v72 = vld [vmem:[%s0 + $0x60] sm:$0xf]
  %v73 = vld [vmem:[%s0 + $0x64] sm:$0xf]
  %v74 = vld [vmem:[%s0 + $0x68] sm:$0xf]
  %v75 = vld [vmem:[%s0 + $0x6c] sm:$0xf]
  %v76 = vld [vmem:[%s0 + $0x70] sm:$0xf]
  %v77 = vld [vmem:[%s0 + $0x74] sm:$0xf]
  %v78 = vld [vmem:[%s0 + $0x78] sm:$0xf]
  %v79 = vld [vmem:[%s0 + $0x7c] sm:$0xf]
  %v80 = vld [vmem:[%s0 + $0x80] sm:$0xf]
  %v81 = vld [vmem:[%s0 + $0x84] sm:$0xf]
  %v82 = vld [vmem:[%s0 + $0x88] sm:$0xf]
  %v83 = vld [vmem:[%s0 + $0x8c] sm:$0xf]
  %v84 = vld [vmem:[%s0 + $0x90] sm:$0xf]
  %v85 = vld [vmem:[%s0 + $0x94] sm:$0xf]
  %v86 = vld [vmem:[%s0 + $0x98] sm:$0xf]
  %v87 = vld [vmem:[%s0 + $0x9c] sm:$0xf]
  %v88 = vld [vmem:[%s0 + $0xa0] sm:$0xf]
  %v89 = vld [vmem:[%s0 + $0xa4] sm:$0xf]
  %v90 = vld [vmem:[%s0 + $0xa8] sm:$0xf]
  %v91 = vld [vmem:[%s0 + $0xac] sm:$0xf]
  %v92 = vld [vmem:[%s0 + $0xb0] sm:$0xf]
  %v93 = vld [vmem:[%s0 + $0xb4] sm:$0xf]
  %v94 = vld [vmem:[%s0 + $0xb8] sm:$0xf]
  %v95 = vld [vmem:[%s0 + $0xbc] sm:$0xf]
  %v96 = vld [vmem:[%s0 + $0xc0] sm:$0xf]
  %v97 = vld [vmem:[%s0 + $0xc4] sm:$0xf]
  %v98 = vld [vmem:[%s0 + $0xc8] sm:$0xf]
  %v99 = vld [vmem:[%s0 + $0xcc] sm:$0xf]
  %v100 = vld [vmem:[%s0 + $0xd0] sm:$0xf]
  %v101 = vld [vmem:[%s0 + $0xd4] sm:$0xf]
  %v102 = vld [vmem:[%s0 + $0xd8] sm:$0xf]
  %v103 = vld [vmem:[%s0 + $0xdc] sm:$0xf]
  %v104 = vld [vmem:[%s0 + $0xe0] sm:$0xf]
  %v105 = vld [vmem:[%s0 + $0xe4] sm:$0xf]
  %v106 = vld [vmem:[%s0 + $0xe8] sm:$0xf]
  %v107 = vld [vmem:[%s0 + $0xec] sm:$0xf]
  %v108 = vld [vmem:[%s0 + $0xf0] sm:$0xf]
  %v109 = vld [vmem:[%s0 + $0xf4] sm:$0xf]
  %v110 = vld [vmem:[%s0 + $0xf8] sm:$0xf]
  %v111 = vld [vmem:[%s0 + $0xfc] sm:$0xf]
  %v112 = vld [vmem:[%s0 + $0x100] sm:$0xf]
  %v113 = vld [vmem:[%s0 + $0x104] sm:$0xf]
  %v114 = vld [vmem:[%s0 + $0x108] sm:$0xf]
  %v115 = vld [vmem:[%s0 + $0x10c] sm:$0xf]
  %v116 = vld [vmem:[%s0 + $0x110] sm:$0xf]
  %v117 = vld [vmem:[%s0 + $0x114] sm:$0xf]
  %v118 = vld [vmem:[%s0 + $0x118] sm:$0xf]
  %v119 = vld [vmem:[%s0 + $0x11c] sm:$0xf]
  %v120 = vld [vmem:[%s0 + $0x120] sm:$0xf]
  %v121 = vld [vmem:[%s0 + $0x124] sm:$0xf]
  %v122 = vld [vmem:[%s0 + $0x128] sm:$0xf]
  %v123 = vld [vmem:[%s0 + $0x12c] sm:$0xf]
  %v124 = vld [vmem:[%s0 + $0x130] sm:$0xf]
  %v125 = vld [vmem:[%s0 + $0x134] sm:$0xf]
  %v126 = vld [vmem:[%s0 + $0x138] sm:$0xf]
  %v127 = vld [vmem:[%s0 + $0x13c] sm:$0xf]
  %v128 = vld [vmem:[%s0 + $0x140] sm:$0xf]
  %v129 = vld [vmem:[%s0 + $0x144] sm:$0xf]
  %v130 = vld [vmem:[%s0 + $0x148] sm:$0xf]
  %v131 = vld [vmem:[%s0 + $0x14c] sm:$0xf]
  %v132 = vld [vmem:[%s0 + $0x150] sm:$0xf]
  %v133 = vld [vmem:[%s0 + $0x154] sm:$0xf]
  %v134 = vld [vmem:[%s0 + $0x158] sm:$0xf]
  %v135 = vld [vmem:[%s0 + $0x15c] sm:$0xf]
  %v136 = vld [vmem:[%s0 + $0x160] sm:$0xf]
  %v137 = vld [vmem:[%s0 + $0x164] sm:$0xf]
  %v138 = vld [vmem:[%s0 + $0x168] sm:$0xf]
  %v139 = vld [vmem:[%s0 + $0x16c] sm:$0xf]
  %v140 = vld [vmem:[%s0 + $0x170] sm:$0xf]
  %v141 = vld [vmem:[%s0 + $0x174] sm:$0xf]
  %v142 = vld [vmem:[%s0 + $0x178] sm:$0xf]
  %v143 = vld [vmem:[%s0 + $0x17c] sm:$0xf]
  %v144 = vld [vmem:[%s5] sm:$0xf]
  %v145 = vld [vmem:[%s5 + $0x4] sm:$0xf]
  %v146 = vld [vmem:[%s5 + $0x8] sm:$0xf]
  %v147 = vld [vmem:[%s5 + $0xc] sm:$0xf]
  %v148 = vld [vmem:[%s5 + $0x10] sm:$0xf]
  %v149 = vld [vmem:[%s5 + $0x14] sm:$0xf]
  %v150 = vld [vmem:[%s5 + $0x18] sm:$0xf]
  %v151 = vld [vmem:[%s5 + $0x1c] sm:$0xf]
  %v152 = vld [vmem:[%s1] sm:$0xff]
  %v153 = vld [vmem:[%s1 + $0x8] sm:$0xff]
  %v154 = vld [vmem:[%s1 + $0x10] sm:$0xff]
  %v155 = vld [vmem:[%s1 + $0x18] sm:$0xff]
  %v156 = vld [vmem:[%s1 + $0x20] sm:$0xff]
  %v157 = vld [vmem:[%s1 + $0x28] sm:$0xff]
  %v158 = vld [vmem:[%s1 + $0x30] sm:$0xff]
  %v159 = vld [vmem:[%s1 + $0x38] sm:$0xff]
  %v160 = vld [vmem:[%s1 + $0x40] sm:$0xff]
  %v161 = vld [vmem:[%s1 + $0x48] sm:$0xff]
  %v162 = vld [vmem:[%s1 + $0x50] sm:$0xff]
  %v163 = vld [vmem:[%s1 + $0x58] sm:$0xff]
  %v164 = vld [vmem:[%s1 + $0x60] sm:$0xff]
  %v165 = vld [vmem:[%s1 + $0x68] sm:$0xff]
  %v166 = vld [vmem:[%s1 + $0x70] sm:$0xff]
  %v167 = vld [vmem:[%s1 + $0x78] sm:$0xff]
  %v168 = vld [vmem:[%s1 + $0x80] sm:$0xff]
  %v169 = vld [vmem:[%s1 + $0x88] sm:$0xff]
  %v170 = vld [vmem:[%s1 + $0x90] sm:$0xff]
  %v171 = vld [vmem:[%s1 + $0x98] sm:$0xff]
  %v172 = vld [vmem:[%s1 + $0xa0] sm:$0xff]
  %v173 = vld [vmem:[%s1 + $0xa8] sm:$0xff]
  %v174 = vld [vmem:[%s1 + $0xb0] sm:$0xff]
  %v175 = vld [vmem:[%s1 + $0xb8] sm:$0xff]
  %v176 = vld [vmem:[%s1 + $0xc0] sm:$0xff]
  %v177 = vld [vmem:[%s1 + $0xc8] sm:$0xff]
  %v178 = vld [vmem:[%s1 + $0xd0] sm:$0xff]
  %v179 = vld [vmem:[%s1 + $0xd8] sm:$0xff]
  %v180 = vld [vmem:[%s1 + $0xe0] sm:$0xff]
  %v181 = vld [vmem:[%s1 + $0xe8] sm:$0xff]
  %v182 = vld [vmem:[%s1 + $0xf0] sm:$0xff]
  %v183 = vld [vmem:[%s1 + $0xf8] sm:$0xff]
  %v184 = vld [vmem:[%s1 + $0x100] sm:$0xff]
  %v185 = vld [vmem:[%s1 + $0x108] sm:$0xff]
  %v186 = vld [vmem:[%s1 + $0x110] sm:$0xff]
  %v187 = vld [vmem:[%s1 + $0x118] sm:$0xff]
  %v188 = vld [vmem:[%s1 + $0x120] sm:$0xff]
  %v189 = vld [vmem:[%s1 + $0x128] sm:$0xff]
  %v190 = vld [vmem:[%s1 + $0x130] sm:$0xff]
  %v191 = vld [vmem:[%s1 + $0x138] sm:$0xff]
  %v192 = vld [vmem:[%s1 + $0x140] sm:$0xff]
  %v193 = vld [vmem:[%s1 + $0x148] sm:$0xff]
  %v194 = vld [vmem:[%s1 + $0x150] sm:$0xff]
  %v195 = vld [vmem:[%s1 + $0x158] sm:$0xff]
  %v196 = vld [vmem:[%s1 + $0x160] sm:$0xff]
  %v197 = vld [vmem:[%s1 + $0x168] sm:$0xff]
  %v198 = vld [vmem:[%s1 + $0x170] sm:$0xff]
  %v199 = vld [vmem:[%s1 + $0x178] sm:$0xff]
  %v200 = vld [vmem:[%s1 + $0x180] sm:$0xff]
  %v201 = vld [vmem:[%s1 + $0x188] sm:$0xff]
  %v202 = vld [vmem:[%s1 + $0x190] sm:$0xff]
  %v203 = vld [vmem:[%s1 + $0x198] sm:$0xff]
  %v204 = vld [vmem:[%s1 + $0x1a0] sm:$0xff]
  %v205 = vld [vmem:[%s1 + $0x1a8] sm:$0xff]
  %v206 = vld [vmem:[%s1 + $0x1b0] sm:$0xff]
  %v207 = vld [vmem:[%s1 + $0x1b8] sm:$0xff]
  %v208 = vld [vmem:[%s1 + $0x1c0] sm:$0xff]
  %v209 = vld [vmem:[%s1 + $0x1c8] sm:$0xff]
  %v210 = vld [vmem:[%s1 + $0x1d0] sm:$0xff]
  %v211 = vld [vmem:[%s1 + $0x1d8] sm:$0xff]
  %v212 = vld [vmem:[%s1 + $0x1e0] sm:$0xff]
  %v213 = vld [vmem:[%s1 + $0x1e8] sm:$0xff]
  %v214 = vld [vmem:[%s1 + $0x1f0] sm:$0xff]
  %v215 = vld [vmem:[%s1 + $0x1f8] sm:$0xff]
  %v216 = vld [vmem:[%s1 + $0x200] sm:$0xff]
  %v217 = vld [vmem:[%s1 + $0x208] sm:$0xff]
  %v218 = vld [vmem:[%s1 + $0x210] sm:$0xff]
  %v219 = vld [vmem:[%s1 + $0x218] sm:$0xff]
  %v220 = vld [vmem:[%s1 + $0x220] sm:$0xff]
  %v221 = vld [vmem:[%s1 + $0x228] sm:$0xff]
  %v222 = vld [vmem:[%s1 + $0x230] sm:$0xff]
  %v223 = vld [vmem:[%s1 + $0x238] sm:$0xff]
  %v224 = vld [vmem:[%s1 + $0x240] sm:$0xff]
  %v225 = vld [vmem:[%s1 + $0x248] sm:$0xff]
  %v226 = vld [vmem:[%s1 + $0x250] sm:$0xff]
  %v227 = vld [vmem:[%s1 + $0x258] sm:$0xff]
  %v228 = vld [vmem:[%s1 + $0x260] sm:$0xff]
  %v229 = vld [vmem:[%s1 + $0x268] sm:$0xff]
  %v230 = vld [vmem:[%s1 + $0x270] sm:$0xff]
  %v231 = vld [vmem:[%s1 + $0x278] sm:$0xff]
  %v232 = vld [vmem:[%s1 + $0x280] sm:$0xff]
  %v233 = vld [vmem:[%s1 + $0x288] sm:$0xff]
  %v234 = vld [vmem:[%s1 + $0x290] sm:$0xff]
  %v235 = vld [vmem:[%s1 + $0x298] sm:$0xff]
  %v236 = vld [vmem:[%s1 + $0x2a0] sm:$0xff]
  %v237 = vld [vmem:[%s1 + $0x2a8] sm:$0xff]
  %v238 = vld [vmem:[%s1 + $0x2b0] sm:$0xff]
  %v239 = vld [vmem:[%s1 + $0x2b8] sm:$0xff]
  %v240 = vld [vmem:[%s1 + $0x2c0] sm:$0xff]
  %v241 = vld [vmem:[%s1 + $0x2c8] sm:$0xff]
  %v242 = vld [vmem:[%s1 + $0x2d0] sm:$0xff]
  %v243 = vld [vmem:[%s1 + $0x2d8] sm:$0xff]
  %v244 = vld [vmem:[%s1 + $0x2e0] sm:$0xff]
  %v245 = vld [vmem:[%s1 + $0x2e8] sm:$0xff]
  %v246 = vld [vmem:[%s1 + $0x2f0] sm:$0xff]
  %v247 = vld [vmem:[%s1 + $0x2f8] sm:$0xff]
  %v248 = vld [vmem:[%s7] sm:$0xff]
  %vm249 = vcmask 64512
  %v251 = vsel %vm249, %v152, 0
  %v254 = vsel %vm249, %v153, 0
  %v257 = vsel %vm249, %v154, 0
  %v260 = vsel %vm249, %v155, 0
  %v263 = vsel %vm249, %v156, 0
  %v266 = vsel %vm249, %v157, 0
  %v269 = vsel %vm249, %v158, 0
  %v272 = vsel %vm249, %v159, 0
  %v275 = vsel %vm249, %v160, 0
  %v278 = vsel %vm249, %v161, 0
  %v281 = vsel %vm249, %v162, 0
  %v284 = vsel %vm249, %v163, 0
  %v287 = vsel %vm249, %v164, 0
  %v290 = vsel %vm249, %v165, 0
  %v293 = vsel %vm249, %v166, 0
  %v296 = vsel %vm249, %v167, 0
  %v299 = vsel %vm249, %v168, 0
  %v302 = vsel %vm249, %v169, 0
  %v305 = vsel %vm249, %v170, 0
  %v308 = vsel %vm249, %v171, 0
  %v311 = vsel %vm249, %v172, 0
  %v314 = vsel %vm249, %v173, 0
  %v317 = vsel %vm249, %v174, 0
  %v320 = vsel %vm249, %v175, 0
  %v323 = vsel %vm249, %v176, 0
  %v326 = vsel %vm249, %v177, 0
  %v329 = vsel %vm249, %v178, 0
  %v332 = vsel %vm249, %v179, 0
  %v335 = vsel %vm249, %v180, 0
  %v338 = vsel %vm249, %v181, 0
  %v341 = vsel %vm249, %v182, 0
  %v344 = vsel %vm249, %v183, 0
  %v347 = vsel %vm249, %v184, 0
  %v350 = vsel %vm249, %v185, 0
  %v353 = vsel %vm249, %v186, 0
  %v356 = vsel %vm249, %v187, 0
  %v359 = vsel %vm249, %v188, 0
  %v362 = vsel %vm249, %v189, 0
  %v365 = vsel %vm249, %v190, 0
  %v368 = vsel %vm249, %v191, 0
  %v371 = vsel %vm249, %v192, 0
  %v374 = vsel %vm249, %v193, 0
  %v377 = vsel %vm249, %v194, 0
  %v380 = vsel %vm249, %v195, 0
  %v383 = vsel %vm249, %v196, 0
  %v386 = vsel %vm249, %v197, 0
  %v389 = vsel %vm249, %v198, 0
  %v392 = vsel %vm249, %v199, 0
  %v395 = vsel %vm249, %v200, 0
  %v398 = vsel %vm249, %v201, 0
  %v401 = vsel %vm249, %v202, 0
  %v404 = vsel %vm249, %v203, 0
  %v407 = vsel %vm249, %v204, 0
  %v410 = vsel %vm249, %v205, 0
  %v413 = vsel %vm249, %v206, 0
  %v416 = vsel %vm249, %v207, 0
  %v419 = vsel %vm249, %v208, 0
  %v422 = vsel %vm249, %v209, 0
  %v425 = vsel %vm249, %v210, 0
  %v428 = vsel %vm249, %v211, 0
  %v431 = vsel %vm249, %v212, 0
  %v434 = vsel %vm249, %v213, 0
  %v437 = vsel %vm249, %v214, 0
  %v440 = vsel %vm249, %v215, 0
  %v443 = vsel %vm249, %v216, 0
  %v446 = vsel %vm249, %v217, 0
  %v449 = vsel %vm249, %v218, 0
  %v452 = vsel %vm249, %v219, 0
  %v455 = vsel %vm249, %v220, 0
  %v458 = vsel %vm249, %v221, 0
  %v461 = vsel %vm249, %v222, 0
  %v464 = vsel %vm249, %v223, 0
  %v467 = vsel %vm249, %v224, 0
  %v470 = vsel %vm249, %v225, 0
  %v473 = vsel %vm249, %v226, 0
  %v476 = vsel %vm249, %v227, 0
  %v479 = vsel %vm249, %v228, 0
  %v482 = vsel %vm249, %v229, 0
  %v485 = vsel %vm249, %v230, 0
  %v488 = vsel %vm249, %v231, 0
  %v491 = vsel %vm249, %v232, 0
  %v494 = vsel %vm249, %v233, 0
  %v497 = vsel %vm249, %v234, 0
  %v500 = vsel %vm249, %v235, 0
  %v503 = vsel %vm249, %v236, 0
  %v506 = vsel %vm249, %v237, 0
  %v509 = vsel %vm249, %v238, 0
  %v512 = vsel %vm249, %v239, 0
  %v515 = vsel %vm249, %v240, 0
  %v518 = vsel %vm249, %v241, 0
  %v521 = vsel %vm249, %v242, 0
  %v524 = vsel %vm249, %v243, 0
  %v527 = vsel %vm249, %v244, 0
  %v530 = vsel %vm249, %v245, 0
  %v533 = vsel %vm249, %v246, 0
  %v536 = vsel %vm249, %v247, 0
  %538 = vmatprep.subr.mxu0 0.0
  %539 = vmatpush1.msra.mxu0 0.0
  %540 = vmatprep.subr.mxu0 0.0
  %541 = vmatpush1.msra.mxu0 0.0
  %542 = vmatprep.subr.mxu0 0.0
  %543 = vmatpush1.msra.mxu0 0.0
  %544 = vmatprep.subr.mxu0 0.0
  %545 = vmatpush1.msra.mxu0 0.0
  %546 = vmatprep.subr.mxu0 0.0
  %547 = vmatpush1.msra.mxu0 0.0
  %548 = vmatprep.subr.mxu0 0.0
  %549 = vmatpush1.msra.mxu0 0.0
  %550 = vmatprep.subr.mxu0 0.0
  %551 = vmatpush1.msra.mxu0 0.0
  %552 = vmatprep.subr.mxu0 0.0
  %553 = vmatpush1.msra.mxu0 0.0
  %554 = vmatprep.subr.mxu0 0.0
  %555 = vmatpush1.msra.mxu0 0.0
  %556 = vmatprep.subr.mxu0 0.0
  %557 = vmatpush1.msra.mxu0 0.0
  %558 = vmatprep.subr.mxu0 0.0
  %559 = vmatpush1.msra.mxu0 0.0
  %560 = vmatprep.subr.mxu0 0.0
  %561 = vmatpush1.msra.mxu0 0.0
  %562 = vmatprep.subr.mxu0 0.0
  %563 = vmatpush1.msra.mxu0 0.0
  %564 = vmatprep.subr.mxu0 0.0
  %565 = vmatpush1.msra.mxu0 0.0
  %566 = vmatprep.subr.mxu0 0.0
  %567 = vmatpush1.msra.mxu0 0.0
  %568 = vmatprep.subr.mxu0 0.0
  %569 = vmatpush1.msra.mxu0 %v248
  %570 = vmatprep.subr.mxu0 0.0
  %571 = vmatpush2.msra.mxu0 0.0
  %572 = vmatprep.subr.mxu0 0.0
  %573 = vmatpush2.msra.mxu0 0.0
  %574 = vmatprep.subr.mxu0 0.0
  %575 = vmatpush2.msra.mxu0 0.0
  %576 = vmatprep.subr.mxu0 0.0
  %577 = vmatpush2.msra.mxu0 0.0
  %578 = vmatprep.subr.mxu0 0.0
  %579 = vmatpush2.msra.mxu0 0.0
  %580 = vmatprep.subr.mxu0 0.0
  %581 = vmatpush2.msra.mxu0 0.0
  %582 = vmatprep.subr.mxu0 0.0
  %583 = vmatpush2.msra.mxu0 0.0
  %584 = vmatprep.subr.mxu0 0.0
  %585 = vmatpush2.msra.mxu0 0.0
  %586 = vmatprep.subr.mxu0 0.0
  %587 = vmatpush2.msra.mxu0 0.0
  %588 = vmatprep.subr.mxu0 0.0
  %589 = vmatpush2.msra.mxu0 0.0
  %590 = vmatprep.subr.mxu0 0.0
  %591 = vmatpush2.msra.mxu0 0.0
  %592 = vmatprep.subr.mxu0 0.0
  %593 = vmatpush2.msra.mxu0 0.0
  %594 = vmatprep.subr.mxu0 0.0
  %595 = vmatpush2.msra.mxu0 0.0
  %596 = vmatprep.subr.mxu0 0.0
  %597 = vmatpush2.msra.mxu0 0.0
  %598 = vmatprep.subr.mxu0 0.0
  %599 = vmatpush2.msra.mxu0 0.0
  %600 = vmatprep.subr.mxu0 0.0
  %601 = vmatpush2.msra.mxu0 0.0
  %602 = vmatprep.mubr.f32.mxu0 0.0
  %603 = vmatmul.mubr.f32.gmra.mxu0 %v251
  %v604 = vpop.f32.mrf.mxu0
  %v605 = vadd.f32 0.0, %v604
  %v606 = vpop.f32.mrf.mxu0
  %607 = vmatprep.mubr.f32.mxu0 0.0
  %608 = vmatmul.mubr.f32.gmra.mxu0 %v254
  %v609 = vpop.f32.mrf.mxu0
  %v610 = vadd.f32 0.0, %v609
  %v611 = vpop.f32.mrf.mxu0
  %612 = vmatprep.mubr.f32.mxu0 0.0
  %613 = vmatmul.mubr.f32.gmra.mxu0 %v257
  %v614 = vpop.f32.mrf.mxu0
  %v615 = vadd.f32 0.0, %v614
  %v616 = vpop.f32.mrf.mxu0
  %617 = vmatprep.mubr.f32.mxu0 0.0
  %618 = vmatmul.mubr.f32.gmra.mxu0 %v260
  %v619 = vpop.f32.mrf.mxu0
  %v620 = vadd.f32 0.0, %v619
  %v621 = vpop.f32.mrf.mxu0
  %622 = vmatprep.mubr.f32.mxu0 0.0
  %623 = vmatmul.mubr.f32.gmra.mxu0 %v263
  %v624 = vpop.f32.mrf.mxu0
  %v625 = vadd.f32 0.0, %v624
  %v626 = vpop.f32.mrf.mxu0
  %627 = vmatprep.mubr.f32.mxu0 0.0
  %628 = vmatmul.mubr.f32.gmra.mxu0 %v266
  %v629 = vpop.f32.mrf.mxu0
  %v630 = vadd.f32 0.0, %v629
  %v631 = vpop.f32.mrf.mxu0
  %632 = vmatprep.mubr.f32.mxu0 0.0
  %633 = vmatmul.mubr.f32.gmra.mxu0 %v269
  %v634 = vpop.f32.mrf.mxu0
  %v635 = vadd.f32 0.0, %v634
  %v636 = vpop.f32.mrf.mxu0
  %637 = vmatprep.mubr.f32.mxu0 0.0
  %638 = vmatmul.mubr.f32.gmra.mxu0 %v272
  %v639 = vpop.f32.mrf.mxu0
  %v640 = vadd.f32 0.0, %v639
  %v641 = vpop.f32.mrf.mxu0
  %642 = vmatprep.mubr.f32.mxu0 0.0
  %643 = vmatmul.mubr.f32.gmra.mxu0 %v275
  %v644 = vpop.f32.mrf.mxu0
  %v645 = vadd.f32 0.0, %v644
  %v646 = vpop.f32.mrf.mxu0
  %647 = vmatprep.mubr.f32.mxu0 0.0
  %648 = vmatmul.mubr.f32.gmra.mxu0 %v278
  %v649 = vpop.f32.mrf.mxu0
  %v650 = vadd.f32 0.0, %v649
  %v651 = vpop.f32.mrf.mxu0
  %652 = vmatprep.mubr.f32.mxu0 0.0
  %653 = vmatmul.mubr.f32.gmra.mxu0 %v281
  %v654 = vpop.f32.mrf.mxu0
  %v655 = vadd.f32 0.0, %v654
  %v656 = vpop.f32.mrf.mxu0
  %657 = vmatprep.mubr.f32.mxu0 0.0
  %658 = vmatmul.mubr.f32.gmra.mxu0 %v284
  %v659 = vpop.f32.mrf.mxu0
  %v660 = vadd.f32 0.0, %v659
  %v661 = vpop.f32.mrf.mxu0
  %662 = vmatprep.mubr.f32.mxu0 0.0
  %663 = vmatmul.mubr.f32.gmra.mxu0 %v287
  %v664 = vpop.f32.mrf.mxu0
  %v665 = vadd.f32 0.0, %v664
  %v666 = vpop.f32.mrf.mxu0
  %667 = vmatprep.mubr.f32.mxu0 0.0
  %668 = vmatmul.mubr.f32.gmra.mxu0 %v290
  %v669 = vpop.f32.mrf.mxu0
  %v670 = vadd.f32 0.0, %v669
  %v671 = vpop.f32.mrf.mxu0
  %672 = vmatprep.mubr.f32.mxu0 0.0
  %673 = vmatmul.mubr.f32.gmra.mxu0 %v293
  %v674 = vpop.f32.mrf.mxu0
  %v675 = vadd.f32 0.0, %v674
  %v676 = vpop.f32.mrf.mxu0
  %677 = vmatprep.mubr.f32.mxu0 0.0
  %678 = vmatmul.mubr.f32.gmra.mxu0 %v296
  %v679 = vpop.f32.mrf.mxu0
  %v680 = vadd.f32 0.0, %v679
  %v681 = vpop.f32.mrf.mxu0
  %682 = vmatprep.mubr.f32.mxu0 0.0
  %683 = vmatmul.mubr.f32.gmra.mxu0 %v299
  %v684 = vpop.f32.mrf.mxu0
  %v685 = vadd.f32 0.0, %v684
  %v686 = vpop.f32.mrf.mxu0
  %687 = vmatprep.mubr.f32.mxu0 0.0
  %688 = vmatmul.mubr.f32.gmra.mxu0 %v302
  %v689 = vpop.f32.mrf.mxu0
  %v690 = vadd.f32 0.0, %v689
  %v691 = vpop.f32.mrf.mxu0
  %692 = vmatprep.mubr.f32.mxu0 0.0
  %693 = vmatmul.mubr.f32.gmra.mxu0 %v305
  %v694 = vpop.f32.mrf.mxu0
  %v695 = vadd.f32 0.0, %v694
  %v696 = vpop.f32.mrf.mxu0
  %697 = vmatprep.mubr.f32.mxu0 0.0
  %698 = vmatmul.mubr.f32.gmra.mxu0 %v308
  %v699 = vpop.f32.mrf.mxu0
  %v700 = vadd.f32 0.0, %v699
  %v701 = vpop.f32.mrf.mxu0
  %702 = vmatprep.mubr.f32.mxu0 0.0
  %703 = vmatmul.mubr.f32.gmra.mxu0 %v311
  %v704 = vpop.f32.mrf.mxu0
  %v705 = vadd.f32 0.0, %v704
  %v706 = vpop.f32.mrf.mxu0
  %707 = vmatprep.mubr.f32.mxu0 0.0
  %708 = vmatmul.mubr.f32.gmra.mxu0 %v314
  %v709 = vpop.f32.mrf.mxu0
  %v710 = vadd.f32 0.0, %v709
  %v711 = vpop.f32.mrf.mxu0
  %712 = vmatprep.mubr.f32.mxu0 0.0
  %713 = vmatmul.mubr.f32.gmra.mxu0 %v317
  %v714 = vpop.f32.mrf.mxu0
  %v715 = vadd.f32 0.0, %v714
  %v716 = vpop.f32.mrf.mxu0
  %717 = vmatprep.mubr.f32.mxu0 0.0
  %718 = vmatmul.mubr.f32.gmra.mxu0 %v320
  %v719 = vpop.f32.mrf.mxu0
  %v720 = vadd.f32 0.0, %v719
  %v721 = vpop.f32.mrf.mxu0
  %722 = vmatprep.mubr.f32.mxu0 0.0
  %723 = vmatmul.mubr.f32.gmra.mxu0 %v323
  %v724 = vpop.f32.mrf.mxu0
  %v725 = vadd.f32 0.0, %v724
  %v726 = vpop.f32.mrf.mxu0
  %727 = vmatprep.mubr.f32.mxu0 0.0
  %728 = vmatmul.mubr.f32.gmra.mxu0 %v326
  %v729 = vpop.f32.mrf.mxu0
  %v730 = vadd.f32 0.0, %v729
  %v731 = vpop.f32.mrf.mxu0
  %732 = vmatprep.mubr.f32.mxu0 0.0
  %733 = vmatmul.mubr.f32.gmra.mxu0 %v329
  %v734 = vpop.f32.mrf.mxu0
  %v735 = vadd.f32 0.0, %v734
  %v736 = vpop.f32.mrf.mxu0
  %737 = vmatprep.mubr.f32.mxu0 0.0
  %738 = vmatmul.mubr.f32.gmra.mxu0 %v332
  %v739 = vpop.f32.mrf.mxu0
  %v740 = vadd.f32 0.0, %v739
  %v741 = vpop.f32.mrf.mxu0
  %742 = vmatprep.mubr.f32.mxu0 0.0
  %743 = vmatmul.mubr.f32.gmra.mxu0 %v335
  %v744 = vpop.f32.mrf.mxu0
  %v745 = vadd.f32 0.0, %v744
  %v746 = vpop.f32.mrf.mxu0
  %747 = vmatprep.mubr.f32.mxu0 0.0
  %748 = vmatmul.mubr.f32.gmra.mxu0 %v338
  %v749 = vpop.f32.mrf.mxu0
  %v750 = vadd.f32 0.0, %v749
  %v751 = vpop.f32.mrf.mxu0
  %752 = vmatprep.mubr.f32.mxu0 0.0
  %753 = vmatmul.mubr.f32.gmra.mxu0 %v341
  %v754 = vpop.f32.mrf.mxu0
  %v755 = vadd.f32 0.0, %v754
  %v756 = vpop.f32.mrf.mxu0
  %757 = vmatprep.mubr.f32.mxu0 0.0
  %758 = vmatmul.mubr.f32.gmra.mxu0 %v344
  %v759 = vpop.f32.mrf.mxu0
  %v760 = vadd.f32 0.0, %v759
  %v761 = vpop.f32.mrf.mxu0
  %762 = vmatprep.mubr.f32.mxu0 0.0
  %763 = vmatmul.mubr.f32.gmra.mxu0 %v347
  %v764 = vpop.f32.mrf.mxu0
  %v765 = vadd.f32 0.0, %v764
  %v766 = vpop.f32.mrf.mxu0
  %767 = vmatprep.mubr.f32.mxu0 0.0
  %768 = vmatmul.mubr.f32.gmra.mxu0 %v350
  %v769 = vpop.f32.mrf.mxu0
  %v770 = vadd.f32 0.0, %v769
  %v771 = vpop.f32.mrf.mxu0
  %772 = vmatprep.mubr.f32.mxu0 0.0
  %773 = vmatmul.mubr.f32.gmra.mxu0 %v353
  %v774 = vpop.f32.mrf.mxu0
  %v775 = vadd.f32 0.0, %v774
  %v776 = vpop.f32.mrf.mxu0
  %777 = vmatprep.mubr.f32.mxu0 0.0
  %778 = vmatmul.mubr.f32.gmra.mxu0 %v356
  %v779 = vpop.f32.mrf.mxu0
  %v780 = vadd.f32 0.0, %v779
  %v781 = vpop.f32.mrf.mxu0
  %782 = vmatprep.mubr.f32.mxu0 0.0
  %783 = vmatmul.mubr.f32.gmra.mxu0 %v359
  %v784 = vpop.f32.mrf.mxu0
  %v785 = vadd.f32 0.0, %v784
  %v786 = vpop.f32.mrf.mxu0
  %787 = vmatprep.mubr.f32.mxu0 0.0
  %788 = vmatmul.mubr.f32.gmra.mxu0 %v362
  %v789 = vpop.f32.mrf.mxu0
  %v790 = vadd.f32 0.0, %v789
  %v791 = vpop.f32.mrf.mxu0
  %792 = vmatprep.mubr.f32.mxu0 0.0
  %793 = vmatmul.mubr.f32.gmra.mxu0 %v365
  %v794 = vpop.f32.mrf.mxu0
  %v795 = vadd.f32 0.0, %v794
  %v796 = vpop.f32.mrf.mxu0
  %797 = vmatprep.mubr.f32.mxu0 0.0
  %798 = vmatmul.mubr.f32.gmra.mxu0 %v368
  %v799 = vpop.f32.mrf.mxu0
  %v800 = vadd.f32 0.0, %v799
  %v801 = vpop.f32.mrf.mxu0
  %802 = vmatprep.mubr.f32.mxu0 0.0
  %803 = vmatmul.mubr.f32.gmra.mxu0 %v371
  %v804 = vpop.f32.mrf.mxu0
  %v805 = vadd.f32 0.0, %v804
  %v806 = vpop.f32.mrf.mxu0
  %807 = vmatprep.mubr.f32.mxu0 0.0
  %808 = vmatmul.mubr.f32.gmra.mxu0 %v374
  %v809 = vpop.f32.mrf.mxu0
  %v810 = vadd.f32 0.0, %v809
  %v811 = vpop.f32.mrf.mxu0
  %812 = vmatprep.mubr.f32.mxu0 0.0
  %813 = vmatmul.mubr.f32.gmra.mxu0 %v377
  %v814 = vpop.f32.mrf.mxu0
  %v815 = vadd.f32 0.0, %v814
  %v816 = vpop.f32.mrf.mxu0
  %817 = vmatprep.mubr.f32.mxu0 0.0
  %818 = vmatmul.mubr.f32.gmra.mxu0 %v380
  %v819 = vpop.f32.mrf.mxu0
  %v820 = vadd.f32 0.0, %v819
  %v821 = vpop.f32.mrf.mxu0
  %822 = vmatprep.mubr.f32.mxu0 0.0
  %823 = vmatmul.mubr.f32.gmra.mxu0 %v383
  %v824 = vpop.f32.mrf.mxu0
  %v825 = vadd.f32 0.0, %v824
  %v826 = vpop.f32.mrf.mxu0
  %827 = vmatprep.mubr.f32.mxu0 0.0
  %828 = vmatmul.mubr.f32.gmra.mxu0 %v386
  %v829 = vpop.f32.mrf.mxu0
  %v830 = vadd.f32 0.0, %v829
  %v831 = vpop.f32.mrf.mxu0
  %832 = vmatprep.mubr.f32.mxu0 0.0
  %833 = vmatmul.mubr.f32.gmra.mxu0 %v389
  %v834 = vpop.f32.mrf.mxu0
  %v835 = vadd.f32 0.0, %v834
  %v836 = vpop.f32.mrf.mxu0
  %837 = vmatprep.mubr.f32.mxu0 0.0
  %838 = vmatmul.mubr.f32.gmra.mxu0 %v392
  %v839 = vpop.f32.mrf.mxu0
  %v840 = vadd.f32 0.0, %v839
  %v841 = vpop.f32.mrf.mxu0
  %842 = vmatprep.mubr.f32.mxu0 0.0
  %843 = vmatmul.mubr.f32.gmra.mxu0 %v395
  %v844 = vpop.f32.mrf.mxu0
  %v845 = vadd.f32 0.0, %v844
  %v846 = vpop.f32.mrf.mxu0
  %847 = vmatprep.mubr.f32.mxu0 0.0
  %848 = vmatmul.mubr.f32.gmra.mxu0 %v398
  %v849 = vpop.f32.mrf.mxu0
  %v850 = vadd.f32 0.0, %v849
  %v851 = vpop.f32.mrf.mxu0
  %852 = vmatprep.mubr.f32.mxu0 0.0
  %853 = vmatmul.mubr.f32.gmra.mxu0 %v401
  %v854 = vpop.f32.mrf.mxu0
  %v855 = vadd.f32 0.0, %v854
  %v856 = vpop.f32.mrf.mxu0
  %857 = vmatprep.mubr.f32.mxu0 0.0
  %858 = vmatmul.mubr.f32.gmra.mxu0 %v404
  %v859 = vpop.f32.mrf.mxu0
  %v860 = vadd.f32 0.0, %v859
  %v861 = vpop.f32.mrf.mxu0
  %862 = vmatprep.mubr.f32.mxu0 0.0
  %863 = vmatmul.mubr.f32.gmra.mxu0 %v407
  %v864 = vpop.f32.mrf.mxu0
  %v865 = vadd.f32 0.0, %v864
  %v866 = vpop.f32.mrf.mxu0
  %867 = vmatprep.mubr.f32.mxu0 0.0
  %868 = vmatmul.mubr.f32.gmra.mxu0 %v410
  %v869 = vpop.f32.mrf.mxu0
  %v870 = vadd.f32 0.0, %v869
  %v871 = vpop.f32.mrf.mxu0
  %872 = vmatprep.mubr.f32.mxu0 0.0
  %873 = vmatmul.mubr.f32.gmra.mxu0 %v413
  %v874 = vpop.f32.mrf.mxu0
  %v875 = vadd.f32 0.0, %v874
  %v876 = vpop.f32.mrf.mxu0
  %877 = vmatprep.mubr.f32.mxu0 0.0
  %878 = vmatmul.mubr.f32.gmra.mxu0 %v416
  %v879 = vpop.f32.mrf.mxu0
  %v880 = vadd.f32 0.0, %v879
  %v881 = vpop.f32.mrf.mxu0
  %882 = vmatprep.mubr.f32.mxu0 0.0
  %883 = vmatmul.mubr.f32.gmra.mxu0 %v419
  %v884 = vpop.f32.mrf.mxu0
  %v885 = vadd.f32 0.0, %v884
  %v886 = vpop.f32.mrf.mxu0
  %887 = vmatprep.mubr.f32.mxu0 0.0
  %888 = vmatmul.mubr.f32.gmra.mxu0 %v422
  %v889 = vpop.f32.mrf.mxu0
  %v890 = vadd.f32 0.0, %v889
  %v891 = vpop.f32.mrf.mxu0
  %892 = vmatprep.mubr.f32.mxu0 0.0
  %893 = vmatmul.mubr.f32.gmra.mxu0 %v425
  %v894 = vpop.f32.mrf.mxu0
  %v895 = vadd.f32 0.0, %v894
  %v896 = vpop.f32.mrf.mxu0
  %897 = vmatprep.mubr.f32.mxu0 0.0
  %898 = vmatmul.mubr.f32.gmra.mxu0 %v428
  %v899 = vpop.f32.mrf.mxu0
  %v900 = vadd.f32 0.0, %v899
  %v901 = vpop.f32.mrf.mxu0
  %902 = vmatprep.mubr.f32.mxu0 0.0
  %903 = vmatmul.mubr.f32.gmra.mxu0 %v431
  %v904 = vpop.f32.mrf.mxu0
  %v905 = vadd.f32 0.0, %v904
  %v906 = vpop.f32.mrf.mxu0
  %907 = vmatprep.mubr.f32.mxu0 0.0
  %908 = vmatmul.mubr.f32.gmra.mxu0 %v434
  %v909 = vpop.f32.mrf.mxu0
  %v910 = vadd.f32 0.0, %v909
  %v911 = vpop.f32.mrf.mxu0
  %912 = vmatprep.mubr.f32.mxu0 0.0
  %913 = vmatmul.mubr.f32.gmra.mxu0 %v437
  %v914 = vpop.f32.mrf.mxu0
  %v915 = vadd.f32 0.0, %v914
  %v916 = vpop.f32.mrf.mxu0
  %917 = vmatprep.mubr.f32.mxu0 0.0
  %918 = vmatmul.mubr.f32.gmra.mxu0 %v440
  %v919 = vpop.f32.mrf.mxu0
  %v920 = vadd.f32 0.0, %v919
  %v921 = vpop.f32.mrf.mxu0
  %922 = vmatprep.mubr.f32.mxu0 0.0
  %923 = vmatmul.mubr.f32.gmra.mxu0 %v443
  %v924 = vpop.f32.mrf.mxu0
  %v925 = vadd.f32 0.0, %v924
  %v926 = vpop.f32.mrf.mxu0
  %927 = vmatprep.mubr.f32.mxu0 0.0
  %928 = vmatmul.mubr.f32.gmra.mxu0 %v446
  %v929 = vpop.f32.mrf.mxu0
  %v930 = vadd.f32 0.0, %v929
  %v931 = vpop.f32.mrf.mxu0
  %932 = vmatprep.mubr.f32.mxu0 0.0
  %933 = vmatmul.mubr.f32.gmra.mxu0 %v449
  %v934 = vpop.f32.mrf.mxu0
  %v935 = vadd.f32 0.0, %v934
  %v936 = vpop.f32.mrf.mxu0
  %937 = vmatprep.mubr.f32.mxu0 0.0
  %938 = vmatmul.mubr.f32.gmra.mxu0 %v452
  %v939 = vpop.f32.mrf.mxu0
  %v940 = vadd.f32 0.0, %v939
  %v941 = vpop.f32.mrf.mxu0
  %942 = vmatprep.mubr.f32.mxu0 0.0
  %943 = vmatmul.mubr.f32.gmra.mxu0 %v455
  %v944 = vpop.f32.mrf.mxu0
  %v945 = vadd.f32 0.0, %v944
  %v946 = vpop.f32.mrf.mxu0
  %947 = vmatprep.mubr.f32.mxu0 0.0
  %948 = vmatmul.mubr.f32.gmra.mxu0 %v458
  %v949 = vpop.f32.mrf.mxu0
  %v950 = vadd.f32 0.0, %v949
  %v951 = vpop.f32.mrf.mxu0
  %952 = vmatprep.mubr.f32.mxu0 0.0
  %953 = vmatmul.mubr.f32.gmra.mxu0 %v461
  %v954 = vpop.f32.mrf.mxu0
  %v955 = vadd.f32 0.0, %v954
  %v956 = vpop.f32.mrf.mxu0
  %957 = vmatprep.mubr.f32.mxu0 0.0
  %958 = vmatmul.mubr.f32.gmra.mxu0 %v464
  %v959 = vpop.f32.mrf.mxu0
  %v960 = vadd.f32 0.0, %v959
  %v961 = vpop.f32.mrf.mxu0
  %962 = vmatprep.mubr.f32.mxu0 0.0
  %963 = vmatmul.mubr.f32.gmra.mxu0 %v467
  %v964 = vpop.f32.mrf.mxu0
  %v965 = vadd.f32 0.0, %v964
  %v966 = vpop.f32.mrf.mxu0
  %967 = vmatprep.mubr.f32.mxu0 0.0
  %968 = vmatmul.mubr.f32.gmra.mxu0 %v470
  %v969 = vpop.f32.mrf.mxu0
  %v970 = vadd.f32 0.0, %v969
  %v971 = vpop.f32.mrf.mxu0
  %972 = vmatprep.mubr.f32.mxu0 0.0
  %973 = vmatmul.mubr.f32.gmra.mxu0 %v473
  %v974 = vpop.f32.mrf.mxu0
  %v975 = vadd.f32 0.0, %v974
  %v976 = vpop.f32.mrf.mxu0
  %977 = vmatprep.mubr.f32.mxu0 0.0
  %978 = vmatmul.mubr.f32.gmra.mxu0 %v476
  %v979 = vpop.f32.mrf.mxu0
  %v980 = vadd.f32 0.0, %v979
  %v981 = vpop.f32.mrf.mxu0
  %982 = vmatprep.mubr.f32.mxu0 0.0
  %983 = vmatmul.mubr.f32.gmra.mxu0 %v479
  %v984 = vpop.f32.mrf.mxu0
  %v985 = vadd.f32 0.0, %v984
  %v986 = vpop.f32.mrf.mxu0
  %987 = vmatprep.mubr.f32.mxu0 0.0
  %988 = vmatmul.mubr.f32.gmra.mxu0 %v482
  %v989 = vpop.f32.mrf.mxu0
  %v990 = vadd.f32 0.0, %v989
  %v991 = vpop.f32.mrf.mxu0
  %992 = vmatprep.mubr.f32.mxu0 0.0
  %993 = vmatmul.mubr.f32.gmra.mxu0 %v485
  %v994 = vpop.f32.mrf.mxu0
  %v995 = vadd.f32 0.0, %v994
  %v996 = vpop.f32.mrf.mxu0
  %997 = vmatprep.mubr.f32.mxu0 0.0
  %998 = vmatmul.mubr.f32.gmra.mxu0 %v488
  %v999 = vpop.f32.mrf.mxu0
  %v1000 = vadd.f32 0.0, %v999
  %v1001 = vpop.f32.mrf.mxu0
  %1002 = vmatprep.mubr.f32.mxu0 0.0
  %1003 = vmatmul.mubr.f32.gmra.mxu0 %v491
  %v1004 = vpop.f32.mrf.mxu0
  %v1005 = vadd.f32 0.0, %v1004
  %v1006 = vpop.f32.mrf.mxu0
  %1007 = vmatprep.mubr.f32.mxu0 0.0
  %1008 = vmatmul.mubr.f32.gmra.mxu0 %v494
  %v1009 = vpop.f32.mrf.mxu0
  %v1010 = vadd.f32 0.0, %v1009
  %v1011 = vpop.f32.mrf.mxu0
  %1012 = vmatprep.mubr.f32.mxu0 0.0
  %1013 = vmatmul.mubr.f32.gmra.mxu0 %v497
  %v1014 = vpop.f32.mrf.mxu0
  %v1015 = vadd.f32 0.0, %v1014
  %v1016 = vpop.f32.mrf.mxu0
  %1017 = vmatprep.mubr.f32.mxu0 0.0
  %1018 = vmatmul.mubr.f32.gmra.mxu0 %v500
  %v1019 = vpop.f32.mrf.mxu0
  %v1020 = vadd.f32 0.0, %v1019
  %v1021 = vpop.f32.mrf.mxu0
  %1022 = vmatprep.mubr.f32.mxu0 0.0
  %1023 = vmatmul.mubr.f32.gmra.mxu0 %v503
  %v1024 = vpop.f32.mrf.mxu0
  %v1025 = vadd.f32 0.0, %v1024
  %v1026 = vpop.f32.mrf.mxu0
  %1027 = vmatprep.mubr.f32.mxu0 0.0
  %1028 = vmatmul.mubr.f32.gmra.mxu0 %v506
  %v1029 = vpop.f32.mrf.mxu0
  %v1030 = vadd.f32 0.0, %v1029
  %v1031 = vpop.f32.mrf.mxu0
  %1032 = vmatprep.mubr.f32.mxu0 0.0
  %1033 = vmatmul.mubr.f32.gmra.mxu0 %v509
  %v1034 = vpop.f32.mrf.mxu0
  %v1035 = vadd.f32 0.0, %v1034
  %v1036 = vpop.f32.mrf.mxu0
  %1037 = vmatprep.mubr.f32.mxu0 0.0
  %1038 = vmatmul.mubr.f32.gmra.mxu0 %v512
  %v1039 = vpop.f32.mrf.mxu0
  %v1040 = vadd.f32 0.0, %v1039
  %v1041 = vpop.f32.mrf.mxu0
  %1042 = vmatprep.mubr.f32.mxu0 0.0
  %1043 = vmatmul.mubr.f32.gmra.mxu0 %v515
  %v1044 = vpop.f32.mrf.mxu0
  %v1045 = vadd.f32 0.0, %v1044
  %v1046 = vpop.f32.mrf.mxu0
  %1047 = vmatprep.mubr.f32.mxu0 0.0
  %1048 = vmatmul.mubr.f32.gmra.mxu0 %v518
  %v1049 = vpop.f32.mrf.mxu0
  %v1050 = vadd.f32 0.0, %v1049
  %v1051 = vpop.f32.mrf.mxu0
  %1052 = vmatprep.mubr.f32.mxu0 0.0
  %1053 = vmatmul.mubr.f32.gmra.mxu0 %v521
  %v1054 = vpop.f32.mrf.mxu0
  %v1055 = vadd.f32 0.0, %v1054
  %v1056 = vpop.f32.mrf.mxu0
  %1057 = vmatprep.mubr.f32.mxu0 0.0
  %1058 = vmatmul.mubr.f32.gmra.mxu0 %v524
  %v1059 = vpop.f32.mrf.mxu0
  %v1060 = vadd.f32 0.0, %v1059
  %v1061 = vpop.f32.mrf.mxu0
  %1062 = vmatprep.mubr.f32.mxu0 0.0
  %1063 = vmatmul.mubr.f32.gmra.mxu0 %v527
  %v1064 = vpop.f32.mrf.mxu0
  %v1065 = vadd.f32 0.0, %v1064
  %v1066 = vpop.f32.mrf.mxu0
  %1067 = vmatprep.mubr.f32.mxu0 0.0
  %1068 = vmatmul.mubr.f32.gmra.mxu0 %v530
  %v1069 = vpop.f32.mrf.mxu0
  %v1070 = vadd.f32 0.0, %v1069
  %v1071 = vpop.f32.mrf.mxu0
  %1072 = vmatprep.mubr.f32.mxu0 0.0
  %1073 = vmatmul.mubr.f32.gmra.mxu0 %v533
  %v1074 = vpop.f32.mrf.mxu0
  %v1075 = vadd.f32 0.0, %v1074
  %v1076 = vpop.f32.mrf.mxu0
  %1077 = vmatprep.mubr.f32.mxu0 0.0
  %1078 = vmatmul.mubr.f32.gmra.mxu0 %v536
  %v1079 = vpop.f32.mrf.mxu0
  %v1080 = vadd.f32 0.0, %v1079
  %v1081 = vpop.f32.mrf.mxu0
  %1082 = vdwg.mxu0
  %v1179 = vunpack.c.l.b16 %v48
  %v1180 = vunpack.c.l.b16 %v49
  %v1181 = vunpack.c.l.b16 %v50
  %v1182 = vunpack.c.l.b16 %v51
  %v1183 = vunpack.c.l.b16 %v52
  %v1184 = vunpack.c.l.b16 %v53
  %v1185 = vunpack.c.l.b16 %v54
  %v1186 = vunpack.c.l.b16 %v55
  %v1187 = vunpack.c.l.b16 %v56
  %v1188 = vunpack.c.l.b16 %v57
  %v1189 = vunpack.c.l.b16 %v58
  %v1190 = vunpack.c.l.b16 %v59
  %v1191 = vunpack.c.l.b16 %v60
  %v1192 = vunpack.c.l.b16 %v61
  %v1193 = vunpack.c.l.b16 %v62
  %v1194 = vunpack.c.l.b16 %v63
  %v1195 = vunpack.c.l.b16 %v64
  %v1196 = vunpack.c.l.b16 %v65
  %v1197 = vunpack.c.l.b16 %v66
  %v1198 = vunpack.c.l.b16 %v67
  %v1199 = vunpack.c.l.b16 %v68
  %v1200 = vunpack.c.l.b16 %v69
  %v1201 = vunpack.c.l.b16 %v70
  %v1202 = vunpack.c.l.b16 %v71
  %v1203 = vunpack.c.l.b16 %v72
  %v1204 = vunpack.c.l.b16 %v73
  %v1205 = vunpack.c.l.b16 %v74
  %v1206 = vunpack.c.l.b16 %v75
  %v1207 = vunpack.c.l.b16 %v76
  %v1208 = vunpack.c.l.b16 %v77
  %v1209 = vunpack.c.l.b16 %v78
  %v1210 = vunpack.c.l.b16 %v79
  %v1211 = vunpack.c.l.b16 %v80
  %v1212 = vunpack.c.l.b16 %v81
  %v1213 = vunpack.c.l.b16 %v82
  %v1214 = vunpack.c.l.b16 %v83
  %v1215 = vunpack.c.l.b16 %v84
  %v1216 = vunpack.c.l.b16 %v85
  %v1217 = vunpack.c.l.b16 %v86
  %v1218 = vunpack.c.l.b16 %v87
  %v1219 = vunpack.c.l.b16 %v88
  %v1220 = vunpack.c.l.b16 %v89
  %v1221 = vunpack.c.l.b16 %v90
  %v1222 = vunpack.c.l.b16 %v91
  %v1223 = vunpack.c.l.b16 %v92
  %v1224 = vunpack.c.l.b16 %v93
  %v1225 = vunpack.c.l.b16 %v94
  %v1226 = vunpack.c.l.b16 %v95
  %v1227 = vunpack.c.l.b16 %v96
  %v1228 = vunpack.c.l.b16 %v97
  %v1229 = vunpack.c.l.b16 %v98
  %v1230 = vunpack.c.l.b16 %v99
  %v1231 = vunpack.c.l.b16 %v100
  %v1232 = vunpack.c.l.b16 %v101
  %v1233 = vunpack.c.l.b16 %v102
  %v1234 = vunpack.c.l.b16 %v103
  %v1235 = vunpack.c.l.b16 %v104
  %v1236 = vunpack.c.l.b16 %v105
  %v1237 = vunpack.c.l.b16 %v106
  %v1238 = vunpack.c.l.b16 %v107
  %v1239 = vunpack.c.l.b16 %v108
  %v1240 = vunpack.c.l.b16 %v109
  %v1241 = vunpack.c.l.b16 %v110
  %v1242 = vunpack.c.l.b16 %v111
  %v1243 = vunpack.c.l.b16 %v112
  %v1244 = vunpack.c.l.b16 %v113
  %v1245 = vunpack.c.l.b16 %v114
  %v1246 = vunpack.c.l.b16 %v115
  %v1247 = vunpack.c.l.b16 %v116
  %v1248 = vunpack.c.l.b16 %v117
  %v1249 = vunpack.c.l.b16 %v118
  %v1250 = vunpack.c.l.b16 %v119
  %v1251 = vunpack.c.l.b16 %v120
  %v1252 = vunpack.c.l.b16 %v121
  %v1253 = vunpack.c.l.b16 %v122
  %v1254 = vunpack.c.l.b16 %v123
  %v1255 = vunpack.c.l.b16 %v124
  %v1256 = vunpack.c.l.b16 %v125
  %v1257 = vunpack.c.l.b16 %v126
  %v1258 = vunpack.c.l.b16 %v127
  %v1259 = vunpack.c.l.b16 %v128
  %v1260 = vunpack.c.l.b16 %v129
  %v1261 = vunpack.c.l.b16 %v130
  %v1262 = vunpack.c.l.b16 %v131
  %v1263 = vunpack.c.l.b16 %v132
  %v1264 = vunpack.c.l.b16 %v133
  %v1265 = vunpack.c.l.b16 %v134
  %v1266 = vunpack.c.l.b16 %v135
  %v1267 = vunpack.c.l.b16 %v136
  %v1268 = vunpack.c.l.b16 %v137
  %v1269 = vunpack.c.l.b16 %v138
  %v1270 = vunpack.c.l.b16 %v139
  %v1271 = vunpack.c.l.b16 %v140
  %v1272 = vunpack.c.l.b16 %v141
  %v1273 = vunpack.c.l.b16 %v142
  %v1274 = vunpack.c.l.b16 %v143
  %v1275 = vpack.c.b16 %v1180, %v1179
  %v1276 = vpack.c.b16 %v1182, %v1181
  %v1277 = vpack.c.b16 %v1184, %v1183
  %v1278 = vpack.c.b16 %v1186, %v1185
  %v1279 = vpack.c.b16 %v1188, %v1187
  %v1280 = vpack.c.b16 %v1190, %v1189
  %v1281 = vpack.c.b16 %v1192, %v1191
  %v1282 = vpack.c.b16 %v1194, %v1193
  %v1283 = vpack.c.b16 %v1196, %v1195
  %v1284 = vpack.c.b16 %v1198, %v1197
  %v1285 = vpack.c.b16 %v1200, %v1199
  %v1286 = vpack.c.b16 %v1202, %v1201
  %v1287 = vpack.c.b16 %v1204, %v1203
  %v1288 = vpack.c.b16 %v1206, %v1205
  %v1289 = vpack.c.b16 %v1208, %v1207
  %v1290 = vpack.c.b16 %v1210, %v1209
  %v1291 = vpack.c.b16 %v1212, %v1211
  %v1292 = vpack.c.b16 %v1214, %v1213
  %v1293 = vpack.c.b16 %v1216, %v1215
  %v1294 = vpack.c.b16 %v1218, %v1217
  %v1295 = vpack.c.b16 %v1220, %v1219
  %v1296 = vpack.c.b16 %v1222, %v1221
  %v1297 = vpack.c.b16 %v1224, %v1223
  %v1298 = vpack.c.b16 %v1226, %v1225
  %v1299 = vpack.c.b16 %v1228, %v1227
  %v1300 = vpack.c.b16 %v1230, %v1229
  %v1301 = vpack.c.b16 %v1232, %v1231
  %v1302 = vpack.c.b16 %v1234, %v1233
  %v1303 = vpack.c.b16 %v1236, %v1235
  %v1304 = vpack.c.b16 %v1238, %v1237
  %v1305 = vpack.c.b16 %v1240, %v1239
  %v1306 = vpack.c.b16 %v1242, %v1241
  %v1307 = vpack.c.b16 %v1244, %v1243
  %v1308 = vpack.c.b16 %v1246, %v1245
  %v1309 = vpack.c.b16 %v1248, %v1247
  %v1310 = vpack.c.b16 %v1250, %v1249
  %v1311 = vpack.c.b16 %v1252, %v1251
  %v1312 = vpack.c.b16 %v1254, %v1253
  %v1313 = vpack.c.b16 %v1256, %v1255
  %v1314 = vpack.c.b16 %v1258, %v1257
  %v1315 = vpack.c.b16 %v1260, %v1259
  %v1316 = vpack.c.b16 %v1262, %v1261
  %v1317 = vpack.c.b16 %v1264, %v1263
  %v1318 = vpack.c.b16 %v1266, %v1265
  %v1319 = vpack.c.b16 %v1268, %v1267
  %v1320 = vpack.c.b16 %v1270, %v1269
  %v1321 = vpack.c.b16 %v1272, %v1271
  %v1322 = vpack.c.b16 %v1274, %v1273
  %v1331 = vunpack.c.l.b16 %v144
  %v1332 = vunpack.c.l.b16 %v145
  %v1333 = vunpack.c.l.b16 %v146
  %v1334 = vunpack.c.l.b16 %v147
  %v1335 = vunpack.c.l.b16 %v148
  %v1336 = vunpack.c.l.b16 %v149
  %v1337 = vunpack.c.l.b16 %v150
  %v1338 = vunpack.c.l.b16 %v151
  %v1339 = vpack.c.b16 %v1332, %v1331
  %v1340 = vpack.c.b16 %v1334, %v1333
  %v1341 = vpack.c.b16 %v1336, %v1335
  %v1342 = vpack.c.b16 %v1338, %v1337
  %vm1347 = vcmask 523264
  %v1349 = vsel %vm1347, %v1275, 0
  %v1352 = vsel %vm1347, %v1276, 0
  %v1355 = vsel %vm1347, %v1277, 0
  %v1358 = vsel %vm1347, %v1278, 0
  %v1361 = vsel %vm1347, %v1279, 0
  %v1364 = vsel %vm1347, %v1280, 0
  %v1367 = vsel %vm1347, %v1281, 0
  %v1370 = vsel %vm1347, %v1282, 0
  %v1373 = vsel %vm1347, %v1283, 0
  %v1376 = vsel %vm1347, %v1284, 0
  %v1379 = vsel %vm1347, %v1285, 0
  %v1382 = vsel %vm1347, %v1286, 0
  %v1385 = vsel %vm1347, %v1287, 0
  %v1388 = vsel %vm1347, %v1288, 0
  %v1391 = vsel %vm1347, %v1289, 0
  %v1394 = vsel %vm1347, %v1290, 0
  %v1397 = vsel %vm1347, %v1291, 0
  %v1400 = vsel %vm1347, %v1292, 0
  %v1403 = vsel %vm1347, %v1293, 0
  %v1406 = vsel %vm1347, %v1294, 0
  %v1409 = vsel %vm1347, %v1295, 0
  %v1412 = vsel %vm1347, %v1296, 0
  %v1415 = vsel %vm1347, %v1297, 0
  %v1418 = vsel %vm1347, %v1298, 0
  %v1421 = vsel %vm1347, %v1299, 0
  %v1424 = vsel %vm1347, %v1300, 0
  %v1427 = vsel %vm1347, %v1301, 0
  %v1430 = vsel %vm1347, %v1302, 0
  %v1433 = vsel %vm1347, %v1303, 0
  %v1436 = vsel %vm1347, %v1304, 0
  %v1439 = vsel %vm1347, %v1305, 0
  %v1442 = vsel %vm1347, %v1306, 0
  %v1445 = vsel %vm1347, %v1307, 0
  %v1448 = vsel %vm1347, %v1308, 0
  %v1451 = vsel %vm1347, %v1309, 0
  %v1454 = vsel %vm1347, %v1310, 0
  %v1457 = vsel %vm1347, %v1311, 0
  %v1460 = vsel %vm1347, %v1312, 0
  %v1463 = vsel %vm1347, %v1313, 0
  %v1466 = vsel %vm1347, %v1314, 0
  %v1469 = vsel %vm1347, %v1315, 0
  %v1472 = vsel %vm1347, %v1316, 0
  %v1475 = vsel %vm1347, %v1317, 0
  %v1478 = vsel %vm1347, %v1318, 0
  %v1481 = vsel %vm1347, %v1319, 0
  %v1484 = vsel %vm1347, %v1320, 0
  %v1487 = vsel %vm1347, %v1321, 0
  %v1490 = vsel %vm1347, %v1322, 0
  %1492 = vmatprep.subr.bf16.mxu0 0
  %1493 = vmatpush1.bf16.msra.mxu0 0
  %1494 = vmatprep.subr.bf16.mxu0 0
  %1495 = vmatpush1.bf16.msra.mxu0 0
  %1496 = vmatprep.subr.bf16.mxu0 0
  %1497 = vmatpush1.bf16.msra.mxu0 0
  %1498 = vmatprep.subr.bf16.mxu0 0
  %1499 = vmatpush1.bf16.msra.mxu0 0
  %1500 = vmatprep.subr.bf16.mxu0 0
  %1501 = vmatpush1.bf16.msra.mxu0 %v1342
  %1502 = vmatprep.subr.bf16.mxu0 0
  %1503 = vmatpush1.bf16.msra.mxu0 %v1341
  %1504 = vmatprep.subr.bf16.mxu0 0
  %1505 = vmatpush1.bf16.msra.mxu0 %v1340
  %1506 = vmatprep.subr.bf16.mxu0 0
  %1507 = vmatpush1.bf16.msra.mxu0 %v1339
  %1508 = vmatprep.subr.bf16.mxu0 0
  %1509 = vmatpush2.bf16.msra.mxu0 0
  %1510 = vmatprep.subr.bf16.mxu0 0
  %1511 = vmatpush2.bf16.msra.mxu0 0
  %1512 = vmatprep.subr.bf16.mxu0 0
  %1513 = vmatpush2.bf16.msra.mxu0 0
  %1514 = vmatprep.subr.bf16.mxu0 0
  %1515 = vmatpush2.bf16.msra.mxu0 0
  %1516 = vmatprep.subr.bf16.mxu0 0
  %1517 = vmatpush2.bf16.msra.mxu0 0
  %1518 = vmatprep.subr.bf16.mxu0 0
  %1519 = vmatpush2.bf16.msra.mxu0 0
  %1520 = vmatprep.subr.bf16.mxu0 0
  %1521 = vmatpush2.bf16.msra.mxu0 0
  %1522 = vmatprep.subr.bf16.mxu0 0
  %1523 = vmatpush2.bf16.msra.mxu0 0
  %1524 = vmatprep.mubr.bf16.mxu0 0
  %1525 = vmatmul.mubr.bf16.gmra.mxu0 %v1349
  %v1526 = vpop.f32.mrf.mxu0
  %v1527 = vadd.f32 %v605, %v1526
  %v1528 = vpop.f32.mrf.mxu0
  %v1529 = vpop.f32.mrf.mxu0
  %v1530 = vadd.f32 %v610, %v1529
  %v1531 = vpop.f32.mrf.mxu0
  %1532 = vmatprep.mubr.bf16.mxu0 0
  %1533 = vmatmul.mubr.bf16.gmra.mxu0 %v1352
  %v1534 = vpop.f32.mrf.mxu0
  %v1535 = vadd.f32 %v615, %v1534
  %v1536 = vpop.f32.mrf.mxu0
  %v1537 = vpop.f32.mrf.mxu0
  %v1538 = vadd.f32 %v620, %v1537
  %v1539 = vpop.f32.mrf.mxu0
  %1540 = vmatprep.mubr.bf16.mxu0 0
  %1541 = vmatmul.mubr.bf16.gmra.mxu0 %v1355
  %v1542 = vpop.f32.mrf.mxu0
  %v1543 = vadd.f32 %v625, %v1542
  %v1544 = vpop.f32.mrf.mxu0
  %v1545 = vpop.f32.mrf.mxu0
  %v1546 = vadd.f32 %v630, %v1545
  %v1547 = vpop.f32.mrf.mxu0
  %1548 = vmatprep.mubr.bf16.mxu0 0
  %1549 = vmatmul.mubr.bf16.gmra.mxu0 %v1358
  %v1550 = vpop.f32.mrf.mxu0
  %v1551 = vadd.f32 %v635, %v1550
  %v1552 = vpop.f32.mrf.mxu0
  %v1553 = vpop.f32.mrf.mxu0
  %v1554 = vadd.f32 %v640, %v1553
  %v1555 = vpop.f32.mrf.mxu0
  %1556 = vmatprep.mubr.bf16.mxu0 0
  %1557 = vmatmul.mubr.bf16.gmra.mxu0 %v1361
  %v1558 = vpop.f32.mrf.mxu0
  %v1559 = vadd.f32 %v645, %v1558
  %v1560 = vpop.f32.mrf.mxu0
  %v1561 = vpop.f32.mrf.mxu0
  %v1562 = vadd.f32 %v650, %v1561
  %v1563 = vpop.f32.mrf.mxu0
  %1564 = vmatprep.mubr.bf16.mxu0 0
  %1565 = vmatmul.mubr.bf16.gmra.mxu0 %v1364
  %v1566 = vpop.f32.mrf.mxu0
  %v1567 = vadd.f32 %v655, %v1566
  %v1568 = vpop.f32.mrf.mxu0
  %v1569 = vpop.f32.mrf.mxu0
  %v1570 = vadd.f32 %v660, %v1569
  %v1571 = vpop.f32.mrf.mxu0
  %1572 = vmatprep.mubr.bf16.mxu0 0
  %1573 = vmatmul.mubr.bf16.gmra.mxu0 %v1367
  %v1574 = vpop.f32.mrf.mxu0
  %v1575 = vadd.f32 %v665, %v1574
  %v1576 = vpop.f32.mrf.mxu0
  %v1577 = vpop.f32.mrf.mxu0
  %v1578 = vadd.f32 %v670, %v1577
  %v1579 = vpop.f32.mrf.mxu0
  %1580 = vmatprep.mubr.bf16.mxu0 0
  %1581 = vmatmul.mubr.bf16.gmra.mxu0 %v1370
  %v1582 = vpop.f32.mrf.mxu0
  %v1583 = vadd.f32 %v675, %v1582
  %v1584 = vpop.f32.mrf.mxu0
  %v1585 = vpop.f32.mrf.mxu0
  %v1586 = vadd.f32 %v680, %v1585
  %v1587 = vpop.f32.mrf.mxu0
  %1588 = vmatprep.mubr.bf16.mxu0 0
  %1589 = vmatmul.mubr.bf16.gmra.mxu0 %v1373
  %v1590 = vpop.f32.mrf.mxu0
  %v1591 = vadd.f32 %v685, %v1590
  %v1592 = vpop.f32.mrf.mxu0
  %v1593 = vpop.f32.mrf.mxu0
  %v1594 = vadd.f32 %v690, %v1593
  %v1595 = vpop.f32.mrf.mxu0
  %1596 = vmatprep.mubr.bf16.mxu0 0
  %1597 = vmatmul.mubr.bf16.gmra.mxu0 %v1376
  %v1598 = vpop.f32.mrf.mxu0
  %v1599 = vadd.f32 %v695, %v1598
  %v1600 = vpop.f32.mrf.mxu0
  %v1601 = vpop.f32.mrf.mxu0
  %v1602 = vadd.f32 %v700, %v1601
  %v1603 = vpop.f32.mrf.mxu0
  %1604 = vmatprep.mubr.bf16.mxu0 0
  %1605 = vmatmul.mubr.bf16.gmra.mxu0 %v1379
  %v1606 = vpop.f32.mrf.mxu0
  %v1607 = vadd.f32 %v705, %v1606
  %v1608 = vpop.f32.mrf.mxu0
  %v1609 = vpop.f32.mrf.mxu0
  %v1610 = vadd.f32 %v710, %v1609
  %v1611 = vpop.f32.mrf.mxu0
  %1612 = vmatprep.mubr.bf16.mxu0 0
  %1613 = vmatmul.mubr.bf16.gmra.mxu0 %v1382
  %v1614 = vpop.f32.mrf.mxu0
  %v1615 = vadd.f32 %v715, %v1614
  %v1616 = vpop.f32.mrf.mxu0
  %v1617 = vpop.f32.mrf.mxu0
  %v1618 = vadd.f32 %v720, %v1617
  %v1619 = vpop.f32.mrf.mxu0
  %1620 = vmatprep.mubr.bf16.mxu0 0
  %1621 = vmatmul.mubr.bf16.gmra.mxu0 %v1385
  %v1622 = vpop.f32.mrf.mxu0
  %v1623 = vadd.f32 %v725, %v1622
  %v1624 = vpop.f32.mrf.mxu0
  %v1625 = vpop.f32.mrf.mxu0
  %v1626 = vadd.f32 %v730, %v1625
  %v1627 = vpop.f32.mrf.mxu0
  %1628 = vmatprep.mubr.bf16.mxu0 0
  %1629 = vmatmul.mubr.bf16.gmra.mxu0 %v1388
  %v1630 = vpop.f32.mrf.mxu0
  %v1631 = vadd.f32 %v735, %v1630
  %v1632 = vpop.f32.mrf.mxu0
  %v1633 = vpop.f32.mrf.mxu0
  %v1634 = vadd.f32 %v740, %v1633
  %v1635 = vpop.f32.mrf.mxu0
  %1636 = vmatprep.mubr.bf16.mxu0 0
  %1637 = vmatmul.mubr.bf16.gmra.mxu0 %v1391
  %v1638 = vpop.f32.mrf.mxu0
  %v1639 = vadd.f32 %v745, %v1638
  %v1640 = vpop.f32.mrf.mxu0
  %v1641 = vpop.f32.mrf.mxu0
  %v1642 = vadd.f32 %v750, %v1641
  %v1643 = vpop.f32.mrf.mxu0
  %1644 = vmatprep.mubr.bf16.mxu0 0
  %1645 = vmatmul.mubr.bf16.gmra.mxu0 %v1394
  %v1646 = vpop.f32.mrf.mxu0
  %v1647 = vadd.f32 %v755, %v1646
  %v1648 = vpop.f32.mrf.mxu0
  %v1649 = vpop.f32.mrf.mxu0
  %v1650 = vadd.f32 %v760, %v1649
  %v1651 = vpop.f32.mrf.mxu0
  %1652 = vmatprep.mubr.bf16.mxu0 0
  %1653 = vmatmul.mubr.bf16.gmra.mxu0 %v1397
  %v1654 = vpop.f32.mrf.mxu0
  %v1655 = vadd.f32 %v765, %v1654
  %v1656 = vpop.f32.mrf.mxu0
  %v1657 = vpop.f32.mrf.mxu0
  %v1658 = vadd.f32 %v770, %v1657
  %v1659 = vpop.f32.mrf.mxu0
  %1660 = vmatprep.mubr.bf16.mxu0 0
  %1661 = vmatmul.mubr.bf16.gmra.mxu0 %v1400
  %v1662 = vpop.f32.mrf.mxu0
  %v1663 = vadd.f32 %v775, %v1662
  %v1664 = vpop.f32.mrf.mxu0
  %v1665 = vpop.f32.mrf.mxu0
  %v1666 = vadd.f32 %v780, %v1665
  %v1667 = vpop.f32.mrf.mxu0
  %1668 = vmatprep.mubr.bf16.mxu0 0
  %1669 = vmatmul.mubr.bf16.gmra.mxu0 %v1403
  %v1670 = vpop.f32.mrf.mxu0
  %v1671 = vadd.f32 %v785, %v1670
  %v1672 = vpop.f32.mrf.mxu0
  %v1673 = vpop.f32.mrf.mxu0
  %v1674 = vadd.f32 %v790, %v1673
  %v1675 = vpop.f32.mrf.mxu0
  %1676 = vmatprep.mubr.bf16.mxu0 0
  %1677 = vmatmul.mubr.bf16.gmra.mxu0 %v1406
  %v1678 = vpop.f32.mrf.mxu0
  %v1679 = vadd.f32 %v795, %v1678
  %v1680 = vpop.f32.mrf.mxu0
  %v1681 = vpop.f32.mrf.mxu0
  %v1682 = vadd.f32 %v800, %v1681
  %v1683 = vpop.f32.mrf.mxu0
  %1684 = vmatprep.mubr.bf16.mxu0 0
  %1685 = vmatmul.mubr.bf16.gmra.mxu0 %v1409
  %v1686 = vpop.f32.mrf.mxu0
  %v1687 = vadd.f32 %v805, %v1686
  %v1688 = vpop.f32.mrf.mxu0
  %v1689 = vpop.f32.mrf.mxu0
  %v1690 = vadd.f32 %v810, %v1689
  %v1691 = vpop.f32.mrf.mxu0
  %1692 = vmatprep.mubr.bf16.mxu0 0
  %1693 = vmatmul.mubr.bf16.gmra.mxu0 %v1412
  %v1694 = vpop.f32.mrf.mxu0
  %v1695 = vadd.f32 %v815, %v1694
  %v1696 = vpop.f32.mrf.mxu0
  %v1697 = vpop.f32.mrf.mxu0
  %v1698 = vadd.f32 %v820, %v1697
  %v1699 = vpop.f32.mrf.mxu0
  %1700 = vmatprep.mubr.bf16.mxu0 0
  %1701 = vmatmul.mubr.bf16.gmra.mxu0 %v1415
  %v1702 = vpop.f32.mrf.mxu0
  %v1703 = vadd.f32 %v825, %v1702
  %v1704 = vpop.f32.mrf.mxu0
  %v1705 = vpop.f32.mrf.mxu0
  %v1706 = vadd.f32 %v830, %v1705
  %v1707 = vpop.f32.mrf.mxu0
  %1708 = vmatprep.mubr.bf16.mxu0 0
  %1709 = vmatmul.mubr.bf16.gmra.mxu0 %v1418
  %v1710 = vpop.f32.mrf.mxu0
  %v1711 = vadd.f32 %v835, %v1710
  %v1712 = vpop.f32.mrf.mxu0
  %v1713 = vpop.f32.mrf.mxu0
  %v1714 = vadd.f32 %v840, %v1713
  %v1715 = vpop.f32.mrf.mxu0
  %1716 = vmatprep.mubr.bf16.mxu0 0
  %1717 = vmatmul.mubr.bf16.gmra.mxu0 %v1421
  %v1718 = vpop.f32.mrf.mxu0
  %v1719 = vadd.f32 %v845, %v1718
  %v1720 = vpop.f32.mrf.mxu0
  %v1721 = vpop.f32.mrf.mxu0
  %v1722 = vadd.f32 %v850, %v1721
  %v1723 = vpop.f32.mrf.mxu0
  %1724 = vmatprep.mubr.bf16.mxu0 0
  %1725 = vmatmul.mubr.bf16.gmra.mxu0 %v1424
  %v1726 = vpop.f32.mrf.mxu0
  %v1727 = vadd.f32 %v855, %v1726
  %v1728 = vpop.f32.mrf.mxu0
  %v1729 = vpop.f32.mrf.mxu0
  %v1730 = vadd.f32 %v860, %v1729
  %v1731 = vpop.f32.mrf.mxu0
  %1732 = vmatprep.mubr.bf16.mxu0 0
  %1733 = vmatmul.mubr.bf16.gmra.mxu0 %v1427
  %v1734 = vpop.f32.mrf.mxu0
  %v1735 = vadd.f32 %v865, %v1734
  %v1736 = vpop.f32.mrf.mxu0
  %v1737 = vpop.f32.mrf.mxu0
  %v1738 = vadd.f32 %v870, %v1737
  %v1739 = vpop.f32.mrf.mxu0
  %1740 = vmatprep.mubr.bf16.mxu0 0
  %1741 = vmatmul.mubr.bf16.gmra.mxu0 %v1430
  %v1742 = vpop.f32.mrf.mxu0
  %v1743 = vadd.f32 %v875, %v1742
  %v1744 = vpop.f32.mrf.mxu0
  %v1745 = vpop.f32.mrf.mxu0
  %v1746 = vadd.f32 %v880, %v1745
  %v1747 = vpop.f32.mrf.mxu0
  %1748 = vmatprep.mubr.bf16.mxu0 0
  %1749 = vmatmul.mubr.bf16.gmra.mxu0 %v1433
  %v1750 = vpop.f32.mrf.mxu0
  %v1751 = vadd.f32 %v885, %v1750
  %v1752 = vpop.f32.mrf.mxu0
  %v1753 = vpop.f32.mrf.mxu0
  %v1754 = vadd.f32 %v890, %v1753
  %v1755 = vpop.f32.mrf.mxu0
  %1756 = vmatprep.mubr.bf16.mxu0 0
  %1757 = vmatmul.mubr.bf16.gmra.mxu0 %v1436
  %v1758 = vpop.f32.mrf.mxu0
  %v1759 = vadd.f32 %v895, %v1758
  %v1760 = vpop.f32.mrf.mxu0
  %v1761 = vpop.f32.mrf.mxu0
  %v1762 = vadd.f32 %v900, %v1761
  %v1763 = vpop.f32.mrf.mxu0
  %1764 = vmatprep.mubr.bf16.mxu0 0
  %1765 = vmatmul.mubr.bf16.gmra.mxu0 %v1439
  %v1766 = vpop.f32.mrf.mxu0
  %v1767 = vadd.f32 %v905, %v1766
  %v1768 = vpop.f32.mrf.mxu0
  %v1769 = vpop.f32.mrf.mxu0
  %v1770 = vadd.f32 %v910, %v1769
  %v1771 = vpop.f32.mrf.mxu0
  %1772 = vmatprep.mubr.bf16.mxu0 0
  %1773 = vmatmul.mubr.bf16.gmra.mxu0 %v1442
  %v1774 = vpop.f32.mrf.mxu0
  %v1775 = vadd.f32 %v915, %v1774
  %v1776 = vpop.f32.mrf.mxu0
  %v1777 = vpop.f32.mrf.mxu0
  %v1778 = vadd.f32 %v920, %v1777
  %v1779 = vpop.f32.mrf.mxu0
  %1780 = vmatprep.mubr.bf16.mxu0 0
  %1781 = vmatmul.mubr.bf16.gmra.mxu0 %v1445
  %v1782 = vpop.f32.mrf.mxu0
  %v1783 = vadd.f32 %v925, %v1782
  %v1784 = vpop.f32.mrf.mxu0
  %v1785 = vpop.f32.mrf.mxu0
  %v1786 = vadd.f32 %v930, %v1785
  %v1787 = vpop.f32.mrf.mxu0
  %1788 = vmatprep.mubr.bf16.mxu0 0
  %1789 = vmatmul.mubr.bf16.gmra.mxu0 %v1448
  %v1790 = vpop.f32.mrf.mxu0
  %v1791 = vadd.f32 %v935, %v1790
  %v1792 = vpop.f32.mrf.mxu0
  %v1793 = vpop.f32.mrf.mxu0
  %v1794 = vadd.f32 %v940, %v1793
  %v1795 = vpop.f32.mrf.mxu0
  %1796 = vmatprep.mubr.bf16.mxu0 0
  %1797 = vmatmul.mubr.bf16.gmra.mxu0 %v1451
  %v1798 = vpop.f32.mrf.mxu0
  %v1799 = vadd.f32 %v945, %v1798
  %v1800 = vpop.f32.mrf.mxu0
  %v1801 = vpop.f32.mrf.mxu0
  %v1802 = vadd.f32 %v950, %v1801
  %v1803 = vpop.f32.mrf.mxu0
  %1804 = vmatprep.mubr.bf16.mxu0 0
  %1805 = vmatmul.mubr.bf16.gmra.mxu0 %v1454
  %v1806 = vpop.f32.mrf.mxu0
  %v1807 = vadd.f32 %v955, %v1806
  %v1808 = vpop.f32.mrf.mxu0
  %v1809 = vpop.f32.mrf.mxu0
  %v1810 = vadd.f32 %v960, %v1809
  %v1811 = vpop.f32.mrf.mxu0
  %1812 = vmatprep.mubr.bf16.mxu0 0
  %1813 = vmatmul.mubr.bf16.gmra.mxu0 %v1457
  %v1814 = vpop.f32.mrf.mxu0
  %v1815 = vadd.f32 %v965, %v1814
  %v1816 = vpop.f32.mrf.mxu0
  %v1817 = vpop.f32.mrf.mxu0
  %v1818 = vadd.f32 %v970, %v1817
  %v1819 = vpop.f32.mrf.mxu0
  %1820 = vmatprep.mubr.bf16.mxu0 0
  %1821 = vmatmul.mubr.bf16.gmra.mxu0 %v1460
  %v1822 = vpop.f32.mrf.mxu0
  %v1823 = vadd.f32 %v975, %v1822
  %v1824 = vpop.f32.mrf.mxu0
  %v1825 = vpop.f32.mrf.mxu0
  %v1826 = vadd.f32 %v980, %v1825
  %v1827 = vpop.f32.mrf.mxu0
  %1828 = vmatprep.mubr.bf16.mxu0 0
  %1829 = vmatmul.mubr.bf16.gmra.mxu0 %v1463
  %v1830 = vpop.f32.mrf.mxu0
  %v1831 = vadd.f32 %v985, %v1830
  %v1832 = vpop.f32.mrf.mxu0
  %v1833 = vpop.f32.mrf.mxu0
  %v1834 = vadd.f32 %v990, %v1833
  %v1835 = vpop.f32.mrf.mxu0
  %1836 = vmatprep.mubr.bf16.mxu0 0
  %1837 = vmatmul.mubr.bf16.gmra.mxu0 %v1466
  %v1838 = vpop.f32.mrf.mxu0
  %v1839 = vadd.f32 %v995, %v1838
  %v1840 = vpop.f32.mrf.mxu0
  %v1841 = vpop.f32.mrf.mxu0
  %v1842 = vadd.f32 %v1000, %v1841
  %v1843 = vpop.f32.mrf.mxu0
  %1844 = vmatprep.mubr.bf16.mxu0 0
  %1845 = vmatmul.mubr.bf16.gmra.mxu0 %v1469
  %v1846 = vpop.f32.mrf.mxu0
  %v1847 = vadd.f32 %v1005, %v1846
  %v1848 = vpop.f32.mrf.mxu0
  %v1849 = vpop.f32.mrf.mxu0
  %v1850 = vadd.f32 %v1010, %v1849
  %v1851 = vpop.f32.mrf.mxu0
  %1852 = vmatprep.mubr.bf16.mxu0 0
  %1853 = vmatmul.mubr.bf16.gmra.mxu0 %v1472
  %v1854 = vpop.f32.mrf.mxu0
  %v1855 = vadd.f32 %v1015, %v1854
  %v1856 = vpop.f32.mrf.mxu0
  %v1857 = vpop.f32.mrf.mxu0
  %v1858 = vadd.f32 %v1020, %v1857
  %v1859 = vpop.f32.mrf.mxu0
  %1860 = vmatprep.mubr.bf16.mxu0 0
  %1861 = vmatmul.mubr.bf16.gmra.mxu0 %v1475
  %v1862 = vpop.f32.mrf.mxu0
  %v1863 = vadd.f32 %v1025, %v1862
  %v1864 = vpop.f32.mrf.mxu0
  %v1865 = vpop.f32.mrf.mxu0
  %v1866 = vadd.f32 %v1030, %v1865
  %v1867 = vpop.f32.mrf.mxu0
  %1868 = vmatprep.mubr.bf16.mxu0 0
  %1869 = vmatmul.mubr.bf16.gmra.mxu0 %v1478
  %v1870 = vpop.f32.mrf.mxu0
  %v1871 = vadd.f32 %v1035, %v1870
  %v1872 = vpop.f32.mrf.mxu0
  %v1873 = vpop.f32.mrf.mxu0
  %v1874 = vadd.f32 %v1040, %v1873
  %v1875 = vpop.f32.mrf.mxu0
  %1876 = vmatprep.mubr.bf16.mxu0 0
  %1877 = vmatmul.mubr.bf16.gmra.mxu0 %v1481
  %v1878 = vpop.f32.mrf.mxu0
  %v1879 = vadd.f32 %v1045, %v1878
  %v1880 = vpop.f32.mrf.mxu0
  %v1881 = vpop.f32.mrf.mxu0
  %v1882 = vadd.f32 %v1050, %v1881
  %v1883 = vpop.f32.mrf.mxu0
  %1884 = vmatprep.mubr.bf16.mxu0 0
  %1885 = vmatmul.mubr.bf16.gmra.mxu0 %v1484
  %v1886 = vpop.f32.mrf.mxu0
  %v1887 = vadd.f32 %v1055, %v1886
  %v1888 = vpop.f32.mrf.mxu0
  %v1889 = vpop.f32.mrf.mxu0
  %v1890 = vadd.f32 %v1060, %v1889
  %v1891 = vpop.f32.mrf.mxu0
  %1892 = vmatprep.mubr.bf16.mxu0 0
  %1893 = vmatmul.mubr.bf16.gmra.mxu0 %v1487
  %v1894 = vpop.f32.mrf.mxu0
  %v1895 = vadd.f32 %v1065, %v1894
  %v1896 = vpop.f32.mrf.mxu0
  %v1897 = vpop.f32.mrf.mxu0
  %v1898 = vadd.f32 %v1070, %v1897
  %v1899 = vpop.f32.mrf.mxu0
  %1900 = vmatprep.mubr.bf16.mxu0 0
  %1901 = vmatmul.mubr.bf16.gmra.mxu0 %v1490
  %v1902 = vpop.f32.mrf.mxu0
  %v1903 = vadd.f32 %v1075, %v1902
  %v1904 = vpop.f32.mrf.mxu0
  %v1905 = vpop.f32.mrf.mxu0
  %v1906 = vadd.f32 %v1080, %v1905
  %v1907 = vpop.f32.mrf.mxu0
  %1908 = vdwg.mxu0
  %v1909 = vld [vmem:[%s2] sm:$0xf]
  %v1910 = vld [vmem:[%s2 + $0x4] sm:$0xf]
  %v1911 = vld [vmem:[%s2 + $0x8] sm:$0xf]
  %v1912 = vld [vmem:[%s2 + $0xc] sm:$0xf]
  %v1913 = vld [vmem:[%s2 + $0x10] sm:$0xf]
  %v1914 = vld [vmem:[%s2 + $0x14] sm:$0xf]
  %v1915 = vld [vmem:[%s2 + $0x18] sm:$0xf]
  %v1916 = vld [vmem:[%s2 + $0x1c] sm:$0xf]
  %v1917 = vld [vmem:[%s2 + $0x20] sm:$0xf]
  %v1918 = vld [vmem:[%s2 + $0x24] sm:$0xf]
  %v1919 = vld [vmem:[%s2 + $0x28] sm:$0xf]
  %v1920 = vld [vmem:[%s2 + $0x2c] sm:$0xf]
  %v1921 = vld [vmem:[%s6] sm:$0xf]
  %v1922 = vld [vmem:[%s6 + $0x4] sm:$0xf]
  %v1923 = vld [vmem:[%s6 + $0x8] sm:$0xf]
  %v1924 = vld [vmem:[%s6 + $0xc] sm:$0xf]
  %v1925 = vld [vmem:[%s6 + $0x10] sm:$0xf]
  %v1926 = vld [vmem:[%s6 + $0x14] sm:$0xf]
  %v1927 = vld [vmem:[%s6 + $0x18] sm:$0xf]
  %v1928 = vld [vmem:[%s6 + $0x1c] sm:$0xf]
  %v1929 = vld [vmem:[%s3] sm:$0xff]
  %v1930 = vld [vmem:[%s3 + $0x8] sm:$0xff]
  %v1931 = vld [vmem:[%s3 + $0x10] sm:$0xff]
  %v1932 = vld [vmem:[%s3 + $0x18] sm:$0xff]
  %v1933 = vld [vmem:[%s3 + $0x20] sm:$0xff]
  %v1934 = vld [vmem:[%s3 + $0x28] sm:$0xff]
  %v1935 = vld [vmem:[%s3 + $0x30] sm:$0xff]
  %v1936 = vld [vmem:[%s3 + $0x38] sm:$0xff]
  %v1937 = vld [vmem:[%s3 + $0x40] sm:$0xff]
  %v1938 = vld [vmem:[%s3 + $0x48] sm:$0xff]
  %v1939 = vld [vmem:[%s3 + $0x50] sm:$0xff]
  %v1940 = vld [vmem:[%s3 + $0x58] sm:$0xff]
  %v1941 = vld [vmem:[%s8] sm:$0xff]
  %v1943 = vsel %vm249, %v1929, 0
  %v1946 = vsel %vm249, %v1930, 0
  %v1949 = vsel %vm249, %v1931, 0
  %v1952 = vsel %vm249, %v1932, 0
  %v1955 = vsel %vm249, %v1933, 0
  %v1958 = vsel %vm249, %v1934, 0
  %v1961 = vsel %vm249, %v1935, 0
  %v1964 = vsel %vm249, %v1936, 0
  %v1967 = vsel %vm249, %v1937, 0
  %v1970 = vsel %vm249, %v1938, 0
  %v1973 = vsel %vm249, %v1939, 0
  %v1976 = vsel %vm249, %v1940, 0
  %1978 = vmatprep.subr.mxu0 0.0
  %1979 = vmatpush1.msra.mxu0 0.0
  %1980 = vmatprep.subr.mxu0 0.0
  %1981 = vmatpush1.msra.mxu0 0.0
  %1982 = vmatprep.subr.mxu0 0.0
  %1983 = vmatpush1.msra.mxu0 0.0
  %1984 = vmatprep.subr.mxu0 0.0
  %1985 = vmatpush1.msra.mxu0 0.0
  %1986 = vmatprep.subr.mxu0 0.0
  %1987 = vmatpush1.msra.mxu0 0.0
  %1988 = vmatprep.subr.mxu0 0.0
  %1989 = vmatpush1.msra.mxu0 0.0
  %1990 = vmatprep.subr.mxu0 0.0
  %1991 = vmatpush1.msra.mxu0 0.0
  %1992 = vmatprep.subr.mxu0 0.0
  %1993 = vmatpush1.msra.mxu0 0.0
  %1994 = vmatprep.subr.mxu0 0.0
  %1995 = vmatpush1.msra.mxu0 0.0
  %1996 = vmatprep.subr.mxu0 0.0
  %1997 = vmatpush1.msra.mxu0 0.0
  %1998 = vmatprep.subr.mxu0 0.0
  %1999 = vmatpush1.msra.mxu0 0.0
  %2000 = vmatprep.subr.mxu0 0.0
  %2001 = vmatpush1.msra.mxu0 0.0
  %2002 = vmatprep.subr.mxu0 0.0
  %2003 = vmatpush1.msra.mxu0 0.0
  %2004 = vmatprep.subr.mxu0 0.0
  %2005 = vmatpush1.msra.mxu0 0.0
  %2006 = vmatprep.subr.mxu0 0.0
  %2007 = vmatpush1.msra.mxu0 0.0
  %2008 = vmatprep.subr.mxu0 0.0
  %2009 = vmatpush1.msra.mxu0 %v1941
  %2010 = vmatprep.subr.mxu0 0.0
  %2011 = vmatpush2.msra.mxu0 0.0
  %2012 = vmatprep.subr.mxu0 0.0
  %2013 = vmatpush2.msra.mxu0 0.0
  %2014 = vmatprep.subr.mxu0 0.0
  %2015 = vmatpush2.msra.mxu0 0.0
  %2016 = vmatprep.subr.mxu0 0.0
  %2017 = vmatpush2.msra.mxu0 0.0
  %2018 = vmatprep.subr.mxu0 0.0
  %2019 = vmatpush2.msra.mxu0 0.0
  %2020 = vmatprep.subr.mxu0 0.0
  %2021 = vmatpush2.msra.mxu0 0.0
  %2022 = vmatprep.subr.mxu0 0.0
  %2023 = vmatpush2.msra.mxu0 0.0
  %2024 = vmatprep.subr.mxu0 0.0
  %2025 = vmatpush2.msra.mxu0 0.0
  %2026 = vmatprep.subr.mxu0 0.0
  %2027 = vmatpush2.msra.mxu0 0.0
  %2028 = vmatprep.subr.mxu0 0.0
  %2029 = vmatpush2.msra.mxu0 0.0
  %2030 = vmatprep.subr.mxu0 0.0
  %2031 = vmatpush2.msra.mxu0 0.0
  %2032 = vmatprep.subr.mxu0 0.0
  %2033 = vmatpush2.msra.mxu0 0.0
  %2034 = vmatprep.subr.mxu0 0.0
  %2035 = vmatpush2.msra.mxu0 0.0
  %2036 = vmatprep.subr.mxu0 0.0
  %2037 = vmatpush2.msra.mxu0 0.0
  %2038 = vmatprep.subr.mxu0 0.0
  %2039 = vmatpush2.msra.mxu0 0.0
  %2040 = vmatprep.subr.mxu0 0.0
  %2041 = vmatpush2.msra.mxu0 0.0
  %2042 = vmatprep.mubr.f32.mxu0 0.0
  %2043 = vmatmul.mubr.f32.gmra.mxu0 %v1943
  %v2044 = vpop.f32.mrf.mxu0
  %v2045 = vadd.f32 0.0, %v2044
  %v2046 = vpop.f32.mrf.mxu0
  %2047 = vmatprep.mubr.f32.mxu0 0.0
  %2048 = vmatmul.mubr.f32.gmra.mxu0 %v1946
  %v2049 = vpop.f32.mrf.mxu0
  %v2050 = vadd.f32 0.0, %v2049
  %v2051 = vpop.f32.mrf.mxu0
  %2052 = vmatprep.mubr.f32.mxu0 0.0
  %2053 = vmatmul.mubr.f32.gmra.mxu0 %v1949
  %v2054 = vpop.f32.mrf.mxu0
  %v2055 = vadd.f32 0.0, %v2054
  %v2056 = vpop.f32.mrf.mxu0
  %2057 = vmatprep.mubr.f32.mxu0 0.0
  %2058 = vmatmul.mubr.f32.gmra.mxu0 %v1952
  %v2059 = vpop.f32.mrf.mxu0
  %v2060 = vadd.f32 0.0, %v2059
  %v2061 = vpop.f32.mrf.mxu0
  %2062 = vmatprep.mubr.f32.mxu0 0.0
  %2063 = vmatmul.mubr.f32.gmra.mxu0 %v1955
  %v2064 = vpop.f32.mrf.mxu0
  %v2065 = vadd.f32 0.0, %v2064
  %v2066 = vpop.f32.mrf.mxu0
  %2067 = vmatprep.mubr.f32.mxu0 0.0
  %2068 = vmatmul.mubr.f32.gmra.mxu0 %v1958
  %v2069 = vpop.f32.mrf.mxu0
  %v2070 = vadd.f32 0.0, %v2069
  %v2071 = vpop.f32.mrf.mxu0
  %2072 = vmatprep.mubr.f32.mxu0 0.0
  %2073 = vmatmul.mubr.f32.gmra.mxu0 %v1961
  %v2074 = vpop.f32.mrf.mxu0
  %v2075 = vadd.f32 0.0, %v2074
  %v2076 = vpop.f32.mrf.mxu0
  %2077 = vmatprep.mubr.f32.mxu0 0.0
  %2078 = vmatmul.mubr.f32.gmra.mxu0 %v1964
  %v2079 = vpop.f32.mrf.mxu0
  %v2080 = vadd.f32 0.0, %v2079
  %v2081 = vpop.f32.mrf.mxu0
  %2082 = vmatprep.mubr.f32.mxu0 0.0
  %2083 = vmatmul.mubr.f32.gmra.mxu0 %v1967
  %v2084 = vpop.f32.mrf.mxu0
  %v2085 = vadd.f32 0.0, %v2084
  %v2086 = vpop.f32.mrf.mxu0
  %2087 = vmatprep.mubr.f32.mxu0 0.0
  %2088 = vmatmul.mubr.f32.gmra.mxu0 %v1970
  %v2089 = vpop.f32.mrf.mxu0
  %v2090 = vadd.f32 0.0, %v2089
  %v2091 = vpop.f32.mrf.mxu0
  %2092 = vmatprep.mubr.f32.mxu0 0.0
  %2093 = vmatmul.mubr.f32.gmra.mxu0 %v1973
  %v2094 = vpop.f32.mrf.mxu0
  %v2095 = vadd.f32 0.0, %v2094
  %v2096 = vpop.f32.mrf.mxu0
  %2097 = vmatprep.mubr.f32.mxu0 0.0
  %2098 = vmatmul.mubr.f32.gmra.mxu0 %v1976
  %v2099 = vpop.f32.mrf.mxu0
  %v2100 = vadd.f32 0.0, %v2099
  %v2101 = vpop.f32.mrf.mxu0
  %2102 = vdwg.mxu0
  %v2115 = vunpack.c.l.b16 %v1909
  %v2116 = vunpack.c.l.b16 %v1910
  %v2117 = vunpack.c.l.b16 %v1911
  %v2118 = vunpack.c.l.b16 %v1912
  %v2119 = vunpack.c.l.b16 %v1913
  %v2120 = vunpack.c.l.b16 %v1914
  %v2121 = vunpack.c.l.b16 %v1915
  %v2122 = vunpack.c.l.b16 %v1916
  %v2123 = vunpack.c.l.b16 %v1917
  %v2124 = vunpack.c.l.b16 %v1918
  %v2125 = vunpack.c.l.b16 %v1919
  %v2126 = vunpack.c.l.b16 %v1920
  %v2127 = vpack.c.b16 %v2116, %v2115
  %v2128 = vpack.c.b16 %v2118, %v2117
  %v2129 = vpack.c.b16 %v2120, %v2119
  %v2130 = vpack.c.b16 %v2122, %v2121
  %v2131 = vpack.c.b16 %v2124, %v2123
  %v2132 = vpack.c.b16 %v2126, %v2125
  %v2141 = vunpack.c.l.b16 %v1921
  %v2142 = vunpack.c.l.b16 %v1922
  %v2143 = vunpack.c.l.b16 %v1923
  %v2144 = vunpack.c.l.b16 %v1924
  %v2145 = vunpack.c.l.b16 %v1925
  %v2146 = vunpack.c.l.b16 %v1926
  %v2147 = vunpack.c.l.b16 %v1927
  %v2148 = vunpack.c.l.b16 %v1928
  %v2149 = vpack.c.b16 %v2142, %v2141
  %v2150 = vpack.c.b16 %v2144, %v2143
  %v2151 = vpack.c.b16 %v2146, %v2145
  %v2152 = vpack.c.b16 %v2148, %v2147
  %v2158 = vsel %vm1347, %v2127, 0
  %v2161 = vsel %vm1347, %v2128, 0
  %v2164 = vsel %vm1347, %v2129, 0
  %v2167 = vsel %vm1347, %v2130, 0
  %v2170 = vsel %vm1347, %v2131, 0
  %v2173 = vsel %vm1347, %v2132, 0
  %2175 = vmatprep.subr.bf16.mxu0 0
  %2176 = vmatpush1.bf16.msra.mxu0 0
  %2177 = vmatprep.subr.bf16.mxu0 0
  %2178 = vmatpush1.bf16.msra.mxu0 0
  %2179 = vmatprep.subr.bf16.mxu0 0
  %2180 = vmatpush1.bf16.msra.mxu0 0
  %2181 = vmatprep.subr.bf16.mxu0 0
  %2182 = vmatpush1.bf16.msra.mxu0 0
  %2183 = vmatprep.subr.bf16.mxu0 0
  %2184 = vmatpush1.bf16.msra.mxu0 %v2152
  %2185 = vmatprep.subr.bf16.mxu0 0
  %2186 = vmatpush1.bf16.msra.mxu0 %v2151
  %2187 = vmatprep.subr.bf16.mxu0 0
  %2188 = vmatpush1.bf16.msra.mxu0 %v2150
  %2189 = vmatprep.subr.bf16.mxu0 0
  %2190 = vmatpush1.bf16.msra.mxu0 %v2149
  %2191 = vmatprep.subr.bf16.mxu0 0
  %2192 = vmatpush2.bf16.msra.mxu0 0
  %2193 = vmatprep.subr.bf16.mxu0 0
  %2194 = vmatpush2.bf16.msra.mxu0 0
  %2195 = vmatprep.subr.bf16.mxu0 0
  %2196 = vmatpush2.bf16.msra.mxu0 0
  %2197 = vmatprep.subr.bf16.mxu0 0
  %2198 = vmatpush2.bf16.msra.mxu0 0
  %2199 = vmatprep.subr.bf16.mxu0 0
  %2200 = vmatpush2.bf16.msra.mxu0 0
  %2201 = vmatprep.subr.bf16.mxu0 0
  %2202 = vmatpush2.bf16.msra.mxu0 0
  %2203 = vmatprep.subr.bf16.mxu0 0
  %2204 = vmatpush2.bf16.msra.mxu0 0
  %2205 = vmatprep.subr.bf16.mxu0 0
  %2206 = vmatpush2.bf16.msra.mxu0 0
  %2207 = vmatprep.mubr.bf16.mxu0 0
  %2208 = vmatmul.mubr.bf16.gmra.mxu0 %v2158
  %v2209 = vpop.f32.mrf.mxu0
  %v2210 = vadd.f32 %v2045, %v2209
  %v2211 = vpop.f32.mrf.mxu0
  %v2212 = vpop.f32.mrf.mxu0
  %v2213 = vadd.f32 %v2050, %v2212
  %v2214 = vpop.f32.mrf.mxu0
  %2215 = vmatprep.mubr.bf16.mxu0 0
  %2216 = vmatmul.mubr.bf16.gmra.mxu0 %v2161
  %v2217 = vpop.f32.mrf.mxu0
  %v2218 = vadd.f32 %v2055, %v2217
  %v2219 = vpop.f32.mrf.mxu0
  %v2220 = vpop.f32.mrf.mxu0
  %v2221 = vadd.f32 %v2060, %v2220
  %v2222 = vpop.f32.mrf.mxu0
  %2223 = vmatprep.mubr.bf16.mxu0 0
  %2224 = vmatmul.mubr.bf16.gmra.mxu0 %v2164
  %v2225 = vpop.f32.mrf.mxu0
  %v2226 = vadd.f32 %v2065, %v2225
  %v2227 = vpop.f32.mrf.mxu0
  %v2228 = vpop.f32.mrf.mxu0
  %v2229 = vadd.f32 %v2070, %v2228
  %v2230 = vpop.f32.mrf.mxu0
  %2231 = vmatprep.mubr.bf16.mxu0 0
  %2232 = vmatmul.mubr.bf16.gmra.mxu0 %v2167
  %v2233 = vpop.f32.mrf.mxu0
  %v2234 = vadd.f32 %v2075, %v2233
  %v2235 = vpop.f32.mrf.mxu0
  %v2236 = vpop.f32.mrf.mxu0
  %v2237 = vadd.f32 %v2080, %v2236
  %v2238 = vpop.f32.mrf.mxu0
  %2239 = vmatprep.mubr.bf16.mxu0 0
  %2240 = vmatmul.mubr.bf16.gmra.mxu0 %v2170
  %v2241 = vpop.f32.mrf.mxu0
  %v2242 = vadd.f32 %v2085, %v2241
  %v2243 = vpop.f32.mrf.mxu0
  %v2244 = vpop.f32.mrf.mxu0
  %v2245 = vadd.f32 %v2090, %v2244
  %v2246 = vpop.f32.mrf.mxu0
  %2247 = vmatprep.mubr.bf16.mxu0 0
  %2248 = vmatmul.mubr.bf16.gmra.mxu0 %v2173
  %v2249 = vpop.f32.mrf.mxu0
  %v2250 = vadd.f32 %v2095, %v2249
  %v2251 = vpop.f32.mrf.mxu0
  %v2252 = vpop.f32.mrf.mxu0
  %v2253 = vadd.f32 %v2100, %v2252
  %v2254 = vpop.f32.mrf.mxu0
  %2255 = vdwg.mxu0
  %v2268 = vcombine.high %v2210, %v2210
  %v2270 = vunpack.c.l.s4 1966171168
  %v2271 = vunpack.c.0.s8 %v2270
  %v2272 = vlaneseq
  %v2273 = vshrl.u32 %v2272, 7
  %v2274 = vsub.s32 %v2271, %v2273
  %v2275 = vrot.slane %v2210, %v2274
  %v2277 = vunpack.c.l.s4 1966171168
  %v2278 = vunpack.c.0.s8 %v2277
  %v2279 = vlaneseq
  %v2280 = vshrl.u32 %v2279, 7
  %v2281 = vsub.s32 %v2278, %v2280
  %v2282 = vrot.slane %v2268, %v2281
  %v2283 = vcombine.high %v2275, %v2275
  %v2284 = vcombine.high %v2282, %v2282
  %v2286 = vunpack.c.l.s4 1966171168
  %v2287 = vunpack.c.0.s8 %v2286
  %v2288 = vlaneseq
  %v2289 = vshrl.u32 %v2288, 7
  %v2290 = vsub.s32 %v2287, %v2289
  %v2291 = vrot.slane %v2275, %v2290
  %v2293 = vunpack.c.l.s4 1966171168
  %v2294 = vunpack.c.0.s8 %v2293
  %v2295 = vlaneseq
  %v2296 = vshrl.u32 %v2295, 7
  %v2297 = vsub.s32 %v2294, %v2296
  %v2298 = vrot.slane %v2282, %v2297
  %v2300 = vunpack.c.l.s4 1966171168
  %v2301 = vunpack.c.0.s8 %v2300
  %v2302 = vlaneseq
  %v2303 = vshrl.u32 %v2302, 7
  %v2304 = vsub.s32 %v2301, %v2303
  %v2305 = vrot.slane %v2283, %v2304
  %v2307 = vunpack.c.l.s4 1966171168
  %v2308 = vunpack.c.0.s8 %v2307
  %v2309 = vlaneseq
  %v2310 = vshrl.u32 %v2309, 7
  %v2311 = vsub.s32 %v2308, %v2310
  %v2312 = vrot.slane %v2284, %v2311
  %v2313 = vcombine.high %v2291, %v2291
  %v2314 = vcombine.high %v2298, %v2298
  %v2315 = vcombine.high %v2305, %v2305
  %v2316 = vcombine.high %v2312, %v2312
  %v2317 = vcombine.high %v2213, %v2213
  %v2319 = vunpack.c.l.s4 1966171168
  %v2320 = vunpack.c.0.s8 %v2319
  %v2321 = vlaneseq
  %v2322 = vshrl.u32 %v2321, 7
  %v2323 = vsub.s32 %v2320, %v2322
  %v2324 = vrot.slane %v2213, %v2323
  %v2326 = vunpack.c.l.s4 1966171168
  %v2327 = vunpack.c.0.s8 %v2326
  %v2328 = vlaneseq
  %v2329 = vshrl.u32 %v2328, 7
  %v2330 = vsub.s32 %v2327, %v2329
  %v2331 = vrot.slane %v2317, %v2330
  %v2332 = vcombine.high %v2324, %v2324
  %v2333 = vcombine.high %v2331, %v2331
  %v2335 = vunpack.c.l.s4 1966171168
  %v2336 = vunpack.c.0.s8 %v2335
  %v2337 = vlaneseq
  %v2338 = vshrl.u32 %v2337, 7
  %v2339 = vsub.s32 %v2336, %v2338
  %v2340 = vrot.slane %v2324, %v2339
  %v2342 = vunpack.c.l.s4 1966171168
  %v2343 = vunpack.c.0.s8 %v2342
  %v2344 = vlaneseq
  %v2345 = vshrl.u32 %v2344, 7
  %v2346 = vsub.s32 %v2343, %v2345
  %v2347 = vrot.slane %v2331, %v2346
  %v2349 = vunpack.c.l.s4 1966171168
  %v2350 = vunpack.c.0.s8 %v2349
  %v2351 = vlaneseq
  %v2352 = vshrl.u32 %v2351, 7
  %v2353 = vsub.s32 %v2350, %v2352
  %v2354 = vrot.slane %v2332, %v2353
  %v2356 = vunpack.c.l.s4 1966171168
  %v2357 = vunpack.c.0.s8 %v2356
  %v2358 = vlaneseq
  %v2359 = vshrl.u32 %v2358, 7
  %v2360 = vsub.s32 %v2357, %v2359
  %v2361 = vrot.slane %v2333, %v2360
  %v2362 = vcombine.high %v2340, %v2340
  %v2363 = vcombine.high %v2347, %v2347
  %v2364 = vcombine.high %v2354, %v2354
  %v2365 = vcombine.high %v2361, %v2361
  %v2366 = vcombine.high %v2218, %v2218
  %v2368 = vunpack.c.l.s4 1966171168
  %v2369 = vunpack.c.0.s8 %v2368
  %v2370 = vlaneseq
  %v2371 = vshrl.u32 %v2370, 7
  %v2372 = vsub.s32 %v2369, %v2371
  %v2373 = vrot.slane %v2218, %v2372
  %v2375 = vunpack.c.l.s4 1966171168
  %v2376 = vunpack.c.0.s8 %v2375
  %v2377 = vlaneseq
  %v2378 = vshrl.u32 %v2377, 7
  %v2379 = vsub.s32 %v2376, %v2378
  %v2380 = vrot.slane %v2366, %v2379
  %v2381 = vcombine.high %v2373, %v2373
  %v2382 = vcombine.high %v2380, %v2380
  %v2384 = vunpack.c.l.s4 1966171168
  %v2385 = vunpack.c.0.s8 %v2384
  %v2386 = vlaneseq
  %v2387 = vshrl.u32 %v2386, 7
  %v2388 = vsub.s32 %v2385, %v2387
  %v2389 = vrot.slane %v2373, %v2388
  %v2391 = vunpack.c.l.s4 1966171168
  %v2392 = vunpack.c.0.s8 %v2391
  %v2393 = vlaneseq
  %v2394 = vshrl.u32 %v2393, 7
  %v2395 = vsub.s32 %v2392, %v2394
  %v2396 = vrot.slane %v2380, %v2395
  %v2398 = vunpack.c.l.s4 1966171168
  %v2399 = vunpack.c.0.s8 %v2398
  %v2400 = vlaneseq
  %v2401 = vshrl.u32 %v2400, 7
  %v2402 = vsub.s32 %v2399, %v2401
  %v2403 = vrot.slane %v2381, %v2402
  %v2405 = vunpack.c.l.s4 1966171168
  %v2406 = vunpack.c.0.s8 %v2405
  %v2407 = vlaneseq
  %v2408 = vshrl.u32 %v2407, 7
  %v2409 = vsub.s32 %v2406, %v2408
  %v2410 = vrot.slane %v2382, %v2409
  %v2411 = vcombine.high %v2389, %v2389
  %v2412 = vcombine.high %v2396, %v2396
  %v2413 = vcombine.high %v2403, %v2403
  %v2414 = vcombine.high %v2410, %v2410
  %v2415 = vcombine.high %v2221, %v2221
  %v2417 = vunpack.c.l.s4 1966171168
  %v2418 = vunpack.c.0.s8 %v2417
  %v2419 = vlaneseq
  %v2420 = vshrl.u32 %v2419, 7
  %v2421 = vsub.s32 %v2418, %v2420
  %v2422 = vrot.slane %v2221, %v2421
  %v2424 = vunpack.c.l.s4 1966171168
  %v2425 = vunpack.c.0.s8 %v2424
  %v2426 = vlaneseq
  %v2427 = vshrl.u32 %v2426, 7
  %v2428 = vsub.s32 %v2425, %v2427
  %v2429 = vrot.slane %v2415, %v2428
  %v2430 = vcombine.high %v2422, %v2422
  %v2431 = vcombine.high %v2429, %v2429
  %v2433 = vunpack.c.l.s4 1966171168
  %v2434 = vunpack.c.0.s8 %v2433
  %v2435 = vlaneseq
  %v2436 = vshrl.u32 %v2435, 7
  %v2437 = vsub.s32 %v2434, %v2436
  %v2438 = vrot.slane %v2422, %v2437
  %v2440 = vunpack.c.l.s4 1966171168
  %v2441 = vunpack.c.0.s8 %v2440
  %v2442 = vlaneseq
  %v2443 = vshrl.u32 %v2442, 7
  %v2444 = vsub.s32 %v2441, %v2443
  %v2445 = vrot.slane %v2429, %v2444
  %v2447 = vunpack.c.l.s4 1966171168
  %v2448 = vunpack.c.0.s8 %v2447
  %v2449 = vlaneseq
  %v2450 = vshrl.u32 %v2449, 7
  %v2451 = vsub.s32 %v2448, %v2450
  %v2452 = vrot.slane %v2430, %v2451
  %v2454 = vunpack.c.l.s4 1966171168
  %v2455 = vunpack.c.0.s8 %v2454
  %v2456 = vlaneseq
  %v2457 = vshrl.u32 %v2456, 7
  %v2458 = vsub.s32 %v2455, %v2457
  %v2459 = vrot.slane %v2431, %v2458
  %v2460 = vcombine.high %v2438, %v2438
  %v2461 = vcombine.high %v2445, %v2445
  %v2462 = vcombine.high %v2452, %v2452
  %v2463 = vcombine.high %v2459, %v2459
  %v2464 = vcombine.high %v2226, %v2226
  %v2466 = vunpack.c.l.s4 1966171168
  %v2467 = vunpack.c.0.s8 %v2466
  %v2468 = vlaneseq
  %v2469 = vshrl.u32 %v2468, 7
  %v2470 = vsub.s32 %v2467, %v2469
  %v2471 = vrot.slane %v2226, %v2470
  %v2473 = vunpack.c.l.s4 1966171168
  %v2474 = vunpack.c.0.s8 %v2473
  %v2475 = vlaneseq
  %v2476 = vshrl.u32 %v2475, 7
  %v2477 = vsub.s32 %v2474, %v2476
  %v2478 = vrot.slane %v2464, %v2477
  %v2479 = vcombine.high %v2471, %v2471
  %v2480 = vcombine.high %v2478, %v2478
  %v2482 = vunpack.c.l.s4 1966171168
  %v2483 = vunpack.c.0.s8 %v2482
  %v2484 = vlaneseq
  %v2485 = vshrl.u32 %v2484, 7
  %v2486 = vsub.s32 %v2483, %v2485
  %v2487 = vrot.slane %v2471, %v2486
  %v2489 = vunpack.c.l.s4 1966171168
  %v2490 = vunpack.c.0.s8 %v2489
  %v2491 = vlaneseq
  %v2492 = vshrl.u32 %v2491, 7
  %v2493 = vsub.s32 %v2490, %v2492
  %v2494 = vrot.slane %v2478, %v2493
  %v2496 = vunpack.c.l.s4 1966171168
  %v2497 = vunpack.c.0.s8 %v2496
  %v2498 = vlaneseq
  %v2499 = vshrl.u32 %v2498, 7
  %v2500 = vsub.s32 %v2497, %v2499
  %v2501 = vrot.slane %v2479, %v2500
  %v2503 = vunpack.c.l.s4 1966171168
  %v2504 = vunpack.c.0.s8 %v2503
  %v2505 = vlaneseq
  %v2506 = vshrl.u32 %v2505, 7
  %v2507 = vsub.s32 %v2504, %v2506
  %v2508 = vrot.slane %v2480, %v2507
  %v2509 = vcombine.high %v2487, %v2487
  %v2510 = vcombine.high %v2494, %v2494
  %v2511 = vcombine.high %v2501, %v2501
  %v2512 = vcombine.high %v2508, %v2508
  %v2513 = vcombine.high %v2229, %v2229
  %v2515 = vunpack.c.l.s4 1966171168
  %v2516 = vunpack.c.0.s8 %v2515
  %v2517 = vlaneseq
  %v2518 = vshrl.u32 %v2517, 7
  %v2519 = vsub.s32 %v2516, %v2518
  %v2520 = vrot.slane %v2229, %v2519
  %v2522 = vunpack.c.l.s4 1966171168
  %v2523 = vunpack.c.0.s8 %v2522
  %v2524 = vlaneseq
  %v2525 = vshrl.u32 %v2524, 7
  %v2526 = vsub.s32 %v2523, %v2525
  %v2527 = vrot.slane %v2513, %v2526
  %v2528 = vcombine.high %v2520, %v2520
  %v2529 = vcombine.high %v2527, %v2527
  %v2531 = vunpack.c.l.s4 1966171168
  %v2532 = vunpack.c.0.s8 %v2531
  %v2533 = vlaneseq
  %v2534 = vshrl.u32 %v2533, 7
  %v2535 = vsub.s32 %v2532, %v2534
  %v2536 = vrot.slane %v2520, %v2535
  %v2538 = vunpack.c.l.s4 1966171168
  %v2539 = vunpack.c.0.s8 %v2538
  %v2540 = vlaneseq
  %v2541 = vshrl.u32 %v2540, 7
  %v2542 = vsub.s32 %v2539, %v2541
  %v2543 = vrot.slane %v2527, %v2542
  %v2545 = vunpack.c.l.s4 1966171168
  %v2546 = vunpack.c.0.s8 %v2545
  %v2547 = vlaneseq
  %v2548 = vshrl.u32 %v2547, 7
  %v2549 = vsub.s32 %v2546, %v2548
  %v2550 = vrot.slane %v2528, %v2549
  %v2552 = vunpack.c.l.s4 1966171168
  %v2553 = vunpack.c.0.s8 %v2552
  %v2554 = vlaneseq
  %v2555 = vshrl.u32 %v2554, 7
  %v2556 = vsub.s32 %v2553, %v2555
  %v2557 = vrot.slane %v2529, %v2556
  %v2558 = vcombine.high %v2536, %v2536
  %v2559 = vcombine.high %v2543, %v2543
  %v2560 = vcombine.high %v2550, %v2550
  %v2561 = vcombine.high %v2557, %v2557
  %v2562 = vcombine.high %v2234, %v2234
  %v2564 = vunpack.c.l.s4 1966171168
  %v2565 = vunpack.c.0.s8 %v2564
  %v2566 = vlaneseq
  %v2567 = vshrl.u32 %v2566, 7
  %v2568 = vsub.s32 %v2565, %v2567
  %v2569 = vrot.slane %v2234, %v2568
  %v2571 = vunpack.c.l.s4 1966171168
  %v2572 = vunpack.c.0.s8 %v2571
  %v2573 = vlaneseq
  %v2574 = vshrl.u32 %v2573, 7
  %v2575 = vsub.s32 %v2572, %v2574
  %v2576 = vrot.slane %v2562, %v2575
  %v2577 = vcombine.high %v2569, %v2569
  %v2578 = vcombine.high %v2576, %v2576
  %v2580 = vunpack.c.l.s4 1966171168
  %v2581 = vunpack.c.0.s8 %v2580
  %v2582 = vlaneseq
  %v2583 = vshrl.u32 %v2582, 7
  %v2584 = vsub.s32 %v2581, %v2583
  %v2585 = vrot.slane %v2569, %v2584
  %v2587 = vunpack.c.l.s4 1966171168
  %v2588 = vunpack.c.0.s8 %v2587
  %v2589 = vlaneseq
  %v2590 = vshrl.u32 %v2589, 7
  %v2591 = vsub.s32 %v2588, %v2590
  %v2592 = vrot.slane %v2576, %v2591
  %v2594 = vunpack.c.l.s4 1966171168
  %v2595 = vunpack.c.0.s8 %v2594
  %v2596 = vlaneseq
  %v2597 = vshrl.u32 %v2596, 7
  %v2598 = vsub.s32 %v2595, %v2597
  %v2599 = vrot.slane %v2577, %v2598
  %v2601 = vunpack.c.l.s4 1966171168
  %v2602 = vunpack.c.0.s8 %v2601
  %v2603 = vlaneseq
  %v2604 = vshrl.u32 %v2603, 7
  %v2605 = vsub.s32 %v2602, %v2604
  %v2606 = vrot.slane %v2578, %v2605
  %v2607 = vcombine.high %v2585, %v2585
  %v2608 = vcombine.high %v2592, %v2592
  %v2609 = vcombine.high %v2599, %v2599
  %v2610 = vcombine.high %v2606, %v2606
  %v2611 = vcombine.high %v2237, %v2237
  %v2613 = vunpack.c.l.s4 1966171168
  %v2614 = vunpack.c.0.s8 %v2613
  %v2615 = vlaneseq
  %v2616 = vshrl.u32 %v2615, 7
  %v2617 = vsub.s32 %v2614, %v2616
  %v2618 = vrot.slane %v2237, %v2617
  %v2620 = vunpack.c.l.s4 1966171168
  %v2621 = vunpack.c.0.s8 %v2620
  %v2622 = vlaneseq
  %v2623 = vshrl.u32 %v2622, 7
  %v2624 = vsub.s32 %v2621, %v2623
  %v2625 = vrot.slane %v2611, %v2624
  %v2626 = vcombine.high %v2618, %v2618
  %v2627 = vcombine.high %v2625, %v2625
  %v2629 = vunpack.c.l.s4 1966171168
  %v2630 = vunpack.c.0.s8 %v2629
  %v2631 = vlaneseq
  %v2632 = vshrl.u32 %v2631, 7
  %v2633 = vsub.s32 %v2630, %v2632
  %v2634 = vrot.slane %v2618, %v2633
  %v2636 = vunpack.c.l.s4 1966171168
  %v2637 = vunpack.c.0.s8 %v2636
  %v2638 = vlaneseq
  %v2639 = vshrl.u32 %v2638, 7
  %v2640 = vsub.s32 %v2637, %v2639
  %v2641 = vrot.slane %v2625, %v2640
  %v2643 = vunpack.c.l.s4 1966171168
  %v2644 = vunpack.c.0.s8 %v2643
  %v2645 = vlaneseq
  %v2646 = vshrl.u32 %v2645, 7
  %v2647 = vsub.s32 %v2644, %v2646
  %v2648 = vrot.slane %v2626, %v2647
  %v2650 = vunpack.c.l.s4 1966171168
  %v2651 = vunpack.c.0.s8 %v2650
  %v2652 = vlaneseq
  %v2653 = vshrl.u32 %v2652, 7
  %v2654 = vsub.s32 %v2651, %v2653
  %v2655 = vrot.slane %v2627, %v2654
  %v2656 = vcombine.high %v2634, %v2634
  %v2657 = vcombine.high %v2641, %v2641
  %v2658 = vcombine.high %v2648, %v2648
  %v2659 = vcombine.high %v2655, %v2655
  %v2660 = vcombine.high %v2242, %v2242
  %v2662 = vunpack.c.l.s4 1966171168
  %v2663 = vunpack.c.0.s8 %v2662
  %v2664 = vlaneseq
  %v2665 = vshrl.u32 %v2664, 7
  %v2666 = vsub.s32 %v2663, %v2665
  %v2667 = vrot.slane %v2242, %v2666
  %v2669 = vunpack.c.l.s4 1966171168
  %v2670 = vunpack.c.0.s8 %v2669
  %v2671 = vlaneseq
  %v2672 = vshrl.u32 %v2671, 7
  %v2673 = vsub.s32 %v2670, %v2672
  %v2674 = vrot.slane %v2660, %v2673
  %v2675 = vcombine.high %v2667, %v2667
  %v2676 = vcombine.high %v2674, %v2674
  %v2678 = vunpack.c.l.s4 1966171168
  %v2679 = vunpack.c.0.s8 %v2678
  %v2680 = vlaneseq
  %v2681 = vshrl.u32 %v2680, 7
  %v2682 = vsub.s32 %v2679, %v2681
  %v2683 = vrot.slane %v2667, %v2682
  %v2685 = vunpack.c.l.s4 1966171168
  %v2686 = vunpack.c.0.s8 %v2685
  %v2687 = vlaneseq
  %v2688 = vshrl.u32 %v2687, 7
  %v2689 = vsub.s32 %v2686, %v2688
  %v2690 = vrot.slane %v2674, %v2689
  %v2692 = vunpack.c.l.s4 1966171168
  %v2693 = vunpack.c.0.s8 %v2692
  %v2694 = vlaneseq
  %v2695 = vshrl.u32 %v2694, 7
  %v2696 = vsub.s32 %v2693, %v2695
  %v2697 = vrot.slane %v2675, %v2696
  %v2699 = vunpack.c.l.s4 1966171168
  %v2700 = vunpack.c.0.s8 %v2699
  %v2701 = vlaneseq
  %v2702 = vshrl.u32 %v2701, 7
  %v2703 = vsub.s32 %v2700, %v2702
  %v2704 = vrot.slane %v2676, %v2703
  %v2705 = vcombine.high %v2683, %v2683
  %v2706 = vcombine.high %v2690, %v2690
  %v2707 = vcombine.high %v2697, %v2697
  %v2708 = vcombine.high %v2704, %v2704
  %v2709 = vcombine.high %v2245, %v2245
  %v2711 = vunpack.c.l.s4 1966171168
  %v2712 = vunpack.c.0.s8 %v2711
  %v2713 = vlaneseq
  %v2714 = vshrl.u32 %v2713, 7
  %v2715 = vsub.s32 %v2712, %v2714
  %v2716 = vrot.slane %v2245, %v2715
  %v2718 = vunpack.c.l.s4 1966171168
  %v2719 = vunpack.c.0.s8 %v2718
  %v2720 = vlaneseq
  %v2721 = vshrl.u32 %v2720, 7
  %v2722 = vsub.s32 %v2719, %v2721
  %v2723 = vrot.slane %v2709, %v2722
  %v2724 = vcombine.high %v2716, %v2716
  %v2725 = vcombine.high %v2723, %v2723
  %v2727 = vunpack.c.l.s4 1966171168
  %v2728 = vunpack.c.0.s8 %v2727
  %v2729 = vlaneseq
  %v2730 = vshrl.u32 %v2729, 7
  %v2731 = vsub.s32 %v2728, %v2730
  %v2732 = vrot.slane %v2716, %v2731
  %v2734 = vunpack.c.l.s4 1966171168
  %v2735 = vunpack.c.0.s8 %v2734
  %v2736 = vlaneseq
  %v2737 = vshrl.u32 %v2736, 7
  %v2738 = vsub.s32 %v2735, %v2737
  %v2739 = vrot.slane %v2723, %v2738
  %v2741 = vunpack.c.l.s4 1966171168
  %v2742 = vunpack.c.0.s8 %v2741
  %v2743 = vlaneseq
  %v2744 = vshrl.u32 %v2743, 7
  %v2745 = vsub.s32 %v2742, %v2744
  %v2746 = vrot.slane %v2724, %v2745
  %v2748 = vunpack.c.l.s4 1966171168
  %v2749 = vunpack.c.0.s8 %v2748
  %v2750 = vlaneseq
  %v2751 = vshrl.u32 %v2750, 7
  %v2752 = vsub.s32 %v2749, %v2751
  %v2753 = vrot.slane %v2725, %v2752
  %v2754 = vcombine.high %v2732, %v2732
  %v2755 = vcombine.high %v2739, %v2739
  %v2756 = vcombine.high %v2746, %v2746
  %v2757 = vcombine.high %v2753, %v2753
  %v2758 = vcombine.high %v2250, %v2250
  %v2760 = vunpack.c.l.s4 1966171168
  %v2761 = vunpack.c.0.s8 %v2760
  %v2762 = vlaneseq
  %v2763 = vshrl.u32 %v2762, 7
  %v2764 = vsub.s32 %v2761, %v2763
  %v2765 = vrot.slane %v2250, %v2764
  %v2767 = vunpack.c.l.s4 1966171168
  %v2768 = vunpack.c.0.s8 %v2767
  %v2769 = vlaneseq
  %v2770 = vshrl.u32 %v2769, 7
  %v2771 = vsub.s32 %v2768, %v2770
  %v2772 = vrot.slane %v2758, %v2771
  %v2773 = vcombine.high %v2765, %v2765
  %v2774 = vcombine.high %v2772, %v2772
  %v2776 = vunpack.c.l.s4 1966171168
  %v2777 = vunpack.c.0.s8 %v2776
  %v2778 = vlaneseq
  %v2779 = vshrl.u32 %v2778, 7
  %v2780 = vsub.s32 %v2777, %v2779
  %v2781 = vrot.slane %v2765, %v2780
  %v2783 = vunpack.c.l.s4 1966171168
  %v2784 = vunpack.c.0.s8 %v2783
  %v2785 = vlaneseq
  %v2786 = vshrl.u32 %v2785, 7
  %v2787 = vsub.s32 %v2784, %v2786
  %v2788 = vrot.slane %v2772, %v2787
  %v2790 = vunpack.c.l.s4 1966171168
  %v2791 = vunpack.c.0.s8 %v2790
  %v2792 = vlaneseq
  %v2793 = vshrl.u32 %v2792, 7
  %v2794 = vsub.s32 %v2791, %v2793
  %v2795 = vrot.slane %v2773, %v2794
  %v2797 = vunpack.c.l.s4 1966171168
  %v2798 = vunpack.c.0.s8 %v2797
  %v2799 = vlaneseq
  %v2800 = vshrl.u32 %v2799, 7
  %v2801 = vsub.s32 %v2798, %v2800
  %v2802 = vrot.slane %v2774, %v2801
  %v2803 = vcombine.high %v2781, %v2781
  %v2804 = vcombine.high %v2788, %v2788
  %v2805 = vcombine.high %v2795, %v2795
  %v2806 = vcombine.high %v2802, %v2802
  %v2807 = vcombine.high %v2253, %v2253
  %v2809 = vunpack.c.l.s4 1966171168
  %v2810 = vunpack.c.0.s8 %v2809
  %v2811 = vlaneseq
  %v2812 = vshrl.u32 %v2811, 7
  %v2813 = vsub.s32 %v2810, %v2812
  %v2814 = vrot.slane %v2253, %v2813
  %v2816 = vunpack.c.l.s4 1966171168
  %v2817 = vunpack.c.0.s8 %v2816
  %v2818 = vlaneseq
  %v2819 = vshrl.u32 %v2818, 7
  %v2820 = vsub.s32 %v2817, %v2819
  %v2821 = vrot.slane %v2807, %v2820
  %v2822 = vcombine.high %v2814, %v2814
  %v2823 = vcombine.high %v2821, %v2821
  %v2825 = vunpack.c.l.s4 1966171168
  %v2826 = vunpack.c.0.s8 %v2825
  %v2827 = vlaneseq
  %v2828 = vshrl.u32 %v2827, 7
  %v2829 = vsub.s32 %v2826, %v2828
  %v2830 = vrot.slane %v2814, %v2829
  %v2832 = vunpack.c.l.s4 1966171168
  %v2833 = vunpack.c.0.s8 %v2832
  %v2834 = vlaneseq
  %v2835 = vshrl.u32 %v2834, 7
  %v2836 = vsub.s32 %v2833, %v2835
  %v2837 = vrot.slane %v2821, %v2836
  %v2839 = vunpack.c.l.s4 1966171168
  %v2840 = vunpack.c.0.s8 %v2839
  %v2841 = vlaneseq
  %v2842 = vshrl.u32 %v2841, 7
  %v2843 = vsub.s32 %v2840, %v2842
  %v2844 = vrot.slane %v2822, %v2843
  %v2846 = vunpack.c.l.s4 1966171168
  %v2847 = vunpack.c.0.s8 %v2846
  %v2848 = vlaneseq
  %v2849 = vshrl.u32 %v2848, 7
  %v2850 = vsub.s32 %v2847, %v2849
  %v2851 = vrot.slane %v2823, %v2850
  %v2852 = vcombine.high %v2830, %v2830
  %v2853 = vcombine.high %v2837, %v2837
  %v2854 = vcombine.high %v2844, %v2844
  %v2855 = vcombine.high %v2851, %v2851
  %v2856 = vlaneseq
  %v2857 = vshrl.u32 %v2856, 7
  %v2858 = vsub.s32 0, %v2857
  %v2859 = vrot.slane %v2291, %v2858
  %v2860 = vlaneseq
  %v2861 = vshrl.u32 %v2860, 7
  %v2862 = vsub.s32 0, %v2861
  %v2863 = vrot.slane %v2305, %v2862
  %v2864 = vlaneseq
  %v2865 = vshrl.u32 %v2864, 7
  %v2866 = vsub.s32 0, %v2865
  %v2867 = vrot.slane %v2313, %v2866
  %v2868 = vlaneseq
  %v2869 = vshrl.u32 %v2868, 7
  %v2870 = vsub.s32 0, %v2869
  %v2871 = vrot.slane %v2315, %v2870
  %v2872 = vlaneseq
  %v2873 = vshrl.u32 %v2872, 7
  %v2874 = vsub.s32 0, %v2873
  %v2875 = vrot.slane %v2298, %v2874
  %v2876 = vlaneseq
  %v2877 = vshrl.u32 %v2876, 7
  %v2878 = vsub.s32 0, %v2877
  %v2879 = vrot.slane %v2312, %v2878
  %v2880 = vlaneseq
  %v2881 = vshrl.u32 %v2880, 7
  %v2882 = vsub.s32 0, %v2881
  %v2883 = vrot.slane %v2314, %v2882
  %v2884 = vlaneseq
  %v2885 = vshrl.u32 %v2884, 7
  %v2886 = vsub.s32 0, %v2885
  %v2887 = vrot.slane %v2316, %v2886
  %v2888 = vlaneseq
  %v2889 = vshrl.u32 %v2888, 7
  %v2890 = vsub.s32 0, %v2889
  %v2891 = vrot.slane %v2340, %v2890
  %v2892 = vlaneseq
  %v2893 = vshrl.u32 %v2892, 7
  %v2894 = vsub.s32 0, %v2893
  %v2895 = vrot.slane %v2354, %v2894
  %v2896 = vlaneseq
  %v2897 = vshrl.u32 %v2896, 7
  %v2898 = vsub.s32 0, %v2897
  %v2899 = vrot.slane %v2362, %v2898
  %v2900 = vlaneseq
  %v2901 = vshrl.u32 %v2900, 7
  %v2902 = vsub.s32 0, %v2901
  %v2903 = vrot.slane %v2364, %v2902
  %v2904 = vlaneseq
  %v2905 = vshrl.u32 %v2904, 7
  %v2906 = vsub.s32 0, %v2905
  %v2907 = vrot.slane %v2347, %v2906
  %v2908 = vlaneseq
  %v2909 = vshrl.u32 %v2908, 7
  %v2910 = vsub.s32 0, %v2909
  %v2911 = vrot.slane %v2361, %v2910
  %v2912 = vlaneseq
  %v2913 = vshrl.u32 %v2912, 7
  %v2914 = vsub.s32 0, %v2913
  %v2915 = vrot.slane %v2363, %v2914
  %v2916 = vlaneseq
  %v2917 = vshrl.u32 %v2916, 7
  %v2918 = vsub.s32 0, %v2917
  %v2919 = vrot.slane %v2365, %v2918
  %v2920 = vlaneseq
  %v2921 = vshrl.u32 %v2920, 7
  %v2922 = vsub.s32 0, %v2921
  %v2923 = vrot.slane %v2389, %v2922
  %v2924 = vlaneseq
  %v2925 = vshrl.u32 %v2924, 7
  %v2926 = vsub.s32 0, %v2925
  %v2927 = vrot.slane %v2403, %v2926
  %v2928 = vlaneseq
  %v2929 = vshrl.u32 %v2928, 7
  %v2930 = vsub.s32 0, %v2929
  %v2931 = vrot.slane %v2411, %v2930
  %v2932 = vlaneseq
  %v2933 = vshrl.u32 %v2932, 7
  %v2934 = vsub.s32 0, %v2933
  %v2935 = vrot.slane %v2413, %v2934
  %v2936 = vlaneseq
  %v2937 = vshrl.u32 %v2936, 7
  %v2938 = vsub.s32 0, %v2937
  %v2939 = vrot.slane %v2396, %v2938
  %v2940 = vlaneseq
  %v2941 = vshrl.u32 %v2940, 7
  %v2942 = vsub.s32 0, %v2941
  %v2943 = vrot.slane %v2410, %v2942
  %v2944 = vlaneseq
  %v2945 = vshrl.u32 %v2944, 7
  %v2946 = vsub.s32 0, %v2945
  %v2947 = vrot.slane %v2412, %v2946
  %v2948 = vlaneseq
  %v2949 = vshrl.u32 %v2948, 7
  %v2950 = vsub.s32 0, %v2949
  %v2951 = vrot.slane %v2414, %v2950
  %v2952 = vlaneseq
  %v2953 = vshrl.u32 %v2952, 7
  %v2954 = vsub.s32 0, %v2953
  %v2955 = vrot.slane %v2438, %v2954
  %v2956 = vlaneseq
  %v2957 = vshrl.u32 %v2956, 7
  %v2958 = vsub.s32 0, %v2957
  %v2959 = vrot.slane %v2452, %v2958
  %v2960 = vlaneseq
  %v2961 = vshrl.u32 %v2960, 7
  %v2962 = vsub.s32 0, %v2961
  %v2963 = vrot.slane %v2460, %v2962
  %v2964 = vlaneseq
  %v2965 = vshrl.u32 %v2964, 7
  %v2966 = vsub.s32 0, %v2965
  %v2967 = vrot.slane %v2462, %v2966
  %v2968 = vlaneseq
  %v2969 = vshrl.u32 %v2968, 7
  %v2970 = vsub.s32 0, %v2969
  %v2971 = vrot.slane %v2445, %v2970
  %v2972 = vlaneseq
  %v2973 = vshrl.u32 %v2972, 7
  %v2974 = vsub.s32 0, %v2973
  %v2975 = vrot.slane %v2459, %v2974
  %v2976 = vlaneseq
  %v2977 = vshrl.u32 %v2976, 7
  %v2978 = vsub.s32 0, %v2977
  %v2979 = vrot.slane %v2461, %v2978
  %v2980 = vlaneseq
  %v2981 = vshrl.u32 %v2980, 7
  %v2982 = vsub.s32 0, %v2981
  %v2983 = vrot.slane %v2463, %v2982
  %v2984 = vlaneseq
  %v2985 = vshrl.u32 %v2984, 7
  %v2986 = vsub.s32 0, %v2985
  %v2987 = vrot.slane %v2487, %v2986
  %v2988 = vlaneseq
  %v2989 = vshrl.u32 %v2988, 7
  %v2990 = vsub.s32 0, %v2989
  %v2991 = vrot.slane %v2501, %v2990
  %v2992 = vlaneseq
  %v2993 = vshrl.u32 %v2992, 7
  %v2994 = vsub.s32 0, %v2993
  %v2995 = vrot.slane %v2509, %v2994
  %v2996 = vlaneseq
  %v2997 = vshrl.u32 %v2996, 7
  %v2998 = vsub.s32 0, %v2997
  %v2999 = vrot.slane %v2511, %v2998
  %v3000 = vlaneseq
  %v3001 = vshrl.u32 %v3000, 7
  %v3002 = vsub.s32 0, %v3001
  %v3003 = vrot.slane %v2494, %v3002
  %v3004 = vlaneseq
  %v3005 = vshrl.u32 %v3004, 7
  %v3006 = vsub.s32 0, %v3005
  %v3007 = vrot.slane %v2508, %v3006
  %v3008 = vlaneseq
  %v3009 = vshrl.u32 %v3008, 7
  %v3010 = vsub.s32 0, %v3009
  %v3011 = vrot.slane %v2510, %v3010
  %v3012 = vlaneseq
  %v3013 = vshrl.u32 %v3012, 7
  %v3014 = vsub.s32 0, %v3013
  %v3015 = vrot.slane %v2512, %v3014
  %v3016 = vlaneseq
  %v3017 = vshrl.u32 %v3016, 7
  %v3018 = vsub.s32 0, %v3017
  %v3019 = vrot.slane %v2536, %v3018
  %v3020 = vlaneseq
  %v3021 = vshrl.u32 %v3020, 7
  %v3022 = vsub.s32 0, %v3021
  %v3023 = vrot.slane %v2550, %v3022
  %v3024 = vlaneseq
  %v3025 = vshrl.u32 %v3024, 7
  %v3026 = vsub.s32 0, %v3025
  %v3027 = vrot.slane %v2558, %v3026
  %v3028 = vlaneseq
  %v3029 = vshrl.u32 %v3028, 7
  %v3030 = vsub.s32 0, %v3029
  %v3031 = vrot.slane %v2560, %v3030
  %v3032 = vlaneseq
  %v3033 = vshrl.u32 %v3032, 7
  %v3034 = vsub.s32 0, %v3033
  %v3035 = vrot.slane %v2543, %v3034
  %v3036 = vlaneseq
  %v3037 = vshrl.u32 %v3036, 7
  %v3038 = vsub.s32 0, %v3037
  %v3039 = vrot.slane %v2557, %v3038
  %v3040 = vlaneseq
  %v3041 = vshrl.u32 %v3040, 7
  %v3042 = vsub.s32 0, %v3041
  %v3043 = vrot.slane %v2559, %v3042
  %v3044 = vlaneseq
  %v3045 = vshrl.u32 %v3044, 7
  %v3046 = vsub.s32 0, %v3045
  %v3047 = vrot.slane %v2561, %v3046
  %v3048 = vlaneseq
  %v3049 = vshrl.u32 %v3048, 7
  %v3050 = vsub.s32 0, %v3049
  %v3051 = vrot.slane %v2585, %v3050
  %v3052 = vlaneseq
  %v3053 = vshrl.u32 %v3052, 7
  %v3054 = vsub.s32 0, %v3053
  %v3055 = vrot.slane %v2599, %v3054
  %v3056 = vlaneseq
  %v3057 = vshrl.u32 %v3056, 7
  %v3058 = vsub.s32 0, %v3057
  %v3059 = vrot.slane %v2607, %v3058
  %v3060 = vlaneseq
  %v3061 = vshrl.u32 %v3060, 7
  %v3062 = vsub.s32 0, %v3061
  %v3063 = vrot.slane %v2609, %v3062
  %v3064 = vlaneseq
  %v3065 = vshrl.u32 %v3064, 7
  %v3066 = vsub.s32 0, %v3065
  %v3067 = vrot.slane %v2592, %v3066
  %v3068 = vlaneseq
  %v3069 = vshrl.u32 %v3068, 7
  %v3070 = vsub.s32 0, %v3069
  %v3071 = vrot.slane %v2606, %v3070
  %v3072 = vlaneseq
  %v3073 = vshrl.u32 %v3072, 7
  %v3074 = vsub.s32 0, %v3073
  %v3075 = vrot.slane %v2608, %v3074
  %v3076 = vlaneseq
  %v3077 = vshrl.u32 %v3076, 7
  %v3078 = vsub.s32 0, %v3077
  %v3079 = vrot.slane %v2610, %v3078
  %v3080 = vlaneseq
  %v3081 = vshrl.u32 %v3080, 7
  %v3082 = vsub.s32 0, %v3081
  %v3083 = vrot.slane %v2634, %v3082
  %v3084 = vlaneseq
  %v3085 = vshrl.u32 %v3084, 7
  %v3086 = vsub.s32 0, %v3085
  %v3087 = vrot.slane %v2648, %v3086
  %v3088 = vlaneseq
  %v3089 = vshrl.u32 %v3088, 7
  %v3090 = vsub.s32 0, %v3089
  %v3091 = vrot.slane %v2656, %v3090
  %v3092 = vlaneseq
  %v3093 = vshrl.u32 %v3092, 7
  %v3094 = vsub.s32 0, %v3093
  %v3095 = vrot.slane %v2658, %v3094
  %v3096 = vlaneseq
  %v3097 = vshrl.u32 %v3096, 7
  %v3098 = vsub.s32 0, %v3097
  %v3099 = vrot.slane %v2641, %v3098
  %v3100 = vlaneseq
  %v3101 = vshrl.u32 %v3100, 7
  %v3102 = vsub.s32 0, %v3101
  %v3103 = vrot.slane %v2655, %v3102
  %v3104 = vlaneseq
  %v3105 = vshrl.u32 %v3104, 7
  %v3106 = vsub.s32 0, %v3105
  %v3107 = vrot.slane %v2657, %v3106
  %v3108 = vlaneseq
  %v3109 = vshrl.u32 %v3108, 7
  %v3110 = vsub.s32 0, %v3109
  %v3111 = vrot.slane %v2659, %v3110
  %v3112 = vlaneseq
  %v3113 = vshrl.u32 %v3112, 7
  %v3114 = vsub.s32 0, %v3113
  %v3115 = vrot.slane %v2683, %v3114
  %v3116 = vlaneseq
  %v3117 = vshrl.u32 %v3116, 7
  %v3118 = vsub.s32 0, %v3117
  %v3119 = vrot.slane %v2697, %v3118
  %v3120 = vlaneseq
  %v3121 = vshrl.u32 %v3120, 7
  %v3122 = vsub.s32 0, %v3121
  %v3123 = vrot.slane %v2705, %v3122
  %v3124 = vlaneseq
  %v3125 = vshrl.u32 %v3124, 7
  %v3126 = vsub.s32 0, %v3125
  %v3127 = vrot.slane %v2707, %v3126
  %v3128 = vlaneseq
  %v3129 = vshrl.u32 %v3128, 7
  %v3130 = vsub.s32 0, %v3129
  %v3131 = vrot.slane %v2690, %v3130
  %v3132 = vlaneseq
  %v3133 = vshrl.u32 %v3132, 7
  %v3134 = vsub.s32 0, %v3133
  %v3135 = vrot.slane %v2704, %v3134
  %v3136 = vlaneseq
  %v3137 = vshrl.u32 %v3136, 7
  %v3138 = vsub.s32 0, %v3137
  %v3139 = vrot.slane %v2706, %v3138
  %v3140 = vlaneseq
  %v3141 = vshrl.u32 %v3140, 7
  %v3142 = vsub.s32 0, %v3141
  %v3143 = vrot.slane %v2708, %v3142
  %v3144 = vlaneseq
  %v3145 = vshrl.u32 %v3144, 7
  %v3146 = vsub.s32 0, %v3145
  %v3147 = vrot.slane %v2732, %v3146
  %v3148 = vlaneseq
  %v3149 = vshrl.u32 %v3148, 7
  %v3150 = vsub.s32 0, %v3149
  %v3151 = vrot.slane %v2746, %v3150
  %v3152 = vlaneseq
  %v3153 = vshrl.u32 %v3152, 7
  %v3154 = vsub.s32 0, %v3153
  %v3155 = vrot.slane %v2754, %v3154
  %v3156 = vlaneseq
  %v3157 = vshrl.u32 %v3156, 7
  %v3158 = vsub.s32 0, %v3157
  %v3159 = vrot.slane %v2756, %v3158
  %v3160 = vlaneseq
  %v3161 = vshrl.u32 %v3160, 7
  %v3162 = vsub.s32 0, %v3161
  %v3163 = vrot.slane %v2739, %v3162
  %v3164 = vlaneseq
  %v3165 = vshrl.u32 %v3164, 7
  %v3166 = vsub.s32 0, %v3165
  %v3167 = vrot.slane %v2753, %v3166
  %v3168 = vlaneseq
  %v3169 = vshrl.u32 %v3168, 7
  %v3170 = vsub.s32 0, %v3169
  %v3171 = vrot.slane %v2755, %v3170
  %v3172 = vlaneseq
  %v3173 = vshrl.u32 %v3172, 7
  %v3174 = vsub.s32 0, %v3173
  %v3175 = vrot.slane %v2757, %v3174
  %v3176 = vlaneseq
  %v3177 = vshrl.u32 %v3176, 7
  %v3178 = vsub.s32 0, %v3177
  %v3179 = vrot.slane %v2781, %v3178
  %v3180 = vlaneseq
  %v3181 = vshrl.u32 %v3180, 7
  %v3182 = vsub.s32 0, %v3181
  %v3183 = vrot.slane %v2795, %v3182
  %v3184 = vlaneseq
  %v3185 = vshrl.u32 %v3184, 7
  %v3186 = vsub.s32 0, %v3185
  %v3187 = vrot.slane %v2803, %v3186
  %v3188 = vlaneseq
  %v3189 = vshrl.u32 %v3188, 7
  %v3190 = vsub.s32 0, %v3189
  %v3191 = vrot.slane %v2805, %v3190
  %v3192 = vlaneseq
  %v3193 = vshrl.u32 %v3192, 7
  %v3194 = vsub.s32 0, %v3193
  %v3195 = vrot.slane %v2788, %v3194
  %v3196 = vlaneseq
  %v3197 = vshrl.u32 %v3196, 7
  %v3198 = vsub.s32 0, %v3197
  %v3199 = vrot.slane %v2802, %v3198
  %v3200 = vlaneseq
  %v3201 = vshrl.u32 %v3200, 7
  %v3202 = vsub.s32 0, %v3201
  %v3203 = vrot.slane %v2804, %v3202
  %v3204 = vlaneseq
  %v3205 = vshrl.u32 %v3204, 7
  %v3206 = vsub.s32 0, %v3205
  %v3207 = vrot.slane %v2806, %v3206
  %v3208 = vlaneseq
  %v3209 = vshrl.u32 %v3208, 7
  %v3210 = vsub.s32 0, %v3209
  %v3211 = vrot.slane %v2830, %v3210
  %v3212 = vlaneseq
  %v3213 = vshrl.u32 %v3212, 7
  %v3214 = vsub.s32 0, %v3213
  %v3215 = vrot.slane %v2844, %v3214
  %v3216 = vlaneseq
  %v3217 = vshrl.u32 %v3216, 7
  %v3218 = vsub.s32 0, %v3217
  %v3219 = vrot.slane %v2852, %v3218
  %v3220 = vlaneseq
  %v3221 = vshrl.u32 %v3220, 7
  %v3222 = vsub.s32 0, %v3221
  %v3223 = vrot.slane %v2854, %v3222
  %v3224 = vlaneseq
  %v3225 = vshrl.u32 %v3224, 7
  %v3226 = vsub.s32 0, %v3225
  %v3227 = vrot.slane %v2837, %v3226
  %v3228 = vlaneseq
  %v3229 = vshrl.u32 %v3228, 7
  %v3230 = vsub.s32 0, %v3229
  %v3231 = vrot.slane %v2851, %v3230
  %v3232 = vlaneseq
  %v3233 = vshrl.u32 %v3232, 7
  %v3234 = vsub.s32 0, %v3233
  %v3235 = vrot.slane %v2853, %v3234
  %v3236 = vlaneseq
  %v3237 = vshrl.u32 %v3236, 7
  %v3238 = vsub.s32 0, %v3237
  %v3239 = vrot.slane %v2855, %v3238
  %v3336 = vadd.f32 %v1527, %v2859
  %v3337 = vadd.f32 %v1530, %v2863
  %v3338 = vadd.f32 %v1535, %v2867
  %v3339 = vadd.f32 %v1538, %v2871
  %v3340 = vadd.f32 %v1543, %v2875
  %v3341 = vadd.f32 %v1546, %v2879
  %v3342 = vadd.f32 %v1551, %v2883
  %v3343 = vadd.f32 %v1554, %v2887
  %v3344 = vadd.f32 %v1559, %v2891
  %v3345 = vadd.f32 %v1562, %v2895
  %v3346 = vadd.f32 %v1567, %v2899
  %v3347 = vadd.f32 %v1570, %v2903
  %v3348 = vadd.f32 %v1575, %v2907
  %v3349 = vadd.f32 %v1578, %v2911
  %v3350 = vadd.f32 %v1583, %v2915
  %v3351 = vadd.f32 %v1586, %v2919
  %v3352 = vadd.f32 %v1591, %v2923
  %v3353 = vadd.f32 %v1594, %v2927
  %v3354 = vadd.f32 %v1599, %v2931
  %v3355 = vadd.f32 %v1602, %v2935
  %v3356 = vadd.f32 %v1607, %v2939
  %v3357 = vadd.f32 %v1610, %v2943
  %v3358 = vadd.f32 %v1615, %v2947
  %v3359 = vadd.f32 %v1618, %v2951
  %v3360 = vadd.f32 %v1623, %v2955
  %v3361 = vadd.f32 %v1626, %v2959
  %v3362 = vadd.f32 %v1631, %v2963
  %v3363 = vadd.f32 %v1634, %v2967
  %v3364 = vadd.f32 %v1639, %v2971
  %v3365 = vadd.f32 %v1642, %v2975
  %v3366 = vadd.f32 %v1647, %v2979
  %v3367 = vadd.f32 %v1650, %v2983
  %v3368 = vadd.f32 %v1655, %v2987
  %v3369 = vadd.f32 %v1658, %v2991
  %v3370 = vadd.f32 %v1663, %v2995
  %v3371 = vadd.f32 %v1666, %v2999
  %v3372 = vadd.f32 %v1671, %v3003
  %v3373 = vadd.f32 %v1674, %v3007
  %v3374 = vadd.f32 %v1679, %v3011
  %v3375 = vadd.f32 %v1682, %v3015
  %v3376 = vadd.f32 %v1687, %v3019
  %v3377 = vadd.f32 %v1690, %v3023
  %v3378 = vadd.f32 %v1695, %v3027
  %v3379 = vadd.f32 %v1698, %v3031
  %v3380 = vadd.f32 %v1703, %v3035
  %v3381 = vadd.f32 %v1706, %v3039
  %v3382 = vadd.f32 %v1711, %v3043
  %v3383 = vadd.f32 %v1714, %v3047
  %v3384 = vadd.f32 %v1719, %v3051
  %v3385 = vadd.f32 %v1722, %v3055
  %v3386 = vadd.f32 %v1727, %v3059
  %v3387 = vadd.f32 %v1730, %v3063
  %v3388 = vadd.f32 %v1735, %v3067
  %v3389 = vadd.f32 %v1738, %v3071
  %v3390 = vadd.f32 %v1743, %v3075
  %v3391 = vadd.f32 %v1746, %v3079
  %v3392 = vadd.f32 %v1751, %v3083
  %v3393 = vadd.f32 %v1754, %v3087
  %v3394 = vadd.f32 %v1759, %v3091
  %v3395 = vadd.f32 %v1762, %v3095
  %v3396 = vadd.f32 %v1767, %v3099
  %v3397 = vadd.f32 %v1770, %v3103
  %v3398 = vadd.f32 %v1775, %v3107
  %v3399 = vadd.f32 %v1778, %v3111
  %v3400 = vadd.f32 %v1783, %v3115
  %v3401 = vadd.f32 %v1786, %v3119
  %v3402 = vadd.f32 %v1791, %v3123
  %v3403 = vadd.f32 %v1794, %v3127
  %v3404 = vadd.f32 %v1799, %v3131
  %v3405 = vadd.f32 %v1802, %v3135
  %v3406 = vadd.f32 %v1807, %v3139
  %v3407 = vadd.f32 %v1810, %v3143
  %v3408 = vadd.f32 %v1815, %v3147
  %v3409 = vadd.f32 %v1818, %v3151
  %v3410 = vadd.f32 %v1823, %v3155
  %v3411 = vadd.f32 %v1826, %v3159
  %v3412 = vadd.f32 %v1831, %v3163
  %v3413 = vadd.f32 %v1834, %v3167
  %v3414 = vadd.f32 %v1839, %v3171
  %v3415 = vadd.f32 %v1842, %v3175
  %v3416 = vadd.f32 %v1847, %v3179
  %v3417 = vadd.f32 %v1850, %v3183
  %v3418 = vadd.f32 %v1855, %v3187
  %v3419 = vadd.f32 %v1858, %v3191
  %v3420 = vadd.f32 %v1863, %v3195
  %v3421 = vadd.f32 %v1866, %v3199
  %v3422 = vadd.f32 %v1871, %v3203
  %v3423 = vadd.f32 %v1874, %v3207
  %v3424 = vadd.f32 %v1879, %v3211
  %v3425 = vadd.f32 %v1882, %v3215
  %v3426 = vadd.f32 %v1887, %v3219
  %v3427 = vadd.f32 %v1890, %v3223
  %v3428 = vadd.f32 %v1895, %v3227
  %v3429 = vadd.f32 %v1898, %v3231
  %v3430 = vadd.f32 %v1903, %v3235
  %v3431 = vadd.f32 %v1906, %v3239
  %v3432 = vld [vmem:[%s4] sm:$0xff]
  %v3433 = vld [vmem:[%s4 + $0x8] sm:$0xff]
  %v3434 = vld [vmem:[%s4 + $0x10] sm:$0xff]
  %v3435 = vld [vmem:[%s4 + $0x18] sm:$0xff]
  %v3436 = vld [vmem:[%s4 + $0x20] sm:$0xff]
  %v3437 = vld [vmem:[%s4 + $0x28] sm:$0xff]
  %v3438 = vld [vmem:[%s4 + $0x30] sm:$0xff]
  %v3439 = vld [vmem:[%s4 + $0x38] sm:$0xff]
  %v3440 = vld [vmem:[%s4 + $0x40] sm:$0xff]
  %v3441 = vld [vmem:[%s4 + $0x48] sm:$0xff]
  %v3442 = vld [vmem:[%s4 + $0x50] sm:$0xff]
  %v3443 = vld [vmem:[%s4 + $0x58] sm:$0xff]
  %v3456 = vcombine.high %v3432, %v3432
  %v3458 = vunpack.c.l.s4 1966171168
  %v3459 = vunpack.c.0.s8 %v3458
  %v3460 = vlaneseq
  %v3461 = vshrl.u32 %v3460, 7
  %v3462 = vsub.s32 %v3459, %v3461
  %v3463 = vrot.slane %v3432, %v3462
  %v3465 = vunpack.c.l.s4 1966171168
  %v3466 = vunpack.c.0.s8 %v3465
  %v3467 = vlaneseq
  %v3468 = vshrl.u32 %v3467, 7
  %v3469 = vsub.s32 %v3466, %v3468
  %v3470 = vrot.slane %v3456, %v3469
  %v3471 = vcombine.high %v3463, %v3463
  %v3472 = vcombine.high %v3470, %v3470
  %v3474 = vunpack.c.l.s4 1966171168
  %v3475 = vunpack.c.0.s8 %v3474
  %v3476 = vlaneseq
  %v3477 = vshrl.u32 %v3476, 7
  %v3478 = vsub.s32 %v3475, %v3477
  %v3479 = vrot.slane %v3463, %v3478
  %v3481 = vunpack.c.l.s4 1966171168
  %v3482 = vunpack.c.0.s8 %v3481
  %v3483 = vlaneseq
  %v3484 = vshrl.u32 %v3483, 7
  %v3485 = vsub.s32 %v3482, %v3484
  %v3486 = vrot.slane %v3470, %v3485
  %v3488 = vunpack.c.l.s4 1966171168
  %v3489 = vunpack.c.0.s8 %v3488
  %v3490 = vlaneseq
  %v3491 = vshrl.u32 %v3490, 7
  %v3492 = vsub.s32 %v3489, %v3491
  %v3493 = vrot.slane %v3471, %v3492
  %v3495 = vunpack.c.l.s4 1966171168
  %v3496 = vunpack.c.0.s8 %v3495
  %v3497 = vlaneseq
  %v3498 = vshrl.u32 %v3497, 7
  %v3499 = vsub.s32 %v3496, %v3498
  %v3500 = vrot.slane %v3472, %v3499
  %v3501 = vcombine.high %v3479, %v3479
  %v3502 = vcombine.high %v3486, %v3486
  %v3503 = vcombine.high %v3493, %v3493
  %v3504 = vcombine.high %v3500, %v3500
  %v3505 = vcombine.high %v3433, %v3433
  %v3507 = vunpack.c.l.s4 1966171168
  %v3508 = vunpack.c.0.s8 %v3507
  %v3509 = vlaneseq
  %v3510 = vshrl.u32 %v3509, 7
  %v3511 = vsub.s32 %v3508, %v3510
  %v3512 = vrot.slane %v3433, %v3511
  %v3514 = vunpack.c.l.s4 1966171168
  %v3515 = vunpack.c.0.s8 %v3514
  %v3516 = vlaneseq
  %v3517 = vshrl.u32 %v3516, 7
  %v3518 = vsub.s32 %v3515, %v3517
  %v3519 = vrot.slane %v3505, %v3518
  %v3520 = vcombine.high %v3512, %v3512
  %v3521 = vcombine.high %v3519, %v3519
  %v3523 = vunpack.c.l.s4 1966171168
  %v3524 = vunpack.c.0.s8 %v3523
  %v3525 = vlaneseq
  %v3526 = vshrl.u32 %v3525, 7
  %v3527 = vsub.s32 %v3524, %v3526
  %v3528 = vrot.slane %v3512, %v3527
  %v3530 = vunpack.c.l.s4 1966171168
  %v3531 = vunpack.c.0.s8 %v3530
  %v3532 = vlaneseq
  %v3533 = vshrl.u32 %v3532, 7
  %v3534 = vsub.s32 %v3531, %v3533
  %v3535 = vrot.slane %v3519, %v3534
  %v3537 = vunpack.c.l.s4 1966171168
  %v3538 = vunpack.c.0.s8 %v3537
  %v3539 = vlaneseq
  %v3540 = vshrl.u32 %v3539, 7
  %v3541 = vsub.s32 %v3538, %v3540
  %v3542 = vrot.slane %v3520, %v3541
  %v3544 = vunpack.c.l.s4 1966171168
  %v3545 = vunpack.c.0.s8 %v3544
  %v3546 = vlaneseq
  %v3547 = vshrl.u32 %v3546, 7
  %v3548 = vsub.s32 %v3545, %v3547
  %v3549 = vrot.slane %v3521, %v3548
  %v3550 = vcombine.high %v3528, %v3528
  %v3551 = vcombine.high %v3535, %v3535
  %v3552 = vcombine.high %v3542, %v3542
  %v3553 = vcombine.high %v3549, %v3549
  %v3554 = vcombine.high %v3434, %v3434
  %v3556 = vunpack.c.l.s4 1966171168
  %v3557 = vunpack.c.0.s8 %v3556
  %v3558 = vlaneseq
  %v3559 = vshrl.u32 %v3558, 7
  %v3560 = vsub.s32 %v3557, %v3559
  %v3561 = vrot.slane %v3434, %v3560
  %v3563 = vunpack.c.l.s4 1966171168
  %v3564 = vunpack.c.0.s8 %v3563
  %v3565 = vlaneseq
  %v3566 = vshrl.u32 %v3565, 7
  %v3567 = vsub.s32 %v3564, %v3566
  %v3568 = vrot.slane %v3554, %v3567
  %v3569 = vcombine.high %v3561, %v3561
  %v3570 = vcombine.high %v3568, %v3568
  %v3572 = vunpack.c.l.s4 1966171168
  %v3573 = vunpack.c.0.s8 %v3572
  %v3574 = vlaneseq
  %v3575 = vshrl.u32 %v3574, 7
  %v3576 = vsub.s32 %v3573, %v3575
  %v3577 = vrot.slane %v3561, %v3576
  %v3579 = vunpack.c.l.s4 1966171168
  %v3580 = vunpack.c.0.s8 %v3579
  %v3581 = vlaneseq
  %v3582 = vshrl.u32 %v3581, 7
  %v3583 = vsub.s32 %v3580, %v3582
  %v3584 = vrot.slane %v3568, %v3583
  %v3586 = vunpack.c.l.s4 1966171168
  %v3587 = vunpack.c.0.s8 %v3586
  %v3588 = vlaneseq
  %v3589 = vshrl.u32 %v3588, 7
  %v3590 = vsub.s32 %v3587, %v3589
  %v3591 = vrot.slane %v3569, %v3590
  %v3593 = vunpack.c.l.s4 1966171168
  %v3594 = vunpack.c.0.s8 %v3593
  %v3595 = vlaneseq
  %v3596 = vshrl.u32 %v3595, 7
  %v3597 = vsub.s32 %v3594, %v3596
  %v3598 = vrot.slane %v3570, %v3597
  %v3599 = vcombine.high %v3577, %v3577
  %v3600 = vcombine.high %v3584, %v3584
  %v3601 = vcombine.high %v3591, %v3591
  %v3602 = vcombine.high %v3598, %v3598
  %v3603 = vcombine.high %v3435, %v3435
  %v3605 = vunpack.c.l.s4 1966171168
  %v3606 = vunpack.c.0.s8 %v3605
  %v3607 = vlaneseq
  %v3608 = vshrl.u32 %v3607, 7
  %v3609 = vsub.s32 %v3606, %v3608
  %v3610 = vrot.slane %v3435, %v3609
  %v3612 = vunpack.c.l.s4 1966171168
  %v3613 = vunpack.c.0.s8 %v3612
  %v3614 = vlaneseq
  %v3615 = vshrl.u32 %v3614, 7
  %v3616 = vsub.s32 %v3613, %v3615
  %v3617 = vrot.slane %v3603, %v3616
  %v3618 = vcombine.high %v3610, %v3610
  %v3619 = vcombine.high %v3617, %v3617
  %v3621 = vunpack.c.l.s4 1966171168
  %v3622 = vunpack.c.0.s8 %v3621
  %v3623 = vlaneseq
  %v3624 = vshrl.u32 %v3623, 7
  %v3625 = vsub.s32 %v3622, %v3624
  %v3626 = vrot.slane %v3610, %v3625
  %v3628 = vunpack.c.l.s4 1966171168
  %v3629 = vunpack.c.0.s8 %v3628
  %v3630 = vlaneseq
  %v3631 = vshrl.u32 %v3630, 7
  %v3632 = vsub.s32 %v3629, %v3631
  %v3633 = vrot.slane %v3617, %v3632
  %v3635 = vunpack.c.l.s4 1966171168
  %v3636 = vunpack.c.0.s8 %v3635
  %v3637 = vlaneseq
  %v3638 = vshrl.u32 %v3637, 7
  %v3639 = vsub.s32 %v3636, %v3638
  %v3640 = vrot.slane %v3618, %v3639
  %v3642 = vunpack.c.l.s4 1966171168
  %v3643 = vunpack.c.0.s8 %v3642
  %v3644 = vlaneseq
  %v3645 = vshrl.u32 %v3644, 7
  %v3646 = vsub.s32 %v3643, %v3645
  %v3647 = vrot.slane %v3619, %v3646
  %v3648 = vcombine.high %v3626, %v3626
  %v3649 = vcombine.high %v3633, %v3633
  %v3650 = vcombine.high %v3640, %v3640
  %v3651 = vcombine.high %v3647, %v3647
  %v3652 = vcombine.high %v3436, %v3436
  %v3654 = vunpack.c.l.s4 1966171168
  %v3655 = vunpack.c.0.s8 %v3654
  %v3656 = vlaneseq
  %v3657 = vshrl.u32 %v3656, 7
  %v3658 = vsub.s32 %v3655, %v3657
  %v3659 = vrot.slane %v3436, %v3658
  %v3661 = vunpack.c.l.s4 1966171168
  %v3662 = vunpack.c.0.s8 %v3661
  %v3663 = vlaneseq
  %v3664 = vshrl.u32 %v3663, 7
  %v3665 = vsub.s32 %v3662, %v3664
  %v3666 = vrot.slane %v3652, %v3665
  %v3667 = vcombine.high %v3659, %v3659
  %v3668 = vcombine.high %v3666, %v3666
  %v3670 = vunpack.c.l.s4 1966171168
  %v3671 = vunpack.c.0.s8 %v3670
  %v3672 = vlaneseq
  %v3673 = vshrl.u32 %v3672, 7
  %v3674 = vsub.s32 %v3671, %v3673
  %v3675 = vrot.slane %v3659, %v3674
  %v3677 = vunpack.c.l.s4 1966171168
  %v3678 = vunpack.c.0.s8 %v3677
  %v3679 = vlaneseq
  %v3680 = vshrl.u32 %v3679, 7
  %v3681 = vsub.s32 %v3678, %v3680
  %v3682 = vrot.slane %v3666, %v3681
  %v3684 = vunpack.c.l.s4 1966171168
  %v3685 = vunpack.c.0.s8 %v3684
  %v3686 = vlaneseq
  %v3687 = vshrl.u32 %v3686, 7
  %v3688 = vsub.s32 %v3685, %v3687
  %v3689 = vrot.slane %v3667, %v3688
  %v3691 = vunpack.c.l.s4 1966171168
  %v3692 = vunpack.c.0.s8 %v3691
  %v3693 = vlaneseq
  %v3694 = vshrl.u32 %v3693, 7
  %v3695 = vsub.s32 %v3692, %v3694
  %v3696 = vrot.slane %v3668, %v3695
  %v3697 = vcombine.high %v3675, %v3675
  %v3698 = vcombine.high %v3682, %v3682
  %v3699 = vcombine.high %v3689, %v3689
  %v3700 = vcombine.high %v3696, %v3696
  %v3701 = vcombine.high %v3437, %v3437
  %v3703 = vunpack.c.l.s4 1966171168
  %v3704 = vunpack.c.0.s8 %v3703
  %v3705 = vlaneseq
  %v3706 = vshrl.u32 %v3705, 7
  %v3707 = vsub.s32 %v3704, %v3706
  %v3708 = vrot.slane %v3437, %v3707
  %v3710 = vunpack.c.l.s4 1966171168
  %v3711 = vunpack.c.0.s8 %v3710
  %v3712 = vlaneseq
  %v3713 = vshrl.u32 %v3712, 7
  %v3714 = vsub.s32 %v3711, %v3713
  %v3715 = vrot.slane %v3701, %v3714
  %v3716 = vcombine.high %v3708, %v3708
  %v3717 = vcombine.high %v3715, %v3715
  %v3719 = vunpack.c.l.s4 1966171168
  %v3720 = vunpack.c.0.s8 %v3719
  %v3721 = vlaneseq
  %v3722 = vshrl.u32 %v3721, 7
  %v3723 = vsub.s32 %v3720, %v3722
  %v3724 = vrot.slane %v3708, %v3723
  %v3726 = vunpack.c.l.s4 1966171168
  %v3727 = vunpack.c.0.s8 %v3726
  %v3728 = vlaneseq
  %v3729 = vshrl.u32 %v3728, 7
  %v3730 = vsub.s32 %v3727, %v3729
  %v3731 = vrot.slane %v3715, %v3730
  %v3733 = vunpack.c.l.s4 1966171168
  %v3734 = vunpack.c.0.s8 %v3733
  %v3735 = vlaneseq
  %v3736 = vshrl.u32 %v3735, 7
  %v3737 = vsub.s32 %v3734, %v3736
  %v3738 = vrot.slane %v3716, %v3737
  %v3740 = vunpack.c.l.s4 1966171168
  %v3741 = vunpack.c.0.s8 %v3740
  %v3742 = vlaneseq
  %v3743 = vshrl.u32 %v3742, 7
  %v3744 = vsub.s32 %v3741, %v3743
  %v3745 = vrot.slane %v3717, %v3744
  %v3746 = vcombine.high %v3724, %v3724
  %v3747 = vcombine.high %v3731, %v3731
  %v3748 = vcombine.high %v3738, %v3738
  %v3749 = vcombine.high %v3745, %v3745
  %v3750 = vcombine.high %v3438, %v3438
  %v3752 = vunpack.c.l.s4 1966171168
  %v3753 = vunpack.c.0.s8 %v3752
  %v3754 = vlaneseq
  %v3755 = vshrl.u32 %v3754, 7
  %v3756 = vsub.s32 %v3753, %v3755
  %v3757 = vrot.slane %v3438, %v3756
  %v3759 = vunpack.c.l.s4 1966171168
  %v3760 = vunpack.c.0.s8 %v3759
  %v3761 = vlaneseq
  %v3762 = vshrl.u32 %v3761, 7
  %v3763 = vsub.s32 %v3760, %v3762
  %v3764 = vrot.slane %v3750, %v3763
  %v3765 = vcombine.high %v3757, %v3757
  %v3766 = vcombine.high %v3764, %v3764
  %v3768 = vunpack.c.l.s4 1966171168
  %v3769 = vunpack.c.0.s8 %v3768
  %v3770 = vlaneseq
  %v3771 = vshrl.u32 %v3770, 7
  %v3772 = vsub.s32 %v3769, %v3771
  %v3773 = vrot.slane %v3757, %v3772
  %v3775 = vunpack.c.l.s4 1966171168
  %v3776 = vunpack.c.0.s8 %v3775
  %v3777 = vlaneseq
  %v3778 = vshrl.u32 %v3777, 7
  %v3779 = vsub.s32 %v3776, %v3778
  %v3780 = vrot.slane %v3764, %v3779
  %v3782 = vunpack.c.l.s4 1966171168
  %v3783 = vunpack.c.0.s8 %v3782
  %v3784 = vlaneseq
  %v3785 = vshrl.u32 %v3784, 7
  %v3786 = vsub.s32 %v3783, %v3785
  %v3787 = vrot.slane %v3765, %v3786
  %v3789 = vunpack.c.l.s4 1966171168
  %v3790 = vunpack.c.0.s8 %v3789
  %v3791 = vlaneseq
  %v3792 = vshrl.u32 %v3791, 7
  %v3793 = vsub.s32 %v3790, %v3792
  %v3794 = vrot.slane %v3766, %v3793
  %v3795 = vcombine.high %v3773, %v3773
  %v3796 = vcombine.high %v3780, %v3780
  %v3797 = vcombine.high %v3787, %v3787
  %v3798 = vcombine.high %v3794, %v3794
  %v3799 = vcombine.high %v3439, %v3439
  %v3801 = vunpack.c.l.s4 1966171168
  %v3802 = vunpack.c.0.s8 %v3801
  %v3803 = vlaneseq
  %v3804 = vshrl.u32 %v3803, 7
  %v3805 = vsub.s32 %v3802, %v3804
  %v3806 = vrot.slane %v3439, %v3805
  %v3808 = vunpack.c.l.s4 1966171168
  %v3809 = vunpack.c.0.s8 %v3808
  %v3810 = vlaneseq
  %v3811 = vshrl.u32 %v3810, 7
  %v3812 = vsub.s32 %v3809, %v3811
  %v3813 = vrot.slane %v3799, %v3812
  %v3814 = vcombine.high %v3806, %v3806
  %v3815 = vcombine.high %v3813, %v3813
  %v3817 = vunpack.c.l.s4 1966171168
  %v3818 = vunpack.c.0.s8 %v3817
  %v3819 = vlaneseq
  %v3820 = vshrl.u32 %v3819, 7
  %v3821 = vsub.s32 %v3818, %v3820
  %v3822 = vrot.slane %v3806, %v3821
  %v3824 = vunpack.c.l.s4 1966171168
  %v3825 = vunpack.c.0.s8 %v3824
  %v3826 = vlaneseq
  %v3827 = vshrl.u32 %v3826, 7
  %v3828 = vsub.s32 %v3825, %v3827
  %v3829 = vrot.slane %v3813, %v3828
  %v3831 = vunpack.c.l.s4 1966171168
  %v3832 = vunpack.c.0.s8 %v3831
  %v3833 = vlaneseq
  %v3834 = vshrl.u32 %v3833, 7
  %v3835 = vsub.s32 %v3832, %v3834
  %v3836 = vrot.slane %v3814, %v3835
  %v3838 = vunpack.c.l.s4 1966171168
  %v3839 = vunpack.c.0.s8 %v3838
  %v3840 = vlaneseq
  %v3841 = vshrl.u32 %v3840, 7
  %v3842 = vsub.s32 %v3839, %v3841
  %v3843 = vrot.slane %v3815, %v3842
  %v3844 = vcombine.high %v3822, %v3822
  %v3845 = vcombine.high %v3829, %v3829
  %v3846 = vcombine.high %v3836, %v3836
  %v3847 = vcombine.high %v3843, %v3843
  %v3848 = vcombine.high %v3440, %v3440
  %v3850 = vunpack.c.l.s4 1966171168
  %v3851 = vunpack.c.0.s8 %v3850
  %v3852 = vlaneseq
  %v3853 = vshrl.u32 %v3852, 7
  %v3854 = vsub.s32 %v3851, %v3853
  %v3855 = vrot.slane %v3440, %v3854
  %v3857 = vunpack.c.l.s4 1966171168
  %v3858 = vunpack.c.0.s8 %v3857
  %v3859 = vlaneseq
  %v3860 = vshrl.u32 %v3859, 7
  %v3861 = vsub.s32 %v3858, %v3860
  %v3862 = vrot.slane %v3848, %v3861
  %v3863 = vcombine.high %v3855, %v3855
  %v3864 = vcombine.high %v3862, %v3862
  %v3866 = vunpack.c.l.s4 1966171168
  %v3867 = vunpack.c.0.s8 %v3866
  %v3868 = vlaneseq
  %v3869 = vshrl.u32 %v3868, 7
  %v3870 = vsub.s32 %v3867, %v3869
  %v3871 = vrot.slane %v3855, %v3870
  %v3873 = vunpack.c.l.s4 1966171168
  %v3874 = vunpack.c.0.s8 %v3873
  %v3875 = vlaneseq
  %v3876 = vshrl.u32 %v3875, 7
  %v3877 = vsub.s32 %v3874, %v3876
  %v3878 = vrot.slane %v3862, %v3877
  %v3880 = vunpack.c.l.s4 1966171168
  %v3881 = vunpack.c.0.s8 %v3880
  %v3882 = vlaneseq
  %v3883 = vshrl.u32 %v3882, 7
  %v3884 = vsub.s32 %v3881, %v3883
  %v3885 = vrot.slane %v3863, %v3884
  %v3887 = vunpack.c.l.s4 1966171168
  %v3888 = vunpack.c.0.s8 %v3887
  %v3889 = vlaneseq
  %v3890 = vshrl.u32 %v3889, 7
  %v3891 = vsub.s32 %v3888, %v3890
  %v3892 = vrot.slane %v3864, %v3891
  %v3893 = vcombine.high %v3871, %v3871
  %v3894 = vcombine.high %v3878, %v3878
  %v3895 = vcombine.high %v3885, %v3885
  %v3896 = vcombine.high %v3892, %v3892
  %v3897 = vcombine.high %v3441, %v3441
  %v3899 = vunpack.c.l.s4 1966171168
  %v3900 = vunpack.c.0.s8 %v3899
  %v3901 = vlaneseq
  %v3902 = vshrl.u32 %v3901, 7
  %v3903 = vsub.s32 %v3900, %v3902
  %v3904 = vrot.slane %v3441, %v3903
  %v3906 = vunpack.c.l.s4 1966171168
  %v3907 = vunpack.c.0.s8 %v3906
  %v3908 = vlaneseq
  %v3909 = vshrl.u32 %v3908, 7
  %v3910 = vsub.s32 %v3907, %v3909
  %v3911 = vrot.slane %v3897, %v3910
  %v3912 = vcombine.high %v3904, %v3904
  %v3913 = vcombine.high %v3911, %v3911
  %v3915 = vunpack.c.l.s4 1966171168
  %v3916 = vunpack.c.0.s8 %v3915
  %v3917 = vlaneseq
  %v3918 = vshrl.u32 %v3917, 7
  %v3919 = vsub.s32 %v3916, %v3918
  %v3920 = vrot.slane %v3904, %v3919
  %v3922 = vunpack.c.l.s4 1966171168
  %v3923 = vunpack.c.0.s8 %v3922
  %v3924 = vlaneseq
  %v3925 = vshrl.u32 %v3924, 7
  %v3926 = vsub.s32 %v3923, %v3925
  %v3927 = vrot.slane %v3911, %v3926
  %v3929 = vunpack.c.l.s4 1966171168
  %v3930 = vunpack.c.0.s8 %v3929
  %v3931 = vlaneseq
  %v3932 = vshrl.u32 %v3931, 7
  %v3933 = vsub.s32 %v3930, %v3932
  %v3934 = vrot.slane %v3912, %v3933
  %v3936 = vunpack.c.l.s4 1966171168
  %v3937 = vunpack.c.0.s8 %v3936
  %v3938 = vlaneseq
  %v3939 = vshrl.u32 %v3938, 7
  %v3940 = vsub.s32 %v3937, %v3939
  %v3941 = vrot.slane %v3913, %v3940
  %v3942 = vcombine.high %v3920, %v3920
  %v3943 = vcombine.high %v3927, %v3927
  %v3944 = vcombine.high %v3934, %v3934
  %v3945 = vcombine.high %v3941, %v3941
  %v3946 = vcombine.high %v3442, %v3442
  %v3948 = vunpack.c.l.s4 1966171168
  %v3949 = vunpack.c.0.s8 %v3948
  %v3950 = vlaneseq
  %v3951 = vshrl.u32 %v3950, 7
  %v3952 = vsub.s32 %v3949, %v3951
  %v3953 = vrot.slane %v3442, %v3952
  %v3955 = vunpack.c.l.s4 1966171168
  %v3956 = vunpack.c.0.s8 %v3955
  %v3957 = vlaneseq
  %v3958 = vshrl.u32 %v3957, 7
  %v3959 = vsub.s32 %v3956, %v3958
  %v3960 = vrot.slane %v3946, %v3959
  %v3961 = vcombine.high %v3953, %v3953
  %v3962 = vcombine.high %v3960, %v3960
  %v3964 = vunpack.c.l.s4 1966171168
  %v3965 = vunpack.c.0.s8 %v3964
  %v3966 = vlaneseq
  %v3967 = vshrl.u32 %v3966, 7
  %v3968 = vsub.s32 %v3965, %v3967
  %v3969 = vrot.slane %v3953, %v3968
  %v3971 = vunpack.c.l.s4 1966171168
  %v3972 = vunpack.c.0.s8 %v3971
  %v3973 = vlaneseq
  %v3974 = vshrl.u32 %v3973, 7
  %v3975 = vsub.s32 %v3972, %v3974
  %v3976 = vrot.slane %v3960, %v3975
  %v3978 = vunpack.c.l.s4 1966171168
  %v3979 = vunpack.c.0.s8 %v3978
  %v3980 = vlaneseq
  %v3981 = vshrl.u32 %v3980, 7
  %v3982 = vsub.s32 %v3979, %v3981
  %v3983 = vrot.slane %v3961, %v3982
  %v3985 = vunpack.c.l.s4 1966171168
  %v3986 = vunpack.c.0.s8 %v3985
  %v3987 = vlaneseq
  %v3988 = vshrl.u32 %v3987, 7
  %v3989 = vsub.s32 %v3986, %v3988
  %v3990 = vrot.slane %v3962, %v3989
  %v3991 = vcombine.high %v3969, %v3969
  %v3992 = vcombine.high %v3976, %v3976
  %v3993 = vcombine.high %v3983, %v3983
  %v3994 = vcombine.high %v3990, %v3990
  %v3995 = vcombine.high %v3443, %v3443
  %v3997 = vunpack.c.l.s4 1966171168
  %v3998 = vunpack.c.0.s8 %v3997
  %v3999 = vlaneseq
  %v4000 = vshrl.u32 %v3999, 7
  %v4001 = vsub.s32 %v3998, %v4000
  %v4002 = vrot.slane %v3443, %v4001
  %v4004 = vunpack.c.l.s4 1966171168
  %v4005 = vunpack.c.0.s8 %v4004
  %v4006 = vlaneseq
  %v4007 = vshrl.u32 %v4006, 7
  %v4008 = vsub.s32 %v4005, %v4007
  %v4009 = vrot.slane %v3995, %v4008
  %v4010 = vcombine.high %v4002, %v4002
  %v4011 = vcombine.high %v4009, %v4009
  %v4013 = vunpack.c.l.s4 1966171168
  %v4014 = vunpack.c.0.s8 %v4013
  %v4015 = vlaneseq
  %v4016 = vshrl.u32 %v4015, 7
  %v4017 = vsub.s32 %v4014, %v4016
  %v4018 = vrot.slane %v4002, %v4017
  %v4020 = vunpack.c.l.s4 1966171168
  %v4021 = vunpack.c.0.s8 %v4020
  %v4022 = vlaneseq
  %v4023 = vshrl.u32 %v4022, 7
  %v4024 = vsub.s32 %v4021, %v4023
  %v4025 = vrot.slane %v4009, %v4024
  %v4027 = vunpack.c.l.s4 1966171168
  %v4028 = vunpack.c.0.s8 %v4027
  %v4029 = vlaneseq
  %v4030 = vshrl.u32 %v4029, 7
  %v4031 = vsub.s32 %v4028, %v4030
  %v4032 = vrot.slane %v4010, %v4031
  %v4034 = vunpack.c.l.s4 1966171168
  %v4035 = vunpack.c.0.s8 %v4034
  %v4036 = vlaneseq
  %v4037 = vshrl.u32 %v4036, 7
  %v4038 = vsub.s32 %v4035, %v4037
  %v4039 = vrot.slane %v4011, %v4038
  %v4040 = vcombine.high %v4018, %v4018
  %v4041 = vcombine.high %v4025, %v4025
  %v4042 = vcombine.high %v4032, %v4032
  %v4043 = vcombine.high %v4039, %v4039
  %v4044 = vlaneseq
  %v4045 = vshrl.u32 %v4044, 7
  %v4046 = vsub.s32 0, %v4045
  %v4047 = vrot.slane %v3479, %v4046
  %v4048 = vlaneseq
  %v4049 = vshrl.u32 %v4048, 7
  %v4050 = vsub.s32 0, %v4049
  %v4051 = vrot.slane %v3493, %v4050
  %v4052 = vlaneseq
  %v4053 = vshrl.u32 %v4052, 7
  %v4054 = vsub.s32 0, %v4053
  %v4055 = vrot.slane %v3501, %v4054
  %v4056 = vlaneseq
  %v4057 = vshrl.u32 %v4056, 7
  %v4058 = vsub.s32 0, %v4057
  %v4059 = vrot.slane %v3503, %v4058
  %v4060 = vlaneseq
  %v4061 = vshrl.u32 %v4060, 7
  %v4062 = vsub.s32 0, %v4061
  %v4063 = vrot.slane %v3486, %v4062
  %v4064 = vlaneseq
  %v4065 = vshrl.u32 %v4064, 7
  %v4066 = vsub.s32 0, %v4065
  %v4067 = vrot.slane %v3500, %v4066
  %v4068 = vlaneseq
  %v4069 = vshrl.u32 %v4068, 7
  %v4070 = vsub.s32 0, %v4069
  %v4071 = vrot.slane %v3502, %v4070
  %v4072 = vlaneseq
  %v4073 = vshrl.u32 %v4072, 7
  %v4074 = vsub.s32 0, %v4073
  %v4075 = vrot.slane %v3504, %v4074
  %v4076 = vlaneseq
  %v4077 = vshrl.u32 %v4076, 7
  %v4078 = vsub.s32 0, %v4077
  %v4079 = vrot.slane %v3528, %v4078
  %v4080 = vlaneseq
  %v4081 = vshrl.u32 %v4080, 7
  %v4082 = vsub.s32 0, %v4081
  %v4083 = vrot.slane %v3542, %v4082
  %v4084 = vlaneseq
  %v4085 = vshrl.u32 %v4084, 7
  %v4086 = vsub.s32 0, %v4085
  %v4087 = vrot.slane %v3550, %v4086
  %v4088 = vlaneseq
  %v4089 = vshrl.u32 %v4088, 7
  %v4090 = vsub.s32 0, %v4089
  %v4091 = vrot.slane %v3552, %v4090
  %v4092 = vlaneseq
  %v4093 = vshrl.u32 %v4092, 7
  %v4094 = vsub.s32 0, %v4093
  %v4095 = vrot.slane %v3535, %v4094
  %v4096 = vlaneseq
  %v4097 = vshrl.u32 %v4096, 7
  %v4098 = vsub.s32 0, %v4097
  %v4099 = vrot.slane %v3549, %v4098
  %v4100 = vlaneseq
  %v4101 = vshrl.u32 %v4100, 7
  %v4102 = vsub.s32 0, %v4101
  %v4103 = vrot.slane %v3551, %v4102
  %v4104 = vlaneseq
  %v4105 = vshrl.u32 %v4104, 7
  %v4106 = vsub.s32 0, %v4105
  %v4107 = vrot.slane %v3553, %v4106
  %v4108 = vlaneseq
  %v4109 = vshrl.u32 %v4108, 7
  %v4110 = vsub.s32 0, %v4109
  %v4111 = vrot.slane %v3577, %v4110
  %v4112 = vlaneseq
  %v4113 = vshrl.u32 %v4112, 7
  %v4114 = vsub.s32 0, %v4113
  %v4115 = vrot.slane %v3591, %v4114
  %v4116 = vlaneseq
  %v4117 = vshrl.u32 %v4116, 7
  %v4118 = vsub.s32 0, %v4117
  %v4119 = vrot.slane %v3599, %v4118
  %v4120 = vlaneseq
  %v4121 = vshrl.u32 %v4120, 7
  %v4122 = vsub.s32 0, %v4121
  %v4123 = vrot.slane %v3601, %v4122
  %v4124 = vlaneseq
  %v4125 = vshrl.u32 %v4124, 7
  %v4126 = vsub.s32 0, %v4125
  %v4127 = vrot.slane %v3584, %v4126
  %v4128 = vlaneseq
  %v4129 = vshrl.u32 %v4128, 7
  %v4130 = vsub.s32 0, %v4129
  %v4131 = vrot.slane %v3598, %v4130
  %v4132 = vlaneseq
  %v4133 = vshrl.u32 %v4132, 7
  %v4134 = vsub.s32 0, %v4133
  %v4135 = vrot.slane %v3600, %v4134
  %v4136 = vlaneseq
  %v4137 = vshrl.u32 %v4136, 7
  %v4138 = vsub.s32 0, %v4137
  %v4139 = vrot.slane %v3602, %v4138
  %v4140 = vlaneseq
  %v4141 = vshrl.u32 %v4140, 7
  %v4142 = vsub.s32 0, %v4141
  %v4143 = vrot.slane %v3626, %v4142
  %v4144 = vlaneseq
  %v4145 = vshrl.u32 %v4144, 7
  %v4146 = vsub.s32 0, %v4145
  %v4147 = vrot.slane %v3640, %v4146
  %v4148 = vlaneseq
  %v4149 = vshrl.u32 %v4148, 7
  %v4150 = vsub.s32 0, %v4149
  %v4151 = vrot.slane %v3648, %v4150
  %v4152 = vlaneseq
  %v4153 = vshrl.u32 %v4152, 7
  %v4154 = vsub.s32 0, %v4153
  %v4155 = vrot.slane %v3650, %v4154
  %v4156 = vlaneseq
  %v4157 = vshrl.u32 %v4156, 7
  %v4158 = vsub.s32 0, %v4157
  %v4159 = vrot.slane %v3633, %v4158
  %v4160 = vlaneseq
  %v4161 = vshrl.u32 %v4160, 7
  %v4162 = vsub.s32 0, %v4161
  %v4163 = vrot.slane %v3647, %v4162
  %v4164 = vlaneseq
  %v4165 = vshrl.u32 %v4164, 7
  %v4166 = vsub.s32 0, %v4165
  %v4167 = vrot.slane %v3649, %v4166
  %v4168 = vlaneseq
  %v4169 = vshrl.u32 %v4168, 7
  %v4170 = vsub.s32 0, %v4169
  %v4171 = vrot.slane %v3651, %v4170
  %v4172 = vlaneseq
  %v4173 = vshrl.u32 %v4172, 7
  %v4174 = vsub.s32 0, %v4173
  %v4175 = vrot.slane %v3675, %v4174
  %v4176 = vlaneseq
  %v4177 = vshrl.u32 %v4176, 7
  %v4178 = vsub.s32 0, %v4177
  %v4179 = vrot.slane %v3689, %v4178
  %v4180 = vlaneseq
  %v4181 = vshrl.u32 %v4180, 7
  %v4182 = vsub.s32 0, %v4181
  %v4183 = vrot.slane %v3697, %v4182
  %v4184 = vlaneseq
  %v4185 = vshrl.u32 %v4184, 7
  %v4186 = vsub.s32 0, %v4185
  %v4187 = vrot.slane %v3699, %v4186
  %v4188 = vlaneseq
  %v4189 = vshrl.u32 %v4188, 7
  %v4190 = vsub.s32 0, %v4189
  %v4191 = vrot.slane %v3682, %v4190
  %v4192 = vlaneseq
  %v4193 = vshrl.u32 %v4192, 7
  %v4194 = vsub.s32 0, %v4193
  %v4195 = vrot.slane %v3696, %v4194
  %v4196 = vlaneseq
  %v4197 = vshrl.u32 %v4196, 7
  %v4198 = vsub.s32 0, %v4197
  %v4199 = vrot.slane %v3698, %v4198
  %v4200 = vlaneseq
  %v4201 = vshrl.u32 %v4200, 7
  %v4202 = vsub.s32 0, %v4201
  %v4203 = vrot.slane %v3700, %v4202
  %v4204 = vlaneseq
  %v4205 = vshrl.u32 %v4204, 7
  %v4206 = vsub.s32 0, %v4205
  %v4207 = vrot.slane %v3724, %v4206
  %v4208 = vlaneseq
  %v4209 = vshrl.u32 %v4208, 7
  %v4210 = vsub.s32 0, %v4209
  %v4211 = vrot.slane %v3738, %v4210
  %v4212 = vlaneseq
  %v4213 = vshrl.u32 %v4212, 7
  %v4214 = vsub.s32 0, %v4213
  %v4215 = vrot.slane %v3746, %v4214
  %v4216 = vlaneseq
  %v4217 = vshrl.u32 %v4216, 7
  %v4218 = vsub.s32 0, %v4217
  %v4219 = vrot.slane %v3748, %v4218
  %v4220 = vlaneseq
  %v4221 = vshrl.u32 %v4220, 7
  %v4222 = vsub.s32 0, %v4221
  %v4223 = vrot.slane %v3731, %v4222
  %v4224 = vlaneseq
  %v4225 = vshrl.u32 %v4224, 7
  %v4226 = vsub.s32 0, %v4225
  %v4227 = vrot.slane %v3745, %v4226
  %v4228 = vlaneseq
  %v4229 = vshrl.u32 %v4228, 7
  %v4230 = vsub.s32 0, %v4229
  %v4231 = vrot.slane %v3747, %v4230
  %v4232 = vlaneseq
  %v4233 = vshrl.u32 %v4232, 7
  %v4234 = vsub.s32 0, %v4233
  %v4235 = vrot.slane %v3749, %v4234
  %v4236 = vlaneseq
  %v4237 = vshrl.u32 %v4236, 7
  %v4238 = vsub.s32 0, %v4237
  %v4239 = vrot.slane %v3773, %v4238
  %v4240 = vlaneseq
  %v4241 = vshrl.u32 %v4240, 7
  %v4242 = vsub.s32 0, %v4241
  %v4243 = vrot.slane %v3787, %v4242
  %v4244 = vlaneseq
  %v4245 = vshrl.u32 %v4244, 7
  %v4246 = vsub.s32 0, %v4245
  %v4247 = vrot.slane %v3795, %v4246
  %v4248 = vlaneseq
  %v4249 = vshrl.u32 %v4248, 7
  %v4250 = vsub.s32 0, %v4249
  %v4251 = vrot.slane %v3797, %v4250
  %v4252 = vlaneseq
  %v4253 = vshrl.u32 %v4252, 7
  %v4254 = vsub.s32 0, %v4253
  %v4255 = vrot.slane %v3780, %v4254
  %v4256 = vlaneseq
  %v4257 = vshrl.u32 %v4256, 7
  %v4258 = vsub.s32 0, %v4257
  %v4259 = vrot.slane %v3794, %v4258
  %v4260 = vlaneseq
  %v4261 = vshrl.u32 %v4260, 7
  %v4262 = vsub.s32 0, %v4261
  %v4263 = vrot.slane %v3796, %v4262
  %v4264 = vlaneseq
  %v4265 = vshrl.u32 %v4264, 7
  %v4266 = vsub.s32 0, %v4265
  %v4267 = vrot.slane %v3798, %v4266
  %v4268 = vlaneseq
  %v4269 = vshrl.u32 %v4268, 7
  %v4270 = vsub.s32 0, %v4269
  %v4271 = vrot.slane %v3822, %v4270
  %v4272 = vlaneseq
  %v4273 = vshrl.u32 %v4272, 7
  %v4274 = vsub.s32 0, %v4273
  %v4275 = vrot.slane %v3836, %v4274
  %v4276 = vlaneseq
  %v4277 = vshrl.u32 %v4276, 7
  %v4278 = vsub.s32 0, %v4277
  %v4279 = vrot.slane %v3844, %v4278
  %v4280 = vlaneseq
  %v4281 = vshrl.u32 %v4280, 7
  %v4282 = vsub.s32 0, %v4281
  %v4283 = vrot.slane %v3846, %v4282
  %v4284 = vlaneseq
  %v4285 = vshrl.u32 %v4284, 7
  %v4286 = vsub.s32 0, %v4285
  %v4287 = vrot.slane %v3829, %v4286
  %v4288 = vlaneseq
  %v4289 = vshrl.u32 %v4288, 7
  %v4290 = vsub.s32 0, %v4289
  %v4291 = vrot.slane %v3843, %v4290
  %v4292 = vlaneseq
  %v4293 = vshrl.u32 %v4292, 7
  %v4294 = vsub.s32 0, %v4293
  %v4295 = vrot.slane %v3845, %v4294
  %v4296 = vlaneseq
  %v4297 = vshrl.u32 %v4296, 7
  %v4298 = vsub.s32 0, %v4297
  %v4299 = vrot.slane %v3847, %v4298
  %v4300 = vlaneseq
  %v4301 = vshrl.u32 %v4300, 7
  %v4302 = vsub.s32 0, %v4301
  %v4303 = vrot.slane %v3871, %v4302
  %v4304 = vlaneseq
  %v4305 = vshrl.u32 %v4304, 7
  %v4306 = vsub.s32 0, %v4305
  %v4307 = vrot.slane %v3885, %v4306
  %v4308 = vlaneseq
  %v4309 = vshrl.u32 %v4308, 7
  %v4310 = vsub.s32 0, %v4309
  %v4311 = vrot.slane %v3893, %v4310
  %v4312 = vlaneseq
  %v4313 = vshrl.u32 %v4312, 7
  %v4314 = vsub.s32 0, %v4313
  %v4315 = vrot.slane %v3895, %v4314
  %v4316 = vlaneseq
  %v4317 = vshrl.u32 %v4316, 7
  %v4318 = vsub.s32 0, %v4317
  %v4319 = vrot.slane %v3878, %v4318
  %v4320 = vlaneseq
  %v4321 = vshrl.u32 %v4320, 7
  %v4322 = vsub.s32 0, %v4321
  %v4323 = vrot.slane %v3892, %v4322
  %v4324 = vlaneseq
  %v4325 = vshrl.u32 %v4324, 7
  %v4326 = vsub.s32 0, %v4325
  %v4327 = vrot.slane %v3894, %v4326
  %v4328 = vlaneseq
  %v4329 = vshrl.u32 %v4328, 7
  %v4330 = vsub.s32 0, %v4329
  %v4331 = vrot.slane %v3896, %v4330
  %v4332 = vlaneseq
  %v4333 = vshrl.u32 %v4332, 7
  %v4334 = vsub.s32 0, %v4333
  %v4335 = vrot.slane %v3920, %v4334
  %v4336 = vlaneseq
  %v4337 = vshrl.u32 %v4336, 7
  %v4338 = vsub.s32 0, %v4337
  %v4339 = vrot.slane %v3934, %v4338
  %v4340 = vlaneseq
  %v4341 = vshrl.u32 %v4340, 7
  %v4342 = vsub.s32 0, %v4341
  %v4343 = vrot.slane %v3942, %v4342
  %v4344 = vlaneseq
  %v4345 = vshrl.u32 %v4344, 7
  %v4346 = vsub.s32 0, %v4345
  %v4347 = vrot.slane %v3944, %v4346
  %v4348 = vlaneseq
  %v4349 = vshrl.u32 %v4348, 7
  %v4350 = vsub.s32 0, %v4349
  %v4351 = vrot.slane %v3927, %v4350
  %v4352 = vlaneseq
  %v4353 = vshrl.u32 %v4352, 7
  %v4354 = vsub.s32 0, %v4353
  %v4355 = vrot.slane %v3941, %v4354
  %v4356 = vlaneseq
  %v4357 = vshrl.u32 %v4356, 7
  %v4358 = vsub.s32 0, %v4357
  %v4359 = vrot.slane %v3943, %v4358
  %v4360 = vlaneseq
  %v4361 = vshrl.u32 %v4360, 7
  %v4362 = vsub.s32 0, %v4361
  %v4363 = vrot.slane %v3945, %v4362
  %v4364 = vlaneseq
  %v4365 = vshrl.u32 %v4364, 7
  %v4366 = vsub.s32 0, %v4365
  %v4367 = vrot.slane %v3969, %v4366
  %v4368 = vlaneseq
  %v4369 = vshrl.u32 %v4368, 7
  %v4370 = vsub.s32 0, %v4369
  %v4371 = vrot.slane %v3983, %v4370
  %v4372 = vlaneseq
  %v4373 = vshrl.u32 %v4372, 7
  %v4374 = vsub.s32 0, %v4373
  %v4375 = vrot.slane %v3991, %v4374
  %v4376 = vlaneseq
  %v4377 = vshrl.u32 %v4376, 7
  %v4378 = vsub.s32 0, %v4377
  %v4379 = vrot.slane %v3993, %v4378
  %v4380 = vlaneseq
  %v4381 = vshrl.u32 %v4380, 7
  %v4382 = vsub.s32 0, %v4381
  %v4383 = vrot.slane %v3976, %v4382
  %v4384 = vlaneseq
  %v4385 = vshrl.u32 %v4384, 7
  %v4386 = vsub.s32 0, %v4385
  %v4387 = vrot.slane %v3990, %v4386
  %v4388 = vlaneseq
  %v4389 = vshrl.u32 %v4388, 7
  %v4390 = vsub.s32 0, %v4389
  %v4391 = vrot.slane %v3992, %v4390
  %v4392 = vlaneseq
  %v4393 = vshrl.u32 %v4392, 7
  %v4394 = vsub.s32 0, %v4393
  %v4395 = vrot.slane %v3994, %v4394
  %v4396 = vlaneseq
  %v4397 = vshrl.u32 %v4396, 7
  %v4398 = vsub.s32 0, %v4397
  %v4399 = vrot.slane %v4018, %v4398
  %v4400 = vlaneseq
  %v4401 = vshrl.u32 %v4400, 7
  %v4402 = vsub.s32 0, %v4401
  %v4403 = vrot.slane %v4032, %v4402
  %v4404 = vlaneseq
  %v4405 = vshrl.u32 %v4404, 7
  %v4406 = vsub.s32 0, %v4405
  %v4407 = vrot.slane %v4040, %v4406
  %v4408 = vlaneseq
  %v4409 = vshrl.u32 %v4408, 7
  %v4410 = vsub.s32 0, %v4409
  %v4411 = vrot.slane %v4042, %v4410
  %v4412 = vlaneseq
  %v4413 = vshrl.u32 %v4412, 7
  %v4414 = vsub.s32 0, %v4413
  %v4415 = vrot.slane %v4025, %v4414
  %v4416 = vlaneseq
  %v4417 = vshrl.u32 %v4416, 7
  %v4418 = vsub.s32 0, %v4417
  %v4419 = vrot.slane %v4039, %v4418
  %v4420 = vlaneseq
  %v4421 = vshrl.u32 %v4420, 7
  %v4422 = vsub.s32 0, %v4421
  %v4423 = vrot.slane %v4041, %v4422
  %v4424 = vlaneseq
  %v4425 = vshrl.u32 %v4424, 7
  %v4426 = vsub.s32 0, %v4425
  %v4427 = vrot.slane %v4043, %v4426
  %4428 = vset.pattern.permute.xlu0 0
  %4429 = vperm.xlu0 %4428, %v4047
  %v4430 = vpop.permute.xlu0 %4429
  %4432 = vset.pattern.permute.xlu0 0
  %4433 = vperm.xlu0 %4432, %v4051
  %v4434 = vpop.permute.xlu0 %4433
  %4436 = vset.pattern.permute.xlu0 0
  %4437 = vperm.xlu0 %4436, %v4055
  %v4438 = vpop.permute.xlu0 %4437
  %4440 = vset.pattern.permute.xlu0 0
  %4441 = vperm.xlu0 %4440, %v4059
  %v4442 = vpop.permute.xlu0 %4441
  %4444 = vset.pattern.permute.xlu0 0
  %4445 = vperm.xlu0 %4444, %v4063
  %v4446 = vpop.permute.xlu0 %4445
  %4448 = vset.pattern.permute.xlu0 0
  %4449 = vperm.xlu0 %4448, %v4067
  %v4450 = vpop.permute.xlu0 %4449
  %4452 = vset.pattern.permute.xlu0 0
  %4453 = vperm.xlu0 %4452, %v4071
  %v4454 = vpop.permute.xlu0 %4453
  %4456 = vset.pattern.permute.xlu0 0
  %4457 = vperm.xlu0 %4456, %v4075
  %v4458 = vpop.permute.xlu0 %4457
  %4460 = vset.pattern.permute.xlu0 0
  %4461 = vperm.xlu0 %4460, %v4079
  %v4462 = vpop.permute.xlu0 %4461
  %4464 = vset.pattern.permute.xlu0 0
  %4465 = vperm.xlu0 %4464, %v4083
  %v4466 = vpop.permute.xlu0 %4465
  %4468 = vset.pattern.permute.xlu0 0
  %4469 = vperm.xlu0 %4468, %v4087
  %v4470 = vpop.permute.xlu0 %4469
  %4472 = vset.pattern.permute.xlu0 0
  %4473 = vperm.xlu0 %4472, %v4091
  %v4474 = vpop.permute.xlu0 %4473
  %4476 = vset.pattern.permute.xlu0 0
  %4477 = vperm.xlu0 %4476, %v4095
  %v4478 = vpop.permute.xlu0 %4477
  %4480 = vset.pattern.permute.xlu0 0
  %4481 = vperm.xlu0 %4480, %v4099
  %v4482 = vpop.permute.xlu0 %4481
  %4484 = vset.pattern.permute.xlu0 0
  %4485 = vperm.xlu0 %4484, %v4103
  %v4486 = vpop.permute.xlu0 %4485
  %4488 = vset.pattern.permute.xlu0 0
  %4489 = vperm.xlu0 %4488, %v4107
  %v4490 = vpop.permute.xlu0 %4489
  %4492 = vset.pattern.permute.xlu0 0
  %4493 = vperm.xlu0 %4492, %v4111
  %v4494 = vpop.permute.xlu0 %4493
  %4496 = vset.pattern.permute.xlu0 0
  %4497 = vperm.xlu0 %4496, %v4115
  %v4498 = vpop.permute.xlu0 %4497
  %4500 = vset.pattern.permute.xlu0 0
  %4501 = vperm.xlu0 %4500, %v4119
  %v4502 = vpop.permute.xlu0 %4501
  %4504 = vset.pattern.permute.xlu0 0
  %4505 = vperm.xlu0 %4504, %v4123
  %v4506 = vpop.permute.xlu0 %4505
  %4508 = vset.pattern.permute.xlu0 0
  %4509 = vperm.xlu0 %4508, %v4127
  %v4510 = vpop.permute.xlu0 %4509
  %4512 = vset.pattern.permute.xlu0 0
  %4513 = vperm.xlu0 %4512, %v4131
  %v4514 = vpop.permute.xlu0 %4513
  %4516 = vset.pattern.permute.xlu0 0
  %4517 = vperm.xlu0 %4516, %v4135
  %v4518 = vpop.permute.xlu0 %4517
  %4520 = vset.pattern.permute.xlu0 0
  %4521 = vperm.xlu0 %4520, %v4139
  %v4522 = vpop.permute.xlu0 %4521
  %4524 = vset.pattern.permute.xlu0 0
  %4525 = vperm.xlu0 %4524, %v4143
  %v4526 = vpop.permute.xlu0 %4525
  %4528 = vset.pattern.permute.xlu0 0
  %4529 = vperm.xlu0 %4528, %v4147
  %v4530 = vpop.permute.xlu0 %4529
  %4532 = vset.pattern.permute.xlu0 0
  %4533 = vperm.xlu0 %4532, %v4151
  %v4534 = vpop.permute.xlu0 %4533
  %4536 = vset.pattern.permute.xlu0 0
  %4537 = vperm.xlu0 %4536, %v4155
  %v4538 = vpop.permute.xlu0 %4537
  %4540 = vset.pattern.permute.xlu0 0
  %4541 = vperm.xlu0 %4540, %v4159
  %v4542 = vpop.permute.xlu0 %4541
  %4544 = vset.pattern.permute.xlu0 0
  %4545 = vperm.xlu0 %4544, %v4163
  %v4546 = vpop.permute.xlu0 %4545
  %4548 = vset.pattern.permute.xlu0 0
  %4549 = vperm.xlu0 %4548, %v4167
  %v4550 = vpop.permute.xlu0 %4549
  %4552 = vset.pattern.permute.xlu0 0
  %4553 = vperm.xlu0 %4552, %v4171
  %v4554 = vpop.permute.xlu0 %4553
  %4556 = vset.pattern.permute.xlu0 0
  %4557 = vperm.xlu0 %4556, %v4175
  %v4558 = vpop.permute.xlu0 %4557
  %4560 = vset.pattern.permute.xlu0 0
  %4561 = vperm.xlu0 %4560, %v4179
  %v4562 = vpop.permute.xlu0 %4561
  %4564 = vset.pattern.permute.xlu0 0
  %4565 = vperm.xlu0 %4564, %v4183
  %v4566 = vpop.permute.xlu0 %4565
  %4568 = vset.pattern.permute.xlu0 0
  %4569 = vperm.xlu0 %4568, %v4187
  %v4570 = vpop.permute.xlu0 %4569
  %4572 = vset.pattern.permute.xlu0 0
  %4573 = vperm.xlu0 %4572, %v4191
  %v4574 = vpop.permute.xlu0 %4573
  %4576 = vset.pattern.permute.xlu0 0
  %4577 = vperm.xlu0 %4576, %v4195
  %v4578 = vpop.permute.xlu0 %4577
  %4580 = vset.pattern.permute.xlu0 0
  %4581 = vperm.xlu0 %4580, %v4199
  %v4582 = vpop.permute.xlu0 %4581
  %4584 = vset.pattern.permute.xlu0 0
  %4585 = vperm.xlu0 %4584, %v4203
  %v4586 = vpop.permute.xlu0 %4585
  %4588 = vset.pattern.permute.xlu0 0
  %4589 = vperm.xlu0 %4588, %v4207
  %v4590 = vpop.permute.xlu0 %4589
  %4592 = vset.pattern.permute.xlu0 0
  %4593 = vperm.xlu0 %4592, %v4211
  %v4594 = vpop.permute.xlu0 %4593
  %4596 = vset.pattern.permute.xlu0 0
  %4597 = vperm.xlu0 %4596, %v4215
  %v4598 = vpop.permute.xlu0 %4597
  %4600 = vset.pattern.permute.xlu0 0
  %4601 = vperm.xlu0 %4600, %v4219
  %v4602 = vpop.permute.xlu0 %4601
  %4604 = vset.pattern.permute.xlu0 0
  %4605 = vperm.xlu0 %4604, %v4223
  %v4606 = vpop.permute.xlu0 %4605
  %4608 = vset.pattern.permute.xlu0 0
  %4609 = vperm.xlu0 %4608, %v4227
  %v4610 = vpop.permute.xlu0 %4609
  %4612 = vset.pattern.permute.xlu0 0
  %4613 = vperm.xlu0 %4612, %v4231
  %v4614 = vpop.permute.xlu0 %4613
  %4616 = vset.pattern.permute.xlu0 0
  %4617 = vperm.xlu0 %4616, %v4235
  %v4618 = vpop.permute.xlu0 %4617
  %4620 = vset.pattern.permute.xlu0 0
  %4621 = vperm.xlu0 %4620, %v4239
  %v4622 = vpop.permute.xlu0 %4621
  %4624 = vset.pattern.permute.xlu0 0
  %4625 = vperm.xlu0 %4624, %v4243
  %v4626 = vpop.permute.xlu0 %4625
  %4628 = vset.pattern.permute.xlu0 0
  %4629 = vperm.xlu0 %4628, %v4247
  %v4630 = vpop.permute.xlu0 %4629
  %4632 = vset.pattern.permute.xlu0 0
  %4633 = vperm.xlu0 %4632, %v4251
  %v4634 = vpop.permute.xlu0 %4633
  %4636 = vset.pattern.permute.xlu0 0
  %4637 = vperm.xlu0 %4636, %v4255
  %v4638 = vpop.permute.xlu0 %4637
  %4640 = vset.pattern.permute.xlu0 0
  %4641 = vperm.xlu0 %4640, %v4259
  %v4642 = vpop.permute.xlu0 %4641
  %4644 = vset.pattern.permute.xlu0 0
  %4645 = vperm.xlu0 %4644, %v4263
  %v4646 = vpop.permute.xlu0 %4645
  %4648 = vset.pattern.permute.xlu0 0
  %4649 = vperm.xlu0 %4648, %v4267
  %v4650 = vpop.permute.xlu0 %4649
  %4652 = vset.pattern.permute.xlu0 0
  %4653 = vperm.xlu0 %4652, %v4271
  %v4654 = vpop.permute.xlu0 %4653
  %4656 = vset.pattern.permute.xlu0 0
  %4657 = vperm.xlu0 %4656, %v4275
  %v4658 = vpop.permute.xlu0 %4657
  %4660 = vset.pattern.permute.xlu0 0
  %4661 = vperm.xlu0 %4660, %v4279
  %v4662 = vpop.permute.xlu0 %4661
  %4664 = vset.pattern.permute.xlu0 0
  %4665 = vperm.xlu0 %4664, %v4283
  %v4666 = vpop.permute.xlu0 %4665
  %4668 = vset.pattern.permute.xlu0 0
  %4669 = vperm.xlu0 %4668, %v4287
  %v4670 = vpop.permute.xlu0 %4669
  %4672 = vset.pattern.permute.xlu0 0
  %4673 = vperm.xlu0 %4672, %v4291
  %v4674 = vpop.permute.xlu0 %4673
  %4676 = vset.pattern.permute.xlu0 0
  %4677 = vperm.xlu0 %4676, %v4295
  %v4678 = vpop.permute.xlu0 %4677
  %4680 = vset.pattern.permute.xlu0 0
  %4681 = vperm.xlu0 %4680, %v4299
  %v4682 = vpop.permute.xlu0 %4681
  %4684 = vset.pattern.permute.xlu0 0
  %4685 = vperm.xlu0 %4684, %v4303
  %v4686 = vpop.permute.xlu0 %4685
  %4688 = vset.pattern.permute.xlu0 0
  %4689 = vperm.xlu0 %4688, %v4307
  %v4690 = vpop.permute.xlu0 %4689
  %4692 = vset.pattern.permute.xlu0 0
  %4693 = vperm.xlu0 %4692, %v4311
  %v4694 = vpop.permute.xlu0 %4693
  %4696 = vset.pattern.permute.xlu0 0
  %4697 = vperm.xlu0 %4696, %v4315
  %v4698 = vpop.permute.xlu0 %4697
  %4700 = vset.pattern.permute.xlu0 0
  %4701 = vperm.xlu0 %4700, %v4319
  %v4702 = vpop.permute.xlu0 %4701
  %4704 = vset.pattern.permute.xlu0 0
  %4705 = vperm.xlu0 %4704, %v4323
  %v4706 = vpop.permute.xlu0 %4705
  %4708 = vset.pattern.permute.xlu0 0
  %4709 = vperm.xlu0 %4708, %v4327
  %v4710 = vpop.permute.xlu0 %4709
  %4712 = vset.pattern.permute.xlu0 0
  %4713 = vperm.xlu0 %4712, %v4331
  %v4714 = vpop.permute.xlu0 %4713
  %4716 = vset.pattern.permute.xlu0 0
  %4717 = vperm.xlu0 %4716, %v4335
  %v4718 = vpop.permute.xlu0 %4717
  %4720 = vset.pattern.permute.xlu0 0
  %4721 = vperm.xlu0 %4720, %v4339
  %v4722 = vpop.permute.xlu0 %4721
  %4724 = vset.pattern.permute.xlu0 0
  %4725 = vperm.xlu0 %4724, %v4343
  %v4726 = vpop.permute.xlu0 %4725
  %4728 = vset.pattern.permute.xlu0 0
  %4729 = vperm.xlu0 %4728, %v4347
  %v4730 = vpop.permute.xlu0 %4729
  %4732 = vset.pattern.permute.xlu0 0
  %4733 = vperm.xlu0 %4732, %v4351
  %v4734 = vpop.permute.xlu0 %4733
  %4736 = vset.pattern.permute.xlu0 0
  %4737 = vperm.xlu0 %4736, %v4355
  %v4738 = vpop.permute.xlu0 %4737
  %4740 = vset.pattern.permute.xlu0 0
  %4741 = vperm.xlu0 %4740, %v4359
  %v4742 = vpop.permute.xlu0 %4741
  %4744 = vset.pattern.permute.xlu0 0
  %4745 = vperm.xlu0 %4744, %v4363
  %v4746 = vpop.permute.xlu0 %4745
  %4748 = vset.pattern.permute.xlu0 0
  %4749 = vperm.xlu0 %4748, %v4367
  %v4750 = vpop.permute.xlu0 %4749
  %4752 = vset.pattern.permute.xlu0 0
  %4753 = vperm.xlu0 %4752, %v4371
  %v4754 = vpop.permute.xlu0 %4753
  %4756 = vset.pattern.permute.xlu0 0
  %4757 = vperm.xlu0 %4756, %v4375
  %v4758 = vpop.permute.xlu0 %4757
  %4760 = vset.pattern.permute.xlu0 0
  %4761 = vperm.xlu0 %4760, %v4379
  %v4762 = vpop.permute.xlu0 %4761
  %4764 = vset.pattern.permute.xlu0 0
  %4765 = vperm.xlu0 %4764, %v4383
  %v4766 = vpop.permute.xlu0 %4765
  %4768 = vset.pattern.permute.xlu0 0
  %4769 = vperm.xlu0 %4768, %v4387
  %v4770 = vpop.permute.xlu0 %4769
  %4772 = vset.pattern.permute.xlu0 0
  %4773 = vperm.xlu0 %4772, %v4391
  %v4774 = vpop.permute.xlu0 %4773
  %4776 = vset.pattern.permute.xlu0 0
  %4777 = vperm.xlu0 %4776, %v4395
  %v4778 = vpop.permute.xlu0 %4777
  %4780 = vset.pattern.permute.xlu0 0
  %4781 = vperm.xlu0 %4780, %v4399
  %v4782 = vpop.permute.xlu0 %4781
  %4784 = vset.pattern.permute.xlu0 0
  %4785 = vperm.xlu0 %4784, %v4403
  %v4786 = vpop.permute.xlu0 %4785
  %4788 = vset.pattern.permute.xlu0 0
  %4789 = vperm.xlu0 %4788, %v4407
  %v4790 = vpop.permute.xlu0 %4789
  %4792 = vset.pattern.permute.xlu0 0
  %4793 = vperm.xlu0 %4792, %v4411
  %v4794 = vpop.permute.xlu0 %4793
  %4796 = vset.pattern.permute.xlu0 0
  %4797 = vperm.xlu0 %4796, %v4415
  %v4798 = vpop.permute.xlu0 %4797
  %4800 = vset.pattern.permute.xlu0 0
  %4801 = vperm.xlu0 %4800, %v4419
  %v4802 = vpop.permute.xlu0 %4801
  %4804 = vset.pattern.permute.xlu0 0
  %4805 = vperm.xlu0 %4804, %v4423
  %v4806 = vpop.permute.xlu0 %4805
  %4808 = vset.pattern.permute.xlu0 0
  %4809 = vperm.xlu0 %4808, %v4427
  %v4810 = vpop.permute.xlu0 %4809
  %v4812 = vmul.f32 %v3336, %v4430
  %v4813 = vmul.f32 %v3337, %v4434
  %v4814 = vmul.f32 %v3338, %v4438
  %v4815 = vmul.f32 %v3339, %v4442
  %v4816 = vmul.f32 %v3340, %v4446
  %v4817 = vmul.f32 %v3341, %v4450
  %v4818 = vmul.f32 %v3342, %v4454
  %v4819 = vmul.f32 %v3343, %v4458
  %v4820 = vmul.f32 %v3344, %v4462
  %v4821 = vmul.f32 %v3345, %v4466
  %v4822 = vmul.f32 %v3346, %v4470
  %v4823 = vmul.f32 %v3347, %v4474
  %v4824 = vmul.f32 %v3348, %v4478
  %v4825 = vmul.f32 %v3349, %v4482
  %v4826 = vmul.f32 %v3350, %v4486
  %v4827 = vmul.f32 %v3351, %v4490
  %v4828 = vmul.f32 %v3352, %v4494
  %v4829 = vmul.f32 %v3353, %v4498
  %v4830 = vmul.f32 %v3354, %v4502
  %v4831 = vmul.f32 %v3355, %v4506
  %v4832 = vmul.f32 %v3356, %v4510
  %v4833 = vmul.f32 %v3357, %v4514
  %v4834 = vmul.f32 %v3358, %v4518
  %v4835 = vmul.f32 %v3359, %v4522
  %v4836 = vmul.f32 %v3360, %v4526
  %v4837 = vmul.f32 %v3361, %v4530
  %v4838 = vmul.f32 %v3362, %v4534
  %v4839 = vmul.f32 %v3363, %v4538
  %v4840 = vmul.f32 %v3364, %v4542
  %v4841 = vmul.f32 %v3365, %v4546
  %v4842 = vmul.f32 %v3366, %v4550
  %v4843 = vmul.f32 %v3367, %v4554
  %v4844 = vmul.f32 %v3368, %v4558
  %v4845 = vmul.f32 %v3369, %v4562
  %v4846 = vmul.f32 %v3370, %v4566
  %v4847 = vmul.f32 %v3371, %v4570
  %v4848 = vmul.f32 %v3372, %v4574
  %v4849 = vmul.f32 %v3373, %v4578
  %v4850 = vmul.f32 %v3374, %v4582
  %v4851 = vmul.f32 %v3375, %v4586
  %v4852 = vmul.f32 %v3376, %v4590
  %v4853 = vmul.f32 %v3377, %v4594
  %v4854 = vmul.f32 %v3378, %v4598
  %v4855 = vmul.f32 %v3379, %v4602
  %v4856 = vmul.f32 %v3380, %v4606
  %v4857 = vmul.f32 %v3381, %v4610
  %v4858 = vmul.f32 %v3382, %v4614
  %v4859 = vmul.f32 %v3383, %v4618
  %v4860 = vmul.f32 %v3384, %v4622
  %v4861 = vmul.f32 %v3385, %v4626
  %v4862 = vmul.f32 %v3386, %v4630
  %v4863 = vmul.f32 %v3387, %v4634
  %v4864 = vmul.f32 %v3388, %v4638
  %v4865 = vmul.f32 %v3389, %v4642
  %v4866 = vmul.f32 %v3390, %v4646
  %v4867 = vmul.f32 %v3391, %v4650
  %v4868 = vmul.f32 %v3392, %v4654
  %v4869 = vmul.f32 %v3393, %v4658
  %v4870 = vmul.f32 %v3394, %v4662
  %v4871 = vmul.f32 %v3395, %v4666
  %v4872 = vmul.f32 %v3396, %v4670
  %v4873 = vmul.f32 %v3397, %v4674
  %v4874 = vmul.f32 %v3398, %v4678
  %v4875 = vmul.f32 %v3399, %v4682
  %v4876 = vmul.f32 %v3400, %v4686
  %v4877 = vmul.f32 %v3401, %v4690
  %v4878 = vmul.f32 %v3402, %v4694
  %v4879 = vmul.f32 %v3403, %v4698
  %v4880 = vmul.f32 %v3404, %v4702
  %v4881 = vmul.f32 %v3405, %v4706
  %v4882 = vmul.f32 %v3406, %v4710
  %v4883 = vmul.f32 %v3407, %v4714
  %v4884 = vmul.f32 %v3408, %v4718
  %v4885 = vmul.f32 %v3409, %v4722
  %v4886 = vmul.f32 %v3410, %v4726
  %v4887 = vmul.f32 %v3411, %v4730
  %v4888 = vmul.f32 %v3412, %v4734
  %v4889 = vmul.f32 %v3413, %v4738
  %v4890 = vmul.f32 %v3414, %v4742
  %v4891 = vmul.f32 %v3415, %v4746
  %v4892 = vmul.f32 %v3416, %v4750
  %v4893 = vmul.f32 %v3417, %v4754
  %v4894 = vmul.f32 %v3418, %v4758
  %v4895 = vmul.f32 %v3419, %v4762
  %v4896 = vmul.f32 %v3420, %v4766
  %v4897 = vmul.f32 %v3421, %v4770
  %v4898 = vmul.f32 %v3422, %v4774
  %v4899 = vmul.f32 %v3423, %v4778
  %v4900 = vmul.f32 %v3424, %v4782
  %v4901 = vmul.f32 %v3425, %v4786
  %v4902 = vmul.f32 %v3426, %v4790
  %v4903 = vmul.f32 %v3427, %v4794
  %v4904 = vmul.f32 %v3428, %v4798
  %v4905 = vmul.f32 %v3429, %v4802
  %v4906 = vmul.f32 %v3430, %v4806
  %v4907 = vmul.f32 %v3431, %v4810
  %v4908 = vld [vmem:[%s9] sm:$0x1]
  %v4910 = vlaneseq
  %v4911 = vshrl.u32 %v4910, 7
  %v4912 = vsub.s32 0, %v4911
  %v4913 = vrot.slane %v4908, %v4912
  %v4915 = vadd.f32 %v4812, %v4913
  %v4916 = vadd.f32 %v4813, %v4913
  %v4917 = vadd.f32 %v4814, %v4913
  %v4918 = vadd.f32 %v4815, %v4913
  %v4919 = vadd.f32 %v4816, %v4913
  %v4920 = vadd.f32 %v4817, %v4913
  %v4921 = vadd.f32 %v4818, %v4913
  %v4922 = vadd.f32 %v4819, %v4913
  %v4923 = vadd.f32 %v4820, %v4913
  %v4924 = vadd.f32 %v4821, %v4913
  %v4925 = vadd.f32 %v4822, %v4913
  %v4926 = vadd.f32 %v4823, %v4913
  %v4927 = vadd.f32 %v4824, %v4913
  %v4928 = vadd.f32 %v4825, %v4913
  %v4929 = vadd.f32 %v4826, %v4913
  %v4930 = vadd.f32 %v4827, %v4913
  %v4931 = vadd.f32 %v4828, %v4913
  %v4932 = vadd.f32 %v4829, %v4913
  %v4933 = vadd.f32 %v4830, %v4913
  %v4934 = vadd.f32 %v4831, %v4913
  %v4935 = vadd.f32 %v4832, %v4913
  %v4936 = vadd.f32 %v4833, %v4913
  %v4937 = vadd.f32 %v4834, %v4913
  %v4938 = vadd.f32 %v4835, %v4913
  %v4939 = vadd.f32 %v4836, %v4913
  %v4940 = vadd.f32 %v4837, %v4913
  %v4941 = vadd.f32 %v4838, %v4913
  %v4942 = vadd.f32 %v4839, %v4913
  %v4943 = vadd.f32 %v4840, %v4913
  %v4944 = vadd.f32 %v4841, %v4913
  %v4945 = vadd.f32 %v4842, %v4913
  %v4946 = vadd.f32 %v4843, %v4913
  %v4947 = vadd.f32 %v4844, %v4913
  %v4948 = vadd.f32 %v4845, %v4913
  %v4949 = vadd.f32 %v4846, %v4913
  %v4950 = vadd.f32 %v4847, %v4913
  %v4951 = vadd.f32 %v4848, %v4913
  %v4952 = vadd.f32 %v4849, %v4913
  %v4953 = vadd.f32 %v4850, %v4913
  %v4954 = vadd.f32 %v4851, %v4913
  %v4955 = vadd.f32 %v4852, %v4913
  %v4956 = vadd.f32 %v4853, %v4913
  %v4957 = vadd.f32 %v4854, %v4913
  %v4958 = vadd.f32 %v4855, %v4913
  %v4959 = vadd.f32 %v4856, %v4913
  %v4960 = vadd.f32 %v4857, %v4913
  %v4961 = vadd.f32 %v4858, %v4913
  %v4962 = vadd.f32 %v4859, %v4913
  %v4963 = vadd.f32 %v4860, %v4913
  %v4964 = vadd.f32 %v4861, %v4913
  %v4965 = vadd.f32 %v4862, %v4913
  %v4966 = vadd.f32 %v4863, %v4913
  %v4967 = vadd.f32 %v4864, %v4913
  %v4968 = vadd.f32 %v4865, %v4913
  %v4969 = vadd.f32 %v4866, %v4913
  %v4970 = vadd.f32 %v4867, %v4913
  %v4971 = vadd.f32 %v4868, %v4913
  %v4972 = vadd.f32 %v4869, %v4913
  %v4973 = vadd.f32 %v4870, %v4913
  %v4974 = vadd.f32 %v4871, %v4913
  %v4975 = vadd.f32 %v4872, %v4913
  %v4976 = vadd.f32 %v4873, %v4913
  %v4977 = vadd.f32 %v4874, %v4913
  %v4978 = vadd.f32 %v4875, %v4913
  %v4979 = vadd.f32 %v4876, %v4913
  %v4980 = vadd.f32 %v4877, %v4913
  %v4981 = vadd.f32 %v4878, %v4913
  %v4982 = vadd.f32 %v4879, %v4913
  %v4983 = vadd.f32 %v4880, %v4913
  %v4984 = vadd.f32 %v4881, %v4913
  %v4985 = vadd.f32 %v4882, %v4913
  %v4986 = vadd.f32 %v4883, %v4913
  %v4987 = vadd.f32 %v4884, %v4913
  %v4988 = vadd.f32 %v4885, %v4913
  %v4989 = vadd.f32 %v4886, %v4913
  %v4990 = vadd.f32 %v4887, %v4913
  %v4991 = vadd.f32 %v4888, %v4913
  %v4992 = vadd.f32 %v4889, %v4913
  %v4993 = vadd.f32 %v4890, %v4913
  %v4994 = vadd.f32 %v4891, %v4913
  %v4995 = vadd.f32 %v4892, %v4913
  %v4996 = vadd.f32 %v4893, %v4913
  %v4997 = vadd.f32 %v4894, %v4913
  %v4998 = vadd.f32 %v4895, %v4913
  %v4999 = vadd.f32 %v4896, %v4913
  %v5000 = vadd.f32 %v4897, %v4913
  %v5001 = vadd.f32 %v4898, %v4913
  %v5002 = vadd.f32 %v4899, %v4913
  %v5003 = vadd.f32 %v4900, %v4913
  %v5004 = vadd.f32 %v4901, %v4913
  %v5005 = vadd.f32 %v4902, %v4913
  %v5006 = vadd.f32 %v4903, %v4913
  %v5007 = vadd.f32 %v4904, %v4913
  %v5008 = vadd.f32 %v4905, %v4913
  %v5009 = vadd.f32 %v4906, %v4913
  %v5010 = vadd.f32 %v4907, %v4913
  %v5011 = vmax.f32 %v4915, 0.0
  %v5012 = vmax.f32 %v4916, 0.0
  %v5013 = vmax.f32 %v4917, 0.0
  %v5014 = vmax.f32 %v4918, 0.0
  %v5015 = vmax.f32 %v4919, 0.0
  %v5016 = vmax.f32 %v4920, 0.0
  %v5017 = vmax.f32 %v4921, 0.0
  %v5018 = vmax.f32 %v4922, 0.0
  %v5019 = vmax.f32 %v4923, 0.0
  %v5020 = vmax.f32 %v4924, 0.0
  %v5021 = vmax.f32 %v4925, 0.0
  %v5022 = vmax.f32 %v4926, 0.0
  %v5023 = vmax.f32 %v4927, 0.0
  %v5024 = vmax.f32 %v4928, 0.0
  %v5025 = vmax.f32 %v4929, 0.0
  %v5026 = vmax.f32 %v4930, 0.0
  %v5027 = vmax.f32 %v4931, 0.0
  %v5028 = vmax.f32 %v4932, 0.0
  %v5029 = vmax.f32 %v4933, 0.0
  %v5030 = vmax.f32 %v4934, 0.0
  %v5031 = vmax.f32 %v4935, 0.0
  %v5032 = vmax.f32 %v4936, 0.0
  %v5033 = vmax.f32 %v4937, 0.0
  %v5034 = vmax.f32 %v4938, 0.0
  %v5035 = vmax.f32 %v4939, 0.0
  %v5036 = vmax.f32 %v4940, 0.0
  %v5037 = vmax.f32 %v4941, 0.0
  %v5038 = vmax.f32 %v4942, 0.0
  %v5039 = vmax.f32 %v4943, 0.0
  %v5040 = vmax.f32 %v4944, 0.0
  %v5041 = vmax.f32 %v4945, 0.0
  %v5042 = vmax.f32 %v4946, 0.0
  %v5043 = vmax.f32 %v4947, 0.0
  %v5044 = vmax.f32 %v4948, 0.0
  %v5045 = vmax.f32 %v4949, 0.0
  %v5046 = vmax.f32 %v4950, 0.0
  %v5047 = vmax.f32 %v4951, 0.0
  %v5048 = vmax.f32 %v4952, 0.0
  %v5049 = vmax.f32 %v4953, 0.0
  %v5050 = vmax.f32 %v4954, 0.0
  %v5051 = vmax.f32 %v4955, 0.0
  %v5052 = vmax.f32 %v4956, 0.0
  %v5053 = vmax.f32 %v4957, 0.0
  %v5054 = vmax.f32 %v4958, 0.0
  %v5055 = vmax.f32 %v4959, 0.0
  %v5056 = vmax.f32 %v4960, 0.0
  %v5057 = vmax.f32 %v4961, 0.0
  %v5058 = vmax.f32 %v4962, 0.0
  %v5059 = vmax.f32 %v4963, 0.0
  %v5060 = vmax.f32 %v4964, 0.0
  %v5061 = vmax.f32 %v4965, 0.0
  %v5062 = vmax.f32 %v4966, 0.0
  %v5063 = vmax.f32 %v4967, 0.0
  %v5064 = vmax.f32 %v4968, 0.0
  %v5065 = vmax.f32 %v4969, 0.0
  %v5066 = vmax.f32 %v4970, 0.0
  %v5067 = vmax.f32 %v4971, 0.0
  %v5068 = vmax.f32 %v4972, 0.0
  %v5069 = vmax.f32 %v4973, 0.0
  %v5070 = vmax.f32 %v4974, 0.0
  %v5071 = vmax.f32 %v4975, 0.0
  %v5072 = vmax.f32 %v4976, 0.0
  %v5073 = vmax.f32 %v4977, 0.0
  %v5074 = vmax.f32 %v4978, 0.0
  %v5075 = vmax.f32 %v4979, 0.0
  %v5076 = vmax.f32 %v4980, 0.0
  %v5077 = vmax.f32 %v4981, 0.0
  %v5078 = vmax.f32 %v4982, 0.0
  %v5079 = vmax.f32 %v4983, 0.0
  %v5080 = vmax.f32 %v4984, 0.0
  %v5081 = vmax.f32 %v4985, 0.0
  %v5082 = vmax.f32 %v4986, 0.0
  %v5083 = vmax.f32 %v4987, 0.0
  %v5084 = vmax.f32 %v4988, 0.0
  %v5085 = vmax.f32 %v4989, 0.0
  %v5086 = vmax.f32 %v4990, 0.0
  %v5087 = vmax.f32 %v4991, 0.0
  %v5088 = vmax.f32 %v4992, 0.0
  %v5089 = vmax.f32 %v4993, 0.0
  %v5090 = vmax.f32 %v4994, 0.0
  %v5091 = vmax.f32 %v4995, 0.0
  %v5092 = vmax.f32 %v4996, 0.0
  %v5093 = vmax.f32 %v4997, 0.0
  %v5094 = vmax.f32 %v4998, 0.0
  %v5095 = vmax.f32 %v4999, 0.0
  %v5096 = vmax.f32 %v5000, 0.0
  %v5097 = vmax.f32 %v5001, 0.0
  %v5098 = vmax.f32 %v5002, 0.0
  %v5099 = vmax.f32 %v5003, 0.0
  %v5100 = vmax.f32 %v5004, 0.0
  %v5101 = vmax.f32 %v5005, 0.0
  %v5102 = vmax.f32 %v5006, 0.0
  %v5103 = vmax.f32 %v5007, 0.0
  %v5104 = vmax.f32 %v5008, 0.0
  %v5105 = vmax.f32 %v5009, 0.0
  %v5106 = vmax.f32 %v5010, 0.0
  %v5107 = vpack.c.bf16 %v5012, %v5011
  %v5108 = vpack.c.bf16 %v5014, %v5013
  %v5109 = vpack.c.bf16 %v5016, %v5015
  %v5110 = vpack.c.bf16 %v5018, %v5017
  %v5111 = vpack.c.bf16 %v5020, %v5019
  %v5112 = vpack.c.bf16 %v5022, %v5021
  %v5113 = vpack.c.bf16 %v5024, %v5023
  %v5114 = vpack.c.bf16 %v5026, %v5025
  %v5115 = vpack.c.bf16 %v5028, %v5027
  %v5116 = vpack.c.bf16 %v5030, %v5029
  %v5117 = vpack.c.bf16 %v5032, %v5031
  %v5118 = vpack.c.bf16 %v5034, %v5033
  %v5119 = vpack.c.bf16 %v5036, %v5035
  %v5120 = vpack.c.bf16 %v5038, %v5037
  %v5121 = vpack.c.bf16 %v5040, %v5039
  %v5122 = vpack.c.bf16 %v5042, %v5041
  %v5123 = vpack.c.bf16 %v5044, %v5043
  %v5124 = vpack.c.bf16 %v5046, %v5045
  %v5125 = vpack.c.bf16 %v5048, %v5047
  %v5126 = vpack.c.bf16 %v5050, %v5049
  %v5127 = vpack.c.bf16 %v5052, %v5051
  %v5128 = vpack.c.bf16 %v5054, %v5053
  %v5129 = vpack.c.bf16 %v5056, %v5055
  %v5130 = vpack.c.bf16 %v5058, %v5057
  %v5131 = vpack.c.bf16 %v5060, %v5059
  %v5132 = vpack.c.bf16 %v5062, %v5061
  %v5133 = vpack.c.bf16 %v5064, %v5063
  %v5134 = vpack.c.bf16 %v5066, %v5065
  %v5135 = vpack.c.bf16 %v5068, %v5067
  %v5136 = vpack.c.bf16 %v5070, %v5069
  %v5137 = vpack.c.bf16 %v5072, %v5071
  %v5138 = vpack.c.bf16 %v5074, %v5073
  %v5139 = vpack.c.bf16 %v5076, %v5075
  %v5140 = vpack.c.bf16 %v5078, %v5077
  %v5141 = vpack.c.bf16 %v5080, %v5079
  %v5142 = vpack.c.bf16 %v5082, %v5081
  %v5143 = vpack.c.bf16 %v5084, %v5083
  %v5144 = vpack.c.bf16 %v5086, %v5085
  %v5145 = vpack.c.bf16 %v5088, %v5087
  %v5146 = vpack.c.bf16 %v5090, %v5089
  %v5147 = vpack.c.bf16 %v5092, %v5091
  %v5148 = vpack.c.bf16 %v5094, %v5093
  %v5149 = vpack.c.bf16 %v5096, %v5095
  %v5150 = vpack.c.bf16 %v5098, %v5097
  %v5151 = vpack.c.bf16 %v5100, %v5099
  %v5152 = vpack.c.bf16 %v5102, %v5101
  %v5153 = vpack.c.bf16 %v5104, %v5103
  %v5154 = vpack.c.bf16 %v5106, %v5105
  %v5155 = vld [vmem:[%s10] sm:$0xf]
  %v5156 = vld [vmem:[%s10 + $0x4] sm:$0xf]
  %v5157 = vld [vmem:[%s10 + $0x8] sm:$0xf]
  %v5158 = vld [vmem:[%s10 + $0xc] sm:$0xf]
  %v5159 = vld [vmem:[%s10 + $0x10] sm:$0xf]
  %v5160 = vld [vmem:[%s10 + $0x14] sm:$0xf]
  %v5161 = vld [vmem:[%s10 + $0x18] sm:$0xf]
  %v5162 = vld [vmem:[%s10 + $0x1c] sm:$0xf]
  %v5163 = vld [vmem:[%s10 + $0x20] sm:$0xf]
  %v5164 = vld [vmem:[%s10 + $0x24] sm:$0xf]
  %v5165 = vld [vmem:[%s10 + $0x28] sm:$0xf]
  %v5166 = vld [vmem:[%s10 + $0x2c] sm:$0xf]
  %v5167 = vld [vmem:[%s10 + $0x30] sm:$0xf]
  %v5168 = vld [vmem:[%s10 + $0x34] sm:$0xf]
  %v5169 = vld [vmem:[%s10 + $0x38] sm:$0xf]
  %v5170 = vld [vmem:[%s10 + $0x3c] sm:$0xf]
  %v5171 = vld [vmem:[%s11] sm:$0x1]
  %v5173 = vlaneseq
  %v5174 = vshrl.u32 %v5173, 7
  %v5175 = vsub.s32 0, %v5174
  %v5176 = vrot.slane %v5171, %v5175
  %v5194 = vunpack.c.l.b16 %v5155
  %v5195 = vunpack.c.l.b16 %v5156
  %v5196 = vunpack.c.l.b16 %v5157
  %v5197 = vunpack.c.l.b16 %v5158
  %v5198 = vunpack.c.l.b16 %v5159
  %v5199 = vunpack.c.l.b16 %v5160
  %v5200 = vunpack.c.l.b16 %v5161
  %v5201 = vunpack.c.l.b16 %v5162
  %v5202 = vunpack.c.l.b16 %v5163
  %v5203 = vunpack.c.l.b16 %v5164
  %v5204 = vunpack.c.l.b16 %v5165
  %v5205 = vunpack.c.l.b16 %v5166
  %v5206 = vunpack.c.l.b16 %v5167
  %v5207 = vunpack.c.l.b16 %v5168
  %v5208 = vunpack.c.l.b16 %v5169
  %v5209 = vunpack.c.l.b16 %v5170
  %v5210 = vpack.c.b16 %v5195, %v5194
  %v5211 = vpack.c.b16 %v5197, %v5196
  %v5212 = vpack.c.b16 %v5199, %v5198
  %v5213 = vpack.c.b16 %v5201, %v5200
  %v5214 = vpack.c.b16 %v5203, %v5202
  %v5215 = vpack.c.b16 %v5205, %v5204
  %v5216 = vpack.c.b16 %v5207, %v5206
  %v5217 = vpack.c.b16 %v5209, %v5208
  %5226 = vmatprep.subr.bf16.mxu0 0
  %5227 = vmatpush1.bf16.msra.mxu0 %v5217
  %5228 = vmatprep.subr.bf16.mxu0 0
  %5229 = vmatpush1.bf16.msra.mxu0 %v5216
  %5230 = vmatprep.subr.bf16.mxu0 0
  %5231 = vmatpush1.bf16.msra.mxu0 %v5215
  %5232 = vmatprep.subr.bf16.mxu0 0
  %5233 = vmatpush1.bf16.msra.mxu0 %v5214
  %5234 = vmatprep.subr.bf16.mxu0 0
  %5235 = vmatpush1.bf16.msra.mxu0 %v5213
  %5236 = vmatprep.subr.bf16.mxu0 0
  %5237 = vmatpush1.bf16.msra.mxu0 %v5212
  %5238 = vmatprep.subr.bf16.mxu0 0
  %5239 = vmatpush1.bf16.msra.mxu0 %v5211
  %5240 = vmatprep.subr.bf16.mxu0 0
  %5241 = vmatpush1.bf16.msra.mxu0 %v5210
  %5242 = vmatprep.subr.bf16.mxu0 0
  %5243 = vmatpush2.bf16.msra.mxu0 0
  %5244 = vmatprep.subr.bf16.mxu0 0
  %5245 = vmatpush2.bf16.msra.mxu0 0
  %5246 = vmatprep.subr.bf16.mxu0 0
  %5247 = vmatpush2.bf16.msra.mxu0 0
  %5248 = vmatprep.subr.bf16.mxu0 0
  %5249 = vmatpush2.bf16.msra.mxu0 0
  %5250 = vmatprep.subr.bf16.mxu0 0
  %5251 = vmatpush2.bf16.msra.mxu0 0
  %5252 = vmatprep.subr.bf16.mxu0 0
  %5253 = vmatpush2.bf16.msra.mxu0 0
  %5254 = vmatprep.subr.bf16.mxu0 0
  %5255 = vmatpush2.bf16.msra.mxu0 0
  %5256 = vmatprep.subr.bf16.mxu0 0
  %5257 = vmatpush2.bf16.msra.mxu0 0
  %5258 = vmatprep.mubr.bf16.mxu0 0
  %5259 = vmatmul.mubr.bf16.gmra.mxu0 %v5107
  %v5260 = vpop.f32.mrf.mxu0
  %v5261 = vadd.f32 %v5176, %v5260
  %v5262 = vpop.f32.mrf.mxu0
  %v5263 = vpop.f32.mrf.mxu0
  %v5264 = vadd.f32 %v5176, %v5263
  %v5265 = vpop.f32.mrf.mxu0
  %5266 = vmatprep.mubr.bf16.mxu0 0
  %5267 = vmatmul.mubr.bf16.gmra.mxu0 %v5108
  %v5268 = vpop.f32.mrf.mxu0
  %v5269 = vadd.f32 %v5176, %v5268
  %v5270 = vpop.f32.mrf.mxu0
  %v5271 = vpop.f32.mrf.mxu0
  %v5272 = vadd.f32 %v5176, %v5271
  %v5273 = vpop.f32.mrf.mxu0
  %5274 = vmatprep.mubr.bf16.mxu0 0
  %5275 = vmatmul.mubr.bf16.gmra.mxu0 %v5109
  %v5276 = vpop.f32.mrf.mxu0
  %v5277 = vadd.f32 %v5176, %v5276
  %v5278 = vpop.f32.mrf.mxu0
  %v5279 = vpop.f32.mrf.mxu0
  %v5280 = vadd.f32 %v5176, %v5279
  %v5281 = vpop.f32.mrf.mxu0
  %5282 = vmatprep.mubr.bf16.mxu0 0
  %5283 = vmatmul.mubr.bf16.gmra.mxu0 %v5110
  %v5284 = vpop.f32.mrf.mxu0
  %v5285 = vadd.f32 %v5176, %v5284
  %v5286 = vpop.f32.mrf.mxu0
  %v5287 = vpop.f32.mrf.mxu0
  %v5288 = vadd.f32 %v5176, %v5287
  %v5289 = vpop.f32.mrf.mxu0
  %5290 = vmatprep.mubr.bf16.mxu0 0
  %5291 = vmatmul.mubr.bf16.gmra.mxu0 %v5111
  %v5292 = vpop.f32.mrf.mxu0
  %v5293 = vadd.f32 %v5176, %v5292
  %v5294 = vpop.f32.mrf.mxu0
  %v5295 = vpop.f32.mrf.mxu0
  %v5296 = vadd.f32 %v5176, %v5295
  %v5297 = vpop.f32.mrf.mxu0
  %5298 = vmatprep.mubr.bf16.mxu0 0
  %5299 = vmatmul.mubr.bf16.gmra.mxu0 %v5112
  %v5300 = vpop.f32.mrf.mxu0
  %v5301 = vadd.f32 %v5176, %v5300
  %v5302 = vpop.f32.mrf.mxu0
  %v5303 = vpop.f32.mrf.mxu0
  %v5304 = vadd.f32 %v5176, %v5303
  %v5305 = vpop.f32.mrf.mxu0
  %5306 = vmatprep.mubr.bf16.mxu0 0
  %5307 = vmatmul.mubr.bf16.gmra.mxu0 %v5113
  %v5308 = vpop.f32.mrf.mxu0
  %v5309 = vadd.f32 %v5176, %v5308
  %v5310 = vpop.f32.mrf.mxu0
  %v5311 = vpop.f32.mrf.mxu0
  %v5312 = vadd.f32 %v5176, %v5311
  %v5313 = vpop.f32.mrf.mxu0
  %5314 = vmatprep.mubr.bf16.mxu0 0
  %5315 = vmatmul.mubr.bf16.gmra.mxu0 %v5114
  %v5316 = vpop.f32.mrf.mxu0
  %v5317 = vadd.f32 %v5176, %v5316
  %v5318 = vpop.f32.mrf.mxu0
  %v5319 = vpop.f32.mrf.mxu0
  %v5320 = vadd.f32 %v5176, %v5319
  %v5321 = vpop.f32.mrf.mxu0
  %5322 = vmatprep.mubr.bf16.mxu0 0
  %5323 = vmatmul.mubr.bf16.gmra.mxu0 %v5115
  %v5324 = vpop.f32.mrf.mxu0
  %v5325 = vadd.f32 %v5176, %v5324
  %v5326 = vpop.f32.mrf.mxu0
  %v5327 = vpop.f32.mrf.mxu0
  %v5328 = vadd.f32 %v5176, %v5327
  %v5329 = vpop.f32.mrf.mxu0
  %5330 = vmatprep.mubr.bf16.mxu0 0
  %5331 = vmatmul.mubr.bf16.gmra.mxu0 %v5116
  %v5332 = vpop.f32.mrf.mxu0
  %v5333 = vadd.f32 %v5176, %v5332
  %v5334 = vpop.f32.mrf.mxu0
  %v5335 = vpop.f32.mrf.mxu0
  %v5336 = vadd.f32 %v5176, %v5335
  %v5337 = vpop.f32.mrf.mxu0
  %5338 = vmatprep.mubr.bf16.mxu0 0
  %5339 = vmatmul.mubr.bf16.gmra.mxu0 %v5117
  %v5340 = vpop.f32.mrf.mxu0
  %v5341 = vadd.f32 %v5176, %v5340
  %v5342 = vpop.f32.mrf.mxu0
  %v5343 = vpop.f32.mrf.mxu0
  %v5344 = vadd.f32 %v5176, %v5343
  %v5345 = vpop.f32.mrf.mxu0
  %5346 = vmatprep.mubr.bf16.mxu0 0
  %5347 = vmatmul.mubr.bf16.gmra.mxu0 %v5118
  %v5348 = vpop.f32.mrf.mxu0
  %v5349 = vadd.f32 %v5176, %v5348
  %v5350 = vpop.f32.mrf.mxu0
  %v5351 = vpop.f32.mrf.mxu0
  %v5352 = vadd.f32 %v5176, %v5351
  %v5353 = vpop.f32.mrf.mxu0
  %5354 = vmatprep.mubr.bf16.mxu0 0
  %5355 = vmatmul.mubr.bf16.gmra.mxu0 %v5119
  %v5356 = vpop.f32.mrf.mxu0
  %v5357 = vadd.f32 %v5176, %v5356
  %v5358 = vpop.f32.mrf.mxu0
  %v5359 = vpop.f32.mrf.mxu0
  %v5360 = vadd.f32 %v5176, %v5359
  %v5361 = vpop.f32.mrf.mxu0
  %5362 = vmatprep.mubr.bf16.mxu0 0
  %5363 = vmatmul.mubr.bf16.gmra.mxu0 %v5120
  %v5364 = vpop.f32.mrf.mxu0
  %v5365 = vadd.f32 %v5176, %v5364
  %v5366 = vpop.f32.mrf.mxu0
  %v5367 = vpop.f32.mrf.mxu0
  %v5368 = vadd.f32 %v5176, %v5367
  %v5369 = vpop.f32.mrf.mxu0
  %5370 = vmatprep.mubr.bf16.mxu0 0
  %5371 = vmatmul.mubr.bf16.gmra.mxu0 %v5121
  %v5372 = vpop.f32.mrf.mxu0
  %v5373 = vadd.f32 %v5176, %v5372
  %v5374 = vpop.f32.mrf.mxu0
  %v5375 = vpop.f32.mrf.mxu0
  %v5376 = vadd.f32 %v5176, %v5375
  %v5377 = vpop.f32.mrf.mxu0
  %5378 = vmatprep.mubr.bf16.mxu0 0
  %5379 = vmatmul.mubr.bf16.gmra.mxu0 %v5122
  %v5380 = vpop.f32.mrf.mxu0
  %v5381 = vadd.f32 %v5176, %v5380
  %v5382 = vpop.f32.mrf.mxu0
  %v5383 = vpop.f32.mrf.mxu0
  %v5384 = vadd.f32 %v5176, %v5383
  %v5385 = vpop.f32.mrf.mxu0
  %5386 = vmatprep.mubr.bf16.mxu0 0
  %5387 = vmatmul.mubr.bf16.gmra.mxu0 %v5123
  %v5388 = vpop.f32.mrf.mxu0
  %v5389 = vadd.f32 %v5176, %v5388
  %v5390 = vpop.f32.mrf.mxu0
  %v5391 = vpop.f32.mrf.mxu0
  %v5392 = vadd.f32 %v5176, %v5391
  %v5393 = vpop.f32.mrf.mxu0
  %5394 = vmatprep.mubr.bf16.mxu0 0
  %5395 = vmatmul.mubr.bf16.gmra.mxu0 %v5124
  %v5396 = vpop.f32.mrf.mxu0
  %v5397 = vadd.f32 %v5176, %v5396
  %v5398 = vpop.f32.mrf.mxu0
  %v5399 = vpop.f32.mrf.mxu0
  %v5400 = vadd.f32 %v5176, %v5399
  %v5401 = vpop.f32.mrf.mxu0
  %5402 = vmatprep.mubr.bf16.mxu0 0
  %5403 = vmatmul.mubr.bf16.gmra.mxu0 %v5125
  %v5404 = vpop.f32.mrf.mxu0
  %v5405 = vadd.f32 %v5176, %v5404
  %v5406 = vpop.f32.mrf.mxu0
  %v5407 = vpop.f32.mrf.mxu0
  %v5408 = vadd.f32 %v5176, %v5407
  %v5409 = vpop.f32.mrf.mxu0
  %5410 = vmatprep.mubr.bf16.mxu0 0
  %5411 = vmatmul.mubr.bf16.gmra.mxu0 %v5126
  %v5412 = vpop.f32.mrf.mxu0
  %v5413 = vadd.f32 %v5176, %v5412
  %v5414 = vpop.f32.mrf.mxu0
  %v5415 = vpop.f32.mrf.mxu0
  %v5416 = vadd.f32 %v5176, %v5415
  %v5417 = vpop.f32.mrf.mxu0
  %5418 = vmatprep.mubr.bf16.mxu0 0
  %5419 = vmatmul.mubr.bf16.gmra.mxu0 %v5127
  %v5420 = vpop.f32.mrf.mxu0
  %v5421 = vadd.f32 %v5176, %v5420
  %v5422 = vpop.f32.mrf.mxu0
  %v5423 = vpop.f32.mrf.mxu0
  %v5424 = vadd.f32 %v5176, %v5423
  %v5425 = vpop.f32.mrf.mxu0
  %5426 = vmatprep.mubr.bf16.mxu0 0
  %5427 = vmatmul.mubr.bf16.gmra.mxu0 %v5128
  %v5428 = vpop.f32.mrf.mxu0
  %v5429 = vadd.f32 %v5176, %v5428
  %v5430 = vpop.f32.mrf.mxu0
  %v5431 = vpop.f32.mrf.mxu0
  %v5432 = vadd.f32 %v5176, %v5431
  %v5433 = vpop.f32.mrf.mxu0
  %5434 = vmatprep.mubr.bf16.mxu0 0
  %5435 = vmatmul.mubr.bf16.gmra.mxu0 %v5129
  %v5436 = vpop.f32.mrf.mxu0
  %v5437 = vadd.f32 %v5176, %v5436
  %v5438 = vpop.f32.mrf.mxu0
  %v5439 = vpop.f32.mrf.mxu0
  %v5440 = vadd.f32 %v5176, %v5439
  %v5441 = vpop.f32.mrf.mxu0
  %5442 = vmatprep.mubr.bf16.mxu0 0
  %5443 = vmatmul.mubr.bf16.gmra.mxu0 %v5130
  %v5444 = vpop.f32.mrf.mxu0
  %v5445 = vadd.f32 %v5176, %v5444
  %v5446 = vpop.f32.mrf.mxu0
  %v5447 = vpop.f32.mrf.mxu0
  %v5448 = vadd.f32 %v5176, %v5447
  %v5449 = vpop.f32.mrf.mxu0
  %5450 = vmatprep.mubr.bf16.mxu0 0
  %5451 = vmatmul.mubr.bf16.gmra.mxu0 %v5131
  %v5452 = vpop.f32.mrf.mxu0
  %v5453 = vadd.f32 %v5176, %v5452
  %v5454 = vpop.f32.mrf.mxu0
  %v5455 = vpop.f32.mrf.mxu0
  %v5456 = vadd.f32 %v5176, %v5455
  %v5457 = vpop.f32.mrf.mxu0
  %5458 = vmatprep.mubr.bf16.mxu0 0
  %5459 = vmatmul.mubr.bf16.gmra.mxu0 %v5132
  %v5460 = vpop.f32.mrf.mxu0
  %v5461 = vadd.f32 %v5176, %v5460
  %v5462 = vpop.f32.mrf.mxu0
  %v5463 = vpop.f32.mrf.mxu0
  %v5464 = vadd.f32 %v5176, %v5463
  %v5465 = vpop.f32.mrf.mxu0
  %5466 = vmatprep.mubr.bf16.mxu0 0
  %5467 = vmatmul.mubr.bf16.gmra.mxu0 %v5133
  %v5468 = vpop.f32.mrf.mxu0
  %v5469 = vadd.f32 %v5176, %v5468
  %v5470 = vpop.f32.mrf.mxu0
  %v5471 = vpop.f32.mrf.mxu0
  %v5472 = vadd.f32 %v5176, %v5471
  %v5473 = vpop.f32.mrf.mxu0
  %5474 = vmatprep.mubr.bf16.mxu0 0
  %5475 = vmatmul.mubr.bf16.gmra.mxu0 %v5134
  %v5476 = vpop.f32.mrf.mxu0
  %v5477 = vadd.f32 %v5176, %v5476
  %v5478 = vpop.f32.mrf.mxu0
  %v5479 = vpop.f32.mrf.mxu0
  %v5480 = vadd.f32 %v5176, %v5479
  %v5481 = vpop.f32.mrf.mxu0
  %5482 = vmatprep.mubr.bf16.mxu0 0
  %5483 = vmatmul.mubr.bf16.gmra.mxu0 %v5135
  %v5484 = vpop.f32.mrf.mxu0
  %v5485 = vadd.f32 %v5176, %v5484
  %v5486 = vpop.f32.mrf.mxu0
  %v5487 = vpop.f32.mrf.mxu0
  %v5488 = vadd.f32 %v5176, %v5487
  %v5489 = vpop.f32.mrf.mxu0
  %5490 = vmatprep.mubr.bf16.mxu0 0
  %5491 = vmatmul.mubr.bf16.gmra.mxu0 %v5136
  %v5492 = vpop.f32.mrf.mxu0
  %v5493 = vadd.f32 %v5176, %v5492
  %v5494 = vpop.f32.mrf.mxu0
  %v5495 = vpop.f32.mrf.mxu0
  %v5496 = vadd.f32 %v5176, %v5495
  %v5497 = vpop.f32.mrf.mxu0
  %5498 = vmatprep.mubr.bf16.mxu0 0
  %5499 = vmatmul.mubr.bf16.gmra.mxu0 %v5137
  %v5500 = vpop.f32.mrf.mxu0
  %v5501 = vadd.f32 %v5176, %v5500
  %v5502 = vpop.f32.mrf.mxu0
  %v5503 = vpop.f32.mrf.mxu0
  %v5504 = vadd.f32 %v5176, %v5503
  %v5505 = vpop.f32.mrf.mxu0
  %5506 = vmatprep.mubr.bf16.mxu0 0
  %5507 = vmatmul.mubr.bf16.gmra.mxu0 %v5138
  %v5508 = vpop.f32.mrf.mxu0
  %v5509 = vadd.f32 %v5176, %v5508
  %v5510 = vpop.f32.mrf.mxu0
  %v5511 = vpop.f32.mrf.mxu0
  %v5512 = vadd.f32 %v5176, %v5511
  %v5513 = vpop.f32.mrf.mxu0
  %5514 = vmatprep.mubr.bf16.mxu0 0
  %5515 = vmatmul.mubr.bf16.gmra.mxu0 %v5139
  %v5516 = vpop.f32.mrf.mxu0
  %v5517 = vadd.f32 %v5176, %v5516
  %v5518 = vpop.f32.mrf.mxu0
  %v5519 = vpop.f32.mrf.mxu0
  %v5520 = vadd.f32 %v5176, %v5519
  %v5521 = vpop.f32.mrf.mxu0
  %5522 = vmatprep.mubr.bf16.mxu0 0
  %5523 = vmatmul.mubr.bf16.gmra.mxu0 %v5140
  %v5524 = vpop.f32.mrf.mxu0
  %v5525 = vadd.f32 %v5176, %v5524
  %v5526 = vpop.f32.mrf.mxu0
  %v5527 = vpop.f32.mrf.mxu0
  %v5528 = vadd.f32 %v5176, %v5527
  %v5529 = vpop.f32.mrf.mxu0
  %5530 = vmatprep.mubr.bf16.mxu0 0
  %5531 = vmatmul.mubr.bf16.gmra.mxu0 %v5141
  %v5532 = vpop.f32.mrf.mxu0
  %v5533 = vadd.f32 %v5176, %v5532
  %v5534 = vpop.f32.mrf.mxu0
  %v5535 = vpop.f32.mrf.mxu0
  %v5536 = vadd.f32 %v5176, %v5535
  %v5537 = vpop.f32.mrf.mxu0
  %5538 = vmatprep.mubr.bf16.mxu0 0
  %5539 = vmatmul.mubr.bf16.gmra.mxu0 %v5142
  %v5540 = vpop.f32.mrf.mxu0
  %v5541 = vadd.f32 %v5176, %v5540
  %v5542 = vpop.f32.mrf.mxu0
  %v5543 = vpop.f32.mrf.mxu0
  %v5544 = vadd.f32 %v5176, %v5543
  %v5545 = vpop.f32.mrf.mxu0
  %5546 = vmatprep.mubr.bf16.mxu0 0
  %5547 = vmatmul.mubr.bf16.gmra.mxu0 %v5143
  %v5548 = vpop.f32.mrf.mxu0
  %v5549 = vadd.f32 %v5176, %v5548
  %v5550 = vpop.f32.mrf.mxu0
  %v5551 = vpop.f32.mrf.mxu0
  %v5552 = vadd.f32 %v5176, %v5551
  %v5553 = vpop.f32.mrf.mxu0
  %5554 = vmatprep.mubr.bf16.mxu0 0
  %5555 = vmatmul.mubr.bf16.gmra.mxu0 %v5144
  %v5556 = vpop.f32.mrf.mxu0
  %v5557 = vadd.f32 %v5176, %v5556
  %v5558 = vpop.f32.mrf.mxu0
  %v5559 = vpop.f32.mrf.mxu0
  %v5560 = vadd.f32 %v5176, %v5559
  %v5561 = vpop.f32.mrf.mxu0
  %5562 = vmatprep.mubr.bf16.mxu0 0
  %5563 = vmatmul.mubr.bf16.gmra.mxu0 %v5145
  %v5564 = vpop.f32.mrf.mxu0
  %v5565 = vadd.f32 %v5176, %v5564
  %v5566 = vpop.f32.mrf.mxu0
  %v5567 = vpop.f32.mrf.mxu0
  %v5568 = vadd.f32 %v5176, %v5567
  %v5569 = vpop.f32.mrf.mxu0
  %5570 = vmatprep.mubr.bf16.mxu0 0
  %5571 = vmatmul.mubr.bf16.gmra.mxu0 %v5146
  %v5572 = vpop.f32.mrf.mxu0
  %v5573 = vadd.f32 %v5176, %v5572
  %v5574 = vpop.f32.mrf.mxu0
  %v5575 = vpop.f32.mrf.mxu0
  %v5576 = vadd.f32 %v5176, %v5575
  %v5577 = vpop.f32.mrf.mxu0
  %5578 = vmatprep.mubr.bf16.mxu0 0
  %5579 = vmatmul.mubr.bf16.gmra.mxu0 %v5147
  %v5580 = vpop.f32.mrf.mxu0
  %v5581 = vadd.f32 %v5176, %v5580
  %v5582 = vpop.f32.mrf.mxu0
  %v5583 = vpop.f32.mrf.mxu0
  %v5584 = vadd.f32 %v5176, %v5583
  %v5585 = vpop.f32.mrf.mxu0
  %5586 = vmatprep.mubr.bf16.mxu0 0
  %5587 = vmatmul.mubr.bf16.gmra.mxu0 %v5148
  %v5588 = vpop.f32.mrf.mxu0
  %v5589 = vadd.f32 %v5176, %v5588
  %v5590 = vpop.f32.mrf.mxu0
  %v5591 = vpop.f32.mrf.mxu0
  %v5592 = vadd.f32 %v5176, %v5591
  %v5593 = vpop.f32.mrf.mxu0
  %5594 = vmatprep.mubr.bf16.mxu0 0
  %5595 = vmatmul.mubr.bf16.gmra.mxu0 %v5149
  %v5596 = vpop.f32.mrf.mxu0
  %v5597 = vadd.f32 %v5176, %v5596
  %v5598 = vpop.f32.mrf.mxu0
  %v5599 = vpop.f32.mrf.mxu0
  %v5600 = vadd.f32 %v5176, %v5599
  %v5601 = vpop.f32.mrf.mxu0
  %5602 = vmatprep.mubr.bf16.mxu0 0
  %5603 = vmatmul.mubr.bf16.gmra.mxu0 %v5150
  %v5604 = vpop.f32.mrf.mxu0
  %v5605 = vadd.f32 %v5176, %v5604
  %v5606 = vpop.f32.mrf.mxu0
  %v5607 = vpop.f32.mrf.mxu0
  %v5608 = vadd.f32 %v5176, %v5607
  %v5609 = vpop.f32.mrf.mxu0
  %5610 = vmatprep.mubr.bf16.mxu0 0
  %5611 = vmatmul.mubr.bf16.gmra.mxu0 %v5151
  %v5612 = vpop.f32.mrf.mxu0
  %v5613 = vadd.f32 %v5176, %v5612
  %v5614 = vpop.f32.mrf.mxu0
  %v5615 = vpop.f32.mrf.mxu0
  %v5616 = vadd.f32 %v5176, %v5615
  %v5617 = vpop.f32.mrf.mxu0
  %5618 = vmatprep.mubr.bf16.mxu0 0
  %5619 = vmatmul.mubr.bf16.gmra.mxu0 %v5152
  %v5620 = vpop.f32.mrf.mxu0
  %v5621 = vadd.f32 %v5176, %v5620
  %v5622 = vpop.f32.mrf.mxu0
  %v5623 = vpop.f32.mrf.mxu0
  %v5624 = vadd.f32 %v5176, %v5623
  %v5625 = vpop.f32.mrf.mxu0
  %5626 = vmatprep.mubr.bf16.mxu0 0
  %5627 = vmatmul.mubr.bf16.gmra.mxu0 %v5153
  %v5628 = vpop.f32.mrf.mxu0
  %v5629 = vadd.f32 %v5176, %v5628
  %v5630 = vpop.f32.mrf.mxu0
  %v5631 = vpop.f32.mrf.mxu0
  %v5632 = vadd.f32 %v5176, %v5631
  %v5633 = vpop.f32.mrf.mxu0
  %5634 = vmatprep.mubr.bf16.mxu0 0
  %5635 = vmatmul.mubr.bf16.gmra.mxu0 %v5154
  %v5636 = vpop.f32.mrf.mxu0
  %v5637 = vadd.f32 %v5176, %v5636
  %v5638 = vpop.f32.mrf.mxu0
  %v5639 = vpop.f32.mrf.mxu0
  %v5640 = vadd.f32 %v5176, %v5639
  %v5641 = vpop.f32.mrf.mxu0
  %5642 = vdwg.mxu0
  %v5643 = vmax.f32 %v5261, 0.0
  %v5644 = vmax.f32 %v5264, 0.0
  %v5645 = vmax.f32 %v5269, 0.0
  %v5646 = vmax.f32 %v5272, 0.0
  %v5647 = vmax.f32 %v5277, 0.0
  %v5648 = vmax.f32 %v5280, 0.0
  %v5649 = vmax.f32 %v5285, 0.0
  %v5650 = vmax.f32 %v5288, 0.0
  %v5651 = vmax.f32 %v5293, 0.0
  %v5652 = vmax.f32 %v5296, 0.0
  %v5653 = vmax.f32 %v5301, 0.0
  %v5654 = vmax.f32 %v5304, 0.0
  %v5655 = vmax.f32 %v5309, 0.0
  %v5656 = vmax.f32 %v5312, 0.0
  %v5657 = vmax.f32 %v5317, 0.0
  %v5658 = vmax.f32 %v5320, 0.0
  %v5659 = vmax.f32 %v5325, 0.0
  %v5660 = vmax.f32 %v5328, 0.0
  %v5661 = vmax.f32 %v5333, 0.0
  %v5662 = vmax.f32 %v5336, 0.0
  %v5663 = vmax.f32 %v5341, 0.0
  %v5664 = vmax.f32 %v5344, 0.0
  %v5665 = vmax.f32 %v5349, 0.0
  %v5666 = vmax.f32 %v5352, 0.0
  %v5667 = vmax.f32 %v5357, 0.0
  %v5668 = vmax.f32 %v5360, 0.0
  %v5669 = vmax.f32 %v5365, 0.0
  %v5670 = vmax.f32 %v5368, 0.0
  %v5671 = vmax.f32 %v5373, 0.0
  %v5672 = vmax.f32 %v5376, 0.0
  %v5673 = vmax.f32 %v5381, 0.0
  %v5674 = vmax.f32 %v5384, 0.0
  %v5675 = vmax.f32 %v5389, 0.0
  %v5676 = vmax.f32 %v5392, 0.0
  %v5677 = vmax.f32 %v5397, 0.0
  %v5678 = vmax.f32 %v5400, 0.0
  %v5679 = vmax.f32 %v5405, 0.0
  %v5680 = vmax.f32 %v5408, 0.0
  %v5681 = vmax.f32 %v5413, 0.0
  %v5682 = vmax.f32 %v5416, 0.0
  %v5683 = vmax.f32 %v5421, 0.0
  %v5684 = vmax.f32 %v5424, 0.0
  %v5685 = vmax.f32 %v5429, 0.0
  %v5686 = vmax.f32 %v5432, 0.0
  %v5687 = vmax.f32 %v5437, 0.0
  %v5688 = vmax.f32 %v5440, 0.0
  %v5689 = vmax.f32 %v5445, 0.0
  %v5690 = vmax.f32 %v5448, 0.0
  %v5691 = vmax.f32 %v5453, 0.0
  %v5692 = vmax.f32 %v5456, 0.0
  %v5693 = vmax.f32 %v5461, 0.0
  %v5694 = vmax.f32 %v5464, 0.0
  %v5695 = vmax.f32 %v5469, 0.0
  %v5696 = vmax.f32 %v5472, 0.0
  %v5697 = vmax.f32 %v5477, 0.0
  %v5698 = vmax.f32 %v5480, 0.0
  %v5699 = vmax.f32 %v5485, 0.0
  %v5700 = vmax.f32 %v5488, 0.0
  %v5701 = vmax.f32 %v5493, 0.0
  %v5702 = vmax.f32 %v5496, 0.0
  %v5703 = vmax.f32 %v5501, 0.0
  %v5704 = vmax.f32 %v5504, 0.0
  %v5705 = vmax.f32 %v5509, 0.0
  %v5706 = vmax.f32 %v5512, 0.0
  %v5707 = vmax.f32 %v5517, 0.0
  %v5708 = vmax.f32 %v5520, 0.0
  %v5709 = vmax.f32 %v5525, 0.0
  %v5710 = vmax.f32 %v5528, 0.0
  %v5711 = vmax.f32 %v5533, 0.0
  %v5712 = vmax.f32 %v5536, 0.0
  %v5713 = vmax.f32 %v5541, 0.0
  %v5714 = vmax.f32 %v5544, 0.0
  %v5715 = vmax.f32 %v5549, 0.0
  %v5716 = vmax.f32 %v5552, 0.0
  %v5717 = vmax.f32 %v5557, 0.0
  %v5718 = vmax.f32 %v5560, 0.0
  %v5719 = vmax.f32 %v5565, 0.0
  %v5720 = vmax.f32 %v5568, 0.0
  %v5721 = vmax.f32 %v5573, 0.0
  %v5722 = vmax.f32 %v5576, 0.0
  %v5723 = vmax.f32 %v5581, 0.0
  %v5724 = vmax.f32 %v5584, 0.0
  %v5725 = vmax.f32 %v5589, 0.0
  %v5726 = vmax.f32 %v5592, 0.0
  %v5727 = vmax.f32 %v5597, 0.0
  %v5728 = vmax.f32 %v5600, 0.0
  %v5729 = vmax.f32 %v5605, 0.0
  %v5730 = vmax.f32 %v5608, 0.0
  %v5731 = vmax.f32 %v5613, 0.0
  %v5732 = vmax.f32 %v5616, 0.0
  %v5733 = vmax.f32 %v5621, 0.0
  %v5734 = vmax.f32 %v5624, 0.0
  %v5735 = vmax.f32 %v5629, 0.0
  %v5736 = vmax.f32 %v5632, 0.0
  %v5737 = vmax.f32 %v5637, 0.0
  %v5738 = vmax.f32 %v5640, 0.0
  %v5739 = vrot.slane %v5643, 4
  %v5740 = vmax.f32 %v5643, %v5739
  %v5741 = vrot.slane %v5740, 2
  %v5742 = vmax.f32 %v5740, %v5741
  %v5743 = vrot.slane %v5742, 1
  %v5744 = vmax.f32 %v5742, %v5743
  %v5745 = vrot.slane %v5644, 4
  %v5746 = vmax.f32 %v5644, %v5745
  %v5747 = vrot.slane %v5746, 2
  %v5748 = vmax.f32 %v5746, %v5747
  %v5749 = vrot.slane %v5748, 1
  %v5750 = vmax.f32 %v5748, %v5749
  %v5751 = vrot.slane %v5645, 4
  %v5752 = vmax.f32 %v5645, %v5751
  %v5753 = vrot.slane %v5752, 2
  %v5754 = vmax.f32 %v5752, %v5753
  %v5755 = vrot.slane %v5754, 1
  %v5756 = vmax.f32 %v5754, %v5755
  %v5757 = vrot.slane %v5646, 4
  %v5758 = vmax.f32 %v5646, %v5757
  %v5759 = vrot.slane %v5758, 2
  %v5760 = vmax.f32 %v5758, %v5759
  %v5761 = vrot.slane %v5760, 1
  %v5762 = vmax.f32 %v5760, %v5761
  %v5763 = vrot.slane %v5647, 4
  %v5764 = vmax.f32 %v5647, %v5763
  %v5765 = vrot.slane %v5764, 2
  %v5766 = vmax.f32 %v5764, %v5765
  %v5767 = vrot.slane %v5766, 1
  %v5768 = vmax.f32 %v5766, %v5767
  %v5769 = vrot.slane %v5648, 4
  %v5770 = vmax.f32 %v5648, %v5769
  %v5771 = vrot.slane %v5770, 2
  %v5772 = vmax.f32 %v5770, %v5771
  %v5773 = vrot.slane %v5772, 1
  %v5774 = vmax.f32 %v5772, %v5773
  %v5775 = vrot.slane %v5649, 4
  %v5776 = vmax.f32 %v5649, %v5775
  %v5777 = vrot.slane %v5776, 2
  %v5778 = vmax.f32 %v5776, %v5777
  %v5779 = vrot.slane %v5778, 1
  %v5780 = vmax.f32 %v5778, %v5779
  %v5781 = vrot.slane %v5650, 4
  %v5782 = vmax.f32 %v5650, %v5781
  %v5783 = vrot.slane %v5782, 2
  %v5784 = vmax.f32 %v5782, %v5783
  %v5785 = vrot.slane %v5784, 1
  %v5786 = vmax.f32 %v5784, %v5785
  %v5787 = vrot.slane %v5651, 4
  %v5788 = vmax.f32 %v5651, %v5787
  %v5789 = vrot.slane %v5788, 2
  %v5790 = vmax.f32 %v5788, %v5789
  %v5791 = vrot.slane %v5790, 1
  %v5792 = vmax.f32 %v5790, %v5791
  %v5793 = vrot.slane %v5652, 4
  %v5794 = vmax.f32 %v5652, %v5793
  %v5795 = vrot.slane %v5794, 2
  %v5796 = vmax.f32 %v5794, %v5795
  %v5797 = vrot.slane %v5796, 1
  %v5798 = vmax.f32 %v5796, %v5797
  %v5799 = vrot.slane %v5653, 4
  %v5800 = vmax.f32 %v5653, %v5799
  %v5801 = vrot.slane %v5800, 2
  %v5802 = vmax.f32 %v5800, %v5801
  %v5803 = vrot.slane %v5802, 1
  %v5804 = vmax.f32 %v5802, %v5803
  %v5805 = vrot.slane %v5654, 4
  %v5806 = vmax.f32 %v5654, %v5805
  %v5807 = vrot.slane %v5806, 2
  %v5808 = vmax.f32 %v5806, %v5807
  %v5809 = vrot.slane %v5808, 1
  %v5810 = vmax.f32 %v5808, %v5809
  %v5811 = vrot.slane %v5655, 4
  %v5812 = vmax.f32 %v5655, %v5811
  %v5813 = vrot.slane %v5812, 2
  %v5814 = vmax.f32 %v5812, %v5813
  %v5815 = vrot.slane %v5814, 1
  %v5816 = vmax.f32 %v5814, %v5815
  %v5817 = vrot.slane %v5656, 4
  %v5818 = vmax.f32 %v5656, %v5817
  %v5819 = vrot.slane %v5818, 2
  %v5820 = vmax.f32 %v5818, %v5819
  %v5821 = vrot.slane %v5820, 1
  %v5822 = vmax.f32 %v5820, %v5821
  %v5823 = vrot.slane %v5657, 4
  %v5824 = vmax.f32 %v5657, %v5823
  %v5825 = vrot.slane %v5824, 2
  %v5826 = vmax.f32 %v5824, %v5825
  %v5827 = vrot.slane %v5826, 1
  %v5828 = vmax.f32 %v5826, %v5827
  %v5829 = vrot.slane %v5658, 4
  %v5830 = vmax.f32 %v5658, %v5829
  %v5831 = vrot.slane %v5830, 2
  %v5832 = vmax.f32 %v5830, %v5831
  %v5833 = vrot.slane %v5832, 1
  %v5834 = vmax.f32 %v5832, %v5833
  %v5835 = vrot.slane %v5659, 4
  %v5836 = vmax.f32 %v5659, %v5835
  %v5837 = vrot.slane %v5836, 2
  %v5838 = vmax.f32 %v5836, %v5837
  %v5839 = vrot.slane %v5838, 1
  %v5840 = vmax.f32 %v5838, %v5839
  %v5841 = vrot.slane %v5660, 4
  %v5842 = vmax.f32 %v5660, %v5841
  %v5843 = vrot.slane %v5842, 2
  %v5844 = vmax.f32 %v5842, %v5843
  %v5845 = vrot.slane %v5844, 1
  %v5846 = vmax.f32 %v5844, %v5845
  %v5847 = vrot.slane %v5661, 4
  %v5848 = vmax.f32 %v5661, %v5847
  %v5849 = vrot.slane %v5848, 2
  %v5850 = vmax.f32 %v5848, %v5849
  %v5851 = vrot.slane %v5850, 1
  %v5852 = vmax.f32 %v5850, %v5851
  %v5853 = vrot.slane %v5662, 4
  %v5854 = vmax.f32 %v5662, %v5853
  %v5855 = vrot.slane %v5854, 2
  %v5856 = vmax.f32 %v5854, %v5855
  %v5857 = vrot.slane %v5856, 1
  %v5858 = vmax.f32 %v5856, %v5857
  %v5859 = vrot.slane %v5663, 4
  %v5860 = vmax.f32 %v5663, %v5859
  %v5861 = vrot.slane %v5860, 2
  %v5862 = vmax.f32 %v5860, %v5861
  %v5863 = vrot.slane %v5862, 1
  %v5864 = vmax.f32 %v5862, %v5863
  %v5865 = vrot.slane %v5664, 4
  %v5866 = vmax.f32 %v5664, %v5865
  %v5867 = vrot.slane %v5866, 2
  %v5868 = vmax.f32 %v5866, %v5867
  %v5869 = vrot.slane %v5868, 1
  %v5870 = vmax.f32 %v5868, %v5869
  %v5871 = vrot.slane %v5665, 4
  %v5872 = vmax.f32 %v5665, %v5871
  %v5873 = vrot.slane %v5872, 2
  %v5874 = vmax.f32 %v5872, %v5873
  %v5875 = vrot.slane %v5874, 1
  %v5876 = vmax.f32 %v5874, %v5875
  %v5877 = vrot.slane %v5666, 4
  %v5878 = vmax.f32 %v5666, %v5877
  %v5879 = vrot.slane %v5878, 2
  %v5880 = vmax.f32 %v5878, %v5879
  %v5881 = vrot.slane %v5880, 1
  %v5882 = vmax.f32 %v5880, %v5881
  %v5883 = vrot.slane %v5667, 4
  %v5884 = vmax.f32 %v5667, %v5883
  %v5885 = vrot.slane %v5884, 2
  %v5886 = vmax.f32 %v5884, %v5885
  %v5887 = vrot.slane %v5886, 1
  %v5888 = vmax.f32 %v5886, %v5887
  %v5889 = vrot.slane %v5668, 4
  %v5890 = vmax.f32 %v5668, %v5889
  %v5891 = vrot.slane %v5890, 2
  %v5892 = vmax.f32 %v5890, %v5891
  %v5893 = vrot.slane %v5892, 1
  %v5894 = vmax.f32 %v5892, %v5893
  %v5895 = vrot.slane %v5669, 4
  %v5896 = vmax.f32 %v5669, %v5895
  %v5897 = vrot.slane %v5896, 2
  %v5898 = vmax.f32 %v5896, %v5897
  %v5899 = vrot.slane %v5898, 1
  %v5900 = vmax.f32 %v5898, %v5899
  %v5901 = vrot.slane %v5670, 4
  %v5902 = vmax.f32 %v5670, %v5901
  %v5903 = vrot.slane %v5902, 2
  %v5904 = vmax.f32 %v5902, %v5903
  %v5905 = vrot.slane %v5904, 1
  %v5906 = vmax.f32 %v5904, %v5905
  %v5907 = vrot.slane %v5671, 4
  %v5908 = vmax.f32 %v5671, %v5907
  %v5909 = vrot.slane %v5908, 2
  %v5910 = vmax.f32 %v5908, %v5909
  %v5911 = vrot.slane %v5910, 1
  %v5912 = vmax.f32 %v5910, %v5911
  %v5913 = vrot.slane %v5672, 4
  %v5914 = vmax.f32 %v5672, %v5913
  %v5915 = vrot.slane %v5914, 2
  %v5916 = vmax.f32 %v5914, %v5915
  %v5917 = vrot.slane %v5916, 1
  %v5918 = vmax.f32 %v5916, %v5917
  %v5919 = vrot.slane %v5673, 4
  %v5920 = vmax.f32 %v5673, %v5919
  %v5921 = vrot.slane %v5920, 2
  %v5922 = vmax.f32 %v5920, %v5921
  %v5923 = vrot.slane %v5922, 1
  %v5924 = vmax.f32 %v5922, %v5923
  %v5925 = vrot.slane %v5674, 4
  %v5926 = vmax.f32 %v5674, %v5925
  %v5927 = vrot.slane %v5926, 2
  %v5928 = vmax.f32 %v5926, %v5927
  %v5929 = vrot.slane %v5928, 1
  %v5930 = vmax.f32 %v5928, %v5929
  %v5931 = vrot.slane %v5675, 4
  %v5932 = vmax.f32 %v5675, %v5931
  %v5933 = vrot.slane %v5932, 2
  %v5934 = vmax.f32 %v5932, %v5933
  %v5935 = vrot.slane %v5934, 1
  %v5936 = vmax.f32 %v5934, %v5935
  %v5937 = vrot.slane %v5676, 4
  %v5938 = vmax.f32 %v5676, %v5937
  %v5939 = vrot.slane %v5938, 2
  %v5940 = vmax.f32 %v5938, %v5939
  %v5941 = vrot.slane %v5940, 1
  %v5942 = vmax.f32 %v5940, %v5941
  %v5943 = vrot.slane %v5677, 4
  %v5944 = vmax.f32 %v5677, %v5943
  %v5945 = vrot.slane %v5944, 2
  %v5946 = vmax.f32 %v5944, %v5945
  %v5947 = vrot.slane %v5946, 1
  %v5948 = vmax.f32 %v5946, %v5947
  %v5949 = vrot.slane %v5678, 4
  %v5950 = vmax.f32 %v5678, %v5949
  %v5951 = vrot.slane %v5950, 2
  %v5952 = vmax.f32 %v5950, %v5951
  %v5953 = vrot.slane %v5952, 1
  %v5954 = vmax.f32 %v5952, %v5953
  %v5955 = vrot.slane %v5679, 4
  %v5956 = vmax.f32 %v5679, %v5955
  %v5957 = vrot.slane %v5956, 2
  %v5958 = vmax.f32 %v5956, %v5957
  %v5959 = vrot.slane %v5958, 1
  %v5960 = vmax.f32 %v5958, %v5959
  %v5961 = vrot.slane %v5680, 4
  %v5962 = vmax.f32 %v5680, %v5961
  %v5963 = vrot.slane %v5962, 2
  %v5964 = vmax.f32 %v5962, %v5963
  %v5965 = vrot.slane %v5964, 1
  %v5966 = vmax.f32 %v5964, %v5965
  %v5967 = vrot.slane %v5681, 4
  %v5968 = vmax.f32 %v5681, %v5967
  %v5969 = vrot.slane %v5968, 2
  %v5970 = vmax.f32 %v5968, %v5969
  %v5971 = vrot.slane %v5970, 1
  %v5972 = vmax.f32 %v5970, %v5971
  %v5973 = vrot.slane %v5682, 4
  %v5974 = vmax.f32 %v5682, %v5973
  %v5975 = vrot.slane %v5974, 2
  %v5976 = vmax.f32 %v5974, %v5975
  %v5977 = vrot.slane %v5976, 1
  %v5978 = vmax.f32 %v5976, %v5977
  %v5979 = vrot.slane %v5683, 4
  %v5980 = vmax.f32 %v5683, %v5979
  %v5981 = vrot.slane %v5980, 2
  %v5982 = vmax.f32 %v5980, %v5981
  %v5983 = vrot.slane %v5982, 1
  %v5984 = vmax.f32 %v5982, %v5983
  %v5985 = vrot.slane %v5684, 4
  %v5986 = vmax.f32 %v5684, %v5985
  %v5987 = vrot.slane %v5986, 2
  %v5988 = vmax.f32 %v5986, %v5987
  %v5989 = vrot.slane %v5988, 1
  %v5990 = vmax.f32 %v5988, %v5989
  %v5991 = vrot.slane %v5685, 4
  %v5992 = vmax.f32 %v5685, %v5991
  %v5993 = vrot.slane %v5992, 2
  %v5994 = vmax.f32 %v5992, %v5993
  %v5995 = vrot.slane %v5994, 1
  %v5996 = vmax.f32 %v5994, %v5995
  %v5997 = vrot.slane %v5686, 4
  %v5998 = vmax.f32 %v5686, %v5997
  %v5999 = vrot.slane %v5998, 2
  %v6000 = vmax.f32 %v5998, %v5999
  %v6001 = vrot.slane %v6000, 1
  %v6002 = vmax.f32 %v6000, %v6001
  %v6003 = vrot.slane %v5687, 4
  %v6004 = vmax.f32 %v5687, %v6003
  %v6005 = vrot.slane %v6004, 2
  %v6006 = vmax.f32 %v6004, %v6005
  %v6007 = vrot.slane %v6006, 1
  %v6008 = vmax.f32 %v6006, %v6007
  %v6009 = vrot.slane %v5688, 4
  %v6010 = vmax.f32 %v5688, %v6009
  %v6011 = vrot.slane %v6010, 2
  %v6012 = vmax.f32 %v6010, %v6011
  %v6013 = vrot.slane %v6012, 1
  %v6014 = vmax.f32 %v6012, %v6013
  %v6015 = vrot.slane %v5689, 4
  %v6016 = vmax.f32 %v5689, %v6015
  %v6017 = vrot.slane %v6016, 2
  %v6018 = vmax.f32 %v6016, %v6017
  %v6019 = vrot.slane %v6018, 1
  %v6020 = vmax.f32 %v6018, %v6019
  %v6021 = vrot.slane %v5690, 4
  %v6022 = vmax.f32 %v5690, %v6021
  %v6023 = vrot.slane %v6022, 2
  %v6024 = vmax.f32 %v6022, %v6023
  %v6025 = vrot.slane %v6024, 1
  %v6026 = vmax.f32 %v6024, %v6025
  %v6027 = vrot.slane %v5691, 4
  %v6028 = vmax.f32 %v5691, %v6027
  %v6029 = vrot.slane %v6028, 2
  %v6030 = vmax.f32 %v6028, %v6029
  %v6031 = vrot.slane %v6030, 1
  %v6032 = vmax.f32 %v6030, %v6031
  %v6033 = vrot.slane %v5692, 4
  %v6034 = vmax.f32 %v5692, %v6033
  %v6035 = vrot.slane %v6034, 2
  %v6036 = vmax.f32 %v6034, %v6035
  %v6037 = vrot.slane %v6036, 1
  %v6038 = vmax.f32 %v6036, %v6037
  %v6039 = vrot.slane %v5693, 4
  %v6040 = vmax.f32 %v5693, %v6039
  %v6041 = vrot.slane %v6040, 2
  %v6042 = vmax.f32 %v6040, %v6041
  %v6043 = vrot.slane %v6042, 1
  %v6044 = vmax.f32 %v6042, %v6043
  %v6045 = vrot.slane %v5694, 4
  %v6046 = vmax.f32 %v5694, %v6045
  %v6047 = vrot.slane %v6046, 2
  %v6048 = vmax.f32 %v6046, %v6047
  %v6049 = vrot.slane %v6048, 1
  %v6050 = vmax.f32 %v6048, %v6049
  %v6051 = vrot.slane %v5695, 4
  %v6052 = vmax.f32 %v5695, %v6051
  %v6053 = vrot.slane %v6052, 2
  %v6054 = vmax.f32 %v6052, %v6053
  %v6055 = vrot.slane %v6054, 1
  %v6056 = vmax.f32 %v6054, %v6055
  %v6057 = vrot.slane %v5696, 4
  %v6058 = vmax.f32 %v5696, %v6057
  %v6059 = vrot.slane %v6058, 2
  %v6060 = vmax.f32 %v6058, %v6059
  %v6061 = vrot.slane %v6060, 1
  %v6062 = vmax.f32 %v6060, %v6061
  %v6063 = vrot.slane %v5697, 4
  %v6064 = vmax.f32 %v5697, %v6063
  %v6065 = vrot.slane %v6064, 2
  %v6066 = vmax.f32 %v6064, %v6065
  %v6067 = vrot.slane %v6066, 1
  %v6068 = vmax.f32 %v6066, %v6067
  %v6069 = vrot.slane %v5698, 4
  %v6070 = vmax.f32 %v5698, %v6069
  %v6071 = vrot.slane %v6070, 2
  %v6072 = vmax.f32 %v6070, %v6071
  %v6073 = vrot.slane %v6072, 1
  %v6074 = vmax.f32 %v6072, %v6073
  %v6075 = vrot.slane %v5699, 4
  %v6076 = vmax.f32 %v5699, %v6075
  %v6077 = vrot.slane %v6076, 2
  %v6078 = vmax.f32 %v6076, %v6077
  %v6079 = vrot.slane %v6078, 1
  %v6080 = vmax.f32 %v6078, %v6079
  %v6081 = vrot.slane %v5700, 4
  %v6082 = vmax.f32 %v5700, %v6081
  %v6083 = vrot.slane %v6082, 2
  %v6084 = vmax.f32 %v6082, %v6083
  %v6085 = vrot.slane %v6084, 1
  %v6086 = vmax.f32 %v6084, %v6085
  %v6087 = vrot.slane %v5701, 4
  %v6088 = vmax.f32 %v5701, %v6087
  %v6089 = vrot.slane %v6088, 2
  %v6090 = vmax.f32 %v6088, %v6089
  %v6091 = vrot.slane %v6090, 1
  %v6092 = vmax.f32 %v6090, %v6091
  %v6093 = vrot.slane %v5702, 4
  %v6094 = vmax.f32 %v5702, %v6093
  %v6095 = vrot.slane %v6094, 2
  %v6096 = vmax.f32 %v6094, %v6095
  %v6097 = vrot.slane %v6096, 1
  %v6098 = vmax.f32 %v6096, %v6097
  %v6099 = vrot.slane %v5703, 4
  %v6100 = vmax.f32 %v5703, %v6099
  %v6101 = vrot.slane %v6100, 2
  %v6102 = vmax.f32 %v6100, %v6101
  %v6103 = vrot.slane %v6102, 1
  %v6104 = vmax.f32 %v6102, %v6103
  %v6105 = vrot.slane %v5704, 4
  %v6106 = vmax.f32 %v5704, %v6105
  %v6107 = vrot.slane %v6106, 2
  %v6108 = vmax.f32 %v6106, %v6107
  %v6109 = vrot.slane %v6108, 1
  %v6110 = vmax.f32 %v6108, %v6109
  %v6111 = vrot.slane %v5705, 4
  %v6112 = vmax.f32 %v5705, %v6111
  %v6113 = vrot.slane %v6112, 2
  %v6114 = vmax.f32 %v6112, %v6113
  %v6115 = vrot.slane %v6114, 1
  %v6116 = vmax.f32 %v6114, %v6115
  %v6117 = vrot.slane %v5706, 4
  %v6118 = vmax.f32 %v5706, %v6117
  %v6119 = vrot.slane %v6118, 2
  %v6120 = vmax.f32 %v6118, %v6119
  %v6121 = vrot.slane %v6120, 1
  %v6122 = vmax.f32 %v6120, %v6121
  %v6123 = vrot.slane %v5707, 4
  %v6124 = vmax.f32 %v5707, %v6123
  %v6125 = vrot.slane %v6124, 2
  %v6126 = vmax.f32 %v6124, %v6125
  %v6127 = vrot.slane %v6126, 1
  %v6128 = vmax.f32 %v6126, %v6127
  %v6129 = vrot.slane %v5708, 4
  %v6130 = vmax.f32 %v5708, %v6129
  %v6131 = vrot.slane %v6130, 2
  %v6132 = vmax.f32 %v6130, %v6131
  %v6133 = vrot.slane %v6132, 1
  %v6134 = vmax.f32 %v6132, %v6133
  %v6135 = vrot.slane %v5709, 4
  %v6136 = vmax.f32 %v5709, %v6135
  %v6137 = vrot.slane %v6136, 2
  %v6138 = vmax.f32 %v6136, %v6137
  %v6139 = vrot.slane %v6138, 1
  %v6140 = vmax.f32 %v6138, %v6139
  %v6141 = vrot.slane %v5710, 4
  %v6142 = vmax.f32 %v5710, %v6141
  %v6143 = vrot.slane %v6142, 2
  %v6144 = vmax.f32 %v6142, %v6143
  %v6145 = vrot.slane %v6144, 1
  %v6146 = vmax.f32 %v6144, %v6145
  %v6147 = vrot.slane %v5711, 4
  %v6148 = vmax.f32 %v5711, %v6147
  %v6149 = vrot.slane %v6148, 2
  %v6150 = vmax.f32 %v6148, %v6149
  %v6151 = vrot.slane %v6150, 1
  %v6152 = vmax.f32 %v6150, %v6151
  %v6153 = vrot.slane %v5712, 4
  %v6154 = vmax.f32 %v5712, %v6153
  %v6155 = vrot.slane %v6154, 2
  %v6156 = vmax.f32 %v6154, %v6155
  %v6157 = vrot.slane %v6156, 1
  %v6158 = vmax.f32 %v6156, %v6157
  %v6159 = vrot.slane %v5713, 4
  %v6160 = vmax.f32 %v5713, %v6159
  %v6161 = vrot.slane %v6160, 2
  %v6162 = vmax.f32 %v6160, %v6161
  %v6163 = vrot.slane %v6162, 1
  %v6164 = vmax.f32 %v6162, %v6163
  %v6165 = vrot.slane %v5714, 4
  %v6166 = vmax.f32 %v5714, %v6165
  %v6167 = vrot.slane %v6166, 2
  %v6168 = vmax.f32 %v6166, %v6167
  %v6169 = vrot.slane %v6168, 1
  %v6170 = vmax.f32 %v6168, %v6169
  %v6171 = vrot.slane %v5715, 4
  %v6172 = vmax.f32 %v5715, %v6171
  %v6173 = vrot.slane %v6172, 2
  %v6174 = vmax.f32 %v6172, %v6173
  %v6175 = vrot.slane %v6174, 1
  %v6176 = vmax.f32 %v6174, %v6175
  %v6177 = vrot.slane %v5716, 4
  %v6178 = vmax.f32 %v5716, %v6177
  %v6179 = vrot.slane %v6178, 2
  %v6180 = vmax.f32 %v6178, %v6179
  %v6181 = vrot.slane %v6180, 1
  %v6182 = vmax.f32 %v6180, %v6181
  %v6183 = vrot.slane %v5717, 4
  %v6184 = vmax.f32 %v5717, %v6183
  %v6185 = vrot.slane %v6184, 2
  %v6186 = vmax.f32 %v6184, %v6185
  %v6187 = vrot.slane %v6186, 1
  %v6188 = vmax.f32 %v6186, %v6187
  %v6189 = vrot.slane %v5718, 4
  %v6190 = vmax.f32 %v5718, %v6189
  %v6191 = vrot.slane %v6190, 2
  %v6192 = vmax.f32 %v6190, %v6191
  %v6193 = vrot.slane %v6192, 1
  %v6194 = vmax.f32 %v6192, %v6193
  %v6195 = vrot.slane %v5719, 4
  %v6196 = vmax.f32 %v5719, %v6195
  %v6197 = vrot.slane %v6196, 2
  %v6198 = vmax.f32 %v6196, %v6197
  %v6199 = vrot.slane %v6198, 1
  %v6200 = vmax.f32 %v6198, %v6199
  %v6201 = vrot.slane %v5720, 4
  %v6202 = vmax.f32 %v5720, %v6201
  %v6203 = vrot.slane %v6202, 2
  %v6204 = vmax.f32 %v6202, %v6203
  %v6205 = vrot.slane %v6204, 1
  %v6206 = vmax.f32 %v6204, %v6205
  %v6207 = vrot.slane %v5721, 4
  %v6208 = vmax.f32 %v5721, %v6207
  %v6209 = vrot.slane %v6208, 2
  %v6210 = vmax.f32 %v6208, %v6209
  %v6211 = vrot.slane %v6210, 1
  %v6212 = vmax.f32 %v6210, %v6211
  %v6213 = vrot.slane %v5722, 4
  %v6214 = vmax.f32 %v5722, %v6213
  %v6215 = vrot.slane %v6214, 2
  %v6216 = vmax.f32 %v6214, %v6215
  %v6217 = vrot.slane %v6216, 1
  %v6218 = vmax.f32 %v6216, %v6217
  %v6219 = vrot.slane %v5723, 4
  %v6220 = vmax.f32 %v5723, %v6219
  %v6221 = vrot.slane %v6220, 2
  %v6222 = vmax.f32 %v6220, %v6221
  %v6223 = vrot.slane %v6222, 1
  %v6224 = vmax.f32 %v6222, %v6223
  %v6225 = vrot.slane %v5724, 4
  %v6226 = vmax.f32 %v5724, %v6225
  %v6227 = vrot.slane %v6226, 2
  %v6228 = vmax.f32 %v6226, %v6227
  %v6229 = vrot.slane %v6228, 1
  %v6230 = vmax.f32 %v6228, %v6229
  %v6231 = vrot.slane %v5725, 4
  %v6232 = vmax.f32 %v5725, %v6231
  %v6233 = vrot.slane %v6232, 2
  %v6234 = vmax.f32 %v6232, %v6233
  %v6235 = vrot.slane %v6234, 1
  %v6236 = vmax.f32 %v6234, %v6235
  %v6237 = vrot.slane %v5726, 4
  %v6238 = vmax.f32 %v5726, %v6237
  %v6239 = vrot.slane %v6238, 2
  %v6240 = vmax.f32 %v6238, %v6239
  %v6241 = vrot.slane %v6240, 1
  %v6242 = vmax.f32 %v6240, %v6241
  %v6243 = vrot.slane %v5727, 4
  %v6244 = vmax.f32 %v5727, %v6243
  %v6245 = vrot.slane %v6244, 2
  %v6246 = vmax.f32 %v6244, %v6245
  %v6247 = vrot.slane %v6246, 1
  %v6248 = vmax.f32 %v6246, %v6247
  %v6249 = vrot.slane %v5728, 4
  %v6250 = vmax.f32 %v5728, %v6249
  %v6251 = vrot.slane %v6250, 2
  %v6252 = vmax.f32 %v6250, %v6251
  %v6253 = vrot.slane %v6252, 1
  %v6254 = vmax.f32 %v6252, %v6253
  %v6255 = vrot.slane %v5729, 4
  %v6256 = vmax.f32 %v5729, %v6255
  %v6257 = vrot.slane %v6256, 2
  %v6258 = vmax.f32 %v6256, %v6257
  %v6259 = vrot.slane %v6258, 1
  %v6260 = vmax.f32 %v6258, %v6259
  %v6261 = vrot.slane %v5730, 4
  %v6262 = vmax.f32 %v5730, %v6261
  %v6263 = vrot.slane %v6262, 2
  %v6264 = vmax.f32 %v6262, %v6263
  %v6265 = vrot.slane %v6264, 1
  %v6266 = vmax.f32 %v6264, %v6265
  %v6267 = vrot.slane %v5731, 4
  %v6268 = vmax.f32 %v5731, %v6267
  %v6269 = vrot.slane %v6268, 2
  %v6270 = vmax.f32 %v6268, %v6269
  %v6271 = vrot.slane %v6270, 1
  %v6272 = vmax.f32 %v6270, %v6271
  %v6273 = vrot.slane %v5732, 4
  %v6274 = vmax.f32 %v5732, %v6273
  %v6275 = vrot.slane %v6274, 2
  %v6276 = vmax.f32 %v6274, %v6275
  %v6277 = vrot.slane %v6276, 1
  %v6278 = vmax.f32 %v6276, %v6277
  %v6279 = vrot.slane %v5733, 4
  %v6280 = vmax.f32 %v5733, %v6279
  %v6281 = vrot.slane %v6280, 2
  %v6282 = vmax.f32 %v6280, %v6281
  %v6283 = vrot.slane %v6282, 1
  %v6284 = vmax.f32 %v6282, %v6283
  %v6285 = vrot.slane %v5734, 4
  %v6286 = vmax.f32 %v5734, %v6285
  %v6287 = vrot.slane %v6286, 2
  %v6288 = vmax.f32 %v6286, %v6287
  %v6289 = vrot.slane %v6288, 1
  %v6290 = vmax.f32 %v6288, %v6289
  %v6291 = vrot.slane %v5735, 4
  %v6292 = vmax.f32 %v5735, %v6291
  %v6293 = vrot.slane %v6292, 2
  %v6294 = vmax.f32 %v6292, %v6293
  %v6295 = vrot.slane %v6294, 1
  %v6296 = vmax.f32 %v6294, %v6295
  %v6297 = vrot.slane %v5736, 4
  %v6298 = vmax.f32 %v5736, %v6297
  %v6299 = vrot.slane %v6298, 2
  %v6300 = vmax.f32 %v6298, %v6299
  %v6301 = vrot.slane %v6300, 1
  %v6302 = vmax.f32 %v6300, %v6301
  %v6303 = vrot.slane %v5737, 4
  %v6304 = vmax.f32 %v5737, %v6303
  %v6305 = vrot.slane %v6304, 2
  %v6306 = vmax.f32 %v6304, %v6305
  %v6307 = vrot.slane %v6306, 1
  %v6308 = vmax.f32 %v6306, %v6307
  %v6309 = vrot.slane %v5738, 4
  %v6310 = vmax.f32 %v5738, %v6309
  %v6311 = vrot.slane %v6310, 2
  %v6312 = vmax.f32 %v6310, %v6311
  %v6313 = vrot.slane %v6312, 1
  %v6314 = vmax.f32 %v6312, %v6313
  %v6315 = vpack.c.bf16 %v5744, %v5744
  %v6316 = vpack.c.bf16 %v5750, %v5750
  %v6317 = vpack.c.bf16 %v5756, %v5756
  %v6318 = vpack.c.bf16 %v5762, %v5762
  %v6319 = vpack.c.bf16 %v5768, %v5768
  %v6320 = vpack.c.bf16 %v5774, %v5774
  %v6321 = vpack.c.bf16 %v5780, %v5780
  %v6322 = vpack.c.bf16 %v5786, %v5786
  %v6323 = vpack.c.bf16 %v5792, %v5792
  %v6324 = vpack.c.bf16 %v5798, %v5798
  %v6325 = vpack.c.bf16 %v5804, %v5804
  %v6326 = vpack.c.bf16 %v5810, %v5810
  %v6327 = vpack.c.bf16 %v5816, %v5816
  %v6328 = vpack.c.bf16 %v5822, %v5822
  %v6329 = vpack.c.bf16 %v5828, %v5828
  %v6330 = vpack.c.bf16 %v5834, %v5834
  %v6331 = vpack.c.bf16 %v5840, %v5840
  %v6332 = vpack.c.bf16 %v5846, %v5846
  %v6333 = vpack.c.bf16 %v5852, %v5852
  %v6334 = vpack.c.bf16 %v5858, %v5858
  %v6335 = vpack.c.bf16 %v5864, %v5864
  %v6336 = vpack.c.bf16 %v5870, %v5870
  %v6337 = vpack.c.bf16 %v5876, %v5876
  %v6338 = vpack.c.bf16 %v5882, %v5882
  %v6339 = vpack.c.bf16 %v5888, %v5888
  %v6340 = vpack.c.bf16 %v5894, %v5894
  %v6341 = vpack.c.bf16 %v5900, %v5900
  %v6342 = vpack.c.bf16 %v5906, %v5906
  %v6343 = vpack.c.bf16 %v5912, %v5912
  %v6344 = vpack.c.bf16 %v5918, %v5918
  %v6345 = vpack.c.bf16 %v5924, %v5924
  %v6346 = vpack.c.bf16 %v5930, %v5930
  %v6347 = vpack.c.bf16 %v5936, %v5936
  %v6348 = vpack.c.bf16 %v5942, %v5942
  %v6349 = vpack.c.bf16 %v5948, %v5948
  %v6350 = vpack.c.bf16 %v5954, %v5954
  %v6351 = vpack.c.bf16 %v5960, %v5960
  %v6352 = vpack.c.bf16 %v5966, %v5966
  %v6353 = vpack.c.bf16 %v5972, %v5972
  %v6354 = vpack.c.bf16 %v5978, %v5978
  %v6355 = vpack.c.bf16 %v5984, %v5984
  %v6356 = vpack.c.bf16 %v5990, %v5990
  %v6357 = vpack.c.bf16 %v5996, %v5996
  %v6358 = vpack.c.bf16 %v6002, %v6002
  %v6359 = vpack.c.bf16 %v6008, %v6008
  %v6360 = vpack.c.bf16 %v6014, %v6014
  %v6361 = vpack.c.bf16 %v6020, %v6020
  %v6362 = vpack.c.bf16 %v6026, %v6026
  %v6363 = vpack.c.bf16 %v6032, %v6032
  %v6364 = vpack.c.bf16 %v6038, %v6038
  %v6365 = vpack.c.bf16 %v6044, %v6044
  %v6366 = vpack.c.bf16 %v6050, %v6050
  %v6367 = vpack.c.bf16 %v6056, %v6056
  %v6368 = vpack.c.bf16 %v6062, %v6062
  %v6369 = vpack.c.bf16 %v6068, %v6068
  %v6370 = vpack.c.bf16 %v6074, %v6074
  %v6371 = vpack.c.bf16 %v6080, %v6080
  %v6372 = vpack.c.bf16 %v6086, %v6086
  %v6373 = vpack.c.bf16 %v6092, %v6092
  %v6374 = vpack.c.bf16 %v6098, %v6098
  %v6375 = vpack.c.bf16 %v6104, %v6104
  %v6376 = vpack.c.bf16 %v6110, %v6110
  %v6377 = vpack.c.bf16 %v6116, %v6116
  %v6378 = vpack.c.bf16 %v6122, %v6122
  %v6379 = vpack.c.bf16 %v6128, %v6128
  %v6380 = vpack.c.bf16 %v6134, %v6134
  %v6381 = vpack.c.bf16 %v6140, %v6140
  %v6382 = vpack.c.bf16 %v6146, %v6146
  %v6383 = vpack.c.bf16 %v6152, %v6152
  %v6384 = vpack.c.bf16 %v6158, %v6158
  %v6385 = vpack.c.bf16 %v6164, %v6164
  %v6386 = vpack.c.bf16 %v6170, %v6170
  %v6387 = vpack.c.bf16 %v6176, %v6176
  %v6388 = vpack.c.bf16 %v6182, %v6182
  %v6389 = vpack.c.bf16 %v6188, %v6188
  %v6390 = vpack.c.bf16 %v6194, %v6194
  %v6391 = vpack.c.bf16 %v6200, %v6200
  %v6392 = vpack.c.bf16 %v6206, %v6206
  %v6393 = vpack.c.bf16 %v6212, %v6212
  %v6394 = vpack.c.bf16 %v6218, %v6218
  %v6395 = vpack.c.bf16 %v6224, %v6224
  %v6396 = vpack.c.bf16 %v6230, %v6230
  %v6397 = vpack.c.bf16 %v6236, %v6236
  %v6398 = vpack.c.bf16 %v6242, %v6242
  %v6399 = vpack.c.bf16 %v6248, %v6248
  %v6400 = vpack.c.bf16 %v6254, %v6254
  %v6401 = vpack.c.bf16 %v6260, %v6260
  %v6402 = vpack.c.bf16 %v6266, %v6266
  %v6403 = vpack.c.bf16 %v6272, %v6272
  %v6404 = vpack.c.bf16 %v6278, %v6278
  %v6405 = vpack.c.bf16 %v6284, %v6284
  %v6406 = vpack.c.bf16 %v6290, %v6290
  %v6407 = vpack.c.bf16 %v6296, %v6296
  %v6408 = vpack.c.bf16 %v6302, %v6302
  %v6409 = vpack.c.bf16 %v6308, %v6308
  %v6410 = vpack.c.bf16 %v6314, %v6314
  %v6411 = vld [vmem:[%s12] sm:$0xf]
  %v6412 = vld [vmem:[%s12 + $0x4] sm:$0xf]
  %v6413 = vld [vmem:[%s12 + $0x8] sm:$0xf]
  %v6414 = vld [vmem:[%s12 + $0xc] sm:$0xf]
  %v6415 = vld [vmem:[%s12 + $0x10] sm:$0xf]
  %v6416 = vld [vmem:[%s12 + $0x14] sm:$0xf]
  %v6417 = vld [vmem:[%s12 + $0x18] sm:$0xf]
  %v6418 = vld [vmem:[%s12 + $0x1c] sm:$0xf]
  %v6419 = vld [vmem:[%s12 + $0x20] sm:$0xf]
  %v6420 = vld [vmem:[%s12 + $0x24] sm:$0xf]
  %v6421 = vld [vmem:[%s12 + $0x28] sm:$0xf]
  %v6422 = vld [vmem:[%s12 + $0x2c] sm:$0xf]
  %v6423 = vld [vmem:[%s12 + $0x30] sm:$0xf]
  %v6424 = vld [vmem:[%s12 + $0x34] sm:$0xf]
  %v6425 = vld [vmem:[%s12 + $0x38] sm:$0xf]
  %v6426 = vld [vmem:[%s12 + $0x3c] sm:$0xf]
  %v6427 = vld [vmem:[%s13] sm:$0x1]
  %v6429 = vlaneseq
  %v6430 = vshrl.u32 %v6429, 7
  %v6431 = vsub.s32 0, %v6430
  %v6432 = vrot.slane %v6427, %v6431
  %v6530 = vunpack.c.l.b16 %v6315
  %v6531 = vunpack.c.l.b16 %v6316
  %v6532 = vunpack.c.l.b16 %v6317
  %v6533 = vunpack.c.l.b16 %v6318
  %v6534 = vunpack.c.l.b16 %v6319
  %v6535 = vunpack.c.l.b16 %v6320
  %v6536 = vunpack.c.l.b16 %v6321
  %v6537 = vunpack.c.l.b16 %v6322
  %v6538 = vunpack.c.l.b16 %v6323
  %v6539 = vunpack.c.l.b16 %v6324
  %v6540 = vunpack.c.l.b16 %v6325
  %v6541 = vunpack.c.l.b16 %v6326
  %v6542 = vunpack.c.l.b16 %v6327
  %v6543 = vunpack.c.l.b16 %v6328
  %v6544 = vunpack.c.l.b16 %v6329
  %v6545 = vunpack.c.l.b16 %v6330
  %v6546 = vunpack.c.l.b16 %v6331
  %v6547 = vunpack.c.l.b16 %v6332
  %v6548 = vunpack.c.l.b16 %v6333
  %v6549 = vunpack.c.l.b16 %v6334
  %v6550 = vunpack.c.l.b16 %v6335
  %v6551 = vunpack.c.l.b16 %v6336
  %v6552 = vunpack.c.l.b16 %v6337
  %v6553 = vunpack.c.l.b16 %v6338
  %v6554 = vunpack.c.l.b16 %v6339
  %v6555 = vunpack.c.l.b16 %v6340
  %v6556 = vunpack.c.l.b16 %v6341
  %v6557 = vunpack.c.l.b16 %v6342
  %v6558 = vunpack.c.l.b16 %v6343
  %v6559 = vunpack.c.l.b16 %v6344
  %v6560 = vunpack.c.l.b16 %v6345
  %v6561 = vunpack.c.l.b16 %v6346
  %v6562 = vunpack.c.l.b16 %v6347
  %v6563 = vunpack.c.l.b16 %v6348
  %v6564 = vunpack.c.l.b16 %v6349
  %v6565 = vunpack.c.l.b16 %v6350
  %v6566 = vunpack.c.l.b16 %v6351
  %v6567 = vunpack.c.l.b16 %v6352
  %v6568 = vunpack.c.l.b16 %v6353
  %v6569 = vunpack.c.l.b16 %v6354
  %v6570 = vunpack.c.l.b16 %v6355
  %v6571 = vunpack.c.l.b16 %v6356
  %v6572 = vunpack.c.l.b16 %v6357
  %v6573 = vunpack.c.l.b16 %v6358
  %v6574 = vunpack.c.l.b16 %v6359
  %v6575 = vunpack.c.l.b16 %v6360
  %v6576 = vunpack.c.l.b16 %v6361
  %v6577 = vunpack.c.l.b16 %v6362
  %v6578 = vunpack.c.l.b16 %v6363
  %v6579 = vunpack.c.l.b16 %v6364
  %v6580 = vunpack.c.l.b16 %v6365
  %v6581 = vunpack.c.l.b16 %v6366
  %v6582 = vunpack.c.l.b16 %v6367
  %v6583 = vunpack.c.l.b16 %v6368
  %v6584 = vunpack.c.l.b16 %v6369
  %v6585 = vunpack.c.l.b16 %v6370
  %v6586 = vunpack.c.l.b16 %v6371
  %v6587 = vunpack.c.l.b16 %v6372
  %v6588 = vunpack.c.l.b16 %v6373
  %v6589 = vunpack.c.l.b16 %v6374
  %v6590 = vunpack.c.l.b16 %v6375
  %v6591 = vunpack.c.l.b16 %v6376
  %v6592 = vunpack.c.l.b16 %v6377
  %v6593 = vunpack.c.l.b16 %v6378
  %v6594 = vunpack.c.l.b16 %v6379
  %v6595 = vunpack.c.l.b16 %v6380
  %v6596 = vunpack.c.l.b16 %v6381
  %v6597 = vunpack.c.l.b16 %v6382
  %v6598 = vunpack.c.l.b16 %v6383
  %v6599 = vunpack.c.l.b16 %v6384
  %v6600 = vunpack.c.l.b16 %v6385
  %v6601 = vunpack.c.l.b16 %v6386
  %v6602 = vunpack.c.l.b16 %v6387
  %v6603 = vunpack.c.l.b16 %v6388
  %v6604 = vunpack.c.l.b16 %v6389
  %v6605 = vunpack.c.l.b16 %v6390
  %v6606 = vunpack.c.l.b16 %v6391
  %v6607 = vunpack.c.l.b16 %v6392
  %v6608 = vunpack.c.l.b16 %v6393
  %v6609 = vunpack.c.l.b16 %v6394
  %v6610 = vunpack.c.l.b16 %v6395
  %v6611 = vunpack.c.l.b16 %v6396
  %v6612 = vunpack.c.l.b16 %v6397
  %v6613 = vunpack.c.l.b16 %v6398
  %v6614 = vunpack.c.l.b16 %v6399
  %v6615 = vunpack.c.l.b16 %v6400
  %v6616 = vunpack.c.l.b16 %v6401
  %v6617 = vunpack.c.l.b16 %v6402
  %v6618 = vunpack.c.l.b16 %v6403
  %v6619 = vunpack.c.l.b16 %v6404
  %v6620 = vunpack.c.l.b16 %v6405
  %v6621 = vunpack.c.l.b16 %v6406
  %v6622 = vunpack.c.l.b16 %v6407
  %v6623 = vunpack.c.l.b16 %v6408
  %v6624 = vunpack.c.l.b16 %v6409
  %v6625 = vunpack.c.l.b16 %v6410
  %vm6626 = vcmask 1041409
  %v6627 = vsel %vm6626, %v6531, %v6530
  %vm6628 = vcmask 1042434
  %v6629 = vsel %vm6628, %v6532, %v6627
  %vm6630 = vcmask 1043459
  %v6631 = vsel %vm6630, %v6533, %v6629
  %vm6632 = vcmask 1044484
  %v6633 = vsel %vm6632, %v6534, %v6631
  %vm6634 = vcmask 1045509
  %v6635 = vsel %vm6634, %v6535, %v6633
  %vm6636 = vcmask 1046534
  %v6637 = vsel %vm6636, %v6536, %v6635
  %vm6638 = vcmask 1047559
  %v6639 = vsel %vm6638, %v6537, %v6637
  %v6640 = vsel %vm6626, %v6539, %v6538
  %v6641 = vsel %vm6628, %v6540, %v6640
  %v6642 = vsel %vm6630, %v6541, %v6641
  %v6643 = vsel %vm6632, %v6542, %v6642
  %v6644 = vsel %vm6634, %v6543, %v6643
  %v6645 = vsel %vm6636, %v6544, %v6644
  %v6646 = vsel %vm6638, %v6545, %v6645
  %v6647 = vsel %vm6626, %v6547, %v6546
  %v6648 = vsel %vm6628, %v6548, %v6647
  %v6649 = vsel %vm6630, %v6549, %v6648
  %v6650 = vsel %vm6632, %v6550, %v6649
  %v6651 = vsel %vm6634, %v6551, %v6650
  %v6652 = vsel %vm6636, %v6552, %v6651
  %v6653 = vsel %vm6638, %v6553, %v6652
  %v6654 = vsel %vm6626, %v6555, %v6554
  %v6655 = vsel %vm6628, %v6556, %v6654
  %v6656 = vsel %vm6630, %v6557, %v6655
  %v6657 = vsel %vm6632, %v6558, %v6656
  %v6658 = vsel %vm6634, %v6559, %v6657
  %v6659 = vsel %vm6636, %v6560, %v6658
  %v6660 = vsel %vm6638, %v6561, %v6659
  %v6661 = vsel %vm6626, %v6563, %v6562
  %v6662 = vsel %vm6628, %v6564, %v6661
  %v6663 = vsel %vm6630, %v6565, %v6662
  %v6664 = vsel %vm6632, %v6566, %v6663
  %v6665 = vsel %vm6634, %v6567, %v6664
  %v6666 = vsel %vm6636, %v6568, %v6665
  %v6667 = vsel %vm6638, %v6569, %v6666
  %v6668 = vsel %vm6626, %v6571, %v6570
  %v6669 = vsel %vm6628, %v6572, %v6668
  %v6670 = vsel %vm6630, %v6573, %v6669
  %v6671 = vsel %vm6632, %v6574, %v6670
  %v6672 = vsel %vm6634, %v6575, %v6671
  %v6673 = vsel %vm6636, %v6576, %v6672
  %v6674 = vsel %vm6638, %v6577, %v6673
  %v6675 = vsel %vm6626, %v6579, %v6578
  %v6676 = vsel %vm6628, %v6580, %v6675
  %v6677 = vsel %vm6630, %v6581, %v6676
  %v6678 = vsel %vm6632, %v6582, %v6677
  %v6679 = vsel %vm6634, %v6583, %v6678
  %v6680 = vsel %vm6636, %v6584, %v6679
  %v6681 = vsel %vm6638, %v6585, %v6680
  %v6682 = vsel %vm6626, %v6587, %v6586
  %v6683 = vsel %vm6628, %v6588, %v6682
  %v6684 = vsel %vm6630, %v6589, %v6683
  %v6685 = vsel %vm6632, %v6590, %v6684
  %v6686 = vsel %vm6634, %v6591, %v6685
  %v6687 = vsel %vm6636, %v6592, %v6686
  %v6688 = vsel %vm6638, %v6593, %v6687
  %v6689 = vsel %vm6626, %v6595, %v6594
  %v6690 = vsel %vm6628, %v6596, %v6689
  %v6691 = vsel %vm6630, %v6597, %v6690
  %v6692 = vsel %vm6632, %v6598, %v6691
  %v6693 = vsel %vm6634, %v6599, %v6692
  %v6694 = vsel %vm6636, %v6600, %v6693
  %v6695 = vsel %vm6638, %v6601, %v6694
  %v6696 = vsel %vm6626, %v6603, %v6602
  %v6697 = vsel %vm6628, %v6604, %v6696
  %v6698 = vsel %vm6630, %v6605, %v6697
  %v6699 = vsel %vm6632, %v6606, %v6698
  %v6700 = vsel %vm6634, %v6607, %v6699
  %v6701 = vsel %vm6636, %v6608, %v6700
  %v6702 = vsel %vm6638, %v6609, %v6701
  %v6703 = vsel %vm6626, %v6611, %v6610
  %v6704 = vsel %vm6628, %v6612, %v6703
  %v6705 = vsel %vm6630, %v6613, %v6704
  %v6706 = vsel %vm6632, %v6614, %v6705
  %v6707 = vsel %vm6634, %v6615, %v6706
  %v6708 = vsel %vm6636, %v6616, %v6707
  %v6709 = vsel %vm6638, %v6617, %v6708
  %v6710 = vsel %vm6626, %v6619, %v6618
  %v6711 = vsel %vm6628, %v6620, %v6710
  %v6712 = vsel %vm6630, %v6621, %v6711
  %v6713 = vsel %vm6632, %v6622, %v6712
  %v6714 = vsel %vm6634, %v6623, %v6713
  %v6715 = vsel %vm6636, %v6624, %v6714
  %v6716 = vsel %vm6638, %v6625, %v6715
  %v6717 = vpack.c.b16 %v6646, %v6639
  %v6718 = vpack.c.b16 %v6660, %v6653
  %v6719 = vpack.c.b16 %v6674, %v6667
  %v6720 = vpack.c.b16 %v6688, %v6681
  %v6721 = vpack.c.b16 %v6702, %v6695
  %v6722 = vpack.c.b16 %v6716, %v6709
  %v6745 = vunpack.c.l.b16 %v6411
  %v6746 = vunpack.c.l.b16 %v6412
  %v6747 = vunpack.c.l.b16 %v6413
  %v6748 = vunpack.c.l.b16 %v6414
  %v6749 = vunpack.c.l.b16 %v6415
  %v6750 = vunpack.c.l.b16 %v6416
  %v6751 = vunpack.c.l.b16 %v6417
  %v6752 = vunpack.c.l.b16 %v6418
  %v6753 = vunpack.c.l.b16 %v6419
  %v6754 = vunpack.c.l.b16 %v6420
  %v6755 = vunpack.c.l.b16 %v6421
  %v6756 = vunpack.c.l.b16 %v6422
  %v6757 = vunpack.c.l.b16 %v6423
  %v6758 = vunpack.c.l.b16 %v6424
  %v6759 = vunpack.c.l.b16 %v6425
  %v6760 = vunpack.c.l.b16 %v6426
  %v6761 = vpack.c.b16 %v6746, %v6745
  %v6762 = vpack.c.b16 %v6748, %v6747
  %v6763 = vpack.c.b16 %v6750, %v6749
  %v6764 = vpack.c.b16 %v6752, %v6751
  %v6765 = vpack.c.b16 %v6754, %v6753
  %v6766 = vpack.c.b16 %v6756, %v6755
  %v6767 = vpack.c.b16 %v6758, %v6757
  %v6768 = vpack.c.b16 %v6760, %v6759
  %6777 = vmatprep.subr.bf16.mxu0 0
  %6778 = vmatpush1.bf16.msra.mxu0 %v6768
  %6779 = vmatprep.subr.bf16.mxu0 0
  %6780 = vmatpush1.bf16.msra.mxu0 %v6767
  %6781 = vmatprep.subr.bf16.mxu0 0
  %6782 = vmatpush1.bf16.msra.mxu0 %v6766
  %6783 = vmatprep.subr.bf16.mxu0 0
  %6784 = vmatpush1.bf16.msra.mxu0 %v6765
  %6785 = vmatprep.subr.bf16.mxu0 0
  %6786 = vmatpush1.bf16.msra.mxu0 %v6764
  %6787 = vmatprep.subr.bf16.mxu0 0
  %6788 = vmatpush1.bf16.msra.mxu0 %v6763
  %6789 = vmatprep.subr.bf16.mxu0 0
  %6790 = vmatpush1.bf16.msra.mxu0 %v6762
  %6791 = vmatprep.subr.bf16.mxu0 0
  %6792 = vmatpush1.bf16.msra.mxu0 %v6761
  %6793 = vmatprep.subr.bf16.mxu0 0
  %6794 = vmatpush2.bf16.msra.mxu0 0
  %6795 = vmatprep.subr.bf16.mxu0 0
  %6796 = vmatpush2.bf16.msra.mxu0 0
  %6797 = vmatprep.subr.bf16.mxu0 0
  %6798 = vmatpush2.bf16.msra.mxu0 0
  %6799 = vmatprep.subr.bf16.mxu0 0
  %6800 = vmatpush2.bf16.msra.mxu0 0
  %6801 = vmatprep.subr.bf16.mxu0 0
  %6802 = vmatpush2.bf16.msra.mxu0 0
  %6803 = vmatprep.subr.bf16.mxu0 0
  %6804 = vmatpush2.bf16.msra.mxu0 0
  %6805 = vmatprep.subr.bf16.mxu0 0
  %6806 = vmatpush2.bf16.msra.mxu0 0
  %6807 = vmatprep.subr.bf16.mxu0 0
  %6808 = vmatpush2.bf16.msra.mxu0 0
  %6809 = vmatprep.mubr.bf16.mxu0 0
  %6810 = vmatmul.mubr.bf16.gmra.mxu0 %v6717
  %v6811 = vpop.f32.mrf.mxu0
  %v6812 = vadd.f32 %v6432, %v6811
  %v6813 = vpop.f32.mrf.mxu0
  %v6814 = vpop.f32.mrf.mxu0
  %v6815 = vadd.f32 %v6432, %v6814
  %v6816 = vpop.f32.mrf.mxu0
  %6817 = vmatprep.mubr.bf16.mxu0 0
  %6818 = vmatmul.mubr.bf16.gmra.mxu0 %v6718
  %v6819 = vpop.f32.mrf.mxu0
  %v6820 = vadd.f32 %v6432, %v6819
  %v6821 = vpop.f32.mrf.mxu0
  %v6822 = vpop.f32.mrf.mxu0
  %v6823 = vadd.f32 %v6432, %v6822
  %v6824 = vpop.f32.mrf.mxu0
  %6825 = vmatprep.mubr.bf16.mxu0 0
  %6826 = vmatmul.mubr.bf16.gmra.mxu0 %v6719
  %v6827 = vpop.f32.mrf.mxu0
  %v6828 = vadd.f32 %v6432, %v6827
  %v6829 = vpop.f32.mrf.mxu0
  %v6830 = vpop.f32.mrf.mxu0
  %v6831 = vadd.f32 %v6432, %v6830
  %v6832 = vpop.f32.mrf.mxu0
  %6833 = vmatprep.mubr.bf16.mxu0 0
  %6834 = vmatmul.mubr.bf16.gmra.mxu0 %v6720
  %v6835 = vpop.f32.mrf.mxu0
  %v6836 = vadd.f32 %v6432, %v6835
  %v6837 = vpop.f32.mrf.mxu0
  %v6838 = vpop.f32.mrf.mxu0
  %v6839 = vadd.f32 %v6432, %v6838
  %v6840 = vpop.f32.mrf.mxu0
  %6841 = vmatprep.mubr.bf16.mxu0 0
  %6842 = vmatmul.mubr.bf16.gmra.mxu0 %v6721
  %v6843 = vpop.f32.mrf.mxu0
  %v6844 = vadd.f32 %v6432, %v6843
  %v6845 = vpop.f32.mrf.mxu0
  %v6846 = vpop.f32.mrf.mxu0
  %v6847 = vadd.f32 %v6432, %v6846
  %v6848 = vpop.f32.mrf.mxu0
  %6849 = vmatprep.mubr.bf16.mxu0 0
  %6850 = vmatmul.mubr.bf16.gmra.mxu0 %v6722
  %v6851 = vpop.f32.mrf.mxu0
  %v6852 = vadd.f32 %v6432, %v6851
  %v6853 = vpop.f32.mrf.mxu0
  %v6854 = vpop.f32.mrf.mxu0
  %v6855 = vadd.f32 %v6432, %v6854
  %v6856 = vpop.f32.mrf.mxu0
  %6857 = vdwg.mxu0
  %v6858 = vmax.f32 %v6812, 0.0
  %v6859 = vmax.f32 %v6815, 0.0
  %v6860 = vmax.f32 %v6820, 0.0
  %v6861 = vmax.f32 %v6823, 0.0
  %v6862 = vmax.f32 %v6828, 0.0
  %v6863 = vmax.f32 %v6831, 0.0
  %v6864 = vmax.f32 %v6836, 0.0
  %v6865 = vmax.f32 %v6839, 0.0
  %v6866 = vmax.f32 %v6844, 0.0
  %v6867 = vmax.f32 %v6847, 0.0
  %v6868 = vmax.f32 %v6852, 0.0
  %v6869 = vmax.f32 %v6855, 0.0
  %v6870 = vpack.c.bf16 %v6859, %v6858
  %v6871 = vpack.c.bf16 %v6861, %v6860
  %v6872 = vpack.c.bf16 %v6863, %v6862
  %v6873 = vpack.c.bf16 %v6865, %v6864
  %v6874 = vpack.c.bf16 %v6867, %v6866
  %v6875 = vpack.c.bf16 %v6869, %v6868
  %v6882 = vunpack.c.l.b16 %v6870
  %v6883 = vunpack.c.h.b16 %v6870
  %v6884 = vunpack.c.l.b16 %v6871
  %v6885 = vunpack.c.h.b16 %v6871
  %v6886 = vunpack.c.l.b16 %v6872
  %v6887 = vunpack.c.h.b16 %v6872
  %v6888 = vunpack.c.l.b16 %v6873
  %v6889 = vunpack.c.h.b16 %v6873
  %v6890 = vunpack.c.l.b16 %v6874
  %v6891 = vunpack.c.h.b16 %v6874
  %v6892 = vunpack.c.l.b16 %v6875
  %v6893 = vunpack.c.h.b16 %v6875
  %v6894 = vpack.c.b16 %v6882, %v6882
  %v6895 = vpack.c.b16 %v6883, %v6883
  %v6896 = vpack.c.b16 %v6884, %v6884
  %v6897 = vpack.c.b16 %v6885, %v6885
  %v6898 = vpack.c.b16 %v6886, %v6886
  %v6899 = vpack.c.b16 %v6887, %v6887
  %v6900 = vpack.c.b16 %v6888, %v6888
  %v6901 = vpack.c.b16 %v6889, %v6889
  %v6902 = vpack.c.b16 %v6890, %v6890
  %v6903 = vpack.c.b16 %v6891, %v6891
  %v6904 = vpack.c.b16 %v6892, %v6892
  %v6905 = vpack.c.b16 %v6893, %v6893
  %6918 = vst [vmem:[%s14] sm:$0xf] %v6894
  %6919 = vst [vmem:[%s14 + $0x4] sm:$0xf] %v6895
  %6920 = vst [vmem:[%s14 + $0x8] sm:$0xf] %v6896
  %6921 = vst [vmem:[%s14 + $0xc] sm:$0xf] %v6897
  %6922 = vst [vmem:[%s14 + $0x10] sm:$0xf] %v6898
  %6923 = vst [vmem:[%s14 + $0x14] sm:$0xf] %v6899
  %6924 = vst [vmem:[%s14 + $0x18] sm:$0xf] %v6900
  %6925 = vst [vmem:[%s14 + $0x1c] sm:$0xf] %v6901
  %6926 = vst [vmem:[%s14 + $0x20] sm:$0xf] %v6902
  %6927 = vst [vmem:[%s14 + $0x24] sm:$0xf] %v6903
  %6928 = vst [vmem:[%s14 + $0x28] sm:$0xf] %v6904
  %6929 = vst [vmem:[%s14 + $0x2c] sm:$0xf] %v6905
  // Predicated region
  $region58: #{_lambda_.8} parent=0 // pred_check
    _
  $region59: #{_lambda_.8} parent=0 // pred_check_branch
    %6931 = sbr.rel (0) target = $region61
  $region60: #{_lambda_.8} parent=0 // pred_region
    _
  $region61: #{_lambda_.8} parent=0 // pred_fallthru
    _
  // Predicated region
  $region62: #{_lambda_.8} parent=0 // pred_check
    _
  $region63: #{_lambda_.8} parent=0 // pred_check_branch
    %6933 = sbr.rel (0) target = $region65
  $region64: #{_lambda_.8} parent=0 // pred_region
    _
  $region65: #{_lambda_.8} parent=0 // pred_fallthru
    _

// kernel: _lambda_.11
$region0: #{_lambda_.11}
  #allocation0 [shape = 'u32[]', space=smem, size = 0x4, offset = 0x4, fixed_abs, tag = 'smem constant byte address 0x4 - core index']
  #allocation1 [shape = 'u32[144,128]{1,0:T(1,128)}', space=vmem, size = 0x12000, scoped, tag = 'internal scratch']
  %s0 = inlined_call_operand.vmem [shape: bf16[768,64], index: 0, kind: input, shape index: {}]
  %s1 = inlined_call_operand.vmem [shape: f32[768,8], index: 1, kind: input, shape index: {}]
  %s2 = inlined_call_operand.vmem [shape: bf16[96,64], index: 2, kind: input, shape index: {}]
  %s3 = inlined_call_operand.vmem [shape: f32[96,8], index: 3, kind: input, shape index: {}]
  %s4 = inlined_call_operand.vmem [shape: f32[96,1], index: 4, kind: input, shape index: {}]
  %s5 = inlined_call_operand.vmem [shape: bf16[64,128], index: 5, kind: input, shape index: {}]
  %s6 = inlined_call_operand.vmem [shape: bf16[64,128], index: 6, kind: input, shape index: {}]
  %s7 = inlined_call_operand.vmem [shape: f32[8,128], index: 7, kind: input, shape index: {}]
  %s8 = inlined_call_operand.vmem [shape: f32[8,128], index: 8, kind: input, shape index: {}]
  %s9 = inlined_call_operand.vmem [shape: f32[1,128], index: 9, kind: input, shape index: {}]
  %s10 = inlined_call_operand.vmem [shape: bf16[128,128], index: 10, kind: input, shape index: {}]
  %s11 = inlined_call_operand.vmem [shape: f32[1,128], index: 11, kind: input, shape index: {}]
  %s12 = inlined_call_operand.vmem [shape: bf16[128,128], index: 12, kind: input, shape index: {}]
  %s13 = inlined_call_operand.vmem [shape: f32[1,128], index: 13, kind: input, shape index: {}]
  %s14 = inlined_call_operand.vmem [shape: f32[96,128], index: 14, kind: output, shape index: {}]
  %s15 = sld [smem:[#allocation0]]
  $region66: #{_lambda_.11} parent=0
    _
  %s17 = ssub.s32 1, %s15
  %s18 = scalar_select 0, %s17, %s15
  // Predicated region
  $region2: #{_lambda_.11} parent=0 // pred_check
    _
  $region3: #{_lambda_.11} parent=0 // pred_check_branch
    %20 = sbr.rel (0) target = $region5
  $region4: #{_lambda_.11} parent=0 // pred_region
    _
  $region5: #{_lambda_.11} parent=0 // pred_fallthru
    _
  // Predicated region
  $region6: #{_lambda_.11} parent=0 // pred_check
    _
  $region7: #{_lambda_.11} parent=0 // pred_check_branch
    %22 = sbr.rel (0) target = $region9
  $region8: #{_lambda_.11} parent=0 // pred_region
    _
  $region9: #{_lambda_.11} parent=0 // pred_fallthru
    _
  // Predicated region
  $region10: #{_lambda_.11} parent=0 // pred_check
    _
  $region11: #{_lambda_.11} parent=0 // pred_check_branch
    %24 = sbr.rel (0) target = $region13
  $region12: #{_lambda_.11} parent=0 // pred_region
    _
  $region13: #{_lambda_.11} parent=0 // pred_fallthru
    _
  // Predicated region
  $region14: #{_lambda_.11} parent=0 // pred_check
    _
  $region15: #{_lambda_.11} parent=0 // pred_check_branch
    %26 = sbr.rel (0) target = $region17
  $region16: #{_lambda_.11} parent=0 // pred_region
    _
  $region17: #{_lambda_.11} parent=0 // pred_fallthru
    _
  // Predicated region
  $region18: #{_lambda_.11} parent=0 // pred_check
    _
  $region19: #{_lambda_.11} parent=0 // pred_check_branch
    %28 = sbr.rel (0) target = $region21
  $region20: #{_lambda_.11} parent=0 // pred_region
    _
  $region21: #{_lambda_.11} parent=0 // pred_fallthru
    _
  // Predicated region
  $region22: #{_lambda_.11} parent=0 // pred_check
    _
  $region23: #{_lambda_.11} parent=0 // pred_check_branch
    %30 = sbr.rel (0) target = $region25
  $region24: #{_lambda_.11} parent=0 // pred_region
    _
  $region25: #{_lambda_.11} parent=0 // pred_fallthru
    _
  // Predicated region
  $region26: #{_lambda_.11} parent=0 // pred_check
    _
  $region27: #{_lambda_.11} parent=0 // pred_check_branch
    %32 = sbr.rel (0) target = $region29
  $region28: #{_lambda_.11} parent=0 // pred_region
    _
  $region29: #{_lambda_.11} parent=0 // pred_fallthru
    _
  // Predicated region
  $region30: #{_lambda_.11} parent=0 // pred_check
    _
  $region31: #{_lambda_.11} parent=0 // pred_check_branch
    %34 = sbr.rel (0) target = $region33
  $region32: #{_lambda_.11} parent=0 // pred_region
    _
  $region33: #{_lambda_.11} parent=0 // pred_fallthru
    _
  // Predicated region
  $region34: #{_lambda_.11} parent=0 // pred_check
    _
  $region35: #{_lambda_.11} parent=0 // pred_check_branch
    %36 = sbr.rel (0) target = $region37
  $region36: #{_lambda_.11} parent=0 // pred_region
    _
  $region37: #{_lambda_.11} parent=0 // pred_fallthru
    _
  // Predicated region
  $region38: #{_lambda_.11} parent=0 // pred_check
    _
  $region39: #{_lambda_.11} parent=0 // pred_check_branch
    %38 = sbr.rel (0) target = $region41
  $region40: #{_lambda_.11} parent=0 // pred_region
    _
  $region41: #{_lambda_.11} parent=0 // pred_fallthru
    _
  // Predicated region
  $region42: #{_lambda_.11} parent=0 // pred_check
    _
  $region43: #{_lambda_.11} parent=0 // pred_check_branch
    %40 = sbr.rel (0) target = $region45
  $region44: #{_lambda_.11} parent=0 // pred_region
    _
  $region45: #{_lambda_.11} parent=0 // pred_fallthru
    _
  // Predicated region
  $region46: #{_lambda_.11} parent=0 // pred_check
    _
  $region47: #{_lambda_.11} parent=0 // pred_check_branch
    %42 = sbr.rel (0) target = $region49
  $region48: #{_lambda_.11} parent=0 // pred_region
    _
  $region49: #{_lambda_.11} parent=0 // pred_fallthru
    _
  // Predicated region
  $region50: #{_lambda_.11} parent=0 // pred_check
    _
  $region51: #{_lambda_.11} parent=0 // pred_check_branch
    %44 = sbr.rel (0) target = $region53
  $region52: #{_lambda_.11} parent=0 // pred_region
    _
  $region53: #{_lambda_.11} parent=0 // pred_fallthru
    _
  // Predicated region
  $region54: #{_lambda_.11} parent=0 // pred_check
    _
  $region55: #{_lambda_.11} parent=0 // pred_check_branch
    %46 = sbr.rel (0) target = $region57
  $region56: #{_lambda_.11} parent=0 // pred_region
    _
  $region57: #{_lambda_.11} parent=0 // pred_fallthru
    _
  %v48 = vld [vmem:[%s0] sm:$0xf]
  %v49 = vld [vmem:[%s0 + $0x4] sm:$0xf]
  %v50 = vld [vmem:[%s0 + $0x8] sm:$0xf]
  %v51 = vld [vmem:[%s0 + $0xc] sm:$0xf]
  %v52 = vld [vmem:[%s0 + $0x10] sm:$0xf]
  %v53 = vld [vmem:[%s0 + $0x14] sm:$0xf]
  %v54 = vld [vmem:[%s0 + $0x18] sm:$0xf]
  %v55 = vld [vmem:[%s0 + $0x1c] sm:$0xf]
  %v56 = vld [vmem:[%s0 + $0x20] sm:$0xf]
  %v57 = vld [vmem:[%s0 + $0x24] sm:$0xf]
  %v58 = vld [vmem:[%s0 + $0x28] sm:$0xf]
  %v59 = vld [vmem:[%s0 + $0x2c] sm:$0xf]
  %v60 = vld [vmem:[%s0 + $0x30] sm:$0xf]
  %v61 = vld [vmem:[%s0 + $0x34] sm:$0xf]
  %v62 = vld [vmem:[%s0 + $0x38] sm:$0xf]
  %v63 = vld [vmem:[%s0 + $0x3c] sm:$0xf]
  %v64 = vld [vmem:[%s0 + $0x40] sm:$0xf]
  %v65 = vld [vmem:[%s0 + $0x44] sm:$0xf]
  %v66 = vld [vmem:[%s0 + $0x48] sm:$0xf]
  %v67 = vld [vmem:[%s0 + $0x4c] sm:$0xf]
  %v68 = vld [vmem:[%s0 + $0x50] sm:$0xf]
  %v69 = vld [vmem:[%s0 + $0x54] sm:$0xf]
  %v70 = vld [vmem:[%s0 + $0x58] sm:$0xf]
  %v71 = vld [vmem:[%s0 + $0x5c] sm:$0xf]
  %v72 = vld [vmem:[%s0 + $0x60] sm:$0xf]
  %v73 = vld [vmem:[%s0 + $0x64] sm:$0xf]
  %v74 = vld [vmem:[%s0 + $0x68] sm:$0xf]
  %v75 = vld [vmem:[%s0 + $0x6c] sm:$0xf]
  %v76 = vld [vmem:[%s0 + $0x70] sm:$0xf]
  %v77 = vld [vmem:[%s0 + $0x74] sm:$0xf]
  %v78 = vld [vmem:[%s0 + $0x78] sm:$0xf]
  %v79 = vld [vmem:[%s0 + $0x7c] sm:$0xf]
  %v80 = vld [vmem:[%s0 + $0x80] sm:$0xf]
  %v81 = vld [vmem:[%s0 + $0x84] sm:$0xf]
  %v82 = vld [vmem:[%s0 + $0x88] sm:$0xf]
  %v83 = vld [vmem:[%s0 + $0x8c] sm:$0xf]
  %v84 = vld [vmem:[%s0 + $0x90] sm:$0xf]
  %v85 = vld [vmem:[%s0 + $0x94] sm:$0xf]
  %v86 = vld [vmem:[%s0 + $0x98] sm:$0xf]
  %v87 = vld [vmem:[%s0 + $0x9c] sm:$0xf]
  %v88 = vld [vmem:[%s0 + $0xa0] sm:$0xf]
  %v89 = vld [vmem:[%s0 + $0xa4] sm:$0xf]
  %v90 = vld [vmem:[%s0 + $0xa8] sm:$0xf]
  %v91 = vld [vmem:[%s0 + $0xac] sm:$0xf]
  %v92 = vld [vmem:[%s0 + $0xb0] sm:$0xf]
  %v93 = vld [vmem:[%s0 + $0xb4] sm:$0xf]
  %v94 = vld [vmem:[%s0 + $0xb8] sm:$0xf]
  %v95 = vld [vmem:[%s0 + $0xbc] sm:$0xf]
  %v96 = vld [vmem:[%s0 + $0xc0] sm:$0xf]
  %v97 = vld [vmem:[%s0 + $0xc4] sm:$0xf]
  %v98 = vld [vmem:[%s0 + $0xc8] sm:$0xf]
  %v99 = vld [vmem:[%s0 + $0xcc] sm:$0xf]
  %v100 = vld [vmem:[%s0 + $0xd0] sm:$0xf]
  %v101 = vld [vmem:[%s0 + $0xd4] sm:$0xf]
  %v102 = vld [vmem:[%s0 + $0xd8] sm:$0xf]
  %v103 = vld [vmem:[%s0 + $0xdc] sm:$0xf]
  %v104 = vld [vmem:[%s0 + $0xe0] sm:$0xf]
  %v105 = vld [vmem:[%s0 + $0xe4] sm:$0xf]
  %v106 = vld [vmem:[%s0 + $0xe8] sm:$0xf]
  %v107 = vld [vmem:[%s0 + $0xec] sm:$0xf]
  %v108 = vld [vmem:[%s0 + $0xf0] sm:$0xf]
  %v109 = vld [vmem:[%s0 + $0xf4] sm:$0xf]
  %v110 = vld [vmem:[%s0 + $0xf8] sm:$0xf]
  %v111 = vld [vmem:[%s0 + $0xfc] sm:$0xf]
  %v112 = vld [vmem:[%s0 + $0x100] sm:$0xf]
  %v113 = vld [vmem:[%s0 + $0x104] sm:$0xf]
  %v114 = vld [vmem:[%s0 + $0x108] sm:$0xf]
  %v115 = vld [vmem:[%s0 + $0x10c] sm:$0xf]
  %v116 = vld [vmem:[%s0 + $0x110] sm:$0xf]
  %v117 = vld [vmem:[%s0 + $0x114] sm:$0xf]
  %v118 = vld [vmem:[%s0 + $0x118] sm:$0xf]
  %v119 = vld [vmem:[%s0 + $0x11c] sm:$0xf]
  %v120 = vld [vmem:[%s0 + $0x120] sm:$0xf]
  %v121 = vld [vmem:[%s0 + $0x124] sm:$0xf]
  %v122 = vld [vmem:[%s0 + $0x128] sm:$0xf]
  %v123 = vld [vmem:[%s0 + $0x12c] sm:$0xf]
  %v124 = vld [vmem:[%s0 + $0x130] sm:$0xf]
  %v125 = vld [vmem:[%s0 + $0x134] sm:$0xf]
  %v126 = vld [vmem:[%s0 + $0x138] sm:$0xf]
  %v127 = vld [vmem:[%s0 + $0x13c] sm:$0xf]
  %v128 = vld [vmem:[%s0 + $0x140] sm:$0xf]
  %v129 = vld [vmem:[%s0 + $0x144] sm:$0xf]
  %v130 = vld [vmem:[%s0 + $0x148] sm:$0xf]
  %v131 = vld [vmem:[%s0 + $0x14c] sm:$0xf]
  %v132 = vld [vmem:[%s0 + $0x150] sm:$0xf]
  %v133 = vld [vmem:[%s0 + $0x154] sm:$0xf]
  %v134 = vld [vmem:[%s0 + $0x158] sm:$0xf]
  %v135 = vld [vmem:[%s0 + $0x15c] sm:$0xf]
  %v136 = vld [vmem:[%s0 + $0x160] sm:$0xf]
  %v137 = vld [vmem:[%s0 + $0x164] sm:$0xf]
  %v138 = vld [vmem:[%s0 + $0x168] sm:$0xf]
  %v139 = vld [vmem:[%s0 + $0x16c] sm:$0xf]
  %v140 = vld [vmem:[%s0 + $0x170] sm:$0xf]
  %v141 = vld [vmem:[%s0 + $0x174] sm:$0xf]
  %v142 = vld [vmem:[%s0 + $0x178] sm:$0xf]
  %v143 = vld [vmem:[%s0 + $0x17c] sm:$0xf]
  %v144 = vld [vmem:[%s5] sm:$0xf]
  %v145 = vld [vmem:[%s5 + $0x4] sm:$0xf]
  %v146 = vld [vmem:[%s5 + $0x8] sm:$0xf]
  %v147 = vld [vmem:[%s5 + $0xc] sm:$0xf]
  %v148 = vld [vmem:[%s5 + $0x10] sm:$0xf]
  %v149 = vld [vmem:[%s5 + $0x14] sm:$0xf]
  %v150 = vld [vmem:[%s5 + $0x18] sm:$0xf]
  %v151 = vld [vmem:[%s5 + $0x1c] sm:$0xf]
  %v152 = vld [vmem:[%s1] sm:$0xff]
  %v153 = vld [vmem:[%s1 + $0x8] sm:$0xff]
  %v154 = vld [vmem:[%s1 + $0x10] sm:$0xff]
  %v155 = vld [vmem:[%s1 + $0x18] sm:$0xff]
  %v156 = vld [vmem:[%s1 + $0x20] sm:$0xff]
  %v157 = vld [vmem:[%s1 + $0x28] sm:$0xff]
  %v158 = vld [vmem:[%s1 + $0x30] sm:$0xff]
  %v159 = vld [vmem:[%s1 + $0x38] sm:$0xff]
  %v160 = vld [vmem:[%s1 + $0x40] sm:$0xff]
  %v161 = vld [vmem:[%s1 + $0x48] sm:$0xff]
  %v162 = vld [vmem:[%s1 + $0x50] sm:$0xff]
  %v163 = vld [vmem:[%s1 + $0x58] sm:$0xff]
  %v164 = vld [vmem:[%s1 + $0x60] sm:$0xff]
  %v165 = vld [vmem:[%s1 + $0x68] sm:$0xff]
  %v166 = vld [vmem:[%s1 + $0x70] sm:$0xff]
  %v167 = vld [vmem:[%s1 + $0x78] sm:$0xff]
  %v168 = vld [vmem:[%s1 + $0x80] sm:$0xff]
  %v169 = vld [vmem:[%s1 + $0x88] sm:$0xff]
  %v170 = vld [vmem:[%s1 + $0x90] sm:$0xff]
  %v171 = vld [vmem:[%s1 + $0x98] sm:$0xff]
  %v172 = vld [vmem:[%s1 + $0xa0] sm:$0xff]
  %v173 = vld [vmem:[%s1 + $0xa8] sm:$0xff]
  %v174 = vld [vmem:[%s1 + $0xb0] sm:$0xff]
  %v175 = vld [vmem:[%s1 + $0xb8] sm:$0xff]
  %v176 = vld [vmem:[%s1 + $0xc0] sm:$0xff]
  %v177 = vld [vmem:[%s1 + $0xc8] sm:$0xff]
  %v178 = vld [vmem:[%s1 + $0xd0] sm:$0xff]
  %v179 = vld [vmem:[%s1 + $0xd8] sm:$0xff]
  %v180 = vld [vmem:[%s1 + $0xe0] sm:$0xff]
  %v181 = vld [vmem:[%s1 + $0xe8] sm:$0xff]
  %v182 = vld [vmem:[%s1 + $0xf0] sm:$0xff]
  %v183 = vld [vmem:[%s1 + $0xf8] sm:$0xff]
  %v184 = vld [vmem:[%s1 + $0x100] sm:$0xff]
  %v185 = vld [vmem:[%s1 + $0x108] sm:$0xff]
  %v186 = vld [vmem:[%s1 + $0x110] sm:$0xff]
  %v187 = vld [vmem:[%s1 + $0x118] sm:$0xff]
  %v188 = vld [vmem:[%s1 + $0x120] sm:$0xff]
  %v189 = vld [vmem:[%s1 + $0x128] sm:$0xff]
  %v190 = vld [vmem:[%s1 + $0x130] sm:$0xff]
  %v191 = vld [vmem:[%s1 + $0x138] sm:$0xff]
  %v192 = vld [vmem:[%s1 + $0x140] sm:$0xff]
  %v193 = vld [vmem:[%s1 + $0x148] sm:$0xff]
  %v194 = vld [vmem:[%s1 + $0x150] sm:$0xff]
  %v195 = vld [vmem:[%s1 + $0x158] sm:$0xff]
  %v196 = vld [vmem:[%s1 + $0x160] sm:$0xff]
  %v197 = vld [vmem:[%s1 + $0x168] sm:$0xff]
  %v198 = vld [vmem:[%s1 + $0x170] sm:$0xff]
  %v199 = vld [vmem:[%s1 + $0x178] sm:$0xff]
  %v200 = vld [vmem:[%s1 + $0x180] sm:$0xff]
  %v201 = vld [vmem:[%s1 + $0x188] sm:$0xff]
  %v202 = vld [vmem:[%s1 + $0x190] sm:$0xff]
  %v203 = vld [vmem:[%s1 + $0x198] sm:$0xff]
  %v204 = vld [vmem:[%s1 + $0x1a0] sm:$0xff]
  %v205 = vld [vmem:[%s1 + $0x1a8] sm:$0xff]
  %v206 = vld [vmem:[%s1 + $0x1b0] sm:$0xff]
  %v207 = vld [vmem:[%s1 + $0x1b8] sm:$0xff]
  %v208 = vld [vmem:[%s1 + $0x1c0] sm:$0xff]
  %v209 = vld [vmem:[%s1 + $0x1c8] sm:$0xff]
  %v210 = vld [vmem:[%s1 + $0x1d0] sm:$0xff]
  %v211 = vld [vmem:[%s1 + $0x1d8] sm:$0xff]
  %v212 = vld [vmem:[%s1 + $0x1e0] sm:$0xff]
  %v213 = vld [vmem:[%s1 + $0x1e8] sm:$0xff]
  %v214 = vld [vmem:[%s1 + $0x1f0] sm:$0xff]
  %v215 = vld [vmem:[%s1 + $0x1f8] sm:$0xff]
  %v216 = vld [vmem:[%s1 + $0x200] sm:$0xff]
  %v217 = vld [vmem:[%s1 + $0x208] sm:$0xff]
  %v218 = vld [vmem:[%s1 + $0x210] sm:$0xff]
  %v219 = vld [vmem:[%s1 + $0x218] sm:$0xff]
  %v220 = vld [vmem:[%s1 + $0x220] sm:$0xff]
  %v221 = vld [vmem:[%s1 + $0x228] sm:$0xff]
  %v222 = vld [vmem:[%s1 + $0x230] sm:$0xff]
  %v223 = vld [vmem:[%s1 + $0x238] sm:$0xff]
  %v224 = vld [vmem:[%s1 + $0x240] sm:$0xff]
  %v225 = vld [vmem:[%s1 + $0x248] sm:$0xff]
  %v226 = vld [vmem:[%s1 + $0x250] sm:$0xff]
  %v227 = vld [vmem:[%s1 + $0x258] sm:$0xff]
  %v228 = vld [vmem:[%s1 + $0x260] sm:$0xff]
  %v229 = vld [vmem:[%s1 + $0x268] sm:$0xff]
  %v230 = vld [vmem:[%s1 + $0x270] sm:$0xff]
  %v231 = vld [vmem:[%s1 + $0x278] sm:$0xff]
  %v232 = vld [vmem:[%s1 + $0x280] sm:$0xff]
  %v233 = vld [vmem:[%s1 + $0x288] sm:$0xff]
  %v234 = vld [vmem:[%s1 + $0x290] sm:$0xff]
  %v235 = vld [vmem:[%s1 + $0x298] sm:$0xff]
  %v236 = vld [vmem:[%s1 + $0x2a0] sm:$0xff]
  %v237 = vld [vmem:[%s1 + $0x2a8] sm:$0xff]
  %v238 = vld [vmem:[%s1 + $0x2b0] sm:$0xff]
  %v239 = vld [vmem:[%s1 + $0x2b8] sm:$0xff]
  %v240 = vld [vmem:[%s1 + $0x2c0] sm:$0xff]
  %v241 = vld [vmem:[%s1 + $0x2c8] sm:$0xff]
  %v242 = vld [vmem:[%s1 + $0x2d0] sm:$0xff]
  %v243 = vld [vmem:[%s1 + $0x2d8] sm:$0xff]
  %v244 = vld [vmem:[%s1 + $0x2e0] sm:$0xff]
  %v245 = vld [vmem:[%s1 + $0x2e8] sm:$0xff]
  %v246 = vld [vmem:[%s1 + $0x2f0] sm:$0xff]
  %v247 = vld [vmem:[%s1 + $0x2f8] sm:$0xff]
  %v248 = vld [vmem:[%s7] sm:$0xff]
  %vm249 = vcmask 64512
  %v251 = vsel %vm249, %v152, 0
  %v254 = vsel %vm249, %v153, 0
  %v257 = vsel %vm249, %v154, 0
  %v260 = vsel %vm249, %v155, 0
  %v263 = vsel %vm249, %v156, 0
  %v266 = vsel %vm249, %v157, 0
  %v269 = vsel %vm249, %v158, 0
  %v272 = vsel %vm249, %v159, 0
  %v275 = vsel %vm249, %v160, 0
  %v278 = vsel %vm249, %v161, 0
  %v281 = vsel %vm249, %v162, 0
  %v284 = vsel %vm249, %v163, 0
  %v287 = vsel %vm249, %v164, 0
  %v290 = vsel %vm249, %v165, 0
  %v293 = vsel %vm249, %v166, 0
  %v296 = vsel %vm249, %v167, 0
  %v299 = vsel %vm249, %v168, 0
  %v302 = vsel %vm249, %v169, 0
  %v305 = vsel %vm249, %v170, 0
  %v308 = vsel %vm249, %v171, 0
  %v311 = vsel %vm249, %v172, 0
  %v314 = vsel %vm249, %v173, 0
  %v317 = vsel %vm249, %v174, 0
  %v320 = vsel %vm249, %v175, 0
  %v323 = vsel %vm249, %v176, 0
  %v326 = vsel %vm249, %v177, 0
  %v329 = vsel %vm249, %v178, 0
  %v332 = vsel %vm249, %v179, 0
  %v335 = vsel %vm249, %v180, 0
  %v338 = vsel %vm249, %v181, 0
  %v341 = vsel %vm249, %v182, 0
  %v344 = vsel %vm249, %v183, 0
  %v347 = vsel %vm249, %v184, 0
  %v350 = vsel %vm249, %v185, 0
  %v353 = vsel %vm249, %v186, 0
  %v356 = vsel %vm249, %v187, 0
  %v359 = vsel %vm249, %v188, 0
  %v362 = vsel %vm249, %v189, 0
  %v365 = vsel %vm249, %v190, 0
  %v368 = vsel %vm249, %v191, 0
  %v371 = vsel %vm249, %v192, 0
  %v374 = vsel %vm249, %v193, 0
  %v377 = vsel %vm249, %v194, 0
  %v380 = vsel %vm249, %v195, 0
  %v383 = vsel %vm249, %v196, 0
  %v386 = vsel %vm249, %v197, 0
  %v389 = vsel %vm249, %v198, 0
  %v392 = vsel %vm249, %v199, 0
  %v395 = vsel %vm249, %v200, 0
  %v398 = vsel %vm249, %v201, 0
  %v401 = vsel %vm249, %v202, 0
  %v404 = vsel %vm249, %v203, 0
  %v407 = vsel %vm249, %v204, 0
  %v410 = vsel %vm249, %v205, 0
  %v413 = vsel %vm249, %v206, 0
  %v416 = vsel %vm249, %v207, 0
  %v419 = vsel %vm249, %v208, 0
  %v422 = vsel %vm249, %v209, 0
  %v425 = vsel %vm249, %v210, 0
  %v428 = vsel %vm249, %v211, 0
  %v431 = vsel %vm249, %v212, 0
  %v434 = vsel %vm249, %v213, 0
  %v437 = vsel %vm249, %v214, 0
  %v440 = vsel %vm249, %v215, 0
  %v443 = vsel %vm249, %v216, 0
  %v446 = vsel %vm249, %v217, 0
  %v449 = vsel %vm249, %v218, 0
  %v452 = vsel %vm249, %v219, 0
  %v455 = vsel %vm249, %v220, 0
  %v458 = vsel %vm249, %v221, 0
  %v461 = vsel %vm249, %v222, 0
  %v464 = vsel %vm249, %v223, 0
  %v467 = vsel %vm249, %v224, 0
  %v470 = vsel %vm249, %v225, 0
  %v473 = vsel %vm249, %v226, 0
  %v476 = vsel %vm249, %v227, 0
  %v479 = vsel %vm249, %v228, 0
  %v482 = vsel %vm249, %v229, 0
  %v485 = vsel %vm249, %v230, 0
  %v488 = vsel %vm249, %v231, 0
  %v491 = vsel %vm249, %v232, 0
  %v494 = vsel %vm249, %v233, 0
  %v497 = vsel %vm249, %v234, 0
  %v500 = vsel %vm249, %v235, 0
  %v503 = vsel %vm249, %v236, 0
  %v506 = vsel %vm249, %v237, 0
  %v509 = vsel %vm249, %v238, 0
  %v512 = vsel %vm249, %v239, 0
  %v515 = vsel %vm249, %v240, 0
  %v518 = vsel %vm249, %v241, 0
  %v521 = vsel %vm249, %v242, 0
  %v524 = vsel %vm249, %v243, 0
  %v527 = vsel %vm249, %v244, 0
  %v530 = vsel %vm249, %v245, 0
  %v533 = vsel %vm249, %v246, 0
  %v536 = vsel %vm249, %v247, 0
  %538 = vmatprep.subr.mxu0 0.0
  %539 = vmatpush1.msra.mxu0 0.0
  %540 = vmatprep.subr.mxu0 0.0
  %541 = vmatpush1.msra.mxu0 0.0
  %542 = vmatprep.subr.mxu0 0.0
  %543 = vmatpush1.msra.mxu0 0.0
  %544 = vmatprep.subr.mxu0 0.0
  %545 = vmatpush1.msra.mxu0 0.0
  %546 = vmatprep.subr.mxu0 0.0
  %547 = vmatpush1.msra.mxu0 0.0
  %548 = vmatprep.subr.mxu0 0.0
  %549 = vmatpush1.msra.mxu0 0.0
  %550 = vmatprep.subr.mxu0 0.0
  %551 = vmatpush1.msra.mxu0 0.0
  %552 = vmatprep.subr.mxu0 0.0
  %553 = vmatpush1.msra.mxu0 0.0
  %554 = vmatprep.subr.mxu0 0.0
  %555 = vmatpush1.msra.mxu0 0.0
  %556 = vmatprep.subr.mxu0 0.0
  %557 = vmatpush1.msra.mxu0 0.0
  %558 = vmatprep.subr.mxu0 0.0
  %559 = vmatpush1.msra.mxu0 0.0
  %560 = vmatprep.subr.mxu0 0.0
  %561 = vmatpush1.msra.mxu0 0.0
  %562 = vmatprep.subr.mxu0 0.0
  %563 = vmatpush1.msra.mxu0 0.0
  %564 = vmatprep.subr.mxu0 0.0
  %565 = vmatpush1.msra.mxu0 0.0
  %566 = vmatprep.subr.mxu0 0.0
  %567 = vmatpush1.msra.mxu0 0.0
  %568 = vmatprep.subr.mxu0 0.0
  %569 = vmatpush1.msra.mxu0 %v248
  %570 = vmatprep.subr.mxu0 0.0
  %571 = vmatpush2.msra.mxu0 0.0
  %572 = vmatprep.subr.mxu0 0.0
  %573 = vmatpush2.msra.mxu0 0.0
  %574 = vmatprep.subr.mxu0 0.0
  %575 = vmatpush2.msra.mxu0 0.0
  %576 = vmatprep.subr.mxu0 0.0
  %577 = vmatpush2.msra.mxu0 0.0
  %578 = vmatprep.subr.mxu0 0.0
  %579 = vmatpush2.msra.mxu0 0.0
  %580 = vmatprep.subr.mxu0 0.0
  %581 = vmatpush2.msra.mxu0 0.0
  %582 = vmatprep.subr.mxu0 0.0
  %583 = vmatpush2.msra.mxu0 0.0
  %584 = vmatprep.subr.mxu0 0.0
  %585 = vmatpush2.msra.mxu0 0.0
  %586 = vmatprep.subr.mxu0 0.0
  %587 = vmatpush2.msra.mxu0 0.0
  %588 = vmatprep.subr.mxu0 0.0
  %589 = vmatpush2.msra.mxu0 0.0
  %590 = vmatprep.subr.mxu0 0.0
  %591 = vmatpush2.msra.mxu0 0.0
  %592 = vmatprep.subr.mxu0 0.0
  %593 = vmatpush2.msra.mxu0 0.0
  %594 = vmatprep.subr.mxu0 0.0
  %595 = vmatpush2.msra.mxu0 0.0
  %596 = vmatprep.subr.mxu0 0.0
  %597 = vmatpush2.msra.mxu0 0.0
  %598 = vmatprep.subr.mxu0 0.0
  %599 = vmatpush2.msra.mxu0 0.0
  %600 = vmatprep.subr.mxu0 0.0
  %601 = vmatpush2.msra.mxu0 0.0
  %602 = vmatprep.mubr.f32.mxu0 0.0
  %603 = vmatmul.mubr.f32.gmra.mxu0 %v251
  %v604 = vpop.f32.mrf.mxu0
  %v605 = vadd.f32 0.0, %v604
  %v606 = vpop.f32.mrf.mxu0
  %607 = vmatprep.mubr.f32.mxu0 0.0
  %608 = vmatmul.mubr.f32.gmra.mxu0 %v254
  %v609 = vpop.f32.mrf.mxu0
  %v610 = vadd.f32 0.0, %v609
  %v611 = vpop.f32.mrf.mxu0
  %612 = vmatprep.mubr.f32.mxu0 0.0
  %613 = vmatmul.mubr.f32.gmra.mxu0 %v257
  %v614 = vpop.f32.mrf.mxu0
  %v615 = vadd.f32 0.0, %v614
  %v616 = vpop.f32.mrf.mxu0
  %617 = vmatprep.mubr.f32.mxu0 0.0
  %618 = vmatmul.mubr.f32.gmra.mxu0 %v260
  %v619 = vpop.f32.mrf.mxu0
  %v620 = vadd.f32 0.0, %v619
  %v621 = vpop.f32.mrf.mxu0
  %622 = vmatprep.mubr.f32.mxu0 0.0
  %623 = vmatmul.mubr.f32.gmra.mxu0 %v263
  %v624 = vpop.f32.mrf.mxu0
  %v625 = vadd.f32 0.0, %v624
  %v626 = vpop.f32.mrf.mxu0
  %627 = vmatprep.mubr.f32.mxu0 0.0
  %628 = vmatmul.mubr.f32.gmra.mxu0 %v266
  %v629 = vpop.f32.mrf.mxu0
  %v630 = vadd.f32 0.0, %v629
  %v631 = vpop.f32.mrf.mxu0
  %632 = vmatprep.mubr.f32.mxu0 0.0
  %633 = vmatmul.mubr.f32.gmra.mxu0 %v269
  %v634 = vpop.f32.mrf.mxu0
  %v635 = vadd.f32 0.0, %v634
  %v636 = vpop.f32.mrf.mxu0
  %637 = vmatprep.mubr.f32.mxu0 0.0
  %638 = vmatmul.mubr.f32.gmra.mxu0 %v272
  %v639 = vpop.f32.mrf.mxu0
  %v640 = vadd.f32 0.0, %v639
  %v641 = vpop.f32.mrf.mxu0
  %642 = vmatprep.mubr.f32.mxu0 0.0
  %643 = vmatmul.mubr.f32.gmra.mxu0 %v275
  %v644 = vpop.f32.mrf.mxu0
  %v645 = vadd.f32 0.0, %v644
  %v646 = vpop.f32.mrf.mxu0
  %647 = vmatprep.mubr.f32.mxu0 0.0
  %648 = vmatmul.mubr.f32.gmra.mxu0 %v278
  %v649 = vpop.f32.mrf.mxu0
  %v650 = vadd.f32 0.0, %v649
  %v651 = vpop.f32.mrf.mxu0
  %652 = vmatprep.mubr.f32.mxu0 0.0
  %653 = vmatmul.mubr.f32.gmra.mxu0 %v281
  %v654 = vpop.f32.mrf.mxu0
  %v655 = vadd.f32 0.0, %v654
  %v656 = vpop.f32.mrf.mxu0
  %657 = vmatprep.mubr.f32.mxu0 0.0
  %658 = vmatmul.mubr.f32.gmra.mxu0 %v284
  %v659 = vpop.f32.mrf.mxu0
  %v660 = vadd.f32 0.0, %v659
  %v661 = vpop.f32.mrf.mxu0
  %662 = vmatprep.mubr.f32.mxu0 0.0
  %663 = vmatmul.mubr.f32.gmra.mxu0 %v287
  %v664 = vpop.f32.mrf.mxu0
  %v665 = vadd.f32 0.0, %v664
  %v666 = vpop.f32.mrf.mxu0
  %667 = vmatprep.mubr.f32.mxu0 0.0
  %668 = vmatmul.mubr.f32.gmra.mxu0 %v290
  %v669 = vpop.f32.mrf.mxu0
  %v670 = vadd.f32 0.0, %v669
  %v671 = vpop.f32.mrf.mxu0
  %672 = vmatprep.mubr.f32.mxu0 0.0
  %673 = vmatmul.mubr.f32.gmra.mxu0 %v293
  %v674 = vpop.f32.mrf.mxu0
  %v675 = vadd.f32 0.0, %v674
  %v676 = vpop.f32.mrf.mxu0
  %677 = vmatprep.mubr.f32.mxu0 0.0
  %678 = vmatmul.mubr.f32.gmra.mxu0 %v296
  %v679 = vpop.f32.mrf.mxu0
  %v680 = vadd.f32 0.0, %v679
  %v681 = vpop.f32.mrf.mxu0
  %682 = vmatprep.mubr.f32.mxu0 0.0
  %683 = vmatmul.mubr.f32.gmra.mxu0 %v299
  %v684 = vpop.f32.mrf.mxu0
  %v685 = vadd.f32 0.0, %v684
  %v686 = vpop.f32.mrf.mxu0
  %687 = vmatprep.mubr.f32.mxu0 0.0
  %688 = vmatmul.mubr.f32.gmra.mxu0 %v302
  %v689 = vpop.f32.mrf.mxu0
  %v690 = vadd.f32 0.0, %v689
  %v691 = vpop.f32.mrf.mxu0
  %692 = vmatprep.mubr.f32.mxu0 0.0
  %693 = vmatmul.mubr.f32.gmra.mxu0 %v305
  %v694 = vpop.f32.mrf.mxu0
  %v695 = vadd.f32 0.0, %v694
  %v696 = vpop.f32.mrf.mxu0
  %697 = vmatprep.mubr.f32.mxu0 0.0
  %698 = vmatmul.mubr.f32.gmra.mxu0 %v308
  %v699 = vpop.f32.mrf.mxu0
  %v700 = vadd.f32 0.0, %v699
  %v701 = vpop.f32.mrf.mxu0
  %702 = vmatprep.mubr.f32.mxu0 0.0
  %703 = vmatmul.mubr.f32.gmra.mxu0 %v311
  %v704 = vpop.f32.mrf.mxu0
  %v705 = vadd.f32 0.0, %v704
  %v706 = vpop.f32.mrf.mxu0
  %707 = vmatprep.mubr.f32.mxu0 0.0
  %708 = vmatmul.mubr.f32.gmra.mxu0 %v314
  %v709 = vpop.f32.mrf.mxu0
  %v710 = vadd.f32 0.0, %v709
  %v711 = vpop.f32.mrf.mxu0
  %712 = vmatprep.mubr.f32.mxu0 0.0
  %713 = vmatmul.mubr.f32.gmra.mxu0 %v317
  %v714 = vpop.f32.mrf.mxu0
  %v715 = vadd.f32 0.0, %v714
  %v716 = vpop.f32.mrf.mxu0
  %717 = vmatprep.mubr.f32.mxu0 0.0
  %718 = vmatmul.mubr.f32.gmra.mxu0 %v320
  %v719 = vpop.f32.mrf.mxu0
  %v720 = vadd.f32 0.0, %v719
  %v721 = vpop.f32.mrf.mxu0
  %722 = vmatprep.mubr.f32.mxu0 0.0
  %723 = vmatmul.mubr.f32.gmra.mxu0 %v323
  %v724 = vpop.f32.mrf.mxu0
  %v725 = vadd.f32 0.0, %v724
  %v726 = vpop.f32.mrf.mxu0
  %727 = vmatprep.mubr.f32.mxu0 0.0
  %728 = vmatmul.mubr.f32.gmra.mxu0 %v326
  %v729 = vpop.f32.mrf.mxu0
  %v730 = vadd.f32 0.0, %v729
  %v731 = vpop.f32.mrf.mxu0
  %732 = vmatprep.mubr.f32.mxu0 0.0
  %733 = vmatmul.mubr.f32.gmra.mxu0 %v329
  %v734 = vpop.f32.mrf.mxu0
  %v735 = vadd.f32 0.0, %v734
  %v736 = vpop.f32.mrf.mxu0
  %737 = vmatprep.mubr.f32.mxu0 0.0
  %738 = vmatmul.mubr.f32.gmra.mxu0 %v332
  %v739 = vpop.f32.mrf.mxu0
  %v740 = vadd.f32 0.0, %v739
  %v741 = vpop.f32.mrf.mxu0
  %742 = vmatprep.mubr.f32.mxu0 0.0
  %743 = vmatmul.mubr.f32.gmra.mxu0 %v335
  %v744 = vpop.f32.mrf.mxu0
  %v745 = vadd.f32 0.0, %v744
  %v746 = vpop.f32.mrf.mxu0
  %747 = vmatprep.mubr.f32.mxu0 0.0
  %748 = vmatmul.mubr.f32.gmra.mxu0 %v338
  %v749 = vpop.f32.mrf.mxu0
  %v750 = vadd.f32 0.0, %v749
  %v751 = vpop.f32.mrf.mxu0
  %752 = vmatprep.mubr.f32.mxu0 0.0
  %753 = vmatmul.mubr.f32.gmra.mxu0 %v341
  %v754 = vpop.f32.mrf.mxu0
  %v755 = vadd.f32 0.0, %v754
  %v756 = vpop.f32.mrf.mxu0
  %757 = vmatprep.mubr.f32.mxu0 0.0
  %758 = vmatmul.mubr.f32.gmra.mxu0 %v344
  %v759 = vpop.f32.mrf.mxu0
  %v760 = vadd.f32 0.0, %v759
  %v761 = vpop.f32.mrf.mxu0
  %762 = vmatprep.mubr.f32.mxu0 0.0
  %763 = vmatmul.mubr.f32.gmra.mxu0 %v347
  %v764 = vpop.f32.mrf.mxu0
  %v765 = vadd.f32 0.0, %v764
  %v766 = vpop.f32.mrf.mxu0
  %767 = vmatprep.mubr.f32.mxu0 0.0
  %768 = vmatmul.mubr.f32.gmra.mxu0 %v350
  %v769 = vpop.f32.mrf.mxu0
  %v770 = vadd.f32 0.0, %v769
  %v771 = vpop.f32.mrf.mxu0
  %772 = vmatprep.mubr.f32.mxu0 0.0
  %773 = vmatmul.mubr.f32.gmra.mxu0 %v353
  %v774 = vpop.f32.mrf.mxu0
  %v775 = vadd.f32 0.0, %v774
  %v776 = vpop.f32.mrf.mxu0
  %777 = vmatprep.mubr.f32.mxu0 0.0
  %778 = vmatmul.mubr.f32.gmra.mxu0 %v356
  %v779 = vpop.f32.mrf.mxu0
  %v780 = vadd.f32 0.0, %v779
  %v781 = vpop.f32.mrf.mxu0
  %782 = vmatprep.mubr.f32.mxu0 0.0
  %783 = vmatmul.mubr.f32.gmra.mxu0 %v359
  %v784 = vpop.f32.mrf.mxu0
  %v785 = vadd.f32 0.0, %v784
  %v786 = vpop.f32.mrf.mxu0
  %787 = vmatprep.mubr.f32.mxu0 0.0
  %788 = vmatmul.mubr.f32.gmra.mxu0 %v362
  %v789 = vpop.f32.mrf.mxu0
  %v790 = vadd.f32 0.0, %v789
  %v791 = vpop.f32.mrf.mxu0
  %792 = vmatprep.mubr.f32.mxu0 0.0
  %793 = vmatmul.mubr.f32.gmra.mxu0 %v365
  %v794 = vpop.f32.mrf.mxu0
  %v795 = vadd.f32 0.0, %v794
  %v796 = vpop.f32.mrf.mxu0
  %797 = vmatprep.mubr.f32.mxu0 0.0
  %798 = vmatmul.mubr.f32.gmra.mxu0 %v368
  %v799 = vpop.f32.mrf.mxu0
  %v800 = vadd.f32 0.0, %v799
  %v801 = vpop.f32.mrf.mxu0
  %802 = vmatprep.mubr.f32.mxu0 0.0
  %803 = vmatmul.mubr.f32.gmra.mxu0 %v371
  %v804 = vpop.f32.mrf.mxu0
  %v805 = vadd.f32 0.0, %v804
  %v806 = vpop.f32.mrf.mxu0
  %807 = vmatprep.mubr.f32.mxu0 0.0
  %808 = vmatmul.mubr.f32.gmra.mxu0 %v374
  %v809 = vpop.f32.mrf.mxu0
  %v810 = vadd.f32 0.0, %v809
  %v811 = vpop.f32.mrf.mxu0
  %812 = vmatprep.mubr.f32.mxu0 0.0
  %813 = vmatmul.mubr.f32.gmra.mxu0 %v377
  %v814 = vpop.f32.mrf.mxu0
  %v815 = vadd.f32 0.0, %v814
  %v816 = vpop.f32.mrf.mxu0
  %817 = vmatprep.mubr.f32.mxu0 0.0
  %818 = vmatmul.mubr.f32.gmra.mxu0 %v380
  %v819 = vpop.f32.mrf.mxu0
  %v820 = vadd.f32 0.0, %v819
  %v821 = vpop.f32.mrf.mxu0
  %822 = vmatprep.mubr.f32.mxu0 0.0
  %823 = vmatmul.mubr.f32.gmra.mxu0 %v383
  %v824 = vpop.f32.mrf.mxu0
  %v825 = vadd.f32 0.0, %v824
  %v826 = vpop.f32.mrf.mxu0
  %827 = vmatprep.mubr.f32.mxu0 0.0
  %828 = vmatmul.mubr.f32.gmra.mxu0 %v386
  %v829 = vpop.f32.mrf.mxu0
  %v830 = vadd.f32 0.0, %v829
  %v831 = vpop.f32.mrf.mxu0
  %832 = vmatprep.mubr.f32.mxu0 0.0
  %833 = vmatmul.mubr.f32.gmra.mxu0 %v389
  %v834 = vpop.f32.mrf.mxu0
  %v835 = vadd.f32 0.0, %v834
  %v836 = vpop.f32.mrf.mxu0
  %837 = vmatprep.mubr.f32.mxu0 0.0
  %838 = vmatmul.mubr.f32.gmra.mxu0 %v392
  %v839 = vpop.f32.mrf.mxu0
  %v840 = vadd.f32 0.0, %v839
  %v841 = vpop.f32.mrf.mxu0
  %842 = vmatprep.mubr.f32.mxu0 0.0
  %843 = vmatmul.mubr.f32.gmra.mxu0 %v395
  %v844 = vpop.f32.mrf.mxu0
  %v845 = vadd.f32 0.0, %v844
  %v846 = vpop.f32.mrf.mxu0
  %847 = vmatprep.mubr.f32.mxu0 0.0
  %848 = vmatmul.mubr.f32.gmra.mxu0 %v398
  %v849 = vpop.f32.mrf.mxu0
  %v850 = vadd.f32 0.0, %v849
  %v851 = vpop.f32.mrf.mxu0
  %852 = vmatprep.mubr.f32.mxu0 0.0
  %853 = vmatmul.mubr.f32.gmra.mxu0 %v401
  %v854 = vpop.f32.mrf.mxu0
  %v855 = vadd.f32 0.0, %v854
  %v856 = vpop.f32.mrf.mxu0
  %857 = vmatprep.mubr.f32.mxu0 0.0
  %858 = vmatmul.mubr.f32.gmra.mxu0 %v404
  %v859 = vpop.f32.mrf.mxu0
  %v860 = vadd.f32 0.0, %v859
  %v861 = vpop.f32.mrf.mxu0
  %862 = vmatprep.mubr.f32.mxu0 0.0
  %863 = vmatmul.mubr.f32.gmra.mxu0 %v407
  %v864 = vpop.f32.mrf.mxu0
  %v865 = vadd.f32 0.0, %v864
  %v866 = vpop.f32.mrf.mxu0
  %867 = vmatprep.mubr.f32.mxu0 0.0
  %868 = vmatmul.mubr.f32.gmra.mxu0 %v410
  %v869 = vpop.f32.mrf.mxu0
  %v870 = vadd.f32 0.0, %v869
  %v871 = vpop.f32.mrf.mxu0
  %872 = vmatprep.mubr.f32.mxu0 0.0
  %873 = vmatmul.mubr.f32.gmra.mxu0 %v413
  %v874 = vpop.f32.mrf.mxu0
  %v875 = vadd.f32 0.0, %v874
  %v876 = vpop.f32.mrf.mxu0
  %877 = vmatprep.mubr.f32.mxu0 0.0
  %878 = vmatmul.mubr.f32.gmra.mxu0 %v416
  %v879 = vpop.f32.mrf.mxu0
  %v880 = vadd.f32 0.0, %v879
  %v881 = vpop.f32.mrf.mxu0
  %882 = vmatprep.mubr.f32.mxu0 0.0
  %883 = vmatmul.mubr.f32.gmra.mxu0 %v419
  %v884 = vpop.f32.mrf.mxu0
  %v885 = vadd.f32 0.0, %v884
  %v886 = vpop.f32.mrf.mxu0
  %887 = vmatprep.mubr.f32.mxu0 0.0
  %888 = vmatmul.mubr.f32.gmra.mxu0 %v422
  %v889 = vpop.f32.mrf.mxu0
  %v890 = vadd.f32 0.0, %v889
  %v891 = vpop.f32.mrf.mxu0
  %892 = vmatprep.mubr.f32.mxu0 0.0
  %893 = vmatmul.mubr.f32.gmra.mxu0 %v425
  %v894 = vpop.f32.mrf.mxu0
  %v895 = vadd.f32 0.0, %v894
  %v896 = vpop.f32.mrf.mxu0
  %897 = vmatprep.mubr.f32.mxu0 0.0
  %898 = vmatmul.mubr.f32.gmra.mxu0 %v428
  %v899 = vpop.f32.mrf.mxu0
  %v900 = vadd.f32 0.0, %v899
  %v901 = vpop.f32.mrf.mxu0
  %902 = vmatprep.mubr.f32.mxu0 0.0
  %903 = vmatmul.mubr.f32.gmra.mxu0 %v431
  %v904 = vpop.f32.mrf.mxu0
  %v905 = vadd.f32 0.0, %v904
  %v906 = vpop.f32.mrf.mxu0
  %907 = vmatprep.mubr.f32.mxu0 0.0
  %908 = vmatmul.mubr.f32.gmra.mxu0 %v434
  %v909 = vpop.f32.mrf.mxu0
  %v910 = vadd.f32 0.0, %v909
  %v911 = vpop.f32.mrf.mxu0
  %912 = vmatprep.mubr.f32.mxu0 0.0
  %913 = vmatmul.mubr.f32.gmra.mxu0 %v437
  %v914 = vpop.f32.mrf.mxu0
  %v915 = vadd.f32 0.0, %v914
  %v916 = vpop.f32.mrf.mxu0
  %917 = vmatprep.mubr.f32.mxu0 0.0
  %918 = vmatmul.mubr.f32.gmra.mxu0 %v440
  %v919 = vpop.f32.mrf.mxu0
  %v920 = vadd.f32 0.0, %v919
  %v921 = vpop.f32.mrf.mxu0
  %922 = vmatprep.mubr.f32.mxu0 0.0
  %923 = vmatmul.mubr.f32.gmra.mxu0 %v443
  %v924 = vpop.f32.mrf.mxu0
  %v925 = vadd.f32 0.0, %v924
  %v926 = vpop.f32.mrf.mxu0
  %927 = vmatprep.mubr.f32.mxu0 0.0
  %928 = vmatmul.mubr.f32.gmra.mxu0 %v446
  %v929 = vpop.f32.mrf.mxu0
  %v930 = vadd.f32 0.0, %v929
  %v931 = vpop.f32.mrf.mxu0
  %932 = vmatprep.mubr.f32.mxu0 0.0
  %933 = vmatmul.mubr.f32.gmra.mxu0 %v449
  %v934 = vpop.f32.mrf.mxu0
  %v935 = vadd.f32 0.0, %v934
  %v936 = vpop.f32.mrf.mxu0
  %937 = vmatprep.mubr.f32.mxu0 0.0
  %938 = vmatmul.mubr.f32.gmra.mxu0 %v452
  %v939 = vpop.f32.mrf.mxu0
  %v940 = vadd.f32 0.0, %v939
  %v941 = vpop.f32.mrf.mxu0
  %942 = vmatprep.mubr.f32.mxu0 0.0
  %943 = vmatmul.mubr.f32.gmra.mxu0 %v455
  %v944 = vpop.f32.mrf.mxu0
  %v945 = vadd.f32 0.0, %v944
  %v946 = vpop.f32.mrf.mxu0
  %947 = vmatprep.mubr.f32.mxu0 0.0
  %948 = vmatmul.mubr.f32.gmra.mxu0 %v458
  %v949 = vpop.f32.mrf.mxu0
  %v950 = vadd.f32 0.0, %v949
  %v951 = vpop.f32.mrf.mxu0
  %952 = vmatprep.mubr.f32.mxu0 0.0
  %953 = vmatmul.mubr.f32.gmra.mxu0 %v461
  %v954 = vpop.f32.mrf.mxu0
  %v955 = vadd.f32 0.0, %v954
  %v956 = vpop.f32.mrf.mxu0
  %957 = vmatprep.mubr.f32.mxu0 0.0
  %958 = vmatmul.mubr.f32.gmra.mxu0 %v464
  %v959 = vpop.f32.mrf.mxu0
  %v960 = vadd.f32 0.0, %v959
  %v961 = vpop.f32.mrf.mxu0
  %962 = vmatprep.mubr.f32.mxu0 0.0
  %963 = vmatmul.mubr.f32.gmra.mxu0 %v467
  %v964 = vpop.f32.mrf.mxu0
  %v965 = vadd.f32 0.0, %v964
  %v966 = vpop.f32.mrf.mxu0
  %967 = vmatprep.mubr.f32.mxu0 0.0
  %968 = vmatmul.mubr.f32.gmra.mxu0 %v470
  %v969 = vpop.f32.mrf.mxu0
  %v970 = vadd.f32 0.0, %v969
  %v971 = vpop.f32.mrf.mxu0
  %972 = vmatprep.mubr.f32.mxu0 0.0
  %973 = vmatmul.mubr.f32.gmra.mxu0 %v473
  %v974 = vpop.f32.mrf.mxu0
  %v975 = vadd.f32 0.0, %v974
  %v976 = vpop.f32.mrf.mxu0
  %977 = vmatprep.mubr.f32.mxu0 0.0
  %978 = vmatmul.mubr.f32.gmra.mxu0 %v476
  %v979 = vpop.f32.mrf.mxu0
  %v980 = vadd.f32 0.0, %v979
  %v981 = vpop.f32.mrf.mxu0
  %982 = vmatprep.mubr.f32.mxu0 0.0
  %983 = vmatmul.mubr.f32.gmra.mxu0 %v479
  %v984 = vpop.f32.mrf.mxu0
  %v985 = vadd.f32 0.0, %v984
  %v986 = vpop.f32.mrf.mxu0
  %987 = vmatprep.mubr.f32.mxu0 0.0
  %988 = vmatmul.mubr.f32.gmra.mxu0 %v482
  %v989 = vpop.f32.mrf.mxu0
  %v990 = vadd.f32 0.0, %v989
  %v991 = vpop.f32.mrf.mxu0
  %992 = vmatprep.mubr.f32.mxu0 0.0
  %993 = vmatmul.mubr.f32.gmra.mxu0 %v485
  %v994 = vpop.f32.mrf.mxu0
  %v995 = vadd.f32 0.0, %v994
  %v996 = vpop.f32.mrf.mxu0
  %997 = vmatprep.mubr.f32.mxu0 0.0
  %998 = vmatmul.mubr.f32.gmra.mxu0 %v488
  %v999 = vpop.f32.mrf.mxu0
  %v1000 = vadd.f32 0.0, %v999
  %v1001 = vpop.f32.mrf.mxu0
  %1002 = vmatprep.mubr.f32.mxu0 0.0
  %1003 = vmatmul.mubr.f32.gmra.mxu0 %v491
  %v1004 = vpop.f32.mrf.mxu0
  %v1005 = vadd.f32 0.0, %v1004
  %v1006 = vpop.f32.mrf.mxu0
  %1007 = vmatprep.mubr.f32.mxu0 0.0
  %1008 = vmatmul.mubr.f32.gmra.mxu0 %v494
  %v1009 = vpop.f32.mrf.mxu0
  %v1010 = vadd.f32 0.0, %v1009
  %v1011 = vpop.f32.mrf.mxu0
  %1012 = vmatprep.mubr.f32.mxu0 0.0
  %1013 = vmatmul.mubr.f32.gmra.mxu0 %v497
  %v1014 = vpop.f32.mrf.mxu0
  %v1015 = vadd.f32 0.0, %v1014
  %v1016 = vpop.f32.mrf.mxu0
  %1017 = vmatprep.mubr.f32.mxu0 0.0
  %1018 = vmatmul.mubr.f32.gmra.mxu0 %v500
  %v1019 = vpop.f32.mrf.mxu0
  %v1020 = vadd.f32 0.0, %v1019
  %v1021 = vpop.f32.mrf.mxu0
  %1022 = vmatprep.mubr.f32.mxu0 0.0
  %1023 = vmatmul.mubr.f32.gmra.mxu0 %v503
  %v1024 = vpop.f32.mrf.mxu0
  %v1025 = vadd.f32 0.0, %v1024
  %v1026 = vpop.f32.mrf.mxu0
  %1027 = vmatprep.mubr.f32.mxu0 0.0
  %1028 = vmatmul.mubr.f32.gmra.mxu0 %v506
  %v1029 = vpop.f32.mrf.mxu0
  %v1030 = vadd.f32 0.0, %v1029
  %v1031 = vpop.f32.mrf.mxu0
  %1032 = vmatprep.mubr.f32.mxu0 0.0
  %1033 = vmatmul.mubr.f32.gmra.mxu0 %v509
  %v1034 = vpop.f32.mrf.mxu0
  %v1035 = vadd.f32 0.0, %v1034
  %v1036 = vpop.f32.mrf.mxu0
  %1037 = vmatprep.mubr.f32.mxu0 0.0
  %1038 = vmatmul.mubr.f32.gmra.mxu0 %v512
  %v1039 = vpop.f32.mrf.mxu0
  %v1040 = vadd.f32 0.0, %v1039
  %v1041 = vpop.f32.mrf.mxu0
  %1042 = vmatprep.mubr.f32.mxu0 0.0
  %1043 = vmatmul.mubr.f32.gmra.mxu0 %v515
  %v1044 = vpop.f32.mrf.mxu0
  %v1045 = vadd.f32 0.0, %v1044
  %v1046 = vpop.f32.mrf.mxu0
  %1047 = vmatprep.mubr.f32.mxu0 0.0
  %1048 = vmatmul.mubr.f32.gmra.mxu0 %v518
  %v1049 = vpop.f32.mrf.mxu0
  %v1050 = vadd.f32 0.0, %v1049
  %v1051 = vpop.f32.mrf.mxu0
  %1052 = vmatprep.mubr.f32.mxu0 0.0
  %1053 = vmatmul.mubr.f32.gmra.mxu0 %v521
  %v1054 = vpop.f32.mrf.mxu0
  %v1055 = vadd.f32 0.0, %v1054
  %v1056 = vpop.f32.mrf.mxu0
  %1057 = vmatprep.mubr.f32.mxu0 0.0
  %1058 = vmatmul.mubr.f32.gmra.mxu0 %v524
  %v1059 = vpop.f32.mrf.mxu0
  %v1060 = vadd.f32 0.0, %v1059
  %v1061 = vpop.f32.mrf.mxu0
  %1062 = vmatprep.mubr.f32.mxu0 0.0
  %1063 = vmatmul.mubr.f32.gmra.mxu0 %v527
  %v1064 = vpop.f32.mrf.mxu0
  %v1065 = vadd.f32 0.0, %v1064
  %v1066 = vpop.f32.mrf.mxu0
  %1067 = vmatprep.mubr.f32.mxu0 0.0
  %1068 = vmatmul.mubr.f32.gmra.mxu0 %v530
  %v1069 = vpop.f32.mrf.mxu0
  %v1070 = vadd.f32 0.0, %v1069
  %v1071 = vpop.f32.mrf.mxu0
  %1072 = vmatprep.mubr.f32.mxu0 0.0
  %1073 = vmatmul.mubr.f32.gmra.mxu0 %v533
  %v1074 = vpop.f32.mrf.mxu0
  %v1075 = vadd.f32 0.0, %v1074
  %v1076 = vpop.f32.mrf.mxu0
  %1077 = vmatprep.mubr.f32.mxu0 0.0
  %1078 = vmatmul.mubr.f32.gmra.mxu0 %v536
  %v1079 = vpop.f32.mrf.mxu0
  %v1080 = vadd.f32 0.0, %v1079
  %v1081 = vpop.f32.mrf.mxu0
  %1082 = vdwg.mxu0
  %v1179 = vunpack.c.l.b16 %v48
  %v1180 = vunpack.c.l.b16 %v49
  %v1181 = vunpack.c.l.b16 %v50
  %v1182 = vunpack.c.l.b16 %v51
  %v1183 = vunpack.c.l.b16 %v52
  %v1184 = vunpack.c.l.b16 %v53
  %v1185 = vunpack.c.l.b16 %v54
  %v1186 = vunpack.c.l.b16 %v55
  %v1187 = vunpack.c.l.b16 %v56
  %v1188 = vunpack.c.l.b16 %v57
  %v1189 = vunpack.c.l.b16 %v58
  %v1190 = vunpack.c.l.b16 %v59
  %v1191 = vunpack.c.l.b16 %v60
  %v1192 = vunpack.c.l.b16 %v61
  %v1193 = vunpack.c.l.b16 %v62
  %v1194 = vunpack.c.l.b16 %v63
  %v1195 = vunpack.c.l.b16 %v64
  %v1196 = vunpack.c.l.b16 %v65
  %v1197 = vunpack.c.l.b16 %v66
  %v1198 = vunpack.c.l.b16 %v67
  %v1199 = vunpack.c.l.b16 %v68
  %v1200 = vunpack.c.l.b16 %v69
  %v1201 = vunpack.c.l.b16 %v70
  %v1202 = vunpack.c.l.b16 %v71
  %v1203 = vunpack.c.l.b16 %v72
  %v1204 = vunpack.c.l.b16 %v73
  %v1205 = vunpack.c.l.b16 %v74
  %v1206 = vunpack.c.l.b16 %v75
  %v1207 = vunpack.c.l.b16 %v76
  %v1208 = vunpack.c.l.b16 %v77
  %v1209 = vunpack.c.l.b16 %v78
  %v1210 = vunpack.c.l.b16 %v79
  %v1211 = vunpack.c.l.b16 %v80
  %v1212 = vunpack.c.l.b16 %v81
  %v1213 = vunpack.c.l.b16 %v82
  %v1214 = vunpack.c.l.b16 %v83
  %v1215 = vunpack.c.l.b16 %v84
  %v1216 = vunpack.c.l.b16 %v85
  %v1217 = vunpack.c.l.b16 %v86
  %v1218 = vunpack.c.l.b16 %v87
  %v1219 = vunpack.c.l.b16 %v88
  %v1220 = vunpack.c.l.b16 %v89
  %v1221 = vunpack.c.l.b16 %v90
  %v1222 = vunpack.c.l.b16 %v91
  %v1223 = vunpack.c.l.b16 %v92
  %v1224 = vunpack.c.l.b16 %v93
  %v1225 = vunpack.c.l.b16 %v94
  %v1226 = vunpack.c.l.b16 %v95
  %v1227 = vunpack.c.l.b16 %v96
  %v1228 = vunpack.c.l.b16 %v97
  %v1229 = vunpack.c.l.b16 %v98
  %v1230 = vunpack.c.l.b16 %v99
  %v1231 = vunpack.c.l.b16 %v100
  %v1232 = vunpack.c.l.b16 %v101
  %v1233 = vunpack.c.l.b16 %v102
  %v1234 = vunpack.c.l.b16 %v103
  %v1235 = vunpack.c.l.b16 %v104
  %v1236 = vunpack.c.l.b16 %v105
  %v1237 = vunpack.c.l.b16 %v106
  %v1238 = vunpack.c.l.b16 %v107
  %v1239 = vunpack.c.l.b16 %v108
  %v1240 = vunpack.c.l.b16 %v109
  %v1241 = vunpack.c.l.b16 %v110
  %v1242 = vunpack.c.l.b16 %v111
  %v1243 = vunpack.c.l.b16 %v112
  %v1244 = vunpack.c.l.b16 %v113
  %v1245 = vunpack.c.l.b16 %v114
  %v1246 = vunpack.c.l.b16 %v115
  %v1247 = vunpack.c.l.b16 %v116
  %v1248 = vunpack.c.l.b16 %v117
  %v1249 = vunpack.c.l.b16 %v118
  %v1250 = vunpack.c.l.b16 %v119
  %v1251 = vunpack.c.l.b16 %v120
  %v1252 = vunpack.c.l.b16 %v121
  %v1253 = vunpack.c.l.b16 %v122
  %v1254 = vunpack.c.l.b16 %v123
  %v1255 = vunpack.c.l.b16 %v124
  %v1256 = vunpack.c.l.b16 %v125
  %v1257 = vunpack.c.l.b16 %v126
  %v1258 = vunpack.c.l.b16 %v127
  %v1259 = vunpack.c.l.b16 %v128
  %v1260 = vunpack.c.l.b16 %v129
  %v1261 = vunpack.c.l.b16 %v130
  %v1262 = vunpack.c.l.b16 %v131
  %v1263 = vunpack.c.l.b16 %v132
  %v1264 = vunpack.c.l.b16 %v133
  %v1265 = vunpack.c.l.b16 %v134
  %v1266 = vunpack.c.l.b16 %v135
  %v1267 = vunpack.c.l.b16 %v136
  %v1268 = vunpack.c.l.b16 %v137
  %v1269 = vunpack.c.l.b16 %v138
  %v1270 = vunpack.c.l.b16 %v139
  %v1271 = vunpack.c.l.b16 %v140
  %v1272 = vunpack.c.l.b16 %v141
  %v1273 = vunpack.c.l.b16 %v142
  %v1274 = vunpack.c.l.b16 %v143
  %v1275 = vpack.c.b16 %v1180, %v1179
  %v1276 = vpack.c.b16 %v1182, %v1181
  %v1277 = vpack.c.b16 %v1184, %v1183
  %v1278 = vpack.c.b16 %v1186, %v1185
  %v1279 = vpack.c.b16 %v1188, %v1187
  %v1280 = vpack.c.b16 %v1190, %v1189
  %v1281 = vpack.c.b16 %v1192, %v1191
  %v1282 = vpack.c.b16 %v1194, %v1193
  %v1283 = vpack.c.b16 %v1196, %v1195
  %v1284 = vpack.c.b16 %v1198, %v1197
  %v1285 = vpack.c.b16 %v1200, %v1199
  %v1286 = vpack.c.b16 %v1202, %v1201
  %v1287 = vpack.c.b16 %v1204, %v1203
  %v1288 = vpack.c.b16 %v1206, %v1205
  %v1289 = vpack.c.b16 %v1208, %v1207
  %v1290 = vpack.c.b16 %v1210, %v1209
  %v1291 = vpack.c.b16 %v1212, %v1211
  %v1292 = vpack.c.b16 %v1214, %v1213
  %v1293 = vpack.c.b16 %v1216, %v1215
  %v1294 = vpack.c.b16 %v1218, %v1217
  %v1295 = vpack.c.b16 %v1220, %v1219
  %v1296 = vpack.c.b16 %v1222, %v1221
  %v1297 = vpack.c.b16 %v1224, %v1223
  %v1298 = vpack.c.b16 %v1226, %v1225
  %v1299 = vpack.c.b16 %v1228, %v1227
  %v1300 = vpack.c.b16 %v1230, %v1229
  %v1301 = vpack.c.b16 %v1232, %v1231
  %v1302 = vpack.c.b16 %v1234, %v1233
  %v1303 = vpack.c.b16 %v1236, %v1235
  %v1304 = vpack.c.b16 %v1238, %v1237
  %v1305 = vpack.c.b16 %v1240, %v1239
  %v1306 = vpack.c.b16 %v1242, %v1241
  %v1307 = vpack.c.b16 %v1244, %v1243
  %v1308 = vpack.c.b16 %v1246, %v1245
  %v1309 = vpack.c.b16 %v1248, %v1247
  %v1310 = vpack.c.b16 %v1250, %v1249
  %v1311 = vpack.c.b16 %v1252, %v1251
  %v1312 = vpack.c.b16 %v1254, %v1253
  %v1313 = vpack.c.b16 %v1256, %v1255
  %v1314 = vpack.c.b16 %v1258, %v1257
  %v1315 = vpack.c.b16 %v1260, %v1259
  %v1316 = vpack.c.b16 %v1262, %v1261
  %v1317 = vpack.c.b16 %v1264, %v1263
  %v1318 = vpack.c.b16 %v1266, %v1265
  %v1319 = vpack.c.b16 %v1268, %v1267
  %v1320 = vpack.c.b16 %v1270, %v1269
  %v1321 = vpack.c.b16 %v1272, %v1271
  %v1322 = vpack.c.b16 %v1274, %v1273
  %v1331 = vunpack.c.l.b16 %v144
  %v1332 = vunpack.c.l.b16 %v145
  %v1333 = vunpack.c.l.b16 %v146
  %v1334 = vunpack.c.l.b16 %v147
  %v1335 = vunpack.c.l.b16 %v148
  %v1336 = vunpack.c.l.b16 %v149
  %v1337 = vunpack.c.l.b16 %v150
  %v1338 = vunpack.c.l.b16 %v151
  %v1339 = vpack.c.b16 %v1332, %v1331
  %v1340 = vpack.c.b16 %v1334, %v1333
  %v1341 = vpack.c.b16 %v1336, %v1335
  %v1342 = vpack.c.b16 %v1338, %v1337
  %vm1347 = vcmask 523264
  %v1349 = vsel %vm1347, %v1275, 0
  %v1352 = vsel %vm1347, %v1276, 0
  %v1355 = vsel %vm1347, %v1277, 0
  %v1358 = vsel %vm1347, %v1278, 0
  %v1361 = vsel %vm1347, %v1279, 0
  %v1364 = vsel %vm1347, %v1280, 0
  %v1367 = vsel %vm1347, %v1281, 0
  %v1370 = vsel %vm1347, %v1282, 0
  %v1373 = vsel %vm1347, %v1283, 0
  %v1376 = vsel %vm1347, %v1284, 0
  %v1379 = vsel %vm1347, %v1285, 0
  %v1382 = vsel %vm1347, %v1286, 0
  %v1385 = vsel %vm1347, %v1287, 0
  %v1388 = vsel %vm1347, %v1288, 0
  %v1391 = vsel %vm1347, %v1289, 0
  %v1394 = vsel %vm1347, %v1290, 0
  %v1397 = vsel %vm1347, %v1291, 0
  %v1400 = vsel %vm1347, %v1292, 0
  %v1403 = vsel %vm1347, %v1293, 0
  %v1406 = vsel %vm1347, %v1294, 0
  %v1409 = vsel %vm1347, %v1295, 0
  %v1412 = vsel %vm1347, %v1296, 0
  %v1415 = vsel %vm1347, %v1297, 0
  %v1418 = vsel %vm1347, %v1298, 0
  %v1421 = vsel %vm1347, %v1299, 0
  %v1424 = vsel %vm1347, %v1300, 0
  %v1427 = vsel %vm1347, %v1301, 0
  %v1430 = vsel %vm1347, %v1302, 0
  %v1433 = vsel %vm1347, %v1303, 0
  %v1436 = vsel %vm1347, %v1304, 0
  %v1439 = vsel %vm1347, %v1305, 0
  %v1442 = vsel %vm1347, %v1306, 0
  %v1445 = vsel %vm1347, %v1307, 0
  %v1448 = vsel %vm1347, %v1308, 0
  %v1451 = vsel %vm1347, %v1309, 0
  %v1454 = vsel %vm1347, %v1310, 0
  %v1457 = vsel %vm1347, %v1311, 0
  %v1460 = vsel %vm1347, %v1312, 0
  %v1463 = vsel %vm1347, %v1313, 0
  %v1466 = vsel %vm1347, %v1314, 0
  %v1469 = vsel %vm1347, %v1315, 0
  %v1472 = vsel %vm1347, %v1316, 0
  %v1475 = vsel %vm1347, %v1317, 0
  %v1478 = vsel %vm1347, %v1318, 0
  %v1481 = vsel %vm1347, %v1319, 0
  %v1484 = vsel %vm1347, %v1320, 0
  %v1487 = vsel %vm1347, %v1321, 0
  %v1490 = vsel %vm1347, %v1322, 0
  %1492 = vmatprep.subr.bf16.mxu0 0
  %1493 = vmatpush1.bf16.msra.mxu0 0
  %1494 = vmatprep.subr.bf16.mxu0 0
  %1495 = vmatpush1.bf16.msra.mxu0 0
  %1496 = vmatprep.subr.bf16.mxu0 0
  %1497 = vmatpush1.bf16.msra.mxu0 0
  %1498 = vmatprep.subr.bf16.mxu0 0
  %1499 = vmatpush1.bf16.msra.mxu0 0
  %1500 = vmatprep.subr.bf16.mxu0 0
  %1501 = vmatpush1.bf16.msra.mxu0 %v1342
  %1502 = vmatprep.subr.bf16.mxu0 0
  %1503 = vmatpush1.bf16.msra.mxu0 %v1341
  %1504 = vmatprep.subr.bf16.mxu0 0
  %1505 = vmatpush1.bf16.msra.mxu0 %v1340
  %1506 = vmatprep.subr.bf16.mxu0 0
  %1507 = vmatpush1.bf16.msra.mxu0 %v1339
  %1508 = vmatprep.subr.bf16.mxu0 0
  %1509 = vmatpush2.bf16.msra.mxu0 0
  %1510 = vmatprep.subr.bf16.mxu0 0
  %1511 = vmatpush2.bf16.msra.mxu0 0
  %1512 = vmatprep.subr.bf16.mxu0 0
  %1513 = vmatpush2.bf16.msra.mxu0 0
  %1514 = vmatprep.subr.bf16.mxu0 0
  %1515 = vmatpush2.bf16.msra.mxu0 0
  %1516 = vmatprep.subr.bf16.mxu0 0
  %1517 = vmatpush2.bf16.msra.mxu0 0
  %1518 = vmatprep.subr.bf16.mxu0 0
  %1519 = vmatpush2.bf16.msra.mxu0 0
  %1520 = vmatprep.subr.bf16.mxu0 0
  %1521 = vmatpush2.bf16.msra.mxu0 0
  %1522 = vmatprep.subr.bf16.mxu0 0
  %1523 = vmatpush2.bf16.msra.mxu0 0
  %1524 = vmatprep.mubr.bf16.mxu0 0
  %1525 = vmatmul.mubr.bf16.gmra.mxu0 %v1349
  %v1526 = vpop.f32.mrf.mxu0
  %v1527 = vadd.f32 %v605, %v1526
  %v1528 = vpop.f32.mrf.mxu0
  %v1529 = vpop.f32.mrf.mxu0
  %v1530 = vadd.f32 %v610, %v1529
  %v1531 = vpop.f32.mrf.mxu0
  %1532 = vmatprep.mubr.bf16.mxu0 0
  %1533 = vmatmul.mubr.bf16.gmra.mxu0 %v1352
  %v1534 = vpop.f32.mrf.mxu0
  %v1535 = vadd.f32 %v615, %v1534
  %v1536 = vpop.f32.mrf.mxu0
  %v1537 = vpop.f32.mrf.mxu0
  %v1538 = vadd.f32 %v620, %v1537
  %v1539 = vpop.f32.mrf.mxu0
  %1540 = vmatprep.mubr.bf16.mxu0 0
  %1541 = vmatmul.mubr.bf16.gmra.mxu0 %v1355
  %v1542 = vpop.f32.mrf.mxu0
  %v1543 = vadd.f32 %v625, %v1542
  %v1544 = vpop.f32.mrf.mxu0
  %v1545 = vpop.f32.mrf.mxu0
  %v1546 = vadd.f32 %v630, %v1545
  %v1547 = vpop.f32.mrf.mxu0
  %1548 = vmatprep.mubr.bf16.mxu0 0
  %1549 = vmatmul.mubr.bf16.gmra.mxu0 %v1358
  %v1550 = vpop.f32.mrf.mxu0
  %v1551 = vadd.f32 %v635, %v1550
  %v1552 = vpop.f32.mrf.mxu0
  %v1553 = vpop.f32.mrf.mxu0
  %v1554 = vadd.f32 %v640, %v1553
  %v1555 = vpop.f32.mrf.mxu0
  %1556 = vmatprep.mubr.bf16.mxu0 0
  %1557 = vmatmul.mubr.bf16.gmra.mxu0 %v1361
  %v1558 = vpop.f32.mrf.mxu0
  %v1559 = vadd.f32 %v645, %v1558
  %v1560 = vpop.f32.mrf.mxu0
  %v1561 = vpop.f32.mrf.mxu0
  %v1562 = vadd.f32 %v650, %v1561
  %v1563 = vpop.f32.mrf.mxu0
  %1564 = vmatprep.mubr.bf16.mxu0 0
  %1565 = vmatmul.mubr.bf16.gmra.mxu0 %v1364
  %v1566 = vpop.f32.mrf.mxu0
  %v1567 = vadd.f32 %v655, %v1566
  %v1568 = vpop.f32.mrf.mxu0
  %v1569 = vpop.f32.mrf.mxu0
  %v1570 = vadd.f32 %v660, %v1569
  %v1571 = vpop.f32.mrf.mxu0
  %1572 = vmatprep.mubr.bf16.mxu0 0
  %1573 = vmatmul.mubr.bf16.gmra.mxu0 %v1367
  %v1574 = vpop.f32.mrf.mxu0
  %v1575 = vadd.f32 %v665, %v1574
  %v1576 = vpop.f32.mrf.mxu0
  %v1577 = vpop.f32.mrf.mxu0
  %v1578 = vadd.f32 %v670, %v1577
  %v1579 = vpop.f32.mrf.mxu0
  %1580 = vmatprep.mubr.bf16.mxu0 0
  %1581 = vmatmul.mubr.bf16.gmra.mxu0 %v1370
  %v1582 = vpop.f32.mrf.mxu0
  %v1583 = vadd.f32 %v675, %v1582
  %v1584 = vpop.f32.mrf.mxu0
  %v1585 = vpop.f32.mrf.mxu0
  %v1586 = vadd.f32 %v680, %v1585
  %v1587 = vpop.f32.mrf.mxu0
  %1588 = vmatprep.mubr.bf16.mxu0 0
  %1589 = vmatmul.mubr.bf16.gmra.mxu0 %v1373
  %v1590 = vpop.f32.mrf.mxu0
  %v1591 = vadd.f32 %v685, %v1590
  %v1592 = vpop.f32.mrf.mxu0
  %v1593 = vpop.f32.mrf.mxu0
  %v1594 = vadd.f32 %v690, %v1593
  %v1595 = vpop.f32.mrf.mxu0
  %1596 = vmatprep.mubr.bf16.mxu0 0
  %1597 = vmatmul.mubr.bf16.gmra.mxu0 %v1376
  %v1598 = vpop.f32.mrf.mxu0
  %v1599 = vadd.f32 %v695, %v1598
  %v1600 = vpop.f32.mrf.mxu0
  %v1601 = vpop.f32.mrf.mxu0
  %v1602 = vadd.f32 %v700, %v1601
  %v1603 = vpop.f32.mrf.mxu0
  %1604 = vmatprep.mubr.bf16.mxu0 0
  %1605 = vmatmul.mubr.bf16.gmra.mxu0 %v1379
  %v1606 = vpop.f32.mrf.mxu0
  %v1607 = vadd.f32 %v705, %v1606
  %v1608 = vpop.f32.mrf.mxu0
  %v1609 = vpop.f32.mrf.mxu0
  %v1610 = vadd.f32 %v710, %v1609
  %v1611 = vpop.f32.mrf.mxu0
  %1612 = vmatprep.mubr.bf16.mxu0 0
  %1613 = vmatmul.mubr.bf16.gmra.mxu0 %v1382
  %v1614 = vpop.f32.mrf.mxu0
  %v1615 = vadd.f32 %v715, %v1614
  %v1616 = vpop.f32.mrf.mxu0
  %v1617 = vpop.f32.mrf.mxu0
  %v1618 = vadd.f32 %v720, %v1617
  %v1619 = vpop.f32.mrf.mxu0
  %1620 = vmatprep.mubr.bf16.mxu0 0
  %1621 = vmatmul.mubr.bf16.gmra.mxu0 %v1385
  %v1622 = vpop.f32.mrf.mxu0
  %v1623 = vadd.f32 %v725, %v1622
  %v1624 = vpop.f32.mrf.mxu0
  %v1625 = vpop.f32.mrf.mxu0
  %v1626 = vadd.f32 %v730, %v1625
  %v1627 = vpop.f32.mrf.mxu0
  %1628 = vmatprep.mubr.bf16.mxu0 0
  %1629 = vmatmul.mubr.bf16.gmra.mxu0 %v1388
  %v1630 = vpop.f32.mrf.mxu0
  %v1631 = vadd.f32 %v735, %v1630
  %v1632 = vpop.f32.mrf.mxu0
  %v1633 = vpop.f32.mrf.mxu0
  %v1634 = vadd.f32 %v740, %v1633
  %v1635 = vpop.f32.mrf.mxu0
  %1636 = vmatprep.mubr.bf16.mxu0 0
  %1637 = vmatmul.mubr.bf16.gmra.mxu0 %v1391
  %v1638 = vpop.f32.mrf.mxu0
  %v1639 = vadd.f32 %v745, %v1638
  %v1640 = vpop.f32.mrf.mxu0
  %v1641 = vpop.f32.mrf.mxu0
  %v1642 = vadd.f32 %v750, %v1641
  %v1643 = vpop.f32.mrf.mxu0
  %1644 = vmatprep.mubr.bf16.mxu0 0
  %1645 = vmatmul.mubr.bf16.gmra.mxu0 %v1394
  %v1646 = vpop.f32.mrf.mxu0
  %v1647 = vadd.f32 %v755, %v1646
  %v1648 = vpop.f32.mrf.mxu0
  %v1649 = vpop.f32.mrf.mxu0
  %v1650 = vadd.f32 %v760, %v1649
  %v1651 = vpop.f32.mrf.mxu0
  %1652 = vmatprep.mubr.bf16.mxu0 0
  %1653 = vmatmul.mubr.bf16.gmra.mxu0 %v1397
  %v1654 = vpop.f32.mrf.mxu0
  %v1655 = vadd.f32 %v765, %v1654
  %v1656 = vpop.f32.mrf.mxu0
  %v1657 = vpop.f32.mrf.mxu0
  %v1658 = vadd.f32 %v770, %v1657
  %v1659 = vpop.f32.mrf.mxu0
  %1660 = vmatprep.mubr.bf16.mxu0 0
  %1661 = vmatmul.mubr.bf16.gmra.mxu0 %v1400
  %v1662 = vpop.f32.mrf.mxu0
  %v1663 = vadd.f32 %v775, %v1662
  %v1664 = vpop.f32.mrf.mxu0
  %v1665 = vpop.f32.mrf.mxu0
  %v1666 = vadd.f32 %v780, %v1665
  %v1667 = vpop.f32.mrf.mxu0
  %1668 = vmatprep.mubr.bf16.mxu0 0
  %1669 = vmatmul.mubr.bf16.gmra.mxu0 %v1403
  %v1670 = vpop.f32.mrf.mxu0
  %v1671 = vadd.f32 %v785, %v1670
  %v1672 = vpop.f32.mrf.mxu0
  %v1673 = vpop.f32.mrf.mxu0
  %v1674 = vadd.f32 %v790, %v1673
  %v1675 = vpop.f32.mrf.mxu0
  %1676 = vmatprep.mubr.bf16.mxu0 0
  %1677 = vmatmul.mubr.bf16.gmra.mxu0 %v1406
  %v1678 = vpop.f32.mrf.mxu0
  %v1679 = vadd.f32 %v795, %v1678
  %v1680 = vpop.f32.mrf.mxu0
  %v1681 = vpop.f32.mrf.mxu0
  %v1682 = vadd.f32 %v800, %v1681
  %v1683 = vpop.f32.mrf.mxu0
  %1684 = vmatprep.mubr.bf16.mxu0 0
  %1685 = vmatmul.mubr.bf16.gmra.mxu0 %v1409
  %v1686 = vpop.f32.mrf.mxu0
  %v1687 = vadd.f32 %v805, %v1686
  %v1688 = vpop.f32.mrf.mxu0
  %v1689 = vpop.f32.mrf.mxu0
  %v1690 = vadd.f32 %v810, %v1689
  %v1691 = vpop.f32.mrf.mxu0
  %1692 = vmatprep.mubr.bf16.mxu0 0
  %1693 = vmatmul.mubr.bf16.gmra.mxu0 %v1412
  %v1694 = vpop.f32.mrf.mxu0
  %v1695 = vadd.f32 %v815, %v1694
  %v1696 = vpop.f32.mrf.mxu0
  %v1697 = vpop.f32.mrf.mxu0
  %v1698 = vadd.f32 %v820, %v1697
  %v1699 = vpop.f32.mrf.mxu0
  %1700 = vmatprep.mubr.bf16.mxu0 0
  %1701 = vmatmul.mubr.bf16.gmra.mxu0 %v1415
  %v1702 = vpop.f32.mrf.mxu0
  %v1703 = vadd.f32 %v825, %v1702
  %v1704 = vpop.f32.mrf.mxu0
  %v1705 = vpop.f32.mrf.mxu0
  %v1706 = vadd.f32 %v830, %v1705
  %v1707 = vpop.f32.mrf.mxu0
  %1708 = vmatprep.mubr.bf16.mxu0 0
  %1709 = vmatmul.mubr.bf16.gmra.mxu0 %v1418
  %v1710 = vpop.f32.mrf.mxu0
  %v1711 = vadd.f32 %v835, %v1710
  %v1712 = vpop.f32.mrf.mxu0
  %v1713 = vpop.f32.mrf.mxu0
  %v1714 = vadd.f32 %v840, %v1713
  %v1715 = vpop.f32.mrf.mxu0
  %1716 = vmatprep.mubr.bf16.mxu0 0
  %1717 = vmatmul.mubr.bf16.gmra.mxu0 %v1421
  %v1718 = vpop.f32.mrf.mxu0
  %v1719 = vadd.f32 %v845, %v1718
  %v1720 = vpop.f32.mrf.mxu0
  %v1721 = vpop.f32.mrf.mxu0
  %v1722 = vadd.f32 %v850, %v1721
  %v1723 = vpop.f32.mrf.mxu0
  %1724 = vmatprep.mubr.bf16.mxu0 0
  %1725 = vmatmul.mubr.bf16.gmra.mxu0 %v1424
  %v1726 = vpop.f32.mrf.mxu0
  %v1727 = vadd.f32 %v855, %v1726
  %v1728 = vpop.f32.mrf.mxu0
  %v1729 = vpop.f32.mrf.mxu0
  %v1730 = vadd.f32 %v860, %v1729
  %v1731 = vpop.f32.mrf.mxu0
  %1732 = vmatprep.mubr.bf16.mxu0 0
  %1733 = vmatmul.mubr.bf16.gmra.mxu0 %v1427
  %v1734 = vpop.f32.mrf.mxu0
  %v1735 = vadd.f32 %v865, %v1734
  %v1736 = vpop.f32.mrf.mxu0
  %v1737 = vpop.f32.mrf.mxu0
  %v1738 = vadd.f32 %v870, %v1737
  %v1739 = vpop.f32.mrf.mxu0
  %1740 = vmatprep.mubr.bf16.mxu0 0
  %1741 = vmatmul.mubr.bf16.gmra.mxu0 %v1430
  %v1742 = vpop.f32.mrf.mxu0
  %v1743 = vadd.f32 %v875, %v1742
  %v1744 = vpop.f32.mrf.mxu0
  %v1745 = vpop.f32.mrf.mxu0
  %v1746 = vadd.f32 %v880, %v1745
  %v1747 = vpop.f32.mrf.mxu0
  %1748 = vmatprep.mubr.bf16.mxu0 0
  %1749 = vmatmul.mubr.bf16.gmra.mxu0 %v1433
  %v1750 = vpop.f32.mrf.mxu0
  %v1751 = vadd.f32 %v885, %v1750
  %v1752 = vpop.f32.mrf.mxu0
  %v1753 = vpop.f32.mrf.mxu0
  %v1754 = vadd.f32 %v890, %v1753
  %v1755 = vpop.f32.mrf.mxu0
  %1756 = vmatprep.mubr.bf16.mxu0 0
  %1757 = vmatmul.mubr.bf16.gmra.mxu0 %v1436
  %v1758 = vpop.f32.mrf.mxu0
  %v1759 = vadd.f32 %v895, %v1758
  %v1760 = vpop.f32.mrf.mxu0
  %v1761 = vpop.f32.mrf.mxu0
  %v1762 = vadd.f32 %v900, %v1761
  %v1763 = vpop.f32.mrf.mxu0
  %1764 = vmatprep.mubr.bf16.mxu0 0
  %1765 = vmatmul.mubr.bf16.gmra.mxu0 %v1439
  %v1766 = vpop.f32.mrf.mxu0
  %v1767 = vadd.f32 %v905, %v1766
  %v1768 = vpop.f32.mrf.mxu0
  %v1769 = vpop.f32.mrf.mxu0
  %v1770 = vadd.f32 %v910, %v1769
  %v1771 = vpop.f32.mrf.mxu0
  %1772 = vmatprep.mubr.bf16.mxu0 0
  %1773 = vmatmul.mubr.bf16.gmra.mxu0 %v1442
  %v1774 = vpop.f32.mrf.mxu0
  %v1775 = vadd.f32 %v915, %v1774
  %v1776 = vpop.f32.mrf.mxu0
  %v1777 = vpop.f32.mrf.mxu0
  %v1778 = vadd.f32 %v920, %v1777
  %v1779 = vpop.f32.mrf.mxu0
  %1780 = vmatprep.mubr.bf16.mxu0 0
  %1781 = vmatmul.mubr.bf16.gmra.mxu0 %v1445
  %v1782 = vpop.f32.mrf.mxu0
  %v1783 = vadd.f32 %v925, %v1782
  %v1784 = vpop.f32.mrf.mxu0
  %v1785 = vpop.f32.mrf.mxu0
  %v1786 = vadd.f32 %v930, %v1785
  %v1787 = vpop.f32.mrf.mxu0
  %1788 = vmatprep.mubr.bf16.mxu0 0
  %1789 = vmatmul.mubr.bf16.gmra.mxu0 %v1448
  %v1790 = vpop.f32.mrf.mxu0
  %v1791 = vadd.f32 %v935, %v1790
  %v1792 = vpop.f32.mrf.mxu0
  %v1793 = vpop.f32.mrf.mxu0
  %v1794 = vadd.f32 %v940, %v1793
  %v1795 = vpop.f32.mrf.mxu0
  %1796 = vmatprep.mubr.bf16.mxu0 0
  %1797 = vmatmul.mubr.bf16.gmra.mxu0 %v1451
  %v1798 = vpop.f32.mrf.mxu0
  %v1799 = vadd.f32 %v945, %v1798
  %v1800 = vpop.f32.mrf.mxu0
  %v1801 = vpop.f32.mrf.mxu0
  %v1802 = vadd.f32 %v950, %v1801
  %v1803 = vpop.f32.mrf.mxu0
  %1804 = vmatprep.mubr.bf16.mxu0 0
  %1805 = vmatmul.mubr.bf16.gmra.mxu0 %v1454
  %v1806 = vpop.f32.mrf.mxu0
  %v1807 = vadd.f32 %v955, %v1806
  %v1808 = vpop.f32.mrf.mxu0
  %v1809 = vpop.f32.mrf.mxu0
  %v1810 = vadd.f32 %v960, %v1809
  %v1811 = vpop.f32.mrf.mxu0
  %1812 = vmatprep.mubr.bf16.mxu0 0
  %1813 = vmatmul.mubr.bf16.gmra.mxu0 %v1457
  %v1814 = vpop.f32.mrf.mxu0
  %v1815 = vadd.f32 %v965, %v1814
  %v1816 = vpop.f32.mrf.mxu0
  %v1817 = vpop.f32.mrf.mxu0
  %v1818 = vadd.f32 %v970, %v1817
  %v1819 = vpop.f32.mrf.mxu0
  %1820 = vmatprep.mubr.bf16.mxu0 0
  %1821 = vmatmul.mubr.bf16.gmra.mxu0 %v1460
  %v1822 = vpop.f32.mrf.mxu0
  %v1823 = vadd.f32 %v975, %v1822
  %v1824 = vpop.f32.mrf.mxu0
  %v1825 = vpop.f32.mrf.mxu0
  %v1826 = vadd.f32 %v980, %v1825
  %v1827 = vpop.f32.mrf.mxu0
  %1828 = vmatprep.mubr.bf16.mxu0 0
  %1829 = vmatmul.mubr.bf16.gmra.mxu0 %v1463
  %v1830 = vpop.f32.mrf.mxu0
  %v1831 = vadd.f32 %v985, %v1830
  %v1832 = vpop.f32.mrf.mxu0
  %v1833 = vpop.f32.mrf.mxu0
  %v1834 = vadd.f32 %v990, %v1833
  %v1835 = vpop.f32.mrf.mxu0
  %1836 = vmatprep.mubr.bf16.mxu0 0
  %1837 = vmatmul.mubr.bf16.gmra.mxu0 %v1466
  %v1838 = vpop.f32.mrf.mxu0
  %v1839 = vadd.f32 %v995, %v1838
  %v1840 = vpop.f32.mrf.mxu0
  %v1841 = vpop.f32.mrf.mxu0
  %v1842 = vadd.f32 %v1000, %v1841
  %v1843 = vpop.f32.mrf.mxu0
  %1844 = vmatprep.mubr.bf16.mxu0 0
  %1845 = vmatmul.mubr.bf16.gmra.mxu0 %v1469
  %v1846 = vpop.f32.mrf.mxu0
  %v1847 = vadd.f32 %v1005, %v1846
  %v1848 = vpop.f32.mrf.mxu0
  %v1849 = vpop.f32.mrf.mxu0
  %v1850 = vadd.f32 %v1010, %v1849
  %v1851 = vpop.f32.mrf.mxu0
  %1852 = vmatprep.mubr.bf16.mxu0 0
  %1853 = vmatmul.mubr.bf16.gmra.mxu0 %v1472
  %v1854 = vpop.f32.mrf.mxu0
  %v1855 = vadd.f32 %v1015, %v1854
  %v1856 = vpop.f32.mrf.mxu0
  %v1857 = vpop.f32.mrf.mxu0
  %v1858 = vadd.f32 %v1020, %v1857
  %v1859 = vpop.f32.mrf.mxu0
  %1860 = vmatprep.mubr.bf16.mxu0 0
  %1861 = vmatmul.mubr.bf16.gmra.mxu0 %v1475
  %v1862 = vpop.f32.mrf.mxu0
  %v1863 = vadd.f32 %v1025, %v1862
  %v1864 = vpop.f32.mrf.mxu0
  %v1865 = vpop.f32.mrf.mxu0
  %v1866 = vadd.f32 %v1030, %v1865
  %v1867 = vpop.f32.mrf.mxu0
  %1868 = vmatprep.mubr.bf16.mxu0 0
  %1869 = vmatmul.mubr.bf16.gmra.mxu0 %v1478
  %v1870 = vpop.f32.mrf.mxu0
  %v1871 = vadd.f32 %v1035, %v1870
  %v1872 = vpop.f32.mrf.mxu0
  %v1873 = vpop.f32.mrf.mxu0
  %v1874 = vadd.f32 %v1040, %v1873
  %v1875 = vpop.f32.mrf.mxu0
  %1876 = vmatprep.mubr.bf16.mxu0 0
  %1877 = vmatmul.mubr.bf16.gmra.mxu0 %v1481
  %v1878 = vpop.f32.mrf.mxu0
  %v1879 = vadd.f32 %v1045, %v1878
  %v1880 = vpop.f32.mrf.mxu0
  %v1881 = vpop.f32.mrf.mxu0
  %v1882 = vadd.f32 %v1050, %v1881
  %v1883 = vpop.f32.mrf.mxu0
  %1884 = vmatprep.mubr.bf16.mxu0 0
  %1885 = vmatmul.mubr.bf16.gmra.mxu0 %v1484
  %v1886 = vpop.f32.mrf.mxu0
  %v1887 = vadd.f32 %v1055, %v1886
  %v1888 = vpop.f32.mrf.mxu0
  %v1889 = vpop.f32.mrf.mxu0
  %v1890 = vadd.f32 %v1060, %v1889
  %v1891 = vpop.f32.mrf.mxu0
  %1892 = vmatprep.mubr.bf16.mxu0 0
  %1893 = vmatmul.mubr.bf16.gmra.mxu0 %v1487
  %v1894 = vpop.f32.mrf.mxu0
  %v1895 = vadd.f32 %v1065, %v1894
  %v1896 = vpop.f32.mrf.mxu0
  %v1897 = vpop.f32.mrf.mxu0
  %v1898 = vadd.f32 %v1070, %v1897
  %v1899 = vpop.f32.mrf.mxu0
  %1900 = vmatprep.mubr.bf16.mxu0 0
  %1901 = vmatmul.mubr.bf16.gmra.mxu0 %v1490
  %v1902 = vpop.f32.mrf.mxu0
  %v1903 = vadd.f32 %v1075, %v1902
  %v1904 = vpop.f32.mrf.mxu0
  %v1905 = vpop.f32.mrf.mxu0
  %v1906 = vadd.f32 %v1080, %v1905
  %v1907 = vpop.f32.mrf.mxu0
  %1908 = vdwg.mxu0
  %v1909 = vld [vmem:[%s2] sm:$0xf]
  %v1910 = vld [vmem:[%s2 + $0x4] sm:$0xf]
  %v1911 = vld [vmem:[%s2 + $0x8] sm:$0xf]
  %v1912 = vld [vmem:[%s2 + $0xc] sm:$0xf]
  %v1913 = vld [vmem:[%s2 + $0x10] sm:$0xf]
  %v1914 = vld [vmem:[%s2 + $0x14] sm:$0xf]
  %v1915 = vld [vmem:[%s2 + $0x18] sm:$0xf]
  %v1916 = vld [vmem:[%s2 + $0x1c] sm:$0xf]
  %v1917 = vld [vmem:[%s2 + $0x20] sm:$0xf]
  %v1918 = vld [vmem:[%s2 + $0x24] sm:$0xf]
  %v1919 = vld [vmem:[%s2 + $0x28] sm:$0xf]
  %v1920 = vld [vmem:[%s2 + $0x2c] sm:$0xf]
  %v1921 = vld [vmem:[%s6] sm:$0xf]
  %v1922 = vld [vmem:[%s6 + $0x4] sm:$0xf]
  %v1923 = vld [vmem:[%s6 + $0x8] sm:$0xf]
  %v1924 = vld [vmem:[%s6 + $0xc] sm:$0xf]
  %v1925 = vld [vmem:[%s6 + $0x10] sm:$0xf]
  %v1926 = vld [vmem:[%s6 + $0x14] sm:$0xf]
  %v1927 = vld [vmem:[%s6 + $0x18] sm:$0xf]
  %v1928 = vld [vmem:[%s6 + $0x1c] sm:$0xf]
  %v1929 = vld [vmem:[%s3] sm:$0xff]
  %v1930 = vld [vmem:[%s3 + $0x8] sm:$0xff]
  %v1931 = vld [vmem:[%s3 + $0x10] sm:$0xff]
  %v1932 = vld [vmem:[%s3 + $0x18] sm:$0xff]
  %v1933 = vld [vmem:[%s3 + $0x20] sm:$0xff]
  %v1934 = vld [vmem:[%s3 + $0x28] sm:$0xff]
  %v1935 = vld [vmem:[%s3 + $0x30] sm:$0xff]
  %v1936 = vld [vmem:[%s3 + $0x38] sm:$0xff]
  %v1937 = vld [vmem:[%s3 + $0x40] sm:$0xff]
  %v1938 = vld [vmem:[%s3 + $0x48] sm:$0xff]
  %v1939 = vld [vmem:[%s3 + $0x50] sm:$0xff]
  %v1940 = vld [vmem:[%s3 + $0x58] sm:$0xff]
  %v1941 = vld [vmem:[%s8] sm:$0xff]
  %v1943 = vsel %vm249, %v1929, 0
  %v1946 = vsel %vm249, %v1930, 0
  %v1949 = vsel %vm249, %v1931, 0
  %v1952 = vsel %vm249, %v1932, 0
  %v1955 = vsel %vm249, %v1933, 0
  %v1958 = vsel %vm249, %v1934, 0
  %v1961 = vsel %vm249, %v1935, 0
  %v1964 = vsel %vm249, %v1936, 0
  %v1967 = vsel %vm249, %v1937, 0
  %v1970 = vsel %vm249, %v1938, 0
  %v1973 = vsel %vm249, %v1939, 0
  %v1976 = vsel %vm249, %v1940, 0
  %1978 = vmatprep.subr.mxu0 0.0
  %1979 = vmatpush1.msra.mxu0 0.0
  %1980 = vmatprep.subr.mxu0 0.0
  %1981 = vmatpush1.msra.mxu0 0.0
  %1982 = vmatprep.subr.mxu0 0.0
  %1983 = vmatpush1.msra.mxu0 0.0
  %1984 = vmatprep.subr.mxu0 0.0
  %1985 = vmatpush1.msra.mxu0 0.0
  %1986 = vmatprep.subr.mxu0 0.0
  %1987 = vmatpush1.msra.mxu0 0.0
  %1988 = vmatprep.subr.mxu0 0.0
  %1989 = vmatpush1.msra.mxu0 0.0
  %1990 = vmatprep.subr.mxu0 0.0
  %1991 = vmatpush1.msra.mxu0 0.0
  %1992 = vmatprep.subr.mxu0 0.0
  %1993 = vmatpush1.msra.mxu0 0.0
  %1994 = vmatprep.subr.mxu0 0.0
  %1995 = vmatpush1.msra.mxu0 0.0
  %1996 = vmatprep.subr.mxu0 0.0
  %1997 = vmatpush1.msra.mxu0 0.0
  %1998 = vmatprep.subr.mxu0 0.0
  %1999 = vmatpush1.msra.mxu0 0.0
  %2000 = vmatprep.subr.mxu0 0.0
  %2001 = vmatpush1.msra.mxu0 0.0
  %2002 = vmatprep.subr.mxu0 0.0
  %2003 = vmatpush1.msra.mxu0 0.0
  %2004 = vmatprep.subr.mxu0 0.0
  %2005 = vmatpush1.msra.mxu0 0.0
  %2006 = vmatprep.subr.mxu0 0.0
  %2007 = vmatpush1.msra.mxu0 0.0
  %2008 = vmatprep.subr.mxu0 0.0
  %2009 = vmatpush1.msra.mxu0 %v1941
  %2010 = vmatprep.subr.mxu0 0.0
  %2011 = vmatpush2.msra.mxu0 0.0
  %2012 = vmatprep.subr.mxu0 0.0
  %2013 = vmatpush2.msra.mxu0 0.0
  %2014 = vmatprep.subr.mxu0 0.0
  %2015 = vmatpush2.msra.mxu0 0.0
  %2016 = vmatprep.subr.mxu0 0.0
  %2017 = vmatpush2.msra.mxu0 0.0
  %2018 = vmatprep.subr.mxu0 0.0
  %2019 = vmatpush2.msra.mxu0 0.0
  %2020 = vmatprep.subr.mxu0 0.0
  %2021 = vmatpush2.msra.mxu0 0.0
  %2022 = vmatprep.subr.mxu0 0.0
  %2023 = vmatpush2.msra.mxu0 0.0
  %2024 = vmatprep.subr.mxu0 0.0
  %2025 = vmatpush2.msra.mxu0 0.0
  %2026 = vmatprep.subr.mxu0 0.0
  %2027 = vmatpush2.msra.mxu0 0.0
  %2028 = vmatprep.subr.mxu0 0.0
  %2029 = vmatpush2.msra.mxu0 0.0
  %2030 = vmatprep.subr.mxu0 0.0
  %2031 = vmatpush2.msra.mxu0 0.0
  %2032 = vmatprep.subr.mxu0 0.0
  %2033 = vmatpush2.msra.mxu0 0.0
  %2034 = vmatprep.subr.mxu0 0.0
  %2035 = vmatpush2.msra.mxu0 0.0
  %2036 = vmatprep.subr.mxu0 0.0
  %2037 = vmatpush2.msra.mxu0 0.0
  %2038 = vmatprep.subr.mxu0 0.0
  %2039 = vmatpush2.msra.mxu0 0.0
  %2040 = vmatprep.subr.mxu0 0.0
  %2041 = vmatpush2.msra.mxu0 0.0
  %2042 = vmatprep.mubr.f32.mxu0 0.0
  %2043 = vmatmul.mubr.f32.gmra.mxu0 %v1943
  %v2044 = vpop.f32.mrf.mxu0
  %v2045 = vadd.f32 0.0, %v2044
  %v2046 = vpop.f32.mrf.mxu0
  %2047 = vmatprep.mubr.f32.mxu0 0.0
  %2048 = vmatmul.mubr.f32.gmra.mxu0 %v1946
  %v2049 = vpop.f32.mrf.mxu0
  %v2050 = vadd.f32 0.0, %v2049
  %v2051 = vpop.f32.mrf.mxu0
  %2052 = vmatprep.mubr.f32.mxu0 0.0
  %2053 = vmatmul.mubr.f32.gmra.mxu0 %v1949
  %v2054 = vpop.f32.mrf.mxu0
  %v2055 = vadd.f32 0.0, %v2054
  %v2056 = vpop.f32.mrf.mxu0
  %2057 = vmatprep.mubr.f32.mxu0 0.0
  %2058 = vmatmul.mubr.f32.gmra.mxu0 %v1952
  %v2059 = vpop.f32.mrf.mxu0
  %v2060 = vadd.f32 0.0, %v2059
  %v2061 = vpop.f32.mrf.mxu0
  %2062 = vmatprep.mubr.f32.mxu0 0.0
  %2063 = vmatmul.mubr.f32.gmra.mxu0 %v1955
  %v2064 = vpop.f32.mrf.mxu0
  %v2065 = vadd.f32 0.0, %v2064
  %v2066 = vpop.f32.mrf.mxu0
  %2067 = vmatprep.mubr.f32.mxu0 0.0
  %2068 = vmatmul.mubr.f32.gmra.mxu0 %v1958
  %v2069 = vpop.f32.mrf.mxu0
  %v2070 = vadd.f32 0.0, %v2069
  %v2071 = vpop.f32.mrf.mxu0
  %2072 = vmatprep.mubr.f32.mxu0 0.0
  %2073 = vmatmul.mubr.f32.gmra.mxu0 %v1961
  %v2074 = vpop.f32.mrf.mxu0
  %v2075 = vadd.f32 0.0, %v2074
  %v2076 = vpop.f32.mrf.mxu0
  %2077 = vmatprep.mubr.f32.mxu0 0.0
  %2078 = vmatmul.mubr.f32.gmra.mxu0 %v1964
  %v2079 = vpop.f32.mrf.mxu0
  %v2080 = vadd.f32 0.0, %v2079
  %v2081 = vpop.f32.mrf.mxu0
  %2082 = vmatprep.mubr.f32.mxu0 0.0
  %2083 = vmatmul.mubr.f32.gmra.mxu0 %v1967
  %v2084 = vpop.f32.mrf.mxu0
  %v2085 = vadd.f32 0.0, %v2084
  %v2086 = vpop.f32.mrf.mxu0
  %2087 = vmatprep.mubr.f32.mxu0 0.0
  %2088 = vmatmul.mubr.f32.gmra.mxu0 %v1970
  %v2089 = vpop.f32.mrf.mxu0
  %v2090 = vadd.f32 0.0, %v2089
  %v2091 = vpop.f32.mrf.mxu0
  %2092 = vmatprep.mubr.f32.mxu0 0.0
  %2093 = vmatmul.mubr.f32.gmra.mxu0 %v1973
  %v2094 = vpop.f32.mrf.mxu0
  %v2095 = vadd.f32 0.0, %v2094
  %v2096 = vpop.f32.mrf.mxu0
  %2097 = vmatprep.mubr.f32.mxu0 0.0
  %2098 = vmatmul.mubr.f32.gmra.mxu0 %v1976
  %v2099 = vpop.f32.mrf.mxu0
  %v2100 = vadd.f32 0.0, %v2099
  %v2101 = vpop.f32.mrf.mxu0
  %2102 = vdwg.mxu0
  %v2115 = vunpack.c.l.b16 %v1909
  %v2116 = vunpack.c.l.b16 %v1910
  %v2117 = vunpack.c.l.b16 %v1911
  %v2118 = vunpack.c.l.b16 %v1912
  %v2119 = vunpack.c.l.b16 %v1913
  %v2120 = vunpack.c.l.b16 %v1914
  %v2121 = vunpack.c.l.b16 %v1915
  %v2122 = vunpack.c.l.b16 %v1916
  %v2123 = vunpack.c.l.b16 %v1917
  %v2124 = vunpack.c.l.b16 %v1918
  %v2125 = vunpack.c.l.b16 %v1919
  %v2126 = vunpack.c.l.b16 %v1920
  %v2127 = vpack.c.b16 %v2116, %v2115
  %v2128 = vpack.c.b16 %v2118, %v2117
  %v2129 = vpack.c.b16 %v2120, %v2119
  %v2130 = vpack.c.b16 %v2122, %v2121
  %v2131 = vpack.c.b16 %v2124, %v2123
  %v2132 = vpack.c.b16 %v2126, %v2125
  %v2141 = vunpack.c.l.b16 %v1921
  %v2142 = vunpack.c.l.b16 %v1922
  %v2143 = vunpack.c.l.b16 %v1923
  %v2144 = vunpack.c.l.b16 %v1924
  %v2145 = vunpack.c.l.b16 %v1925
  %v2146 = vunpack.c.l.b16 %v1926
  %v2147 = vunpack.c.l.b16 %v1927
  %v2148 = vunpack.c.l.b16 %v1928
  %v2149 = vpack.c.b16 %v2142, %v2141
  %v2150 = vpack.c.b16 %v2144, %v2143
  %v2151 = vpack.c.b16 %v2146, %v2145
  %v2152 = vpack.c.b16 %v2148, %v2147
  %v2158 = vsel %vm1347, %v2127, 0
  %v2161 = vsel %vm1347, %v2128, 0
  %v2164 = vsel %vm1347, %v2129, 0
  %v2167 = vsel %vm1347, %v2130, 0
  %v2170 = vsel %vm1347, %v2131, 0
  %v2173 = vsel %vm1347, %v2132, 0
  %2175 = vmatprep.subr.bf16.mxu0 0
  %2176 = vmatpush1.bf16.msra.mxu0 0
  %2177 = vmatprep.subr.bf16.mxu0 0
  %2178 = vmatpush1.bf16.msra.mxu0 0
  %2179 = vmatprep.subr.bf16.mxu0 0
  %2180 = vmatpush1.bf16.msra.mxu0 0
  %2181 = vmatprep.subr.bf16.mxu0 0
  %2182 = vmatpush1.bf16.msra.mxu0 0
  %2183 = vmatprep.subr.bf16.mxu0 0
  %2184 = vmatpush1.bf16.msra.mxu0 %v2152
  %2185 = vmatprep.subr.bf16.mxu0 0
  %2186 = vmatpush1.bf16.msra.mxu0 %v2151
  %2187 = vmatprep.subr.bf16.mxu0 0
  %2188 = vmatpush1.bf16.msra.mxu0 %v2150
  %2189 = vmatprep.subr.bf16.mxu0 0
  %2190 = vmatpush1.bf16.msra.mxu0 %v2149
  %2191 = vmatprep.subr.bf16.mxu0 0
  %2192 = vmatpush2.bf16.msra.mxu0 0
  %2193 = vmatprep.subr.bf16.mxu0 0
  %2194 = vmatpush2.bf16.msra.mxu0 0
  %2195 = vmatprep.subr.bf16.mxu0 0
  %2196 = vmatpush2.bf16.msra.mxu0 0
  %2197 = vmatprep.subr.bf16.mxu0 0
  %2198 = vmatpush2.bf16.msra.mxu0 0
  %2199 = vmatprep.subr.bf16.mxu0 0
  %2200 = vmatpush2.bf16.msra.mxu0 0
  %2201 = vmatprep.subr.bf16.mxu0 0
  %2202 = vmatpush2.bf16.msra.mxu0 0
  %2203 = vmatprep.subr.bf16.mxu0 0
  %2204 = vmatpush2.bf16.msra.mxu0 0
  %2205 = vmatprep.subr.bf16.mxu0 0
  %2206 = vmatpush2.bf16.msra.mxu0 0
  %2207 = vmatprep.mubr.bf16.mxu0 0
  %2208 = vmatmul.mubr.bf16.gmra.mxu0 %v2158
  %v2209 = vpop.f32.mrf.mxu0
  %v2210 = vadd.f32 %v2045, %v2209
  %v2211 = vpop.f32.mrf.mxu0
  %v2212 = vpop.f32.mrf.mxu0
  %v2213 = vadd.f32 %v2050, %v2212
  %v2214 = vpop.f32.mrf.mxu0
  %2215 = vmatprep.mubr.bf16.mxu0 0
  %2216 = vmatmul.mubr.bf16.gmra.mxu0 %v2161
  %v2217 = vpop.f32.mrf.mxu0
  %v2218 = vadd.f32 %v2055, %v2217
  %v2219 = vpop.f32.mrf.mxu0
  %v2220 = vpop.f32.mrf.mxu0
  %v2221 = vadd.f32 %v2060, %v2220
  %v2222 = vpop.f32.mrf.mxu0
  %2223 = vmatprep.mubr.bf16.mxu0 0
  %2224 = vmatmul.mubr.bf16.gmra.mxu0 %v2164
  %v2225 = vpop.f32.mrf.mxu0
  %v2226 = vadd.f32 %v2065, %v2225
  %v2227 = vpop.f32.mrf.mxu0
  %v2228 = vpop.f32.mrf.mxu0
  %v2229 = vadd.f32 %v2070, %v2228
  %v2230 = vpop.f32.mrf.mxu0
  %2231 = vmatprep.mubr.bf16.mxu0 0
  %2232 = vmatmul.mubr.bf16.gmra.mxu0 %v2167
  %v2233 = vpop.f32.mrf.mxu0
  %v2234 = vadd.f32 %v2075, %v2233
  %v2235 = vpop.f32.mrf.mxu0
  %v2236 = vpop.f32.mrf.mxu0
  %v2237 = vadd.f32 %v2080, %v2236
  %v2238 = vpop.f32.mrf.mxu0
  %2239 = vmatprep.mubr.bf16.mxu0 0
  %2240 = vmatmul.mubr.bf16.gmra.mxu0 %v2170
  %v2241 = vpop.f32.mrf.mxu0
  %v2242 = vadd.f32 %v2085, %v2241
  %v2243 = vpop.f32.mrf.mxu0
  %v2244 = vpop.f32.mrf.mxu0
  %v2245 = vadd.f32 %v2090, %v2244
  %v2246 = vpop.f32.mrf.mxu0
  %2247 = vmatprep.mubr.bf16.mxu0 0
  %2248 = vmatmul.mubr.bf16.gmra.mxu0 %v2173
  %v2249 = vpop.f32.mrf.mxu0
  %v2250 = vadd.f32 %v2095, %v2249
  %v2251 = vpop.f32.mrf.mxu0
  %v2252 = vpop.f32.mrf.mxu0
  %v2253 = vadd.f32 %v2100, %v2252
  %v2254 = vpop.f32.mrf.mxu0
  %2255 = vdwg.mxu0
  %v2268 = vcombine.high %v2210, %v2210
  %v2270 = vunpack.c.l.s4 1966171168
  %v2271 = vunpack.c.0.s8 %v2270
  %v2272 = vlaneseq
  %v2273 = vshrl.u32 %v2272, 7
  %v2274 = vsub.s32 %v2271, %v2273
  %v2275 = vrot.slane %v2210, %v2274
  %v2277 = vunpack.c.l.s4 1966171168
  %v2278 = vunpack.c.0.s8 %v2277
  %v2279 = vlaneseq
  %v2280 = vshrl.u32 %v2279, 7
  %v2281 = vsub.s32 %v2278, %v2280
  %v2282 = vrot.slane %v2268, %v2281
  %v2283 = vcombine.high %v2275, %v2275
  %v2284 = vcombine.high %v2282, %v2282
  %v2286 = vunpack.c.l.s4 1966171168
  %v2287 = vunpack.c.0.s8 %v2286
  %v2288 = vlaneseq
  %v2289 = vshrl.u32 %v2288, 7
  %v2290 = vsub.s32 %v2287, %v2289
  %v2291 = vrot.slane %v2275, %v2290
  %v2293 = vunpack.c.l.s4 1966171168
  %v2294 = vunpack.c.0.s8 %v2293
  %v2295 = vlaneseq
  %v2296 = vshrl.u32 %v2295, 7
  %v2297 = vsub.s32 %v2294, %v2296
  %v2298 = vrot.slane %v2282, %v2297
  %v2300 = vunpack.c.l.s4 1966171168
  %v2301 = vunpack.c.0.s8 %v2300
  %v2302 = vlaneseq
  %v2303 = vshrl.u32 %v2302, 7
  %v2304 = vsub.s32 %v2301, %v2303
  %v2305 = vrot.slane %v2283, %v2304
  %v2307 = vunpack.c.l.s4 1966171168
  %v2308 = vunpack.c.0.s8 %v2307
  %v2309 = vlaneseq
  %v2310 = vshrl.u32 %v2309, 7
  %v2311 = vsub.s32 %v2308, %v2310
  %v2312 = vrot.slane %v2284, %v2311
  %v2313 = vcombine.high %v2291, %v2291
  %v2314 = vcombine.high %v2298, %v2298
  %v2315 = vcombine.high %v2305, %v2305
  %v2316 = vcombine.high %v2312, %v2312
  %v2317 = vcombine.high %v2213, %v2213
  %v2319 = vunpack.c.l.s4 1966171168
  %v2320 = vunpack.c.0.s8 %v2319
  %v2321 = vlaneseq
  %v2322 = vshrl.u32 %v2321, 7
  %v2323 = vsub.s32 %v2320, %v2322
  %v2324 = vrot.slane %v2213, %v2323
  %v2326 = vunpack.c.l.s4 1966171168
  %v2327 = vunpack.c.0.s8 %v2326
  %v2328 = vlaneseq
  %v2329 = vshrl.u32 %v2328, 7
  %v2330 = vsub.s32 %v2327, %v2329
  %v2331 = vrot.slane %v2317, %v2330
  %v2332 = vcombine.high %v2324, %v2324
  %v2333 = vcombine.high %v2331, %v2331
  %v2335 = vunpack.c.l.s4 1966171168
  %v2336 = vunpack.c.0.s8 %v2335
  %v2337 = vlaneseq
  %v2338 = vshrl.u32 %v2337, 7
  %v2339 = vsub.s32 %v2336, %v2338
  %v2340 = vrot.slane %v2324, %v2339
  %v2342 = vunpack.c.l.s4 1966171168
  %v2343 = vunpack.c.0.s8 %v2342
  %v2344 = vlaneseq
  %v2345 = vshrl.u32 %v2344, 7
  %v2346 = vsub.s32 %v2343, %v2345
  %v2347 = vrot.slane %v2331, %v2346
  %v2349 = vunpack.c.l.s4 1966171168
  %v2350 = vunpack.c.0.s8 %v2349
  %v2351 = vlaneseq
  %v2352 = vshrl.u32 %v2351, 7
  %v2353 = vsub.s32 %v2350, %v2352
  %v2354 = vrot.slane %v2332, %v2353
  %v2356 = vunpack.c.l.s4 1966171168
  %v2357 = vunpack.c.0.s8 %v2356
  %v2358 = vlaneseq
  %v2359 = vshrl.u32 %v2358, 7
  %v2360 = vsub.s32 %v2357, %v2359
  %v2361 = vrot.slane %v2333, %v2360
  %v2362 = vcombine.high %v2340, %v2340
  %v2363 = vcombine.high %v2347, %v2347
  %v2364 = vcombine.high %v2354, %v2354
  %v2365 = vcombine.high %v2361, %v2361
  %v2366 = vcombine.high %v2218, %v2218
  %v2368 = vunpack.c.l.s4 1966171168
  %v2369 = vunpack.c.0.s8 %v2368
  %v2370 = vlaneseq
  %v2371 = vshrl.u32 %v2370, 7
  %v2372 = vsub.s32 %v2369, %v2371
  %v2373 = vrot.slane %v2218, %v2372
  %v2375 = vunpack.c.l.s4 1966171168
  %v2376 = vunpack.c.0.s8 %v2375
  %v2377 = vlaneseq
  %v2378 = vshrl.u32 %v2377, 7
  %v2379 = vsub.s32 %v2376, %v2378
  %v2380 = vrot.slane %v2366, %v2379
  %v2381 = vcombine.high %v2373, %v2373
  %v2382 = vcombine.high %v2380, %v2380
  %v2384 = vunpack.c.l.s4 1966171168
  %v2385 = vunpack.c.0.s8 %v2384
  %v2386 = vlaneseq
  %v2387 = vshrl.u32 %v2386, 7
  %v2388 = vsub.s32 %v2385, %v2387
  %v2389 = vrot.slane %v2373, %v2388
  %v2391 = vunpack.c.l.s4 1966171168
  %v2392 = vunpack.c.0.s8 %v2391
  %v2393 = vlaneseq
  %v2394 = vshrl.u32 %v2393, 7
  %v2395 = vsub.s32 %v2392, %v2394
  %v2396 = vrot.slane %v2380, %v2395
  %v2398 = vunpack.c.l.s4 1966171168
  %v2399 = vunpack.c.0.s8 %v2398
  %v2400 = vlaneseq
  %v2401 = vshrl.u32 %v2400, 7
  %v2402 = vsub.s32 %v2399, %v2401
  %v2403 = vrot.slane %v2381, %v2402
  %v2405 = vunpack.c.l.s4 1966171168
  %v2406 = vunpack.c.0.s8 %v2405
  %v2407 = vlaneseq
  %v2408 = vshrl.u32 %v2407, 7
  %v2409 = vsub.s32 %v2406, %v2408
  %v2410 = vrot.slane %v2382, %v2409
  %v2411 = vcombine.high %v2389, %v2389
  %v2412 = vcombine.high %v2396, %v2396
  %v2413 = vcombine.high %v2403, %v2403
  %v2414 = vcombine.high %v2410, %v2410
  %v2415 = vcombine.high %v2221, %v2221
  %v2417 = vunpack.c.l.s4 1966171168
  %v2418 = vunpack.c.0.s8 %v2417
  %v2419 = vlaneseq
  %v2420 = vshrl.u32 %v2419, 7
  %v2421 = vsub.s32 %v2418, %v2420
  %v2422 = vrot.slane %v2221, %v2421
  %v2424 = vunpack.c.l.s4 1966171168
  %v2425 = vunpack.c.0.s8 %v2424
  %v2426 = vlaneseq
  %v2427 = vshrl.u32 %v2426, 7
  %v2428 = vsub.s32 %v2425, %v2427
  %v2429 = vrot.slane %v2415, %v2428
  %v2430 = vcombine.high %v2422, %v2422
  %v2431 = vcombine.high %v2429, %v2429
  %v2433 = vunpack.c.l.s4 1966171168
  %v2434 = vunpack.c.0.s8 %v2433
  %v2435 = vlaneseq
  %v2436 = vshrl.u32 %v2435, 7
  %v2437 = vsub.s32 %v2434, %v2436
  %v2438 = vrot.slane %v2422, %v2437
  %v2440 = vunpack.c.l.s4 1966171168
  %v2441 = vunpack.c.0.s8 %v2440
  %v2442 = vlaneseq
  %v2443 = vshrl.u32 %v2442, 7
  %v2444 = vsub.s32 %v2441, %v2443
  %v2445 = vrot.slane %v2429, %v2444
  %v2447 = vunpack.c.l.s4 1966171168
  %v2448 = vunpack.c.0.s8 %v2447
  %v2449 = vlaneseq
  %v2450 = vshrl.u32 %v2449, 7
  %v2451 = vsub.s32 %v2448, %v2450
  %v2452 = vrot.slane %v2430, %v2451
  %v2454 = vunpack.c.l.s4 1966171168
  %v2455 = vunpack.c.0.s8 %v2454
  %v2456 = vlaneseq
  %v2457 = vshrl.u32 %v2456, 7
  %v2458 = vsub.s32 %v2455, %v2457
  %v2459 = vrot.slane %v2431, %v2458
  %v2460 = vcombine.high %v2438, %v2438
  %v2461 = vcombine.high %v2445, %v2445
  %v2462 = vcombine.high %v2452, %v2452
  %v2463 = vcombine.high %v2459, %v2459
  %v2464 = vcombine.high %v2226, %v2226
  %v2466 = vunpack.c.l.s4 1966171168
  %v2467 = vunpack.c.0.s8 %v2466
  %v2468 = vlaneseq
  %v2469 = vshrl.u32 %v2468, 7
  %v2470 = vsub.s32 %v2467, %v2469
  %v2471 = vrot.slane %v2226, %v2470
  %v2473 = vunpack.c.l.s4 1966171168
  %v2474 = vunpack.c.0.s8 %v2473
  %v2475 = vlaneseq
  %v2476 = vshrl.u32 %v2475, 7
  %v2477 = vsub.s32 %v2474, %v2476
  %v2478 = vrot.slane %v2464, %v2477
  %v2479 = vcombine.high %v2471, %v2471
  %v2480 = vcombine.high %v2478, %v2478
  %v2482 = vunpack.c.l.s4 1966171168
  %v2483 = vunpack.c.0.s8 %v2482
  %v2484 = vlaneseq
  %v2485 = vshrl.u32 %v2484, 7
  %v2486 = vsub.s32 %v2483, %v2485
  %v2487 = vrot.slane %v2471, %v2486
  %v2489 = vunpack.c.l.s4 1966171168
  %v2490 = vunpack.c.0.s8 %v2489
  %v2491 = vlaneseq
  %v2492 = vshrl.u32 %v2491, 7
  %v2493 = vsub.s32 %v2490, %v2492
  %v2494 = vrot.slane %v2478, %v2493
  %v2496 = vunpack.c.l.s4 1966171168
  %v2497 = vunpack.c.0.s8 %v2496
  %v2498 = vlaneseq
  %v2499 = vshrl.u32 %v2498, 7
  %v2500 = vsub.s32 %v2497, %v2499
  %v2501 = vrot.slane %v2479, %v2500
  %v2503 = vunpack.c.l.s4 1966171168
  %v2504 = vunpack.c.0.s8 %v2503
  %v2505 = vlaneseq
  %v2506 = vshrl.u32 %v2505, 7
  %v2507 = vsub.s32 %v2504, %v2506
  %v2508 = vrot.slane %v2480, %v2507
  %v2509 = vcombine.high %v2487, %v2487
  %v2510 = vcombine.high %v2494, %v2494
  %v2511 = vcombine.high %v2501, %v2501
  %v2512 = vcombine.high %v2508, %v2508
  %v2513 = vcombine.high %v2229, %v2229
  %v2515 = vunpack.c.l.s4 1966171168
  %v2516 = vunpack.c.0.s8 %v2515
  %v2517 = vlaneseq
  %v2518 = vshrl.u32 %v2517, 7
  %v2519 = vsub.s32 %v2516, %v2518
  %v2520 = vrot.slane %v2229, %v2519
  %v2522 = vunpack.c.l.s4 1966171168
  %v2523 = vunpack.c.0.s8 %v2522
  %v2524 = vlaneseq
  %v2525 = vshrl.u32 %v2524, 7
  %v2526 = vsub.s32 %v2523, %v2525
  %v2527 = vrot.slane %v2513, %v2526
  %v2528 = vcombine.high %v2520, %v2520
  %v2529 = vcombine.high %v2527, %v2527
  %v2531 = vunpack.c.l.s4 1966171168
  %v2532 = vunpack.c.0.s8 %v2531
  %v2533 = vlaneseq
  %v2534 = vshrl.u32 %v2533, 7
  %v2535 = vsub.s32 %v2532, %v2534
  %v2536 = vrot.slane %v2520, %v2535
  %v2538 = vunpack.c.l.s4 1966171168
  %v2539 = vunpack.c.0.s8 %v2538
  %v2540 = vlaneseq
  %v2541 = vshrl.u32 %v2540, 7
  %v2542 = vsub.s32 %v2539, %v2541
  %v2543 = vrot.slane %v2527, %v2542
  %v2545 = vunpack.c.l.s4 1966171168
  %v2546 = vunpack.c.0.s8 %v2545
  %v2547 = vlaneseq
  %v2548 = vshrl.u32 %v2547, 7
  %v2549 = vsub.s32 %v2546, %v2548
  %v2550 = vrot.slane %v2528, %v2549
  %v2552 = vunpack.c.l.s4 1966171168
  %v2553 = vunpack.c.0.s8 %v2552
  %v2554 = vlaneseq
  %v2555 = vshrl.u32 %v2554, 7
  %v2556 = vsub.s32 %v2553, %v2555
  %v2557 = vrot.slane %v2529, %v2556
  %v2558 = vcombine.high %v2536, %v2536
  %v2559 = vcombine.high %v2543, %v2543
  %v2560 = vcombine.high %v2550, %v2550
  %v2561 = vcombine.high %v2557, %v2557
  %v2562 = vcombine.high %v2234, %v2234
  %v2564 = vunpack.c.l.s4 1966171168
  %v2565 = vunpack.c.0.s8 %v2564
  %v2566 = vlaneseq
  %v2567 = vshrl.u32 %v2566, 7
  %v2568 = vsub.s32 %v2565, %v2567
  %v2569 = vrot.slane %v2234, %v2568
  %v2571 = vunpack.c.l.s4 1966171168
  %v2572 = vunpack.c.0.s8 %v2571
  %v2573 = vlaneseq
  %v2574 = vshrl.u32 %v2573, 7
  %v2575 = vsub.s32 %v2572, %v2574
  %v2576 = vrot.slane %v2562, %v2575
  %v2577 = vcombine.high %v2569, %v2569
  %v2578 = vcombine.high %v2576, %v2576
  %v2580 = vunpack.c.l.s4 1966171168
  %v2581 = vunpack.c.0.s8 %v2580
  %v2582 = vlaneseq
  %v2583 = vshrl.u32 %v2582, 7
  %v2584 = vsub.s32 %v2581, %v2583
  %v2585 = vrot.slane %v2569, %v2584
  %v2587 = vunpack.c.l.s4 1966171168
  %v2588 = vunpack.c.0.s8 %v2587
  %v2589 = vlaneseq
  %v2590 = vshrl.u32 %v2589, 7
  %v2591 = vsub.s32 %v2588, %v2590
  %v2592 = vrot.slane %v2576, %v2591
  %v2594 = vunpack.c.l.s4 1966171168
  %v2595 = vunpack.c.0.s8 %v2594
  %v2596 = vlaneseq
  %v2597 = vshrl.u32 %v2596, 7
  %v2598 = vsub.s32 %v2595, %v2597
  %v2599 = vrot.slane %v2577, %v2598
  %v2601 = vunpack.c.l.s4 1966171168
  %v2602 = vunpack.c.0.s8 %v2601
  %v2603 = vlaneseq
  %v2604 = vshrl.u32 %v2603, 7
  %v2605 = vsub.s32 %v2602, %v2604
  %v2606 = vrot.slane %v2578, %v2605
  %v2607 = vcombine.high %v2585, %v2585
  %v2608 = vcombine.high %v2592, %v2592
  %v2609 = vcombine.high %v2599, %v2599
  %v2610 = vcombine.high %v2606, %v2606
  %v2611 = vcombine.high %v2237, %v2237
  %v2613 = vunpack.c.l.s4 1966171168
  %v2614 = vunpack.c.0.s8 %v2613
  %v2615 = vlaneseq
  %v2616 = vshrl.u32 %v2615, 7
  %v2617 = vsub.s32 %v2614, %v2616
  %v2618 = vrot.slane %v2237, %v2617
  %v2620 = vunpack.c.l.s4 1966171168
  %v2621 = vunpack.c.0.s8 %v2620
  %v2622 = vlaneseq
  %v2623 = vshrl.u32 %v2622, 7
  %v2624 = vsub.s32 %v2621, %v2623
  %v2625 = vrot.slane %v2611, %v2624
  %v2626 = vcombine.high %v2618, %v2618
  %v2627 = vcombine.high %v2625, %v2625
  %v2629 = vunpack.c.l.s4 1966171168
  %v2630 = vunpack.c.0.s8 %v2629
  %v2631 = vlaneseq
  %v2632 = vshrl.u32 %v2631, 7
  %v2633 = vsub.s32 %v2630, %v2632
  %v2634 = vrot.slane %v2618, %v2633
  %v2636 = vunpack.c.l.s4 1966171168
  %v2637 = vunpack.c.0.s8 %v2636
  %v2638 = vlaneseq
  %v2639 = vshrl.u32 %v2638, 7
  %v2640 = vsub.s32 %v2637, %v2639
  %v2641 = vrot.slane %v2625, %v2640
  %v2643 = vunpack.c.l.s4 1966171168
  %v2644 = vunpack.c.0.s8 %v2643
  %v2645 = vlaneseq
  %v2646 = vshrl.u32 %v2645, 7
  %v2647 = vsub.s32 %v2644, %v2646
  %v2648 = vrot.slane %v2626, %v2647
  %v2650 = vunpack.c.l.s4 1966171168
  %v2651 = vunpack.c.0.s8 %v2650
  %v2652 = vlaneseq
  %v2653 = vshrl.u32 %v2652, 7
  %v2654 = vsub.s32 %v2651, %v2653
  %v2655 = vrot.slane %v2627, %v2654
  %v2656 = vcombine.high %v2634, %v2634
  %v2657 = vcombine.high %v2641, %v2641
  %v2658 = vcombine.high %v2648, %v2648
  %v2659 = vcombine.high %v2655, %v2655
  %v2660 = vcombine.high %v2242, %v2242
  %v2662 = vunpack.c.l.s4 1966171168
  %v2663 = vunpack.c.0.s8 %v2662
  %v2664 = vlaneseq
  %v2665 = vshrl.u32 %v2664, 7
  %v2666 = vsub.s32 %v2663, %v2665
  %v2667 = vrot.slane %v2242, %v2666
  %v2669 = vunpack.c.l.s4 1966171168
  %v2670 = vunpack.c.0.s8 %v2669
  %v2671 = vlaneseq
  %v2672 = vshrl.u32 %v2671, 7
  %v2673 = vsub.s32 %v2670, %v2672
  %v2674 = vrot.slane %v2660, %v2673
  %v2675 = vcombine.high %v2667, %v2667
  %v2676 = vcombine.high %v2674, %v2674
  %v2678 = vunpack.c.l.s4 1966171168
  %v2679 = vunpack.c.0.s8 %v2678
  %v2680 = vlaneseq
  %v2681 = vshrl.u32 %v2680, 7
  %v2682 = vsub.s32 %v2679, %v2681
  %v2683 = vrot.slane %v2667, %v2682
  %v2685 = vunpack.c.l.s4 1966171168
  %v2686 = vunpack.c.0.s8 %v2685
  %v2687 = vlaneseq
  %v2688 = vshrl.u32 %v2687, 7
  %v2689 = vsub.s32 %v2686, %v2688
  %v2690 = vrot.slane %v2674, %v2689
  %v2692 = vunpack.c.l.s4 1966171168
  %v2693 = vunpack.c.0.s8 %v2692
  %v2694 = vlaneseq
  %v2695 = vshrl.u32 %v2694, 7
  %v2696 = vsub.s32 %v2693, %v2695
  %v2697 = vrot.slane %v2675, %v2696
  %v2699 = vunpack.c.l.s4 1966171168
  %v2700 = vunpack.c.0.s8 %v2699
  %v2701 = vlaneseq
  %v2702 = vshrl.u32 %v2701, 7
  %v2703 = vsub.s32 %v2700, %v2702
  %v2704 = vrot.slane %v2676, %v2703
  %v2705 = vcombine.high %v2683, %v2683
  %v2706 = vcombine.high %v2690, %v2690
  %v2707 = vcombine.high %v2697, %v2697
  %v2708 = vcombine.high %v2704, %v2704
  %v2709 = vcombine.high %v2245, %v2245
  %v2711 = vunpack.c.l.s4 1966171168
  %v2712 = vunpack.c.0.s8 %v2711
  %v2713 = vlaneseq
  %v2714 = vshrl.u32 %v2713, 7
  %v2715 = vsub.s32 %v2712, %v2714
  %v2716 = vrot.slane %v2245, %v2715
  %v2718 = vunpack.c.l.s4 1966171168
  %v2719 = vunpack.c.0.s8 %v2718
  %v2720 = vlaneseq
  %v2721 = vshrl.u32 %v2720, 7
  %v2722 = vsub.s32 %v2719, %v2721
  %v2723 = vrot.slane %v2709, %v2722
  %v2724 = vcombine.high %v2716, %v2716
  %v2725 = vcombine.high %v2723, %v2723
  %v2727 = vunpack.c.l.s4 1966171168
  %v2728 = vunpack.c.0.s8 %v2727
  %v2729 = vlaneseq
  %v2730 = vshrl.u32 %v2729, 7
  %v2731 = vsub.s32 %v2728, %v2730
  %v2732 = vrot.slane %v2716, %v2731
  %v2734 = vunpack.c.l.s4 1966171168
  %v2735 = vunpack.c.0.s8 %v2734
  %v2736 = vlaneseq
  %v2737 = vshrl.u32 %v2736, 7
  %v2738 = vsub.s32 %v2735, %v2737
  %v2739 = vrot.slane %v2723, %v2738
  %v2741 = vunpack.c.l.s4 1966171168
  %v2742 = vunpack.c.0.s8 %v2741
  %v2743 = vlaneseq
  %v2744 = vshrl.u32 %v2743, 7
  %v2745 = vsub.s32 %v2742, %v2744
  %v2746 = vrot.slane %v2724, %v2745
  %v2748 = vunpack.c.l.s4 1966171168
  %v2749 = vunpack.c.0.s8 %v2748
  %v2750 = vlaneseq
  %v2751 = vshrl.u32 %v2750, 7
  %v2752 = vsub.s32 %v2749, %v2751
  %v2753 = vrot.slane %v2725, %v2752
  %v2754 = vcombine.high %v2732, %v2732
  %v2755 = vcombine.high %v2739, %v2739
  %v2756 = vcombine.high %v2746, %v2746
  %v2757 = vcombine.high %v2753, %v2753
  %v2758 = vcombine.high %v2250, %v2250
  %v2760 = vunpack.c.l.s4 1966171168
  %v2761 = vunpack.c.0.s8 %v2760
  %v2762 = vlaneseq
  %v2763 = vshrl.u32 %v2762, 7
  %v2764 = vsub.s32 %v2761, %v2763
  %v2765 = vrot.slane %v2250, %v2764
  %v2767 = vunpack.c.l.s4 1966171168
  %v2768 = vunpack.c.0.s8 %v2767
  %v2769 = vlaneseq
  %v2770 = vshrl.u32 %v2769, 7
  %v2771 = vsub.s32 %v2768, %v2770
  %v2772 = vrot.slane %v2758, %v2771
  %v2773 = vcombine.high %v2765, %v2765
  %v2774 = vcombine.high %v2772, %v2772
  %v2776 = vunpack.c.l.s4 1966171168
  %v2777 = vunpack.c.0.s8 %v2776
  %v2778 = vlaneseq
  %v2779 = vshrl.u32 %v2778, 7
  %v2780 = vsub.s32 %v2777, %v2779
  %v2781 = vrot.slane %v2765, %v2780
  %v2783 = vunpack.c.l.s4 1966171168
  %v2784 = vunpack.c.0.s8 %v2783
  %v2785 = vlaneseq
  %v2786 = vshrl.u32 %v2785, 7
  %v2787 = vsub.s32 %v2784, %v2786
  %v2788 = vrot.slane %v2772, %v2787
  %v2790 = vunpack.c.l.s4 1966171168
  %v2791 = vunpack.c.0.s8 %v2790
  %v2792 = vlaneseq
  %v2793 = vshrl.u32 %v2792, 7
  %v2794 = vsub.s32 %v2791, %v2793
  %v2795 = vrot.slane %v2773, %v2794
  %v2797 = vunpack.c.l.s4 1966171168
  %v2798 = vunpack.c.0.s8 %v2797
  %v2799 = vlaneseq
  %v2800 = vshrl.u32 %v2799, 7
  %v2801 = vsub.s32 %v2798, %v2800
  %v2802 = vrot.slane %v2774, %v2801
  %v2803 = vcombine.high %v2781, %v2781
  %v2804 = vcombine.high %v2788, %v2788
  %v2805 = vcombine.high %v2795, %v2795
  %v2806 = vcombine.high %v2802, %v2802
  %v2807 = vcombine.high %v2253, %v2253
  %v2809 = vunpack.c.l.s4 1966171168
  %v2810 = vunpack.c.0.s8 %v2809
  %v2811 = vlaneseq
  %v2812 = vshrl.u32 %v2811, 7
  %v2813 = vsub.s32 %v2810, %v2812
  %v2814 = vrot.slane %v2253, %v2813
  %v2816 = vunpack.c.l.s4 1966171168
  %v2817 = vunpack.c.0.s8 %v2816
  %v2818 = vlaneseq
  %v2819 = vshrl.u32 %v2818, 7
  %v2820 = vsub.s32 %v2817, %v2819
  %v2821 = vrot.slane %v2807, %v2820
  %v2822 = vcombine.high %v2814, %v2814
  %v2823 = vcombine.high %v2821, %v2821
  %v2825 = vunpack.c.l.s4 1966171168
  %v2826 = vunpack.c.0.s8 %v2825
  %v2827 = vlaneseq
  %v2828 = vshrl.u32 %v2827, 7
  %v2829 = vsub.s32 %v2826, %v2828
  %v2830 = vrot.slane %v2814, %v2829
  %v2832 = vunpack.c.l.s4 1966171168
  %v2833 = vunpack.c.0.s8 %v2832
  %v2834 = vlaneseq
  %v2835 = vshrl.u32 %v2834, 7
  %v2836 = vsub.s32 %v2833, %v2835
  %v2837 = vrot.slane %v2821, %v2836
  %v2839 = vunpack.c.l.s4 1966171168
  %v2840 = vunpack.c.0.s8 %v2839
  %v2841 = vlaneseq
  %v2842 = vshrl.u32 %v2841, 7
  %v2843 = vsub.s32 %v2840, %v2842
  %v2844 = vrot.slane %v2822, %v2843
  %v2846 = vunpack.c.l.s4 1966171168
  %v2847 = vunpack.c.0.s8 %v2846
  %v2848 = vlaneseq
  %v2849 = vshrl.u32 %v2848, 7
  %v2850 = vsub.s32 %v2847, %v2849
  %v2851 = vrot.slane %v2823, %v2850
  %v2852 = vcombine.high %v2830, %v2830
  %v2853 = vcombine.high %v2837, %v2837
  %v2854 = vcombine.high %v2844, %v2844
  %v2855 = vcombine.high %v2851, %v2851
  %v2856 = vlaneseq
  %v2857 = vshrl.u32 %v2856, 7
  %v2858 = vsub.s32 0, %v2857
  %v2859 = vrot.slane %v2291, %v2858
  %v2860 = vlaneseq
  %v2861 = vshrl.u32 %v2860, 7
  %v2862 = vsub.s32 0, %v2861
  %v2863 = vrot.slane %v2305, %v2862
  %v2864 = vlaneseq
  %v2865 = vshrl.u32 %v2864, 7
  %v2866 = vsub.s32 0, %v2865
  %v2867 = vrot.slane %v2313, %v2866
  %v2868 = vlaneseq
  %v2869 = vshrl.u32 %v2868, 7
  %v2870 = vsub.s32 0, %v2869
  %v2871 = vrot.slane %v2315, %v2870
  %v2872 = vlaneseq
  %v2873 = vshrl.u32 %v2872, 7
  %v2874 = vsub.s32 0, %v2873
  %v2875 = vrot.slane %v2298, %v2874
  %v2876 = vlaneseq
  %v2877 = vshrl.u32 %v2876, 7
  %v2878 = vsub.s32 0, %v2877
  %v2879 = vrot.slane %v2312, %v2878
  %v2880 = vlaneseq
  %v2881 = vshrl.u32 %v2880, 7
  %v2882 = vsub.s32 0, %v2881
  %v2883 = vrot.slane %v2314, %v2882
  %v2884 = vlaneseq
  %v2885 = vshrl.u32 %v2884, 7
  %v2886 = vsub.s32 0, %v2885
  %v2887 = vrot.slane %v2316, %v2886
  %v2888 = vlaneseq
  %v2889 = vshrl.u32 %v2888, 7
  %v2890 = vsub.s32 0, %v2889
  %v2891 = vrot.slane %v2340, %v2890
  %v2892 = vlaneseq
  %v2893 = vshrl.u32 %v2892, 7
  %v2894 = vsub.s32 0, %v2893
  %v2895 = vrot.slane %v2354, %v2894
  %v2896 = vlaneseq
  %v2897 = vshrl.u32 %v2896, 7
  %v2898 = vsub.s32 0, %v2897
  %v2899 = vrot.slane %v2362, %v2898
  %v2900 = vlaneseq
  %v2901 = vshrl.u32 %v2900, 7
  %v2902 = vsub.s32 0, %v2901
  %v2903 = vrot.slane %v2364, %v2902
  %v2904 = vlaneseq
  %v2905 = vshrl.u32 %v2904, 7
  %v2906 = vsub.s32 0, %v2905
  %v2907 = vrot.slane %v2347, %v2906
  %v2908 = vlaneseq
  %v2909 = vshrl.u32 %v2908, 7
  %v2910 = vsub.s32 0, %v2909
  %v2911 = vrot.slane %v2361, %v2910
  %v2912 = vlaneseq
  %v2913 = vshrl.u32 %v2912, 7
  %v2914 = vsub.s32 0, %v2913
  %v2915 = vrot.slane %v2363, %v2914
  %v2916 = vlaneseq
  %v2917 = vshrl.u32 %v2916, 7
  %v2918 = vsub.s32 0, %v2917
  %v2919 = vrot.slane %v2365, %v2918
  %v2920 = vlaneseq
  %v2921 = vshrl.u32 %v2920, 7
  %v2922 = vsub.s32 0, %v2921
  %v2923 = vrot.slane %v2389, %v2922
  %v2924 = vlaneseq
  %v2925 = vshrl.u32 %v2924, 7
  %v2926 = vsub.s32 0, %v2925
  %v2927 = vrot.slane %v2403, %v2926
  %v2928 = vlaneseq
  %v2929 = vshrl.u32 %v2928, 7
  %v2930 = vsub.s32 0, %v2929
  %v2931 = vrot.slane %v2411, %v2930
  %v2932 = vlaneseq
  %v2933 = vshrl.u32 %v2932, 7
  %v2934 = vsub.s32 0, %v2933
  %v2935 = vrot.slane %v2413, %v2934
  %v2936 = vlaneseq
  %v2937 = vshrl.u32 %v2936, 7
  %v2938 = vsub.s32 0, %v2937
  %v2939 = vrot.slane %v2396, %v2938
  %v2940 = vlaneseq
  %v2941 = vshrl.u32 %v2940, 7
  %v2942 = vsub.s32 0, %v2941
  %v2943 = vrot.slane %v2410, %v2942
  %v2944 = vlaneseq
  %v2945 = vshrl.u32 %v2944, 7
  %v2946 = vsub.s32 0, %v2945
  %v2947 = vrot.slane %v2412, %v2946
  %v2948 = vlaneseq
  %v2949 = vshrl.u32 %v2948, 7
  %v2950 = vsub.s32 0, %v2949
  %v2951 = vrot.slane %v2414, %v2950
  %v2952 = vlaneseq
  %v2953 = vshrl.u32 %v2952, 7
  %v2954 = vsub.s32 0, %v2953
  %v2955 = vrot.slane %v2438, %v2954
  %v2956 = vlaneseq
  %v2957 = vshrl.u32 %v2956, 7
  %v2958 = vsub.s32 0, %v2957
  %v2959 = vrot.slane %v2452, %v2958
  %v2960 = vlaneseq
  %v2961 = vshrl.u32 %v2960, 7
  %v2962 = vsub.s32 0, %v2961
  %v2963 = vrot.slane %v2460, %v2962
  %v2964 = vlaneseq
  %v2965 = vshrl.u32 %v2964, 7
  %v2966 = vsub.s32 0, %v2965
  %v2967 = vrot.slane %v2462, %v2966
  %v2968 = vlaneseq
  %v2969 = vshrl.u32 %v2968, 7
  %v2970 = vsub.s32 0, %v2969
  %v2971 = vrot.slane %v2445, %v2970
  %v2972 = vlaneseq
  %v2973 = vshrl.u32 %v2972, 7
  %v2974 = vsub.s32 0, %v2973
  %v2975 = vrot.slane %v2459, %v2974
  %v2976 = vlaneseq
  %v2977 = vshrl.u32 %v2976, 7
  %v2978 = vsub.s32 0, %v2977
  %v2979 = vrot.slane %v2461, %v2978
  %v2980 = vlaneseq
  %v2981 = vshrl.u32 %v2980, 7
  %v2982 = vsub.s32 0, %v2981
  %v2983 = vrot.slane %v2463, %v2982
  %v2984 = vlaneseq
  %v2985 = vshrl.u32 %v2984, 7
  %v2986 = vsub.s32 0, %v2985
  %v2987 = vrot.slane %v2487, %v2986
  %v2988 = vlaneseq
  %v2989 = vshrl.u32 %v2988, 7
  %v2990 = vsub.s32 0, %v2989
  %v2991 = vrot.slane %v2501, %v2990
  %v2992 = vlaneseq
  %v2993 = vshrl.u32 %v2992, 7
  %v2994 = vsub.s32 0, %v2993
  %v2995 = vrot.slane %v2509, %v2994
  %v2996 = vlaneseq
  %v2997 = vshrl.u32 %v2996, 7
  %v2998 = vsub.s32 0, %v2997
  %v2999 = vrot.slane %v2511, %v2998
  %v3000 = vlaneseq
  %v3001 = vshrl.u32 %v3000, 7
  %v3002 = vsub.s32 0, %v3001
  %v3003 = vrot.slane %v2494, %v3002
  %v3004 = vlaneseq
  %v3005 = vshrl.u32 %v3004, 7
  %v3006 = vsub.s32 0, %v3005
  %v3007 = vrot.slane %v2508, %v3006
  %v3008 = vlaneseq
  %v3009 = vshrl.u32 %v3008, 7
  %v3010 = vsub.s32 0, %v3009
  %v3011 = vrot.slane %v2510, %v3010
  %v3012 = vlaneseq
  %v3013 = vshrl.u32 %v3012, 7
  %v3014 = vsub.s32 0, %v3013
  %v3015 = vrot.slane %v2512, %v3014
  %v3016 = vlaneseq
  %v3017 = vshrl.u32 %v3016, 7
  %v3018 = vsub.s32 0, %v3017
  %v3019 = vrot.slane %v2536, %v3018
  %v3020 = vlaneseq
  %v3021 = vshrl.u32 %v3020, 7
  %v3022 = vsub.s32 0, %v3021
  %v3023 = vrot.slane %v2550, %v3022
  %v3024 = vlaneseq
  %v3025 = vshrl.u32 %v3024, 7
  %v3026 = vsub.s32 0, %v3025
  %v3027 = vrot.slane %v2558, %v3026
  %v3028 = vlaneseq
  %v3029 = vshrl.u32 %v3028, 7
  %v3030 = vsub.s32 0, %v3029
  %v3031 = vrot.slane %v2560, %v3030
  %v3032 = vlaneseq
  %v3033 = vshrl.u32 %v3032, 7
  %v3034 = vsub.s32 0, %v3033
  %v3035 = vrot.slane %v2543, %v3034
  %v3036 = vlaneseq
  %v3037 = vshrl.u32 %v3036, 7
  %v3038 = vsub.s32 0, %v3037
  %v3039 = vrot.slane %v2557, %v3038
  %v3040 = vlaneseq
  %v3041 = vshrl.u32 %v3040, 7
  %v3042 = vsub.s32 0, %v3041
  %v3043 = vrot.slane %v2559, %v3042
  %v3044 = vlaneseq
  %v3045 = vshrl.u32 %v3044, 7
  %v3046 = vsub.s32 0, %v3045
  %v3047 = vrot.slane %v2561, %v3046
  %v3048 = vlaneseq
  %v3049 = vshrl.u32 %v3048, 7
  %v3050 = vsub.s32 0, %v3049
  %v3051 = vrot.slane %v2585, %v3050
  %v3052 = vlaneseq
  %v3053 = vshrl.u32 %v3052, 7
  %v3054 = vsub.s32 0, %v3053
  %v3055 = vrot.slane %v2599, %v3054
  %v3056 = vlaneseq
  %v3057 = vshrl.u32 %v3056, 7
  %v3058 = vsub.s32 0, %v3057
  %v3059 = vrot.slane %v2607, %v3058
  %v3060 = vlaneseq
  %v3061 = vshrl.u32 %v3060, 7
  %v3062 = vsub.s32 0, %v3061
  %v3063 = vrot.slane %v2609, %v3062
  %v3064 = vlaneseq
  %v3065 = vshrl.u32 %v3064, 7
  %v3066 = vsub.s32 0, %v3065
  %v3067 = vrot.slane %v2592, %v3066
  %v3068 = vlaneseq
  %v3069 = vshrl.u32 %v3068, 7
  %v3070 = vsub.s32 0, %v3069
  %v3071 = vrot.slane %v2606, %v3070
  %v3072 = vlaneseq
  %v3073 = vshrl.u32 %v3072, 7
  %v3074 = vsub.s32 0, %v3073
  %v3075 = vrot.slane %v2608, %v3074
  %v3076 = vlaneseq
  %v3077 = vshrl.u32 %v3076, 7
  %v3078 = vsub.s32 0, %v3077
  %v3079 = vrot.slane %v2610, %v3078
  %v3080 = vlaneseq
  %v3081 = vshrl.u32 %v3080, 7
  %v3082 = vsub.s32 0, %v3081
  %v3083 = vrot.slane %v2634, %v3082
  %v3084 = vlaneseq
  %v3085 = vshrl.u32 %v3084, 7
  %v3086 = vsub.s32 0, %v3085
  %v3087 = vrot.slane %v2648, %v3086
  %v3088 = vlaneseq
  %v3089 = vshrl.u32 %v3088, 7
  %v3090 = vsub.s32 0, %v3089
  %v3091 = vrot.slane %v2656, %v3090
  %v3092 = vlaneseq
  %v3093 = vshrl.u32 %v3092, 7
  %v3094 = vsub.s32 0, %v3093
  %v3095 = vrot.slane %v2658, %v3094
  %v3096 = vlaneseq
  %v3097 = vshrl.u32 %v3096, 7
  %v3098 = vsub.s32 0, %v3097
  %v3099 = vrot.slane %v2641, %v3098
  %v3100 = vlaneseq
  %v3101 = vshrl.u32 %v3100, 7
  %v3102 = vsub.s32 0, %v3101
  %v3103 = vrot.slane %v2655, %v3102
  %v3104 = vlaneseq
  %v3105 = vshrl.u32 %v3104, 7
  %v3106 = vsub.s32 0, %v3105
  %v3107 = vrot.slane %v2657, %v3106
  %v3108 = vlaneseq
  %v3109 = vshrl.u32 %v3108, 7
  %v3110 = vsub.s32 0, %v3109
  %v3111 = vrot.slane %v2659, %v3110
  %v3112 = vlaneseq
  %v3113 = vshrl.u32 %v3112, 7
  %v3114 = vsub.s32 0, %v3113
  %v3115 = vrot.slane %v2683, %v3114
  %v3116 = vlaneseq
  %v3117 = vshrl.u32 %v3116, 7
  %v3118 = vsub.s32 0, %v3117
  %v3119 = vrot.slane %v2697, %v3118
  %v3120 = vlaneseq
  %v3121 = vshrl.u32 %v3120, 7
  %v3122 = vsub.s32 0, %v3121
  %v3123 = vrot.slane %v2705, %v3122
  %v3124 = vlaneseq
  %v3125 = vshrl.u32 %v3124, 7
  %v3126 = vsub.s32 0, %v3125
  %v3127 = vrot.slane %v2707, %v3126
  %v3128 = vlaneseq
  %v3129 = vshrl.u32 %v3128, 7
  %v3130 = vsub.s32 0, %v3129
  %v3131 = vrot.slane %v2690, %v3130
  %v3132 = vlaneseq
  %v3133 = vshrl.u32 %v3132, 7
  %v3134 = vsub.s32 0, %v3133
  %v3135 = vrot.slane %v2704, %v3134
  %v3136 = vlaneseq
  %v3137 = vshrl.u32 %v3136, 7
  %v3138 = vsub.s32 0, %v3137
  %v3139 = vrot.slane %v2706, %v3138
  %v3140 = vlaneseq
  %v3141 = vshrl.u32 %v3140, 7
  %v3142 = vsub.s32 0, %v3141
  %v3143 = vrot.slane %v2708, %v3142
  %v3144 = vlaneseq
  %v3145 = vshrl.u32 %v3144, 7
  %v3146 = vsub.s32 0, %v3145
  %v3147 = vrot.slane %v2732, %v3146
  %v3148 = vlaneseq
  %v3149 = vshrl.u32 %v3148, 7
  %v3150 = vsub.s32 0, %v3149
  %v3151 = vrot.slane %v2746, %v3150
  %v3152 = vlaneseq
  %v3153 = vshrl.u32 %v3152, 7
  %v3154 = vsub.s32 0, %v3153
  %v3155 = vrot.slane %v2754, %v3154
  %v3156 = vlaneseq
  %v3157 = vshrl.u32 %v3156, 7
  %v3158 = vsub.s32 0, %v3157
  %v3159 = vrot.slane %v2756, %v3158
  %v3160 = vlaneseq
  %v3161 = vshrl.u32 %v3160, 7
  %v3162 = vsub.s32 0, %v3161
  %v3163 = vrot.slane %v2739, %v3162
  %v3164 = vlaneseq
  %v3165 = vshrl.u32 %v3164, 7
  %v3166 = vsub.s32 0, %v3165
  %v3167 = vrot.slane %v2753, %v3166
  %v3168 = vlaneseq
  %v3169 = vshrl.u32 %v3168, 7
  %v3170 = vsub.s32 0, %v3169
  %v3171 = vrot.slane %v2755, %v3170
  %v3172 = vlaneseq
  %v3173 = vshrl.u32 %v3172, 7
  %v3174 = vsub.s32 0, %v3173
  %v3175 = vrot.slane %v2757, %v3174
  %v3176 = vlaneseq
  %v3177 = vshrl.u32 %v3176, 7
  %v3178 = vsub.s32 0, %v3177
  %v3179 = vrot.slane %v2781, %v3178
  %v3180 = vlaneseq
  %v3181 = vshrl.u32 %v3180, 7
  %v3182 = vsub.s32 0, %v3181
  %v3183 = vrot.slane %v2795, %v3182
  %v3184 = vlaneseq
  %v3185 = vshrl.u32 %v3184, 7
  %v3186 = vsub.s32 0, %v3185
  %v3187 = vrot.slane %v2803, %v3186
  %v3188 = vlaneseq
  %v3189 = vshrl.u32 %v3188, 7
  %v3190 = vsub.s32 0, %v3189
  %v3191 = vrot.slane %v2805, %v3190
  %v3192 = vlaneseq
  %v3193 = vshrl.u32 %v3192, 7
  %v3194 = vsub.s32 0, %v3193
  %v3195 = vrot.slane %v2788, %v3194
  %v3196 = vlaneseq
  %v3197 = vshrl.u32 %v3196, 7
  %v3198 = vsub.s32 0, %v3197
  %v3199 = vrot.slane %v2802, %v3198
  %v3200 = vlaneseq
  %v3201 = vshrl.u32 %v3200, 7
  %v3202 = vsub.s32 0, %v3201
  %v3203 = vrot.slane %v2804, %v3202
  %v3204 = vlaneseq
  %v3205 = vshrl.u32 %v3204, 7
  %v3206 = vsub.s32 0, %v3205
  %v3207 = vrot.slane %v2806, %v3206
  %v3208 = vlaneseq
  %v3209 = vshrl.u32 %v3208, 7
  %v3210 = vsub.s32 0, %v3209
  %v3211 = vrot.slane %v2830, %v3210
  %v3212 = vlaneseq
  %v3213 = vshrl.u32 %v3212, 7
  %v3214 = vsub.s32 0, %v3213
  %v3215 = vrot.slane %v2844, %v3214
  %v3216 = vlaneseq
  %v3217 = vshrl.u32 %v3216, 7
  %v3218 = vsub.s32 0, %v3217
  %v3219 = vrot.slane %v2852, %v3218
  %v3220 = vlaneseq
  %v3221 = vshrl.u32 %v3220, 7
  %v3222 = vsub.s32 0, %v3221
  %v3223 = vrot.slane %v2854, %v3222
  %v3224 = vlaneseq
  %v3225 = vshrl.u32 %v3224, 7
  %v3226 = vsub.s32 0, %v3225
  %v3227 = vrot.slane %v2837, %v3226
  %v3228 = vlaneseq
  %v3229 = vshrl.u32 %v3228, 7
  %v3230 = vsub.s32 0, %v3229
  %v3231 = vrot.slane %v2851, %v3230
  %v3232 = vlaneseq
  %v3233 = vshrl.u32 %v3232, 7
  %v3234 = vsub.s32 0, %v3233
  %v3235 = vrot.slane %v2853, %v3234
  %v3236 = vlaneseq
  %v3237 = vshrl.u32 %v3236, 7
  %v3238 = vsub.s32 0, %v3237
  %v3239 = vrot.slane %v2855, %v3238
  %v3336 = vadd.f32 %v1527, %v2859
  %v3337 = vadd.f32 %v1530, %v2863
  %v3338 = vadd.f32 %v1535, %v2867
  %v3339 = vadd.f32 %v1538, %v2871
  %v3340 = vadd.f32 %v1543, %v2875
  %v3341 = vadd.f32 %v1546, %v2879
  %v3342 = vadd.f32 %v1551, %v2883
  %v3343 = vadd.f32 %v1554, %v2887
  %v3344 = vadd.f32 %v1559, %v2891
  %v3345 = vadd.f32 %v1562, %v2895
  %v3346 = vadd.f32 %v1567, %v2899
  %v3347 = vadd.f32 %v1570, %v2903
  %v3348 = vadd.f32 %v1575, %v2907
  %v3349 = vadd.f32 %v1578, %v2911
  %v3350 = vadd.f32 %v1583, %v2915
  %v3351 = vadd.f32 %v1586, %v2919
  %v3352 = vadd.f32 %v1591, %v2923
  %v3353 = vadd.f32 %v1594, %v2927
  %v3354 = vadd.f32 %v1599, %v2931
  %v3355 = vadd.f32 %v1602, %v2935
  %v3356 = vadd.f32 %v1607, %v2939
  %v3357 = vadd.f32 %v1610, %v2943
  %v3358 = vadd.f32 %v1615, %v2947
  %v3359 = vadd.f32 %v1618, %v2951
  %v3360 = vadd.f32 %v1623, %v2955
  %v3361 = vadd.f32 %v1626, %v2959
  %v3362 = vadd.f32 %v1631, %v2963
  %v3363 = vadd.f32 %v1634, %v2967
  %v3364 = vadd.f32 %v1639, %v2971
  %v3365 = vadd.f32 %v1642, %v2975
  %v3366 = vadd.f32 %v1647, %v2979
  %v3367 = vadd.f32 %v1650, %v2983
  %v3368 = vadd.f32 %v1655, %v2987
  %v3369 = vadd.f32 %v1658, %v2991
  %v3370 = vadd.f32 %v1663, %v2995
  %v3371 = vadd.f32 %v1666, %v2999
  %v3372 = vadd.f32 %v1671, %v3003
  %v3373 = vadd.f32 %v1674, %v3007
  %v3374 = vadd.f32 %v1679, %v3011
  %v3375 = vadd.f32 %v1682, %v3015
  %v3376 = vadd.f32 %v1687, %v3019
  %v3377 = vadd.f32 %v1690, %v3023
  %v3378 = vadd.f32 %v1695, %v3027
  %v3379 = vadd.f32 %v1698, %v3031
  %v3380 = vadd.f32 %v1703, %v3035
  %v3381 = vadd.f32 %v1706, %v3039
  %v3382 = vadd.f32 %v1711, %v3043
  %v3383 = vadd.f32 %v1714, %v3047
  %v3384 = vadd.f32 %v1719, %v3051
  %v3385 = vadd.f32 %v1722, %v3055
  %v3386 = vadd.f32 %v1727, %v3059
  %v3387 = vadd.f32 %v1730, %v3063
  %v3388 = vadd.f32 %v1735, %v3067
  %v3389 = vadd.f32 %v1738, %v3071
  %v3390 = vadd.f32 %v1743, %v3075
  %v3391 = vadd.f32 %v1746, %v3079
  %v3392 = vadd.f32 %v1751, %v3083
  %v3393 = vadd.f32 %v1754, %v3087
  %v3394 = vadd.f32 %v1759, %v3091
  %v3395 = vadd.f32 %v1762, %v3095
  %v3396 = vadd.f32 %v1767, %v3099
  %v3397 = vadd.f32 %v1770, %v3103
  %v3398 = vadd.f32 %v1775, %v3107
  %v3399 = vadd.f32 %v1778, %v3111
  %v3400 = vadd.f32 %v1783, %v3115
  %v3401 = vadd.f32 %v1786, %v3119
  %v3402 = vadd.f32 %v1791, %v3123
  %v3403 = vadd.f32 %v1794, %v3127
  %v3404 = vadd.f32 %v1799, %v3131
  %v3405 = vadd.f32 %v1802, %v3135
  %v3406 = vadd.f32 %v1807, %v3139
  %v3407 = vadd.f32 %v1810, %v3143
  %v3408 = vadd.f32 %v1815, %v3147
  %v3409 = vadd.f32 %v1818, %v3151
  %v3410 = vadd.f32 %v1823, %v3155
  %v3411 = vadd.f32 %v1826, %v3159
  %v3412 = vadd.f32 %v1831, %v3163
  %v3413 = vadd.f32 %v1834, %v3167
  %v3414 = vadd.f32 %v1839, %v3171
  %v3415 = vadd.f32 %v1842, %v3175
  %v3416 = vadd.f32 %v1847, %v3179
  %v3417 = vadd.f32 %v1850, %v3183
  %v3418 = vadd.f32 %v1855, %v3187
  %v3419 = vadd.f32 %v1858, %v3191
  %v3420 = vadd.f32 %v1863, %v3195
  %v3421 = vadd.f32 %v1866, %v3199
  %v3422 = vadd.f32 %v1871, %v3203
  %v3423 = vadd.f32 %v1874, %v3207
  %v3424 = vadd.f32 %v1879, %v3211
  %v3425 = vadd.f32 %v1882, %v3215
  %v3426 = vadd.f32 %v1887, %v3219
  %v3427 = vadd.f32 %v1890, %v3223
  %v3428 = vadd.f32 %v1895, %v3227
  %v3429 = vadd.f32 %v1898, %v3231
  %v3430 = vadd.f32 %v1903, %v3235
  %v3431 = vadd.f32 %v1906, %v3239
  %v3432 = vld [vmem:[%s4] sm:$0xff]
  %v3433 = vld [vmem:[%s4 + $0x8] sm:$0xff]
  %v3434 = vld [vmem:[%s4 + $0x10] sm:$0xff]
  %v3435 = vld [vmem:[%s4 + $0x18] sm:$0xff]
  %v3436 = vld [vmem:[%s4 + $0x20] sm:$0xff]
  %v3437 = vld [vmem:[%s4 + $0x28] sm:$0xff]
  %v3438 = vld [vmem:[%s4 + $0x30] sm:$0xff]
  %v3439 = vld [vmem:[%s4 + $0x38] sm:$0xff]
  %v3440 = vld [vmem:[%s4 + $0x40] sm:$0xff]
  %v3441 = vld [vmem:[%s4 + $0x48] sm:$0xff]
  %v3442 = vld [vmem:[%s4 + $0x50] sm:$0xff]
  %v3443 = vld [vmem:[%s4 + $0x58] sm:$0xff]
  %v3456 = vcombine.high %v3432, %v3432
  %v3458 = vunpack.c.l.s4 1966171168
  %v3459 = vunpack.c.0.s8 %v3458
  %v3460 = vlaneseq
  %v3461 = vshrl.u32 %v3460, 7
  %v3462 = vsub.s32 %v3459, %v3461
  %v3463 = vrot.slane %v3432, %v3462
  %v3465 = vunpack.c.l.s4 1966171168
  %v3466 = vunpack.c.0.s8 %v3465
  %v3467 = vlaneseq
  %v3468 = vshrl.u32 %v3467, 7
  %v3469 = vsub.s32 %v3466, %v3468
  %v3470 = vrot.slane %v3456, %v3469
  %v3471 = vcombine.high %v3463, %v3463
  %v3472 = vcombine.high %v3470, %v3470
  %v3474 = vunpack.c.l.s4 1966171168
  %v3475 = vunpack.c.0.s8 %v3474
  %v3476 = vlaneseq
  %v3477 = vshrl.u32 %v3476, 7
  %v3478 = vsub.s32 %v3475, %v3477
  %v3479 = vrot.slane %v3463, %v3478
  %v3481 = vunpack.c.l.s4 1966171168
  %v3482 = vunpack.c.0.s8 %v3481
  %v3483 = vlaneseq
  %v3484 = vshrl.u32 %v3483, 7
  %v3485 = vsub.s32 %v3482, %v3484
  %v3486 = vrot.slane %v3470, %v3485
  %v3488 = vunpack.c.l.s4 1966171168
  %v3489 = vunpack.c.0.s8 %v3488
  %v3490 = vlaneseq
  %v3491 = vshrl.u32 %v3490, 7
  %v3492 = vsub.s32 %v3489, %v3491
  %v3493 = vrot.slane %v3471, %v3492
  %v3495 = vunpack.c.l.s4 1966171168
  %v3496 = vunpack.c.0.s8 %v3495
  %v3497 = vlaneseq
  %v3498 = vshrl.u32 %v3497, 7
  %v3499 = vsub.s32 %v3496, %v3498
  %v3500 = vrot.slane %v3472, %v3499
  %v3501 = vcombine.high %v3479, %v3479
  %v3502 = vcombine.high %v3486, %v3486
  %v3503 = vcombine.high %v3493, %v3493
  %v3504 = vcombine.high %v3500, %v3500
  %v3505 = vcombine.high %v3433, %v3433
  %v3507 = vunpack.c.l.s4 1966171168
  %v3508 = vunpack.c.0.s8 %v3507
  %v3509 = vlaneseq
  %v3510 = vshrl.u32 %v3509, 7
  %v3511 = vsub.s32 %v3508, %v3510
  %v3512 = vrot.slane %v3433, %v3511
  %v3514 = vunpack.c.l.s4 1966171168
  %v3515 = vunpack.c.0.s8 %v3514
  %v3516 = vlaneseq
  %v3517 = vshrl.u32 %v3516, 7
  %v3518 = vsub.s32 %v3515, %v3517
  %v3519 = vrot.slane %v3505, %v3518
  %v3520 = vcombine.high %v3512, %v3512
  %v3521 = vcombine.high %v3519, %v3519
  %v3523 = vunpack.c.l.s4 1966171168
  %v3524 = vunpack.c.0.s8 %v3523
  %v3525 = vlaneseq
  %v3526 = vshrl.u32 %v3525, 7
  %v3527 = vsub.s32 %v3524, %v3526
  %v3528 = vrot.slane %v3512, %v3527
  %v3530 = vunpack.c.l.s4 1966171168
  %v3531 = vunpack.c.0.s8 %v3530
  %v3532 = vlaneseq
  %v3533 = vshrl.u32 %v3532, 7
  %v3534 = vsub.s32 %v3531, %v3533
  %v3535 = vrot.slane %v3519, %v3534
  %v3537 = vunpack.c.l.s4 1966171168
  %v3538 = vunpack.c.0.s8 %v3537
  %v3539 = vlaneseq
  %v3540 = vshrl.u32 %v3539, 7
  %v3541 = vsub.s32 %v3538, %v3540
  %v3542 = vrot.slane %v3520, %v3541
  %v3544 = vunpack.c.l.s4 1966171168
  %v3545 = vunpack.c.0.s8 %v3544
  %v3546 = vlaneseq
  %v3547 = vshrl.u32 %v3546, 7
  %v3548 = vsub.s32 %v3545, %v3547
  %v3549 = vrot.slane %v3521, %v3548
  %v3550 = vcombine.high %v3528, %v3528
  %v3551 = vcombine.high %v3535, %v3535
  %v3552 = vcombine.high %v3542, %v3542
  %v3553 = vcombine.high %v3549, %v3549
  %v3554 = vcombine.high %v3434, %v3434
  %v3556 = vunpack.c.l.s4 1966171168
  %v3557 = vunpack.c.0.s8 %v3556
  %v3558 = vlaneseq
  %v3559 = vshrl.u32 %v3558, 7
  %v3560 = vsub.s32 %v3557, %v3559
  %v3561 = vrot.slane %v3434, %v3560
  %v3563 = vunpack.c.l.s4 1966171168
  %v3564 = vunpack.c.0.s8 %v3563
  %v3565 = vlaneseq
  %v3566 = vshrl.u32 %v3565, 7
  %v3567 = vsub.s32 %v3564, %v3566
  %v3568 = vrot.slane %v3554, %v3567
  %v3569 = vcombine.high %v3561, %v3561
  %v3570 = vcombine.high %v3568, %v3568
  %v3572 = vunpack.c.l.s4 1966171168
  %v3573 = vunpack.c.0.s8 %v3572
  %v3574 = vlaneseq
  %v3575 = vshrl.u32 %v3574, 7
  %v3576 = vsub.s32 %v3573, %v3575
  %v3577 = vrot.slane %v3561, %v3576
  %v3579 = vunpack.c.l.s4 1966171168
  %v3580 = vunpack.c.0.s8 %v3579
  %v3581 = vlaneseq
  %v3582 = vshrl.u32 %v3581, 7
  %v3583 = vsub.s32 %v3580, %v3582
  %v3584 = vrot.slane %v3568, %v3583
  %v3586 = vunpack.c.l.s4 1966171168
  %v3587 = vunpack.c.0.s8 %v3586
  %v3588 = vlaneseq
  %v3589 = vshrl.u32 %v3588, 7
  %v3590 = vsub.s32 %v3587, %v3589
  %v3591 = vrot.slane %v3569, %v3590
  %v3593 = vunpack.c.l.s4 1966171168
  %v3594 = vunpack.c.0.s8 %v3593
  %v3595 = vlaneseq
  %v3596 = vshrl.u32 %v3595, 7
  %v3597 = vsub.s32 %v3594, %v3596
  %v3598 = vrot.slane %v3570, %v3597
  %v3599 = vcombine.high %v3577, %v3577
  %v3600 = vcombine.high %v3584, %v3584
  %v3601 = vcombine.high %v3591, %v3591
  %v3602 = vcombine.high %v3598, %v3598
  %v3603 = vcombine.high %v3435, %v3435
  %v3605 = vunpack.c.l.s4 1966171168
  %v3606 = vunpack.c.0.s8 %v3605
  %v3607 = vlaneseq
  %v3608 = vshrl.u32 %v3607, 7
  %v3609 = vsub.s32 %v3606, %v3608
  %v3610 = vrot.slane %v3435, %v3609
  %v3612 = vunpack.c.l.s4 1966171168
  %v3613 = vunpack.c.0.s8 %v3612
  %v3614 = vlaneseq
  %v3615 = vshrl.u32 %v3614, 7
  %v3616 = vsub.s32 %v3613, %v3615
  %v3617 = vrot.slane %v3603, %v3616
  %v3618 = vcombine.high %v3610, %v3610
  %v3619 = vcombine.high %v3617, %v3617
  %v3621 = vunpack.c.l.s4 1966171168
  %v3622 = vunpack.c.0.s8 %v3621
  %v3623 = vlaneseq
  %v3624 = vshrl.u32 %v3623, 7
  %v3625 = vsub.s32 %v3622, %v3624
  %v3626 = vrot.slane %v3610, %v3625
  %v3628 = vunpack.c.l.s4 1966171168
  %v3629 = vunpack.c.0.s8 %v3628
  %v3630 = vlaneseq
  %v3631 = vshrl.u32 %v3630, 7
  %v3632 = vsub.s32 %v3629, %v3631
  %v3633 = vrot.slane %v3617, %v3632
  %v3635 = vunpack.c.l.s4 1966171168
  %v3636 = vunpack.c.0.s8 %v3635
  %v3637 = vlaneseq
  %v3638 = vshrl.u32 %v3637, 7
  %v3639 = vsub.s32 %v3636, %v3638
  %v3640 = vrot.slane %v3618, %v3639
  %v3642 = vunpack.c.l.s4 1966171168
  %v3643 = vunpack.c.0.s8 %v3642
  %v3644 = vlaneseq
  %v3645 = vshrl.u32 %v3644, 7
  %v3646 = vsub.s32 %v3643, %v3645
  %v3647 = vrot.slane %v3619, %v3646
  %v3648 = vcombine.high %v3626, %v3626
  %v3649 = vcombine.high %v3633, %v3633
  %v3650 = vcombine.high %v3640, %v3640
  %v3651 = vcombine.high %v3647, %v3647
  %v3652 = vcombine.high %v3436, %v3436
  %v3654 = vunpack.c.l.s4 1966171168
  %v3655 = vunpack.c.0.s8 %v3654
  %v3656 = vlaneseq
  %v3657 = vshrl.u32 %v3656, 7
  %v3658 = vsub.s32 %v3655, %v3657
  %v3659 = vrot.slane %v3436, %v3658
  %v3661 = vunpack.c.l.s4 1966171168
  %v3662 = vunpack.c.0.s8 %v3661
  %v3663 = vlaneseq
  %v3664 = vshrl.u32 %v3663, 7
  %v3665 = vsub.s32 %v3662, %v3664
  %v3666 = vrot.slane %v3652, %v3665
  %v3667 = vcombine.high %v3659, %v3659
  %v3668 = vcombine.high %v3666, %v3666
  %v3670 = vunpack.c.l.s4 1966171168
  %v3671 = vunpack.c.0.s8 %v3670
  %v3672 = vlaneseq
  %v3673 = vshrl.u32 %v3672, 7
  %v3674 = vsub.s32 %v3671, %v3673
  %v3675 = vrot.slane %v3659, %v3674
  %v3677 = vunpack.c.l.s4 1966171168
  %v3678 = vunpack.c.0.s8 %v3677
  %v3679 = vlaneseq
  %v3680 = vshrl.u32 %v3679, 7
  %v3681 = vsub.s32 %v3678, %v3680
  %v3682 = vrot.slane %v3666, %v3681
  %v3684 = vunpack.c.l.s4 1966171168
  %v3685 = vunpack.c.0.s8 %v3684
  %v3686 = vlaneseq
  %v3687 = vshrl.u32 %v3686, 7
  %v3688 = vsub.s32 %v3685, %v3687
  %v3689 = vrot.slane %v3667, %v3688
  %v3691 = vunpack.c.l.s4 1966171168
  %v3692 = vunpack.c.0.s8 %v3691
  %v3693 = vlaneseq
  %v3694 = vshrl.u32 %v3693, 7
  %v3695 = vsub.s32 %v3692, %v3694
  %v3696 = vrot.slane %v3668, %v3695
  %v3697 = vcombine.high %v3675, %v3675
  %v3698 = vcombine.high %v3682, %v3682
  %v3699 = vcombine.high %v3689, %v3689
  %v3700 = vcombine.high %v3696, %v3696
  %v3701 = vcombine.high %v3437, %v3437
  %v3703 = vunpack.c.l.s4 1966171168
  %v3704 = vunpack.c.0.s8 %v3703
  %v3705 = vlaneseq
  %v3706 = vshrl.u32 %v3705, 7
  %v3707 = vsub.s32 %v3704, %v3706
  %v3708 = vrot.slane %v3437, %v3707
  %v3710 = vunpack.c.l.s4 1966171168
  %v3711 = vunpack.c.0.s8 %v3710
  %v3712 = vlaneseq
  %v3713 = vshrl.u32 %v3712, 7
  %v3714 = vsub.s32 %v3711, %v3713
  %v3715 = vrot.slane %v3701, %v3714
  %v3716 = vcombine.high %v3708, %v3708
  %v3717 = vcombine.high %v3715, %v3715
  %v3719 = vunpack.c.l.s4 1966171168
  %v3720 = vunpack.c.0.s8 %v3719
  %v3721 = vlaneseq
  %v3722 = vshrl.u32 %v3721, 7
  %v3723 = vsub.s32 %v3720, %v3722
  %v3724 = vrot.slane %v3708, %v3723
  %v3726 = vunpack.c.l.s4 1966171168
  %v3727 = vunpack.c.0.s8 %v3726
  %v3728 = vlaneseq
  %v3729 = vshrl.u32 %v3728, 7
  %v3730 = vsub.s32 %v3727, %v3729
  %v3731 = vrot.slane %v3715, %v3730
  %v3733 = vunpack.c.l.s4 1966171168
  %v3734 = vunpack.c.0.s8 %v3733
  %v3735 = vlaneseq
  %v3736 = vshrl.u32 %v3735, 7
  %v3737 = vsub.s32 %v3734, %v3736
  %v3738 = vrot.slane %v3716, %v3737
  %v3740 = vunpack.c.l.s4 1966171168
  %v3741 = vunpack.c.0.s8 %v3740
  %v3742 = vlaneseq
  %v3743 = vshrl.u32 %v3742, 7
  %v3744 = vsub.s32 %v3741, %v3743
  %v3745 = vrot.slane %v3717, %v3744
  %v3746 = vcombine.high %v3724, %v3724
  %v3747 = vcombine.high %v3731, %v3731
  %v3748 = vcombine.high %v3738, %v3738
  %v3749 = vcombine.high %v3745, %v3745
  %v3750 = vcombine.high %v3438, %v3438
  %v3752 = vunpack.c.l.s4 1966171168
  %v3753 = vunpack.c.0.s8 %v3752
  %v3754 = vlaneseq
  %v3755 = vshrl.u32 %v3754, 7
  %v3756 = vsub.s32 %v3753, %v3755
  %v3757 = vrot.slane %v3438, %v3756
  %v3759 = vunpack.c.l.s4 1966171168
  %v3760 = vunpack.c.0.s8 %v3759
  %v3761 = vlaneseq
  %v3762 = vshrl.u32 %v3761, 7
  %v3763 = vsub.s32 %v3760, %v3762
  %v3764 = vrot.slane %v3750, %v3763
  %v3765 = vcombine.high %v3757, %v3757
  %v3766 = vcombine.high %v3764, %v3764
  %v3768 = vunpack.c.l.s4 1966171168
  %v3769 = vunpack.c.0.s8 %v3768
  %v3770 = vlaneseq
  %v3771 = vshrl.u32 %v3770, 7
  %v3772 = vsub.s32 %v3769, %v3771
  %v3773 = vrot.slane %v3757, %v3772
  %v3775 = vunpack.c.l.s4 1966171168
  %v3776 = vunpack.c.0.s8 %v3775
  %v3777 = vlaneseq
  %v3778 = vshrl.u32 %v3777, 7
  %v3779 = vsub.s32 %v3776, %v3778
  %v3780 = vrot.slane %v3764, %v3779
  %v3782 = vunpack.c.l.s4 1966171168
  %v3783 = vunpack.c.0.s8 %v3782
  %v3784 = vlaneseq
  %v3785 = vshrl.u32 %v3784, 7
  %v3786 = vsub.s32 %v3783, %v3785
  %v3787 = vrot.slane %v3765, %v3786
  %v3789 = vunpack.c.l.s4 1966171168
  %v3790 = vunpack.c.0.s8 %v3789
  %v3791 = vlaneseq
  %v3792 = vshrl.u32 %v3791, 7
  %v3793 = vsub.s32 %v3790, %v3792
  %v3794 = vrot.slane %v3766, %v3793
  %v3795 = vcombine.high %v3773, %v3773
  %v3796 = vcombine.high %v3780, %v3780
  %v3797 = vcombine.high %v3787, %v3787
  %v3798 = vcombine.high %v3794, %v3794
  %v3799 = vcombine.high %v3439, %v3439
  %v3801 = vunpack.c.l.s4 1966171168
  %v3802 = vunpack.c.0.s8 %v3801
  %v3803 = vlaneseq
  %v3804 = vshrl.u32 %v3803, 7
  %v3805 = vsub.s32 %v3802, %v3804
  %v3806 = vrot.slane %v3439, %v3805
  %v3808 = vunpack.c.l.s4 1966171168
  %v3809 = vunpack.c.0.s8 %v3808
  %v3810 = vlaneseq
  %v3811 = vshrl.u32 %v3810, 7
  %v3812 = vsub.s32 %v3809, %v3811
  %v3813 = vrot.slane %v3799, %v3812
  %v3814 = vcombine.high %v3806, %v3806
  %v3815 = vcombine.high %v3813, %v3813
  %v3817 = vunpack.c.l.s4 1966171168
  %v3818 = vunpack.c.0.s8 %v3817
  %v3819 = vlaneseq
  %v3820 = vshrl.u32 %v3819, 7
  %v3821 = vsub.s32 %v3818, %v3820
  %v3822 = vrot.slane %v3806, %v3821
  %v3824 = vunpack.c.l.s4 1966171168
  %v3825 = vunpack.c.0.s8 %v3824
  %v3826 = vlaneseq
  %v3827 = vshrl.u32 %v3826, 7
  %v3828 = vsub.s32 %v3825, %v3827
  %v3829 = vrot.slane %v3813, %v3828
  %v3831 = vunpack.c.l.s4 1966171168
  %v3832 = vunpack.c.0.s8 %v3831
  %v3833 = vlaneseq
  %v3834 = vshrl.u32 %v3833, 7
  %v3835 = vsub.s32 %v3832, %v3834
  %v3836 = vrot.slane %v3814, %v3835
  %v3838 = vunpack.c.l.s4 1966171168
  %v3839 = vunpack.c.0.s8 %v3838
  %v3840 = vlaneseq
  %v3841 = vshrl.u32 %v3840, 7
  %v3842 = vsub.s32 %v3839, %v3841
  %v3843 = vrot.slane %v3815, %v3842
  %v3844 = vcombine.high %v3822, %v3822
  %v3845 = vcombine.high %v3829, %v3829
  %v3846 = vcombine.high %v3836, %v3836
  %v3847 = vcombine.high %v3843, %v3843
  %v3848 = vcombine.high %v3440, %v3440
  %v3850 = vunpack.c.l.s4 1966171168
  %v3851 = vunpack.c.0.s8 %v3850
  %v3852 = vlaneseq
  %v3853 = vshrl.u32 %v3852, 7
  %v3854 = vsub.s32 %v3851, %v3853
  %v3855 = vrot.slane %v3440, %v3854
  %v3857 = vunpack.c.l.s4 1966171168
  %v3858 = vunpack.c.0.s8 %v3857
  %v3859 = vlaneseq
  %v3860 = vshrl.u32 %v3859, 7
  %v3861 = vsub.s32 %v3858, %v3860
  %v3862 = vrot.slane %v3848, %v3861
  %v3863 = vcombine.high %v3855, %v3855
  %v3864 = vcombine.high %v3862, %v3862
  %v3866 = vunpack.c.l.s4 1966171168
  %v3867 = vunpack.c.0.s8 %v3866
  %v3868 = vlaneseq
  %v3869 = vshrl.u32 %v3868, 7
  %v3870 = vsub.s32 %v3867, %v3869
  %v3871 = vrot.slane %v3855, %v3870
  %v3873 = vunpack.c.l.s4 1966171168
  %v3874 = vunpack.c.0.s8 %v3873
  %v3875 = vlaneseq
  %v3876 = vshrl.u32 %v3875, 7
  %v3877 = vsub.s32 %v3874, %v3876
  %v3878 = vrot.slane %v3862, %v3877
  %v3880 = vunpack.c.l.s4 1966171168
  %v3881 = vunpack.c.0.s8 %v3880
  %v3882 = vlaneseq
  %v3883 = vshrl.u32 %v3882, 7
  %v3884 = vsub.s32 %v3881, %v3883
  %v3885 = vrot.slane %v3863, %v3884
  %v3887 = vunpack.c.l.s4 1966171168
  %v3888 = vunpack.c.0.s8 %v3887
  %v3889 = vlaneseq
  %v3890 = vshrl.u32 %v3889, 7
  %v3891 = vsub.s32 %v3888, %v3890
  %v3892 = vrot.slane %v3864, %v3891
  %v3893 = vcombine.high %v3871, %v3871
  %v3894 = vcombine.high %v3878, %v3878
  %v3895 = vcombine.high %v3885, %v3885
  %v3896 = vcombine.high %v3892, %v3892
  %v3897 = vcombine.high %v3441, %v3441
  %v3899 = vunpack.c.l.s4 1966171168
  %v3900 = vunpack.c.0.s8 %v3899
  %v3901 = vlaneseq
  %v3902 = vshrl.u32 %v3901, 7
  %v3903 = vsub.s32 %v3900, %v3902
  %v3904 = vrot.slane %v3441, %v3903
  %v3906 = vunpack.c.l.s4 1966171168
  %v3907 = vunpack.c.0.s8 %v3906
  %v3908 = vlaneseq
  %v3909 = vshrl.u32 %v3908, 7
  %v3910 = vsub.s32 %v3907, %v3909
  %v3911 = vrot.slane %v3897, %v3910
  %v3912 = vcombine.high %v3904, %v3904
  %v3913 = vcombine.high %v3911, %v3911
  %v3915 = vunpack.c.l.s4 1966171168
  %v3916 = vunpack.c.0.s8 %v3915
  %v3917 = vlaneseq
  %v3918 = vshrl.u32 %v3917, 7
  %v3919 = vsub.s32 %v3916, %v3918
  %v3920 = vrot.slane %v3904, %v3919
  %v3922 = vunpack.c.l.s4 1966171168
  %v3923 = vunpack.c.0.s8 %v3922
  %v3924 = vlaneseq
  %v3925 = vshrl.u32 %v3924, 7
  %v3926 = vsub.s32 %v3923, %v3925
  %v3927 = vrot.slane %v3911, %v3926
  %v3929 = vunpack.c.l.s4 1966171168
  %v3930 = vunpack.c.0.s8 %v3929
  %v3931 = vlaneseq
  %v3932 = vshrl.u32 %v3931, 7
  %v3933 = vsub.s32 %v3930, %v3932
  %v3934 = vrot.slane %v3912, %v3933
  %v3936 = vunpack.c.l.s4 1966171168
  %v3937 = vunpack.c.0.s8 %v3936
  %v3938 = vlaneseq
  %v3939 = vshrl.u32 %v3938, 7
  %v3940 = vsub.s32 %v3937, %v3939
  %v3941 = vrot.slane %v3913, %v3940
  %v3942 = vcombine.high %v3920, %v3920
  %v3943 = vcombine.high %v3927, %v3927
  %v3944 = vcombine.high %v3934, %v3934
  %v3945 = vcombine.high %v3941, %v3941
  %v3946 = vcombine.high %v3442, %v3442
  %v3948 = vunpack.c.l.s4 1966171168
  %v3949 = vunpack.c.0.s8 %v3948
  %v3950 = vlaneseq
  %v3951 = vshrl.u32 %v3950, 7
  %v3952 = vsub.s32 %v3949, %v3951
  %v3953 = vrot.slane %v3442, %v3952
  %v3955 = vunpack.c.l.s4 1966171168
  %v3956 = vunpack.c.0.s8 %v3955
  %v3957 = vlaneseq
  %v3958 = vshrl.u32 %v3957, 7
  %v3959 = vsub.s32 %v3956, %v3958
  %v3960 = vrot.slane %v3946, %v3959
  %v3961 = vcombine.high %v3953, %v3953
  %v3962 = vcombine.high %v3960, %v3960
  %v3964 = vunpack.c.l.s4 1966171168
  %v3965 = vunpack.c.0.s8 %v3964
  %v3966 = vlaneseq
  %v3967 = vshrl.u32 %v3966, 7
  %v3968 = vsub.s32 %v3965, %v3967
  %v3969 = vrot.slane %v3953, %v3968
  %v3971 = vunpack.c.l.s4 1966171168
  %v3972 = vunpack.c.0.s8 %v3971
  %v3973 = vlaneseq
  %v3974 = vshrl.u32 %v3973, 7
  %v3975 = vsub.s32 %v3972, %v3974
  %v3976 = vrot.slane %v3960, %v3975
  %v3978 = vunpack.c.l.s4 1966171168
  %v3979 = vunpack.c.0.s8 %v3978
  %v3980 = vlaneseq
  %v3981 = vshrl.u32 %v3980, 7
  %v3982 = vsub.s32 %v3979, %v3981
  %v3983 = vrot.slane %v3961, %v3982
  %v3985 = vunpack.c.l.s4 1966171168
  %v3986 = vunpack.c.0.s8 %v3985
  %v3987 = vlaneseq
  %v3988 = vshrl.u32 %v3987, 7
  %v3989 = vsub.s32 %v3986, %v3988
  %v3990 = vrot.slane %v3962, %v3989
  %v3991 = vcombine.high %v3969, %v3969
  %v3992 = vcombine.high %v3976, %v3976
  %v3993 = vcombine.high %v3983, %v3983
  %v3994 = vcombine.high %v3990, %v3990
  %v3995 = vcombine.high %v3443, %v3443
  %v3997 = vunpack.c.l.s4 1966171168
  %v3998 = vunpack.c.0.s8 %v3997
  %v3999 = vlaneseq
  %v4000 = vshrl.u32 %v3999, 7
  %v4001 = vsub.s32 %v3998, %v4000
  %v4002 = vrot.slane %v3443, %v4001
  %v4004 = vunpack.c.l.s4 1966171168
  %v4005 = vunpack.c.0.s8 %v4004
  %v4006 = vlaneseq
  %v4007 = vshrl.u32 %v4006, 7
  %v4008 = vsub.s32 %v4005, %v4007
  %v4009 = vrot.slane %v3995, %v4008
  %v4010 = vcombine.high %v4002, %v4002
  %v4011 = vcombine.high %v4009, %v4009
  %v4013 = vunpack.c.l.s4 1966171168
  %v4014 = vunpack.c.0.s8 %v4013
  %v4015 = vlaneseq
  %v4016 = vshrl.u32 %v4015, 7
  %v4017 = vsub.s32 %v4014, %v4016
  %v4018 = vrot.slane %v4002, %v4017
  %v4020 = vunpack.c.l.s4 1966171168
  %v4021 = vunpack.c.0.s8 %v4020
  %v4022 = vlaneseq
  %v4023 = vshrl.u32 %v4022, 7
  %v4024 = vsub.s32 %v4021, %v4023
  %v4025 = vrot.slane %v4009, %v4024
  %v4027 = vunpack.c.l.s4 1966171168
  %v4028 = vunpack.c.0.s8 %v4027
  %v4029 = vlaneseq
  %v4030 = vshrl.u32 %v4029, 7
  %v4031 = vsub.s32 %v4028, %v4030
  %v4032 = vrot.slane %v4010, %v4031
  %v4034 = vunpack.c.l.s4 1966171168
  %v4035 = vunpack.c.0.s8 %v4034
  %v4036 = vlaneseq
  %v4037 = vshrl.u32 %v4036, 7
  %v4038 = vsub.s32 %v4035, %v4037
  %v4039 = vrot.slane %v4011, %v4038
  %v4040 = vcombine.high %v4018, %v4018
  %v4041 = vcombine.high %v4025, %v4025
  %v4042 = vcombine.high %v4032, %v4032
  %v4043 = vcombine.high %v4039, %v4039
  %v4044 = vlaneseq
  %v4045 = vshrl.u32 %v4044, 7
  %v4046 = vsub.s32 0, %v4045
  %v4047 = vrot.slane %v3479, %v4046
  %v4048 = vlaneseq
  %v4049 = vshrl.u32 %v4048, 7
  %v4050 = vsub.s32 0, %v4049
  %v4051 = vrot.slane %v3493, %v4050
  %v4052 = vlaneseq
  %v4053 = vshrl.u32 %v4052, 7
  %v4054 = vsub.s32 0, %v4053
  %v4055 = vrot.slane %v3501, %v4054
  %v4056 = vlaneseq
  %v4057 = vshrl.u32 %v4056, 7
  %v4058 = vsub.s32 0, %v4057
  %v4059 = vrot.slane %v3503, %v4058
  %v4060 = vlaneseq
  %v4061 = vshrl.u32 %v4060, 7
  %v4062 = vsub.s32 0, %v4061
  %v4063 = vrot.slane %v3486, %v4062
  %v4064 = vlaneseq
  %v4065 = vshrl.u32 %v4064, 7
  %v4066 = vsub.s32 0, %v4065
  %v4067 = vrot.slane %v3500, %v4066
  %v4068 = vlaneseq
  %v4069 = vshrl.u32 %v4068, 7
  %v4070 = vsub.s32 0, %v4069
  %v4071 = vrot.slane %v3502, %v4070
  %v4072 = vlaneseq
  %v4073 = vshrl.u32 %v4072, 7
  %v4074 = vsub.s32 0, %v4073
  %v4075 = vrot.slane %v3504, %v4074
  %v4076 = vlaneseq
  %v4077 = vshrl.u32 %v4076, 7
  %v4078 = vsub.s32 0, %v4077
  %v4079 = vrot.slane %v3528, %v4078
  %v4080 = vlaneseq
  %v4081 = vshrl.u32 %v4080, 7
  %v4082 = vsub.s32 0, %v4081
  %v4083 = vrot.slane %v3542, %v4082
  %v4084 = vlaneseq
  %v4085 = vshrl.u32 %v4084, 7
  %v4086 = vsub.s32 0, %v4085
  %v4087 = vrot.slane %v3550, %v4086
  %v4088 = vlaneseq
  %v4089 = vshrl.u32 %v4088, 7
  %v4090 = vsub.s32 0, %v4089
  %v4091 = vrot.slane %v3552, %v4090
  %v4092 = vlaneseq
  %v4093 = vshrl.u32 %v4092, 7
  %v4094 = vsub.s32 0, %v4093
  %v4095 = vrot.slane %v3535, %v4094
  %v4096 = vlaneseq
  %v4097 = vshrl.u32 %v4096, 7
  %v4098 = vsub.s32 0, %v4097
  %v4099 = vrot.slane %v3549, %v4098
  %v4100 = vlaneseq
  %v4101 = vshrl.u32 %v4100, 7
  %v4102 = vsub.s32 0, %v4101
  %v4103 = vrot.slane %v3551, %v4102
  %v4104 = vlaneseq
  %v4105 = vshrl.u32 %v4104, 7
  %v4106 = vsub.s32 0, %v4105
  %v4107 = vrot.slane %v3553, %v4106
  %v4108 = vlaneseq
  %v4109 = vshrl.u32 %v4108, 7
  %v4110 = vsub.s32 0, %v4109
  %v4111 = vrot.slane %v3577, %v4110
  %v4112 = vlaneseq
  %v4113 = vshrl.u32 %v4112, 7
  %v4114 = vsub.s32 0, %v4113
  %v4115 = vrot.slane %v3591, %v4114
  %v4116 = vlaneseq
  %v4117 = vshrl.u32 %v4116, 7
  %v4118 = vsub.s32 0, %v4117
  %v4119 = vrot.slane %v3599, %v4118
  %v4120 = vlaneseq
  %v4121 = vshrl.u32 %v4120, 7
  %v4122 = vsub.s32 0, %v4121
  %v4123 = vrot.slane %v3601, %v4122
  %v4124 = vlaneseq
  %v4125 = vshrl.u32 %v4124, 7
  %v4126 = vsub.s32 0, %v4125
  %v4127 = vrot.slane %v3584, %v4126
  %v4128 = vlaneseq
  %v4129 = vshrl.u32 %v4128, 7
  %v4130 = vsub.s32 0, %v4129
  %v4131 = vrot.slane %v3598, %v4130
  %v4132 = vlaneseq
  %v4133 = vshrl.u32 %v4132, 7
  %v4134 = vsub.s32 0, %v4133
  %v4135 = vrot.slane %v3600, %v4134
  %v4136 = vlaneseq
  %v4137 = vshrl.u32 %v4136, 7
  %v4138 = vsub.s32 0, %v4137
  %v4139 = vrot.slane %v3602, %v4138
  %v4140 = vlaneseq
  %v4141 = vshrl.u32 %v4140, 7
  %v4142 = vsub.s32 0, %v4141
  %v4143 = vrot.slane %v3626, %v4142
  %v4144 = vlaneseq
  %v4145 = vshrl.u32 %v4144, 7
  %v4146 = vsub.s32 0, %v4145
  %v4147 = vrot.slane %v3640, %v4146
  %v4148 = vlaneseq
  %v4149 = vshrl.u32 %v4148, 7
  %v4150 = vsub.s32 0, %v4149
  %v4151 = vrot.slane %v3648, %v4150
  %v4152 = vlaneseq
  %v4153 = vshrl.u32 %v4152, 7
  %v4154 = vsub.s32 0, %v4153
  %v4155 = vrot.slane %v3650, %v4154
  %v4156 = vlaneseq
  %v4157 = vshrl.u32 %v4156, 7
  %v4158 = vsub.s32 0, %v4157
  %v4159 = vrot.slane %v3633, %v4158
  %v4160 = vlaneseq
  %v4161 = vshrl.u32 %v4160, 7
  %v4162 = vsub.s32 0, %v4161
  %v4163 = vrot.slane %v3647, %v4162
  %v4164 = vlaneseq
  %v4165 = vshrl.u32 %v4164, 7
  %v4166 = vsub.s32 0, %v4165
  %v4167 = vrot.slane %v3649, %v4166
  %v4168 = vlaneseq
  %v4169 = vshrl.u32 %v4168, 7
  %v4170 = vsub.s32 0, %v4169
  %v4171 = vrot.slane %v3651, %v4170
  %v4172 = vlaneseq
  %v4173 = vshrl.u32 %v4172, 7
  %v4174 = vsub.s32 0, %v4173
  %v4175 = vrot.slane %v3675, %v4174
  %v4176 = vlaneseq
  %v4177 = vshrl.u32 %v4176, 7
  %v4178 = vsub.s32 0, %v4177
  %v4179 = vrot.slane %v3689, %v4178
  %v4180 = vlaneseq
  %v4181 = vshrl.u32 %v4180, 7
  %v4182 = vsub.s32 0, %v4181
  %v4183 = vrot.slane %v3697, %v4182
  %v4184 = vlaneseq
  %v4185 = vshrl.u32 %v4184, 7
  %v4186 = vsub.s32 0, %v4185
  %v4187 = vrot.slane %v3699, %v4186
  %v4188 = vlaneseq
  %v4189 = vshrl.u32 %v4188, 7
  %v4190 = vsub.s32 0, %v4189
  %v4191 = vrot.slane %v3682, %v4190
  %v4192 = vlaneseq
  %v4193 = vshrl.u32 %v4192, 7
  %v4194 = vsub.s32 0, %v4193
  %v4195 = vrot.slane %v3696, %v4194
  %v4196 = vlaneseq
  %v4197 = vshrl.u32 %v4196, 7
  %v4198 = vsub.s32 0, %v4197
  %v4199 = vrot.slane %v3698, %v4198
  %v4200 = vlaneseq
  %v4201 = vshrl.u32 %v4200, 7
  %v4202 = vsub.s32 0, %v4201
  %v4203 = vrot.slane %v3700, %v4202
  %v4204 = vlaneseq
  %v4205 = vshrl.u32 %v4204, 7
  %v4206 = vsub.s32 0, %v4205
  %v4207 = vrot.slane %v3724, %v4206
  %v4208 = vlaneseq
  %v4209 = vshrl.u32 %v4208, 7
  %v4210 = vsub.s32 0, %v4209
  %v4211 = vrot.slane %v3738, %v4210
  %v4212 = vlaneseq
  %v4213 = vshrl.u32 %v4212, 7
  %v4214 = vsub.s32 0, %v4213
  %v4215 = vrot.slane %v3746, %v4214
  %v4216 = vlaneseq
  %v4217 = vshrl.u32 %v4216, 7
  %v4218 = vsub.s32 0, %v4217
  %v4219 = vrot.slane %v3748, %v4218
  %v4220 = vlaneseq
  %v4221 = vshrl.u32 %v4220, 7
  %v4222 = vsub.s32 0, %v4221
  %v4223 = vrot.slane %v3731, %v4222
  %v4224 = vlaneseq
  %v4225 = vshrl.u32 %v4224, 7
  %v4226 = vsub.s32 0, %v4225
  %v4227 = vrot.slane %v3745, %v4226
  %v4228 = vlaneseq
  %v4229 = vshrl.u32 %v4228, 7
  %v4230 = vsub.s32 0, %v4229
  %v4231 = vrot.slane %v3747, %v4230
  %v4232 = vlaneseq
  %v4233 = vshrl.u32 %v4232, 7
  %v4234 = vsub.s32 0, %v4233
  %v4235 = vrot.slane %v3749, %v4234
  %v4236 = vlaneseq
  %v4237 = vshrl.u32 %v4236, 7
  %v4238 = vsub.s32 0, %v4237
  %v4239 = vrot.slane %v3773, %v4238
  %v4240 = vlaneseq
  %v4241 = vshrl.u32 %v4240, 7
  %v4242 = vsub.s32 0, %v4241
  %v4243 = vrot.slane %v3787, %v4242
  %v4244 = vlaneseq
  %v4245 = vshrl.u32 %v4244, 7
  %v4246 = vsub.s32 0, %v4245
  %v4247 = vrot.slane %v3795, %v4246
  %v4248 = vlaneseq
  %v4249 = vshrl.u32 %v4248, 7
  %v4250 = vsub.s32 0, %v4249
  %v4251 = vrot.slane %v3797, %v4250
  %v4252 = vlaneseq
  %v4253 = vshrl.u32 %v4252, 7
  %v4254 = vsub.s32 0, %v4253
  %v4255 = vrot.slane %v3780, %v4254
  %v4256 = vlaneseq
  %v4257 = vshrl.u32 %v4256, 7
  %v4258 = vsub.s32 0, %v4257
  %v4259 = vrot.slane %v3794, %v4258
  %v4260 = vlaneseq
  %v4261 = vshrl.u32 %v4260, 7
  %v4262 = vsub.s32 0, %v4261
  %v4263 = vrot.slane %v3796, %v4262
  %v4264 = vlaneseq
  %v4265 = vshrl.u32 %v4264, 7
  %v4266 = vsub.s32 0, %v4265
  %v4267 = vrot.slane %v3798, %v4266
  %v4268 = vlaneseq
  %v4269 = vshrl.u32 %v4268, 7
  %v4270 = vsub.s32 0, %v4269
  %v4271 = vrot.slane %v3822, %v4270
  %v4272 = vlaneseq
  %v4273 = vshrl.u32 %v4272, 7
  %v4274 = vsub.s32 0, %v4273
  %v4275 = vrot.slane %v3836, %v4274
  %v4276 = vlaneseq
  %v4277 = vshrl.u32 %v4276, 7
  %v4278 = vsub.s32 0, %v4277
  %v4279 = vrot.slane %v3844, %v4278
  %v4280 = vlaneseq
  %v4281 = vshrl.u32 %v4280, 7
  %v4282 = vsub.s32 0, %v4281
  %v4283 = vrot.slane %v3846, %v4282
  %v4284 = vlaneseq
  %v4285 = vshrl.u32 %v4284, 7
  %v4286 = vsub.s32 0, %v4285
  %v4287 = vrot.slane %v3829, %v4286
  %v4288 = vlaneseq
  %v4289 = vshrl.u32 %v4288, 7
  %v4290 = vsub.s32 0, %v4289
  %v4291 = vrot.slane %v3843, %v4290
  %v4292 = vlaneseq
  %v4293 = vshrl.u32 %v4292, 7
  %v4294 = vsub.s32 0, %v4293
  %v4295 = vrot.slane %v3845, %v4294
  %v4296 = vlaneseq
  %v4297 = vshrl.u32 %v4296, 7
  %v4298 = vsub.s32 0, %v4297
  %v4299 = vrot.slane %v3847, %v4298
  %v4300 = vlaneseq
  %v4301 = vshrl.u32 %v4300, 7
  %v4302 = vsub.s32 0, %v4301
  %v4303 = vrot.slane %v3871, %v4302
  %v4304 = vlaneseq
  %v4305 = vshrl.u32 %v4304, 7
  %v4306 = vsub.s32 0, %v4305
  %v4307 = vrot.slane %v3885, %v4306
  %v4308 = vlaneseq
  %v4309 = vshrl.u32 %v4308, 7
  %v4310 = vsub.s32 0, %v4309
  %v4311 = vrot.slane %v3893, %v4310
  %v4312 = vlaneseq
  %v4313 = vshrl.u32 %v4312, 7
  %v4314 = vsub.s32 0, %v4313
  %v4315 = vrot.slane %v3895, %v4314
  %v4316 = vlaneseq
  %v4317 = vshrl.u32 %v4316, 7
  %v4318 = vsub.s32 0, %v4317
  %v4319 = vrot.slane %v3878, %v4318
  %v4320 = vlaneseq
  %v4321 = vshrl.u32 %v4320, 7
  %v4322 = vsub.s32 0, %v4321
  %v4323 = vrot.slane %v3892, %v4322
  %v4324 = vlaneseq
  %v4325 = vshrl.u32 %v4324, 7
  %v4326 = vsub.s32 0, %v4325
  %v4327 = vrot.slane %v3894, %v4326
  %v4328 = vlaneseq
  %v4329 = vshrl.u32 %v4328, 7
  %v4330 = vsub.s32 0, %v4329
  %v4331 = vrot.slane %v3896, %v4330
  %v4332 = vlaneseq
  %v4333 = vshrl.u32 %v4332, 7
  %v4334 = vsub.s32 0, %v4333
  %v4335 = vrot.slane %v3920, %v4334
  %v4336 = vlaneseq
  %v4337 = vshrl.u32 %v4336, 7
  %v4338 = vsub.s32 0, %v4337
  %v4339 = vrot.slane %v3934, %v4338
  %v4340 = vlaneseq
  %v4341 = vshrl.u32 %v4340, 7
  %v4342 = vsub.s32 0, %v4341
  %v4343 = vrot.slane %v3942, %v4342
  %v4344 = vlaneseq
  %v4345 = vshrl.u32 %v4344, 7
  %v4346 = vsub.s32 0, %v4345
  %v4347 = vrot.slane %v3944, %v4346
  %v4348 = vlaneseq
  %v4349 = vshrl.u32 %v4348, 7
  %v4350 = vsub.s32 0, %v4349
  %v4351 = vrot.slane %v3927, %v4350
  %v4352 = vlaneseq
  %v4353 = vshrl.u32 %v4352, 7
  %v4354 = vsub.s32 0, %v4353
  %v4355 = vrot.slane %v3941, %v4354
  %v4356 = vlaneseq
  %v4357 = vshrl.u32 %v4356, 7
  %v4358 = vsub.s32 0, %v4357
  %v4359 = vrot.slane %v3943, %v4358
  %v4360 = vlaneseq
  %v4361 = vshrl.u32 %v4360, 7
  %v4362 = vsub.s32 0, %v4361
  %v4363 = vrot.slane %v3945, %v4362
  %v4364 = vlaneseq
  %v4365 = vshrl.u32 %v4364, 7
  %v4366 = vsub.s32 0, %v4365
  %v4367 = vrot.slane %v3969, %v4366
  %v4368 = vlaneseq
  %v4369 = vshrl.u32 %v4368, 7
  %v4370 = vsub.s32 0, %v4369
  %v4371 = vrot.slane %v3983, %v4370
  %v4372 = vlaneseq
  %v4373 = vshrl.u32 %v4372, 7
  %v4374 = vsub.s32 0, %v4373
  %v4375 = vrot.slane %v3991, %v4374
  %v4376 = vlaneseq
  %v4377 = vshrl.u32 %v4376, 7
  %v4378 = vsub.s32 0, %v4377
  %v4379 = vrot.slane %v3993, %v4378
  %v4380 = vlaneseq
  %v4381 = vshrl.u32 %v4380, 7
  %v4382 = vsub.s32 0, %v4381
  %v4383 = vrot.slane %v3976, %v4382
  %v4384 = vlaneseq
  %v4385 = vshrl.u32 %v4384, 7
  %v4386 = vsub.s32 0, %v4385
  %v4387 = vrot.slane %v3990, %v4386
  %v4388 = vlaneseq
  %v4389 = vshrl.u32 %v4388, 7
  %v4390 = vsub.s32 0, %v4389
  %v4391 = vrot.slane %v3992, %v4390
  %v4392 = vlaneseq
  %v4393 = vshrl.u32 %v4392, 7
  %v4394 = vsub.s32 0, %v4393
  %v4395 = vrot.slane %v3994, %v4394
  %v4396 = vlaneseq
  %v4397 = vshrl.u32 %v4396, 7
  %v4398 = vsub.s32 0, %v4397
  %v4399 = vrot.slane %v4018, %v4398
  %v4400 = vlaneseq
  %v4401 = vshrl.u32 %v4400, 7
  %v4402 = vsub.s32 0, %v4401
  %v4403 = vrot.slane %v4032, %v4402
  %v4404 = vlaneseq
  %v4405 = vshrl.u32 %v4404, 7
  %v4406 = vsub.s32 0, %v4405
  %v4407 = vrot.slane %v4040, %v4406
  %v4408 = vlaneseq
  %v4409 = vshrl.u32 %v4408, 7
  %v4410 = vsub.s32 0, %v4409
  %v4411 = vrot.slane %v4042, %v4410
  %v4412 = vlaneseq
  %v4413 = vshrl.u32 %v4412, 7
  %v4414 = vsub.s32 0, %v4413
  %v4415 = vrot.slane %v4025, %v4414
  %v4416 = vlaneseq
  %v4417 = vshrl.u32 %v4416, 7
  %v4418 = vsub.s32 0, %v4417
  %v4419 = vrot.slane %v4039, %v4418
  %v4420 = vlaneseq
  %v4421 = vshrl.u32 %v4420, 7
  %v4422 = vsub.s32 0, %v4421
  %v4423 = vrot.slane %v4041, %v4422
  %v4424 = vlaneseq
  %v4425 = vshrl.u32 %v4424, 7
  %v4426 = vsub.s32 0, %v4425
  %v4427 = vrot.slane %v4043, %v4426
  %4428 = vset.pattern.permute.xlu0 0
  %4429 = vperm.xlu0 %4428, %v4047
  %v4430 = vpop.permute.xlu0 %4429
  %4432 = vset.pattern.permute.xlu0 0
  %4433 = vperm.xlu0 %4432, %v4051
  %v4434 = vpop.permute.xlu0 %4433
  %4436 = vset.pattern.permute.xlu0 0
  %4437 = vperm.xlu0 %4436, %v4055
  %v4438 = vpop.permute.xlu0 %4437
  %4440 = vset.pattern.permute.xlu0 0
  %4441 = vperm.xlu0 %4440, %v4059
  %v4442 = vpop.permute.xlu0 %4441
  %4444 = vset.pattern.permute.xlu0 0
  %4445 = vperm.xlu0 %4444, %v4063
  %v4446 = vpop.permute.xlu0 %4445
  %4448 = vset.pattern.permute.xlu0 0
  %4449 = vperm.xlu0 %4448, %v4067
  %v4450 = vpop.permute.xlu0 %4449
  %4452 = vset.pattern.permute.xlu0 0
  %4453 = vperm.xlu0 %4452, %v4071
  %v4454 = vpop.permute.xlu0 %4453
  %4456 = vset.pattern.permute.xlu0 0
  %4457 = vperm.xlu0 %4456, %v4075
  %v4458 = vpop.permute.xlu0 %4457
  %4460 = vset.pattern.permute.xlu0 0
  %4461 = vperm.xlu0 %4460, %v4079
  %v4462 = vpop.permute.xlu0 %4461
  %4464 = vset.pattern.permute.xlu0 0
  %4465 = vperm.xlu0 %4464, %v4083
  %v4466 = vpop.permute.xlu0 %4465
  %4468 = vset.pattern.permute.xlu0 0
  %4469 = vperm.xlu0 %4468, %v4087
  %v4470 = vpop.permute.xlu0 %4469
  %4472 = vset.pattern.permute.xlu0 0
  %4473 = vperm.xlu0 %4472, %v4091
  %v4474 = vpop.permute.xlu0 %4473
  %4476 = vset.pattern.permute.xlu0 0
  %4477 = vperm.xlu0 %4476, %v4095
  %v4478 = vpop.permute.xlu0 %4477
  %4480 = vset.pattern.permute.xlu0 0
  %4481 = vperm.xlu0 %4480, %v4099
  %v4482 = vpop.permute.xlu0 %4481
  %4484 = vset.pattern.permute.xlu0 0
  %4485 = vperm.xlu0 %4484, %v4103
  %v4486 = vpop.permute.xlu0 %4485
  %4488 = vset.pattern.permute.xlu0 0
  %4489 = vperm.xlu0 %4488, %v4107
  %v4490 = vpop.permute.xlu0 %4489
  %4492 = vset.pattern.permute.xlu0 0
  %4493 = vperm.xlu0 %4492, %v4111
  %v4494 = vpop.permute.xlu0 %4493
  %4496 = vset.pattern.permute.xlu0 0
  %4497 = vperm.xlu0 %4496, %v4115
  %v4498 = vpop.permute.xlu0 %4497
  %4500 = vset.pattern.permute.xlu0 0
  %4501 = vperm.xlu0 %4500, %v4119
  %v4502 = vpop.permute.xlu0 %4501
  %4504 = vset.pattern.permute.xlu0 0
  %4505 = vperm.xlu0 %4504, %v4123
  %v4506 = vpop.permute.xlu0 %4505
  %4508 = vset.pattern.permute.xlu0 0
  %4509 = vperm.xlu0 %4508, %v4127
  %v4510 = vpop.permute.xlu0 %4509
  %4512 = vset.pattern.permute.xlu0 0
  %4513 = vperm.xlu0 %4512, %v4131
  %v4514 = vpop.permute.xlu0 %4513
  %4516 = vset.pattern.permute.xlu0 0
  %4517 = vperm.xlu0 %4516, %v4135
  %v4518 = vpop.permute.xlu0 %4517
  %4520 = vset.pattern.permute.xlu0 0
  %4521 = vperm.xlu0 %4520, %v4139
  %v4522 = vpop.permute.xlu0 %4521
  %4524 = vset.pattern.permute.xlu0 0
  %4525 = vperm.xlu0 %4524, %v4143
  %v4526 = vpop.permute.xlu0 %4525
  %4528 = vset.pattern.permute.xlu0 0
  %4529 = vperm.xlu0 %4528, %v4147
  %v4530 = vpop.permute.xlu0 %4529
  %4532 = vset.pattern.permute.xlu0 0
  %4533 = vperm.xlu0 %4532, %v4151
  %v4534 = vpop.permute.xlu0 %4533
  %4536 = vset.pattern.permute.xlu0 0
  %4537 = vperm.xlu0 %4536, %v4155
  %v4538 = vpop.permute.xlu0 %4537
  %4540 = vset.pattern.permute.xlu0 0
  %4541 = vperm.xlu0 %4540, %v4159
  %v4542 = vpop.permute.xlu0 %4541
  %4544 = vset.pattern.permute.xlu0 0
  %4545 = vperm.xlu0 %4544, %v4163
  %v4546 = vpop.permute.xlu0 %4545
  %4548 = vset.pattern.permute.xlu0 0
  %4549 = vperm.xlu0 %4548, %v4167
  %v4550 = vpop.permute.xlu0 %4549
  %4552 = vset.pattern.permute.xlu0 0
  %4553 = vperm.xlu0 %4552, %v4171
  %v4554 = vpop.permute.xlu0 %4553
  %4556 = vset.pattern.permute.xlu0 0
  %4557 = vperm.xlu0 %4556, %v4175
  %v4558 = vpop.permute.xlu0 %4557
  %4560 = vset.pattern.permute.xlu0 0
  %4561 = vperm.xlu0 %4560, %v4179
  %v4562 = vpop.permute.xlu0 %4561
  %4564 = vset.pattern.permute.xlu0 0
  %4565 = vperm.xlu0 %4564, %v4183
  %v4566 = vpop.permute.xlu0 %4565
  %4568 = vset.pattern.permute.xlu0 0
  %4569 = vperm.xlu0 %4568, %v4187
  %v4570 = vpop.permute.xlu0 %4569
  %4572 = vset.pattern.permute.xlu0 0
  %4573 = vperm.xlu0 %4572, %v4191
  %v4574 = vpop.permute.xlu0 %4573
  %4576 = vset.pattern.permute.xlu0 0
  %4577 = vperm.xlu0 %4576, %v4195
  %v4578 = vpop.permute.xlu0 %4577
  %4580 = vset.pattern.permute.xlu0 0
  %4581 = vperm.xlu0 %4580, %v4199
  %v4582 = vpop.permute.xlu0 %4581
  %4584 = vset.pattern.permute.xlu0 0
  %4585 = vperm.xlu0 %4584, %v4203
  %v4586 = vpop.permute.xlu0 %4585
  %4588 = vset.pattern.permute.xlu0 0
  %4589 = vperm.xlu0 %4588, %v4207
  %v4590 = vpop.permute.xlu0 %4589
  %4592 = vset.pattern.permute.xlu0 0
  %4593 = vperm.xlu0 %4592, %v4211
  %v4594 = vpop.permute.xlu0 %4593
  %4596 = vset.pattern.permute.xlu0 0
  %4597 = vperm.xlu0 %4596, %v4215
  %v4598 = vpop.permute.xlu0 %4597
  %4600 = vset.pattern.permute.xlu0 0
  %4601 = vperm.xlu0 %4600, %v4219
  %v4602 = vpop.permute.xlu0 %4601
  %4604 = vset.pattern.permute.xlu0 0
  %4605 = vperm.xlu0 %4604, %v4223
  %v4606 = vpop.permute.xlu0 %4605
  %4608 = vset.pattern.permute.xlu0 0
  %4609 = vperm.xlu0 %4608, %v4227
  %v4610 = vpop.permute.xlu0 %4609
  %4612 = vset.pattern.permute.xlu0 0
  %4613 = vperm.xlu0 %4612, %v4231
  %v4614 = vpop.permute.xlu0 %4613
  %4616 = vset.pattern.permute.xlu0 0
  %4617 = vperm.xlu0 %4616, %v4235
  %v4618 = vpop.permute.xlu0 %4617
  %4620 = vset.pattern.permute.xlu0 0
  %4621 = vperm.xlu0 %4620, %v4239
  %v4622 = vpop.permute.xlu0 %4621
  %4624 = vset.pattern.permute.xlu0 0
  %4625 = vperm.xlu0 %4624, %v4243
  %v4626 = vpop.permute.xlu0 %4625
  %4628 = vset.pattern.permute.xlu0 0
  %4629 = vperm.xlu0 %4628, %v4247
  %v4630 = vpop.permute.xlu0 %4629
  %4632 = vset.pattern.permute.xlu0 0
  %4633 = vperm.xlu0 %4632, %v4251
  %v4634 = vpop.permute.xlu0 %4633
  %4636 = vset.pattern.permute.xlu0 0
  %4637 = vperm.xlu0 %4636, %v4255
  %v4638 = vpop.permute.xlu0 %4637
  %4640 = vset.pattern.permute.xlu0 0
  %4641 = vperm.xlu0 %4640, %v4259
  %v4642 = vpop.permute.xlu0 %4641
  %4644 = vset.pattern.permute.xlu0 0
  %4645 = vperm.xlu0 %4644, %v4263
  %v4646 = vpop.permute.xlu0 %4645
  %4648 = vset.pattern.permute.xlu0 0
  %4649 = vperm.xlu0 %4648, %v4267
  %v4650 = vpop.permute.xlu0 %4649
  %4652 = vset.pattern.permute.xlu0 0
  %4653 = vperm.xlu0 %4652, %v4271
  %v4654 = vpop.permute.xlu0 %4653
  %4656 = vset.pattern.permute.xlu0 0
  %4657 = vperm.xlu0 %4656, %v4275
  %v4658 = vpop.permute.xlu0 %4657
  %4660 = vset.pattern.permute.xlu0 0
  %4661 = vperm.xlu0 %4660, %v4279
  %v4662 = vpop.permute.xlu0 %4661
  %4664 = vset.pattern.permute.xlu0 0
  %4665 = vperm.xlu0 %4664, %v4283
  %v4666 = vpop.permute.xlu0 %4665
  %4668 = vset.pattern.permute.xlu0 0
  %4669 = vperm.xlu0 %4668, %v4287
  %v4670 = vpop.permute.xlu0 %4669
  %4672 = vset.pattern.permute.xlu0 0
  %4673 = vperm.xlu0 %4672, %v4291
  %v4674 = vpop.permute.xlu0 %4673
  %4676 = vset.pattern.permute.xlu0 0
  %4677 = vperm.xlu0 %4676, %v4295
  %v4678 = vpop.permute.xlu0 %4677
  %4680 = vset.pattern.permute.xlu0 0
  %4681 = vperm.xlu0 %4680, %v4299
  %v4682 = vpop.permute.xlu0 %4681
  %4684 = vset.pattern.permute.xlu0 0
  %4685 = vperm.xlu0 %4684, %v4303
  %v4686 = vpop.permute.xlu0 %4685
  %4688 = vset.pattern.permute.xlu0 0
  %4689 = vperm.xlu0 %4688, %v4307
  %v4690 = vpop.permute.xlu0 %4689
  %4692 = vset.pattern.permute.xlu0 0
  %4693 = vperm.xlu0 %4692, %v4311
  %v4694 = vpop.permute.xlu0 %4693
  %4696 = vset.pattern.permute.xlu0 0
  %4697 = vperm.xlu0 %4696, %v4315
  %v4698 = vpop.permute.xlu0 %4697
  %4700 = vset.pattern.permute.xlu0 0
  %4701 = vperm.xlu0 %4700, %v4319
  %v4702 = vpop.permute.xlu0 %4701
  %4704 = vset.pattern.permute.xlu0 0
  %4705 = vperm.xlu0 %4704, %v4323
  %v4706 = vpop.permute.xlu0 %4705
  %4708 = vset.pattern.permute.xlu0 0
  %4709 = vperm.xlu0 %4708, %v4327
  %v4710 = vpop.permute.xlu0 %4709
  %4712 = vset.pattern.permute.xlu0 0
  %4713 = vperm.xlu0 %4712, %v4331
  %v4714 = vpop.permute.xlu0 %4713
  %4716 = vset.pattern.permute.xlu0 0
  %4717 = vperm.xlu0 %4716, %v4335
  %v4718 = vpop.permute.xlu0 %4717
  %4720 = vset.pattern.permute.xlu0 0
  %4721 = vperm.xlu0 %4720, %v4339
  %v4722 = vpop.permute.xlu0 %4721
  %4724 = vset.pattern.permute.xlu0 0
  %4725 = vperm.xlu0 %4724, %v4343
  %v4726 = vpop.permute.xlu0 %4725
  %4728 = vset.pattern.permute.xlu0 0
  %4729 = vperm.xlu0 %4728, %v4347
  %v4730 = vpop.permute.xlu0 %4729
  %4732 = vset.pattern.permute.xlu0 0
  %4733 = vperm.xlu0 %4732, %v4351
  %v4734 = vpop.permute.xlu0 %4733
  %4736 = vset.pattern.permute.xlu0 0
  %4737 = vperm.xlu0 %4736, %v4355
  %v4738 = vpop.permute.xlu0 %4737
  %4740 = vset.pattern.permute.xlu0 0
  %4741 = vperm.xlu0 %4740, %v4359
  %v4742 = vpop.permute.xlu0 %4741
  %4744 = vset.pattern.permute.xlu0 0
  %4745 = vperm.xlu0 %4744, %v4363
  %v4746 = vpop.permute.xlu0 %4745
  %4748 = vset.pattern.permute.xlu0 0
  %4749 = vperm.xlu0 %4748, %v4367
  %v4750 = vpop.permute.xlu0 %4749
  %4752 = vset.pattern.permute.xlu0 0
  %4753 = vperm.xlu0 %4752, %v4371
  %v4754 = vpop.permute.xlu0 %4753
  %4756 = vset.pattern.permute.xlu0 0
  %4757 = vperm.xlu0 %4756, %v4375
  %v4758 = vpop.permute.xlu0 %4757
  %4760 = vset.pattern.permute.xlu0 0
  %4761 = vperm.xlu0 %4760, %v4379
  %v4762 = vpop.permute.xlu0 %4761
  %4764 = vset.pattern.permute.xlu0 0
  %4765 = vperm.xlu0 %4764, %v4383
  %v4766 = vpop.permute.xlu0 %4765
  %4768 = vset.pattern.permute.xlu0 0
  %4769 = vperm.xlu0 %4768, %v4387
  %v4770 = vpop.permute.xlu0 %4769
  %4772 = vset.pattern.permute.xlu0 0
  %4773 = vperm.xlu0 %4772, %v4391
  %v4774 = vpop.permute.xlu0 %4773
  %4776 = vset.pattern.permute.xlu0 0
  %4777 = vperm.xlu0 %4776, %v4395
  %v4778 = vpop.permute.xlu0 %4777
  %4780 = vset.pattern.permute.xlu0 0
  %4781 = vperm.xlu0 %4780, %v4399
  %v4782 = vpop.permute.xlu0 %4781
  %4784 = vset.pattern.permute.xlu0 0
  %4785 = vperm.xlu0 %4784, %v4403
  %v4786 = vpop.permute.xlu0 %4785
  %4788 = vset.pattern.permute.xlu0 0
  %4789 = vperm.xlu0 %4788, %v4407
  %v4790 = vpop.permute.xlu0 %4789
  %4792 = vset.pattern.permute.xlu0 0
  %4793 = vperm.xlu0 %4792, %v4411
  %v4794 = vpop.permute.xlu0 %4793
  %4796 = vset.pattern.permute.xlu0 0
  %4797 = vperm.xlu0 %4796, %v4415
  %v4798 = vpop.permute.xlu0 %4797
  %4800 = vset.pattern.permute.xlu0 0
  %4801 = vperm.xlu0 %4800, %v4419
  %v4802 = vpop.permute.xlu0 %4801
  %4804 = vset.pattern.permute.xlu0 0
  %4805 = vperm.xlu0 %4804, %v4423
  %v4806 = vpop.permute.xlu0 %4805
  %4808 = vset.pattern.permute.xlu0 0
  %4809 = vperm.xlu0 %4808, %v4427
  %v4810 = vpop.permute.xlu0 %4809
  %v4812 = vmul.f32 %v3336, %v4430
  %v4813 = vmul.f32 %v3337, %v4434
  %v4814 = vmul.f32 %v3338, %v4438
  %v4815 = vmul.f32 %v3339, %v4442
  %v4816 = vmul.f32 %v3340, %v4446
  %v4817 = vmul.f32 %v3341, %v4450
  %v4818 = vmul.f32 %v3342, %v4454
  %v4819 = vmul.f32 %v3343, %v4458
  %v4820 = vmul.f32 %v3344, %v4462
  %v4821 = vmul.f32 %v3345, %v4466
  %v4822 = vmul.f32 %v3346, %v4470
  %v4823 = vmul.f32 %v3347, %v4474
  %v4824 = vmul.f32 %v3348, %v4478
  %v4825 = vmul.f32 %v3349, %v4482
  %v4826 = vmul.f32 %v3350, %v4486
  %v4827 = vmul.f32 %v3351, %v4490
  %v4828 = vmul.f32 %v3352, %v4494
  %v4829 = vmul.f32 %v3353, %v4498
  %v4830 = vmul.f32 %v3354, %v4502
  %v4831 = vmul.f32 %v3355, %v4506
  %v4832 = vmul.f32 %v3356, %v4510
  %v4833 = vmul.f32 %v3357, %v4514
  %v4834 = vmul.f32 %v3358, %v4518
  %v4835 = vmul.f32 %v3359, %v4522
  %v4836 = vmul.f32 %v3360, %v4526
  %v4837 = vmul.f32 %v3361, %v4530
  %v4838 = vmul.f32 %v3362, %v4534
  %v4839 = vmul.f32 %v3363, %v4538
  %v4840 = vmul.f32 %v3364, %v4542
  %v4841 = vmul.f32 %v3365, %v4546
  %v4842 = vmul.f32 %v3366, %v4550
  %v4843 = vmul.f32 %v3367, %v4554
  %v4844 = vmul.f32 %v3368, %v4558
  %v4845 = vmul.f32 %v3369, %v4562
  %v4846 = vmul.f32 %v3370, %v4566
  %v4847 = vmul.f32 %v3371, %v4570
  %v4848 = vmul.f32 %v3372, %v4574
  %v4849 = vmul.f32 %v3373, %v4578
  %v4850 = vmul.f32 %v3374, %v4582
  %v4851 = vmul.f32 %v3375, %v4586
  %v4852 = vmul.f32 %v3376, %v4590
  %v4853 = vmul.f32 %v3377, %v4594
  %v4854 = vmul.f32 %v3378, %v4598
  %v4855 = vmul.f32 %v3379, %v4602
  %v4856 = vmul.f32 %v3380, %v4606
  %v4857 = vmul.f32 %v3381, %v4610
  %v4858 = vmul.f32 %v3382, %v4614
  %v4859 = vmul.f32 %v3383, %v4618
  %v4860 = vmul.f32 %v3384, %v4622
  %v4861 = vmul.f32 %v3385, %v4626
  %v4862 = vmul.f32 %v3386, %v4630
  %v4863 = vmul.f32 %v3387, %v4634
  %v4864 = vmul.f32 %v3388, %v4638
  %v4865 = vmul.f32 %v3389, %v4642
  %v4866 = vmul.f32 %v3390, %v4646
  %v4867 = vmul.f32 %v3391, %v4650
  %v4868 = vmul.f32 %v3392, %v4654
  %v4869 = vmul.f32 %v3393, %v4658
  %v4870 = vmul.f32 %v3394, %v4662
  %v4871 = vmul.f32 %v3395, %v4666
  %v4872 = vmul.f32 %v3396, %v4670
  %v4873 = vmul.f32 %v3397, %v4674
  %v4874 = vmul.f32 %v3398, %v4678
  %v4875 = vmul.f32 %v3399, %v4682
  %v4876 = vmul.f32 %v3400, %v4686
  %v4877 = vmul.f32 %v3401, %v4690
  %v4878 = vmul.f32 %v3402, %v4694
  %v4879 = vmul.f32 %v3403, %v4698
  %v4880 = vmul.f32 %v3404, %v4702
  %v4881 = vmul.f32 %v3405, %v4706
  %v4882 = vmul.f32 %v3406, %v4710
  %v4883 = vmul.f32 %v3407, %v4714
  %v4884 = vmul.f32 %v3408, %v4718
  %v4885 = vmul.f32 %v3409, %v4722
  %v4886 = vmul.f32 %v3410, %v4726
  %v4887 = vmul.f32 %v3411, %v4730
  %v4888 = vmul.f32 %v3412, %v4734
  %v4889 = vmul.f32 %v3413, %v4738
  %v4890 = vmul.f32 %v3414, %v4742
  %v4891 = vmul.f32 %v3415, %v4746
  %v4892 = vmul.f32 %v3416, %v4750
  %v4893 = vmul.f32 %v3417, %v4754
  %v4894 = vmul.f32 %v3418, %v4758
  %v4895 = vmul.f32 %v3419, %v4762
  %v4896 = vmul.f32 %v3420, %v4766
  %v4897 = vmul.f32 %v3421, %v4770
  %v4898 = vmul.f32 %v3422, %v4774
  %v4899 = vmul.f32 %v3423, %v4778
  %v4900 = vmul.f32 %v3424, %v4782
  %v4901 = vmul.f32 %v3425, %v4786
  %v4902 = vmul.f32 %v3426, %v4790
  %v4903 = vmul.f32 %v3427, %v4794
  %v4904 = vmul.f32 %v3428, %v4798
  %v4905 = vmul.f32 %v3429, %v4802
  %v4906 = vmul.f32 %v3430, %v4806
  %v4907 = vmul.f32 %v3431, %v4810
  %v4908 = vld [vmem:[%s9] sm:$0x1]
  %v4910 = vlaneseq
  %v4911 = vshrl.u32 %v4910, 7
  %v4912 = vsub.s32 0, %v4911
  %v4913 = vrot.slane %v4908, %v4912
  %v4915 = vadd.f32 %v4812, %v4913
  %v4916 = vadd.f32 %v4813, %v4913
  %v4917 = vadd.f32 %v4814, %v4913
  %v4918 = vadd.f32 %v4815, %v4913
  %v4919 = vadd.f32 %v4816, %v4913
  %v4920 = vadd.f32 %v4817, %v4913
  %v4921 = vadd.f32 %v4818, %v4913
  %v4922 = vadd.f32 %v4819, %v4913
  %v4923 = vadd.f32 %v4820, %v4913
  %v4924 = vadd.f32 %v4821, %v4913
  %v4925 = vadd.f32 %v4822, %v4913
  %v4926 = vadd.f32 %v4823, %v4913
  %v4927 = vadd.f32 %v4824, %v4913
  %v4928 = vadd.f32 %v4825, %v4913
  %v4929 = vadd.f32 %v4826, %v4913
  %v4930 = vadd.f32 %v4827, %v4913
  %v4931 = vadd.f32 %v4828, %v4913
  %v4932 = vadd.f32 %v4829, %v4913
  %v4933 = vadd.f32 %v4830, %v4913
  %v4934 = vadd.f32 %v4831, %v4913
  %v4935 = vadd.f32 %v4832, %v4913
  %v4936 = vadd.f32 %v4833, %v4913
  %v4937 = vadd.f32 %v4834, %v4913
  %v4938 = vadd.f32 %v4835, %v4913
  %v4939 = vadd.f32 %v4836, %v4913
  %v4940 = vadd.f32 %v4837, %v4913
  %v4941 = vadd.f32 %v4838, %v4913
  %v4942 = vadd.f32 %v4839, %v4913
  %v4943 = vadd.f32 %v4840, %v4913
  %v4944 = vadd.f32 %v4841, %v4913
  %v4945 = vadd.f32 %v4842, %v4913
  %v4946 = vadd.f32 %v4843, %v4913
  %v4947 = vadd.f32 %v4844, %v4913
  %v4948 = vadd.f32 %v4845, %v4913
  %v4949 = vadd.f32 %v4846, %v4913
  %v4950 = vadd.f32 %v4847, %v4913
  %v4951 = vadd.f32 %v4848, %v4913
  %v4952 = vadd.f32 %v4849, %v4913
  %v4953 = vadd.f32 %v4850, %v4913
  %v4954 = vadd.f32 %v4851, %v4913
  %v4955 = vadd.f32 %v4852, %v4913
  %v4956 = vadd.f32 %v4853, %v4913
  %v4957 = vadd.f32 %v4854, %v4913
  %v4958 = vadd.f32 %v4855, %v4913
  %v4959 = vadd.f32 %v4856, %v4913
  %v4960 = vadd.f32 %v4857, %v4913
  %v4961 = vadd.f32 %v4858, %v4913
  %v4962 = vadd.f32 %v4859, %v4913
  %v4963 = vadd.f32 %v4860, %v4913
  %v4964 = vadd.f32 %v4861, %v4913
  %v4965 = vadd.f32 %v4862, %v4913
  %v4966 = vadd.f32 %v4863, %v4913
  %v4967 = vadd.f32 %v4864, %v4913
  %v4968 = vadd.f32 %v4865, %v4913
  %v4969 = vadd.f32 %v4866, %v4913
  %v4970 = vadd.f32 %v4867, %v4913
  %v4971 = vadd.f32 %v4868, %v4913
  %v4972 = vadd.f32 %v4869, %v4913
  %v4973 = vadd.f32 %v4870, %v4913
  %v4974 = vadd.f32 %v4871, %v4913
  %v4975 = vadd.f32 %v4872, %v4913
  %v4976 = vadd.f32 %v4873, %v4913
  %v4977 = vadd.f32 %v4874, %v4913
  %v4978 = vadd.f32 %v4875, %v4913
  %v4979 = vadd.f32 %v4876, %v4913
  %v4980 = vadd.f32 %v4877, %v4913
  %v4981 = vadd.f32 %v4878, %v4913
  %v4982 = vadd.f32 %v4879, %v4913
  %v4983 = vadd.f32 %v4880, %v4913
  %v4984 = vadd.f32 %v4881, %v4913
  %v4985 = vadd.f32 %v4882, %v4913
  %v4986 = vadd.f32 %v4883, %v4913
  %v4987 = vadd.f32 %v4884, %v4913
  %v4988 = vadd.f32 %v4885, %v4913
  %v4989 = vadd.f32 %v4886, %v4913
  %v4990 = vadd.f32 %v4887, %v4913
  %v4991 = vadd.f32 %v4888, %v4913
  %v4992 = vadd.f32 %v4889, %v4913
  %v4993 = vadd.f32 %v4890, %v4913
  %v4994 = vadd.f32 %v4891, %v4913
  %v4995 = vadd.f32 %v4892, %v4913
  %v4996 = vadd.f32 %v4893, %v4913
  %v4997 = vadd.f32 %v4894, %v4913
  %v4998 = vadd.f32 %v4895, %v4913
  %v4999 = vadd.f32 %v4896, %v4913
  %v5000 = vadd.f32 %v4897, %v4913
  %v5001 = vadd.f32 %v4898, %v4913
  %v5002 = vadd.f32 %v4899, %v4913
  %v5003 = vadd.f32 %v4900, %v4913
  %v5004 = vadd.f32 %v4901, %v4913
  %v5005 = vadd.f32 %v4902, %v4913
  %v5006 = vadd.f32 %v4903, %v4913
  %v5007 = vadd.f32 %v4904, %v4913
  %v5008 = vadd.f32 %v4905, %v4913
  %v5009 = vadd.f32 %v4906, %v4913
  %v5010 = vadd.f32 %v4907, %v4913
  %v5011 = vmax.f32 %v4915, 0.0
  %v5012 = vmax.f32 %v4916, 0.0
  %v5013 = vmax.f32 %v4917, 0.0
  %v5014 = vmax.f32 %v4918, 0.0
  %v5015 = vmax.f32 %v4919, 0.0
  %v5016 = vmax.f32 %v4920, 0.0
  %v5017 = vmax.f32 %v4921, 0.0
  %v5018 = vmax.f32 %v4922, 0.0
  %v5019 = vmax.f32 %v4923, 0.0
  %v5020 = vmax.f32 %v4924, 0.0
  %v5021 = vmax.f32 %v4925, 0.0
  %v5022 = vmax.f32 %v4926, 0.0
  %v5023 = vmax.f32 %v4927, 0.0
  %v5024 = vmax.f32 %v4928, 0.0
  %v5025 = vmax.f32 %v4929, 0.0
  %v5026 = vmax.f32 %v4930, 0.0
  %v5027 = vmax.f32 %v4931, 0.0
  %v5028 = vmax.f32 %v4932, 0.0
  %v5029 = vmax.f32 %v4933, 0.0
  %v5030 = vmax.f32 %v4934, 0.0
  %v5031 = vmax.f32 %v4935, 0.0
  %v5032 = vmax.f32 %v4936, 0.0
  %v5033 = vmax.f32 %v4937, 0.0
  %v5034 = vmax.f32 %v4938, 0.0
  %v5035 = vmax.f32 %v4939, 0.0
  %v5036 = vmax.f32 %v4940, 0.0
  %v5037 = vmax.f32 %v4941, 0.0
  %v5038 = vmax.f32 %v4942, 0.0
  %v5039 = vmax.f32 %v4943, 0.0
  %v5040 = vmax.f32 %v4944, 0.0
  %v5041 = vmax.f32 %v4945, 0.0
  %v5042 = vmax.f32 %v4946, 0.0
  %v5043 = vmax.f32 %v4947, 0.0
  %v5044 = vmax.f32 %v4948, 0.0
  %v5045 = vmax.f32 %v4949, 0.0
  %v5046 = vmax.f32 %v4950, 0.0
  %v5047 = vmax.f32 %v4951, 0.0
  %v5048 = vmax.f32 %v4952, 0.0
  %v5049 = vmax.f32 %v4953, 0.0
  %v5050 = vmax.f32 %v4954, 0.0
  %v5051 = vmax.f32 %v4955, 0.0
  %v5052 = vmax.f32 %v4956, 0.0
  %v5053 = vmax.f32 %v4957, 0.0
  %v5054 = vmax.f32 %v4958, 0.0
  %v5055 = vmax.f32 %v4959, 0.0
  %v5056 = vmax.f32 %v4960, 0.0
  %v5057 = vmax.f32 %v4961, 0.0
  %v5058 = vmax.f32 %v4962, 0.0
  %v5059 = vmax.f32 %v4963, 0.0
  %v5060 = vmax.f32 %v4964, 0.0
  %v5061 = vmax.f32 %v4965, 0.0
  %v5062 = vmax.f32 %v4966, 0.0
  %v5063 = vmax.f32 %v4967, 0.0
  %v5064 = vmax.f32 %v4968, 0.0
  %v5065 = vmax.f32 %v4969, 0.0
  %v5066 = vmax.f32 %v4970, 0.0
  %v5067 = vmax.f32 %v4971, 0.0
  %v5068 = vmax.f32 %v4972, 0.0
  %v5069 = vmax.f32 %v4973, 0.0
  %v5070 = vmax.f32 %v4974, 0.0
  %v5071 = vmax.f32 %v4975, 0.0
  %v5072 = vmax.f32 %v4976, 0.0
  %v5073 = vmax.f32 %v4977, 0.0
  %v5074 = vmax.f32 %v4978, 0.0
  %v5075 = vmax.f32 %v4979, 0.0
  %v5076 = vmax.f32 %v4980, 0.0
  %v5077 = vmax.f32 %v4981, 0.0
  %v5078 = vmax.f32 %v4982, 0.0
  %v5079 = vmax.f32 %v4983, 0.0
  %v5080 = vmax.f32 %v4984, 0.0
  %v5081 = vmax.f32 %v4985, 0.0
  %v5082 = vmax.f32 %v4986, 0.0
  %v5083 = vmax.f32 %v4987, 0.0
  %v5084 = vmax.f32 %v4988, 0.0
  %v5085 = vmax.f32 %v4989, 0.0
  %v5086 = vmax.f32 %v4990, 0.0
  %v5087 = vmax.f32 %v4991, 0.0
  %v5088 = vmax.f32 %v4992, 0.0
  %v5089 = vmax.f32 %v4993, 0.0
  %v5090 = vmax.f32 %v4994, 0.0
  %v5091 = vmax.f32 %v4995, 0.0
  %v5092 = vmax.f32 %v4996, 0.0
  %v5093 = vmax.f32 %v4997, 0.0
  %v5094 = vmax.f32 %v4998, 0.0
  %v5095 = vmax.f32 %v4999, 0.0
  %v5096 = vmax.f32 %v5000, 0.0
  %v5097 = vmax.f32 %v5001, 0.0
  %v5098 = vmax.f32 %v5002, 0.0
  %v5099 = vmax.f32 %v5003, 0.0
  %v5100 = vmax.f32 %v5004, 0.0
  %v5101 = vmax.f32 %v5005, 0.0
  %v5102 = vmax.f32 %v5006, 0.0
  %v5103 = vmax.f32 %v5007, 0.0
  %v5104 = vmax.f32 %v5008, 0.0
  %v5105 = vmax.f32 %v5009, 0.0
  %v5106 = vmax.f32 %v5010, 0.0
  %v5107 = vpack.c.bf16 %v5012, %v5011
  %v5108 = vpack.c.bf16 %v5014, %v5013
  %v5109 = vpack.c.bf16 %v5016, %v5015
  %v5110 = vpack.c.bf16 %v5018, %v5017
  %v5111 = vpack.c.bf16 %v5020, %v5019
  %v5112 = vpack.c.bf16 %v5022, %v5021
  %v5113 = vpack.c.bf16 %v5024, %v5023
  %v5114 = vpack.c.bf16 %v5026, %v5025
  %v5115 = vpack.c.bf16 %v5028, %v5027
  %v5116 = vpack.c.bf16 %v5030, %v5029
  %v5117 = vpack.c.bf16 %v5032, %v5031
  %v5118 = vpack.c.bf16 %v5034, %v5033
  %v5119 = vpack.c.bf16 %v5036, %v5035
  %v5120 = vpack.c.bf16 %v5038, %v5037
  %v5121 = vpack.c.bf16 %v5040, %v5039
  %v5122 = vpack.c.bf16 %v5042, %v5041
  %v5123 = vpack.c.bf16 %v5044, %v5043
  %v5124 = vpack.c.bf16 %v5046, %v5045
  %v5125 = vpack.c.bf16 %v5048, %v5047
  %v5126 = vpack.c.bf16 %v5050, %v5049
  %v5127 = vpack.c.bf16 %v5052, %v5051
  %v5128 = vpack.c.bf16 %v5054, %v5053
  %v5129 = vpack.c.bf16 %v5056, %v5055
  %v5130 = vpack.c.bf16 %v5058, %v5057
  %v5131 = vpack.c.bf16 %v5060, %v5059
  %v5132 = vpack.c.bf16 %v5062, %v5061
  %v5133 = vpack.c.bf16 %v5064, %v5063
  %v5134 = vpack.c.bf16 %v5066, %v5065
  %v5135 = vpack.c.bf16 %v5068, %v5067
  %v5136 = vpack.c.bf16 %v5070, %v5069
  %v5137 = vpack.c.bf16 %v5072, %v5071
  %v5138 = vpack.c.bf16 %v5074, %v5073
  %v5139 = vpack.c.bf16 %v5076, %v5075
  %v5140 = vpack.c.bf16 %v5078, %v5077
  %v5141 = vpack.c.bf16 %v5080, %v5079
  %v5142 = vpack.c.bf16 %v5082, %v5081
  %v5143 = vpack.c.bf16 %v5084, %v5083
  %v5144 = vpack.c.bf16 %v5086, %v5085
  %v5145 = vpack.c.bf16 %v5088, %v5087
  %v5146 = vpack.c.bf16 %v5090, %v5089
  %v5147 = vpack.c.bf16 %v5092, %v5091
  %v5148 = vpack.c.bf16 %v5094, %v5093
  %v5149 = vpack.c.bf16 %v5096, %v5095
  %v5150 = vpack.c.bf16 %v5098, %v5097
  %v5151 = vpack.c.bf16 %v5100, %v5099
  %v5152 = vpack.c.bf16 %v5102, %v5101
  %v5153 = vpack.c.bf16 %v5104, %v5103
  %v5154 = vpack.c.bf16 %v5106, %v5105
  %v5155 = vld [vmem:[%s10] sm:$0xf]
  %v5156 = vld [vmem:[%s10 + $0x4] sm:$0xf]
  %v5157 = vld [vmem:[%s10 + $0x8] sm:$0xf]
  %v5158 = vld [vmem:[%s10 + $0xc] sm:$0xf]
  %v5159 = vld [vmem:[%s10 + $0x10] sm:$0xf]
  %v5160 = vld [vmem:[%s10 + $0x14] sm:$0xf]
  %v5161 = vld [vmem:[%s10 + $0x18] sm:$0xf]
  %v5162 = vld [vmem:[%s10 + $0x1c] sm:$0xf]
  %v5163 = vld [vmem:[%s10 + $0x20] sm:$0xf]
  %v5164 = vld [vmem:[%s10 + $0x24] sm:$0xf]
  %v5165 = vld [vmem:[%s10 + $0x28] sm:$0xf]
  %v5166 = vld [vmem:[%s10 + $0x2c] sm:$0xf]
  %v5167 = vld [vmem:[%s10 + $0x30] sm:$0xf]
  %v5168 = vld [vmem:[%s10 + $0x34] sm:$0xf]
  %v5169 = vld [vmem:[%s10 + $0x38] sm:$0xf]
  %v5170 = vld [vmem:[%s10 + $0x3c] sm:$0xf]
  %v5171 = vld [vmem:[%s11] sm:$0x1]
  %v5173 = vlaneseq
  %v5174 = vshrl.u32 %v5173, 7
  %v5175 = vsub.s32 0, %v5174
  %v5176 = vrot.slane %v5171, %v5175
  %v5194 = vunpack.c.l.b16 %v5155
  %v5195 = vunpack.c.l.b16 %v5156
  %v5196 = vunpack.c.l.b16 %v5157
  %v5197 = vunpack.c.l.b16 %v5158
  %v5198 = vunpack.c.l.b16 %v5159
  %v5199 = vunpack.c.l.b16 %v5160
  %v5200 = vunpack.c.l.b16 %v5161
  %v5201 = vunpack.c.l.b16 %v5162
  %v5202 = vunpack.c.l.b16 %v5163
  %v5203 = vunpack.c.l.b16 %v5164
  %v5204 = vunpack.c.l.b16 %v5165
  %v5205 = vunpack.c.l.b16 %v5166
  %v5206 = vunpack.c.l.b16 %v5167
  %v5207 = vunpack.c.l.b16 %v5168
  %v5208 = vunpack.c.l.b16 %v5169
  %v5209 = vunpack.c.l.b16 %v5170
  %v5210 = vpack.c.b16 %v5195, %v5194
  %v5211 = vpack.c.b16 %v5197, %v5196
  %v5212 = vpack.c.b16 %v5199, %v5198
  %v5213 = vpack.c.b16 %v5201, %v5200
  %v5214 = vpack.c.b16 %v5203, %v5202
  %v5215 = vpack.c.b16 %v5205, %v5204
  %v5216 = vpack.c.b16 %v5207, %v5206
  %v5217 = vpack.c.b16 %v5209, %v5208
  %5226 = vmatprep.subr.bf16.mxu0 0
  %5227 = vmatpush1.bf16.msra.mxu0 %v5217
  %5228 = vmatprep.subr.bf16.mxu0 0
  %5229 = vmatpush1.bf16.msra.mxu0 %v5216
  %5230 = vmatprep.subr.bf16.mxu0 0
  %5231 = vmatpush1.bf16.msra.mxu0 %v5215
  %5232 = vmatprep.subr.bf16.mxu0 0
  %5233 = vmatpush1.bf16.msra.mxu0 %v5214
  %5234 = vmatprep.subr.bf16.mxu0 0
  %5235 = vmatpush1.bf16.msra.mxu0 %v5213
  %5236 = vmatprep.subr.bf16.mxu0 0
  %5237 = vmatpush1.bf16.msra.mxu0 %v5212
  %5238 = vmatprep.subr.bf16.mxu0 0
  %5239 = vmatpush1.bf16.msra.mxu0 %v5211
  %5240 = vmatprep.subr.bf16.mxu0 0
  %5241 = vmatpush1.bf16.msra.mxu0 %v5210
  %5242 = vmatprep.subr.bf16.mxu0 0
  %5243 = vmatpush2.bf16.msra.mxu0 0
  %5244 = vmatprep.subr.bf16.mxu0 0
  %5245 = vmatpush2.bf16.msra.mxu0 0
  %5246 = vmatprep.subr.bf16.mxu0 0
  %5247 = vmatpush2.bf16.msra.mxu0 0
  %5248 = vmatprep.subr.bf16.mxu0 0
  %5249 = vmatpush2.bf16.msra.mxu0 0
  %5250 = vmatprep.subr.bf16.mxu0 0
  %5251 = vmatpush2.bf16.msra.mxu0 0
  %5252 = vmatprep.subr.bf16.mxu0 0
  %5253 = vmatpush2.bf16.msra.mxu0 0
  %5254 = vmatprep.subr.bf16.mxu0 0
  %5255 = vmatpush2.bf16.msra.mxu0 0
  %5256 = vmatprep.subr.bf16.mxu0 0
  %5257 = vmatpush2.bf16.msra.mxu0 0
  %5258 = vmatprep.mubr.bf16.mxu0 0
  %5259 = vmatmul.mubr.bf16.gmra.mxu0 %v5107
  %v5260 = vpop.f32.mrf.mxu0
  %v5261 = vadd.f32 %v5176, %v5260
  %v5262 = vpop.f32.mrf.mxu0
  %v5263 = vpop.f32.mrf.mxu0
  %v5264 = vadd.f32 %v5176, %v5263
  %v5265 = vpop.f32.mrf.mxu0
  %5266 = vmatprep.mubr.bf16.mxu0 0
  %5267 = vmatmul.mubr.bf16.gmra.mxu0 %v5108
  %v5268 = vpop.f32.mrf.mxu0
  %v5269 = vadd.f32 %v5176, %v5268
  %v5270 = vpop.f32.mrf.mxu0
  %v5271 = vpop.f32.mrf.mxu0
  %v5272 = vadd.f32 %v5176, %v5271
  %v5273 = vpop.f32.mrf.mxu0
  %5274 = vmatprep.mubr.bf16.mxu0 0
  %5275 = vmatmul.mubr.bf16.gmra.mxu0 %v5109
  %v5276 = vpop.f32.mrf.mxu0
  %v5277 = vadd.f32 %v5176, %v5276
  %v5278 = vpop.f32.mrf.mxu0
  %v5279 = vpop.f32.mrf.mxu0
  %v5280 = vadd.f32 %v5176, %v5279
  %v5281 = vpop.f32.mrf.mxu0
  %5282 = vmatprep.mubr.bf16.mxu0 0
  %5283 = vmatmul.mubr.bf16.gmra.mxu0 %v5110
  %v5284 = vpop.f32.mrf.mxu0
  %v5285 = vadd.f32 %v5176, %v5284
  %v5286 = vpop.f32.mrf.mxu0
  %v5287 = vpop.f32.mrf.mxu0
  %v5288 = vadd.f32 %v5176, %v5287
  %v5289 = vpop.f32.mrf.mxu0
  %5290 = vmatprep.mubr.bf16.mxu0 0
  %5291 = vmatmul.mubr.bf16.gmra.mxu0 %v5111
  %v5292 = vpop.f32.mrf.mxu0
  %v5293 = vadd.f32 %v5176, %v5292
  %v5294 = vpop.f32.mrf.mxu0
  %v5295 = vpop.f32.mrf.mxu0
  %v5296 = vadd.f32 %v5176, %v5295
  %v5297 = vpop.f32.mrf.mxu0
  %5298 = vmatprep.mubr.bf16.mxu0 0
  %5299 = vmatmul.mubr.bf16.gmra.mxu0 %v5112
  %v5300 = vpop.f32.mrf.mxu0
  %v5301 = vadd.f32 %v5176, %v5300
  %v5302 = vpop.f32.mrf.mxu0
  %v5303 = vpop.f32.mrf.mxu0
  %v5304 = vadd.f32 %v5176, %v5303
  %v5305 = vpop.f32.mrf.mxu0
  %5306 = vmatprep.mubr.bf16.mxu0 0
  %5307 = vmatmul.mubr.bf16.gmra.mxu0 %v5113
  %v5308 = vpop.f32.mrf.mxu0
  %v5309 = vadd.f32 %v5176, %v5308
  %v5310 = vpop.f32.mrf.mxu0
  %v5311 = vpop.f32.mrf.mxu0
  %v5312 = vadd.f32 %v5176, %v5311
  %v5313 = vpop.f32.mrf.mxu0
  %5314 = vmatprep.mubr.bf16.mxu0 0
  %5315 = vmatmul.mubr.bf16.gmra.mxu0 %v5114
  %v5316 = vpop.f32.mrf.mxu0
  %v5317 = vadd.f32 %v5176, %v5316
  %v5318 = vpop.f32.mrf.mxu0
  %v5319 = vpop.f32.mrf.mxu0
  %v5320 = vadd.f32 %v5176, %v5319
  %v5321 = vpop.f32.mrf.mxu0
  %5322 = vmatprep.mubr.bf16.mxu0 0
  %5323 = vmatmul.mubr.bf16.gmra.mxu0 %v5115
  %v5324 = vpop.f32.mrf.mxu0
  %v5325 = vadd.f32 %v5176, %v5324
  %v5326 = vpop.f32.mrf.mxu0
  %v5327 = vpop.f32.mrf.mxu0
  %v5328 = vadd.f32 %v5176, %v5327
  %v5329 = vpop.f32.mrf.mxu0
  %5330 = vmatprep.mubr.bf16.mxu0 0
  %5331 = vmatmul.mubr.bf16.gmra.mxu0 %v5116
  %v5332 = vpop.f32.mrf.mxu0
  %v5333 = vadd.f32 %v5176, %v5332
  %v5334 = vpop.f32.mrf.mxu0
  %v5335 = vpop.f32.mrf.mxu0
  %v5336 = vadd.f32 %v5176, %v5335
  %v5337 = vpop.f32.mrf.mxu0
  %5338 = vmatprep.mubr.bf16.mxu0 0
  %5339 = vmatmul.mubr.bf16.gmra.mxu0 %v5117
  %v5340 = vpop.f32.mrf.mxu0
  %v5341 = vadd.f32 %v5176, %v5340
  %v5342 = vpop.f32.mrf.mxu0
  %v5343 = vpop.f32.mrf.mxu0
  %v5344 = vadd.f32 %v5176, %v5343
  %v5345 = vpop.f32.mrf.mxu0
  %5346 = vmatprep.mubr.bf16.mxu0 0
  %5347 = vmatmul.mubr.bf16.gmra.mxu0 %v5118
  %v5348 = vpop.f32.mrf.mxu0
  %v5349 = vadd.f32 %v5176, %v5348
  %v5350 = vpop.f32.mrf.mxu0
  %v5351 = vpop.f32.mrf.mxu0
  %v5352 = vadd.f32 %v5176, %v5351
  %v5353 = vpop.f32.mrf.mxu0
  %5354 = vmatprep.mubr.bf16.mxu0 0
  %5355 = vmatmul.mubr.bf16.gmra.mxu0 %v5119
  %v5356 = vpop.f32.mrf.mxu0
  %v5357 = vadd.f32 %v5176, %v5356
  %v5358 = vpop.f32.mrf.mxu0
  %v5359 = vpop.f32.mrf.mxu0
  %v5360 = vadd.f32 %v5176, %v5359
  %v5361 = vpop.f32.mrf.mxu0
  %5362 = vmatprep.mubr.bf16.mxu0 0
  %5363 = vmatmul.mubr.bf16.gmra.mxu0 %v5120
  %v5364 = vpop.f32.mrf.mxu0
  %v5365 = vadd.f32 %v5176, %v5364
  %v5366 = vpop.f32.mrf.mxu0
  %v5367 = vpop.f32.mrf.mxu0
  %v5368 = vadd.f32 %v5176, %v5367
  %v5369 = vpop.f32.mrf.mxu0
  %5370 = vmatprep.mubr.bf16.mxu0 0
  %5371 = vmatmul.mubr.bf16.gmra.mxu0 %v5121
  %v5372 = vpop.f32.mrf.mxu0
  %v5373 = vadd.f32 %v5176, %v5372
  %v5374 = vpop.f32.mrf.mxu0
  %v5375 = vpop.f32.mrf.mxu0
  %v5376 = vadd.f32 %v5176, %v5375
  %v5377 = vpop.f32.mrf.mxu0
  %5378 = vmatprep.mubr.bf16.mxu0 0
  %5379 = vmatmul.mubr.bf16.gmra.mxu0 %v5122
  %v5380 = vpop.f32.mrf.mxu0
  %v5381 = vadd.f32 %v5176, %v5380
  %v5382 = vpop.f32.mrf.mxu0
  %v5383 = vpop.f32.mrf.mxu0
  %v5384 = vadd.f32 %v5176, %v5383
  %v5385 = vpop.f32.mrf.mxu0
  %5386 = vmatprep.mubr.bf16.mxu0 0
  %5387 = vmatmul.mubr.bf16.gmra.mxu0 %v5123
  %v5388 = vpop.f32.mrf.mxu0
  %v5389 = vadd.f32 %v5176, %v5388
  %v5390 = vpop.f32.mrf.mxu0
  %v5391 = vpop.f32.mrf.mxu0
  %v5392 = vadd.f32 %v5176, %v5391
  %v5393 = vpop.f32.mrf.mxu0
  %5394 = vmatprep.mubr.bf16.mxu0 0
  %5395 = vmatmul.mubr.bf16.gmra.mxu0 %v5124
  %v5396 = vpop.f32.mrf.mxu0
  %v5397 = vadd.f32 %v5176, %v5396
  %v5398 = vpop.f32.mrf.mxu0
  %v5399 = vpop.f32.mrf.mxu0
  %v5400 = vadd.f32 %v5176, %v5399
  %v5401 = vpop.f32.mrf.mxu0
  %5402 = vmatprep.mubr.bf16.mxu0 0
  %5403 = vmatmul.mubr.bf16.gmra.mxu0 %v5125
  %v5404 = vpop.f32.mrf.mxu0
  %v5405 = vadd.f32 %v5176, %v5404
  %v5406 = vpop.f32.mrf.mxu0
  %v5407 = vpop.f32.mrf.mxu0
  %v5408 = vadd.f32 %v5176, %v5407
  %v5409 = vpop.f32.mrf.mxu0
  %5410 = vmatprep.mubr.bf16.mxu0 0
  %5411 = vmatmul.mubr.bf16.gmra.mxu0 %v5126
  %v5412 = vpop.f32.mrf.mxu0
  %v5413 = vadd.f32 %v5176, %v5412
  %v5414 = vpop.f32.mrf.mxu0
  %v5415 = vpop.f32.mrf.mxu0
  %v5416 = vadd.f32 %v5176, %v5415
  %v5417 = vpop.f32.mrf.mxu0
  %5418 = vmatprep.mubr.bf16.mxu0 0
  %5419 = vmatmul.mubr.bf16.gmra.mxu0 %v5127
  %v5420 = vpop.f32.mrf.mxu0
  %v5421 = vadd.f32 %v5176, %v5420
  %v5422 = vpop.f32.mrf.mxu0
  %v5423 = vpop.f32.mrf.mxu0
  %v5424 = vadd.f32 %v5176, %v5423
  %v5425 = vpop.f32.mrf.mxu0
  %5426 = vmatprep.mubr.bf16.mxu0 0
  %5427 = vmatmul.mubr.bf16.gmra.mxu0 %v5128
  %v5428 = vpop.f32.mrf.mxu0
  %v5429 = vadd.f32 %v5176, %v5428
  %v5430 = vpop.f32.mrf.mxu0
  %v5431 = vpop.f32.mrf.mxu0
  %v5432 = vadd.f32 %v5176, %v5431
  %v5433 = vpop.f32.mrf.mxu0
  %5434 = vmatprep.mubr.bf16.mxu0 0
  %5435 = vmatmul.mubr.bf16.gmra.mxu0 %v5129
  %v5436 = vpop.f32.mrf.mxu0
  %v5437 = vadd.f32 %v5176, %v5436
  %v5438 = vpop.f32.mrf.mxu0
  %v5439 = vpop.f32.mrf.mxu0
  %v5440 = vadd.f32 %v5176, %v5439
  %v5441 = vpop.f32.mrf.mxu0
  %5442 = vmatprep.mubr.bf16.mxu0 0
  %5443 = vmatmul.mubr.bf16.gmra.mxu0 %v5130
  %v5444 = vpop.f32.mrf.mxu0
  %v5445 = vadd.f32 %v5176, %v5444
  %v5446 = vpop.f32.mrf.mxu0
  %v5447 = vpop.f32.mrf.mxu0
  %v5448 = vadd.f32 %v5176, %v5447
  %v5449 = vpop.f32.mrf.mxu0
  %5450 = vmatprep.mubr.bf16.mxu0 0
  %5451 = vmatmul.mubr.bf16.gmra.mxu0 %v5131
  %v5452 = vpop.f32.mrf.mxu0
  %v5453 = vadd.f32 %v5176, %v5452
  %v5454 = vpop.f32.mrf.mxu0
  %v5455 = vpop.f32.mrf.mxu0
  %v5456 = vadd.f32 %v5176, %v5455
  %v5457 = vpop.f32.mrf.mxu0
  %5458 = vmatprep.mubr.bf16.mxu0 0
  %5459 = vmatmul.mubr.bf16.gmra.mxu0 %v5132
  %v5460 = vpop.f32.mrf.mxu0
  %v5461 = vadd.f32 %v5176, %v5460
  %v5462 = vpop.f32.mrf.mxu0
  %v5463 = vpop.f32.mrf.mxu0
  %v5464 = vadd.f32 %v5176, %v5463
  %v5465 = vpop.f32.mrf.mxu0
  %5466 = vmatprep.mubr.bf16.mxu0 0
  %5467 = vmatmul.mubr.bf16.gmra.mxu0 %v5133
  %v5468 = vpop.f32.mrf.mxu0
  %v5469 = vadd.f32 %v5176, %v5468
  %v5470 = vpop.f32.mrf.mxu0
  %v5471 = vpop.f32.mrf.mxu0
  %v5472 = vadd.f32 %v5176, %v5471
  %v5473 = vpop.f32.mrf.mxu0
  %5474 = vmatprep.mubr.bf16.mxu0 0
  %5475 = vmatmul.mubr.bf16.gmra.mxu0 %v5134
  %v5476 = vpop.f32.mrf.mxu0
  %v5477 = vadd.f32 %v5176, %v5476
  %v5478 = vpop.f32.mrf.mxu0
  %v5479 = vpop.f32.mrf.mxu0
  %v5480 = vadd.f32 %v5176, %v5479
  %v5481 = vpop.f32.mrf.mxu0
  %5482 = vmatprep.mubr.bf16.mxu0 0
  %5483 = vmatmul.mubr.bf16.gmra.mxu0 %v5135
  %v5484 = vpop.f32.mrf.mxu0
  %v5485 = vadd.f32 %v5176, %v5484
  %v5486 = vpop.f32.mrf.mxu0
  %v5487 = vpop.f32.mrf.mxu0
  %v5488 = vadd.f32 %v5176, %v5487
  %v5489 = vpop.f32.mrf.mxu0
  %5490 = vmatprep.mubr.bf16.mxu0 0
  %5491 = vmatmul.mubr.bf16.gmra.mxu0 %v5136
  %v5492 = vpop.f32.mrf.mxu0
  %v5493 = vadd.f32 %v5176, %v5492
  %v5494 = vpop.f32.mrf.mxu0
  %v5495 = vpop.f32.mrf.mxu0
  %v5496 = vadd.f32 %v5176, %v5495
  %v5497 = vpop.f32.mrf.mxu0
  %5498 = vmatprep.mubr.bf16.mxu0 0
  %5499 = vmatmul.mubr.bf16.gmra.mxu0 %v5137
  %v5500 = vpop.f32.mrf.mxu0
  %v5501 = vadd.f32 %v5176, %v5500
  %v5502 = vpop.f32.mrf.mxu0
  %v5503 = vpop.f32.mrf.mxu0
  %v5504 = vadd.f32 %v5176, %v5503
  %v5505 = vpop.f32.mrf.mxu0
  %5506 = vmatprep.mubr.bf16.mxu0 0
  %5507 = vmatmul.mubr.bf16.gmra.mxu0 %v5138
  %v5508 = vpop.f32.mrf.mxu0
  %v5509 = vadd.f32 %v5176, %v5508
  %v5510 = vpop.f32.mrf.mxu0
  %v5511 = vpop.f32.mrf.mxu0
  %v5512 = vadd.f32 %v5176, %v5511
  %v5513 = vpop.f32.mrf.mxu0
  %5514 = vmatprep.mubr.bf16.mxu0 0
  %5515 = vmatmul.mubr.bf16.gmra.mxu0 %v5139
  %v5516 = vpop.f32.mrf.mxu0
  %v5517 = vadd.f32 %v5176, %v5516
  %v5518 = vpop.f32.mrf.mxu0
  %v5519 = vpop.f32.mrf.mxu0
  %v5520 = vadd.f32 %v5176, %v5519
  %v5521 = vpop.f32.mrf.mxu0
  %5522 = vmatprep.mubr.bf16.mxu0 0
  %5523 = vmatmul.mubr.bf16.gmra.mxu0 %v5140
  %v5524 = vpop.f32.mrf.mxu0
  %v5525 = vadd.f32 %v5176, %v5524
  %v5526 = vpop.f32.mrf.mxu0
  %v5527 = vpop.f32.mrf.mxu0
  %v5528 = vadd.f32 %v5176, %v5527
  %v5529 = vpop.f32.mrf.mxu0
  %5530 = vmatprep.mubr.bf16.mxu0 0
  %5531 = vmatmul.mubr.bf16.gmra.mxu0 %v5141
  %v5532 = vpop.f32.mrf.mxu0
  %v5533 = vadd.f32 %v5176, %v5532
  %v5534 = vpop.f32.mrf.mxu0
  %v5535 = vpop.f32.mrf.mxu0
  %v5536 = vadd.f32 %v5176, %v5535
  %v5537 = vpop.f32.mrf.mxu0
  %5538 = vmatprep.mubr.bf16.mxu0 0
  %5539 = vmatmul.mubr.bf16.gmra.mxu0 %v5142
  %v5540 = vpop.f32.mrf.mxu0
  %v5541 = vadd.f32 %v5176, %v5540
  %v5542 = vpop.f32.mrf.mxu0
  %v5543 = vpop.f32.mrf.mxu0
  %v5544 = vadd.f32 %v5176, %v5543
  %v5545 = vpop.f32.mrf.mxu0
  %5546 = vmatprep.mubr.bf16.mxu0 0
  %5547 = vmatmul.mubr.bf16.gmra.mxu0 %v5143
  %v5548 = vpop.f32.mrf.mxu0
  %v5549 = vadd.f32 %v5176, %v5548
  %v5550 = vpop.f32.mrf.mxu0
  %v5551 = vpop.f32.mrf.mxu0
  %v5552 = vadd.f32 %v5176, %v5551
  %v5553 = vpop.f32.mrf.mxu0
  %5554 = vmatprep.mubr.bf16.mxu0 0
  %5555 = vmatmul.mubr.bf16.gmra.mxu0 %v5144
  %v5556 = vpop.f32.mrf.mxu0
  %v5557 = vadd.f32 %v5176, %v5556
  %v5558 = vpop.f32.mrf.mxu0
  %v5559 = vpop.f32.mrf.mxu0
  %v5560 = vadd.f32 %v5176, %v5559
  %v5561 = vpop.f32.mrf.mxu0
  %5562 = vmatprep.mubr.bf16.mxu0 0
  %5563 = vmatmul.mubr.bf16.gmra.mxu0 %v5145
  %v5564 = vpop.f32.mrf.mxu0
  %v5565 = vadd.f32 %v5176, %v5564
  %v5566 = vpop.f32.mrf.mxu0
  %v5567 = vpop.f32.mrf.mxu0
  %v5568 = vadd.f32 %v5176, %v5567
  %v5569 = vpop.f32.mrf.mxu0
  %5570 = vmatprep.mubr.bf16.mxu0 0
  %5571 = vmatmul.mubr.bf16.gmra.mxu0 %v5146
  %v5572 = vpop.f32.mrf.mxu0
  %v5573 = vadd.f32 %v5176, %v5572
  %v5574 = vpop.f32.mrf.mxu0
  %v5575 = vpop.f32.mrf.mxu0
  %v5576 = vadd.f32 %v5176, %v5575
  %v5577 = vpop.f32.mrf.mxu0
  %5578 = vmatprep.mubr.bf16.mxu0 0
  %5579 = vmatmul.mubr.bf16.gmra.mxu0 %v5147
  %v5580 = vpop.f32.mrf.mxu0
  %v5581 = vadd.f32 %v5176, %v5580
  %v5582 = vpop.f32.mrf.mxu0
  %v5583 = vpop.f32.mrf.mxu0
  %v5584 = vadd.f32 %v5176, %v5583
  %v5585 = vpop.f32.mrf.mxu0
  %5586 = vmatprep.mubr.bf16.mxu0 0
  %5587 = vmatmul.mubr.bf16.gmra.mxu0 %v5148
  %v5588 = vpop.f32.mrf.mxu0
  %v5589 = vadd.f32 %v5176, %v5588
  %v5590 = vpop.f32.mrf.mxu0
  %v5591 = vpop.f32.mrf.mxu0
  %v5592 = vadd.f32 %v5176, %v5591
  %v5593 = vpop.f32.mrf.mxu0
  %5594 = vmatprep.mubr.bf16.mxu0 0
  %5595 = vmatmul.mubr.bf16.gmra.mxu0 %v5149
  %v5596 = vpop.f32.mrf.mxu0
  %v5597 = vadd.f32 %v5176, %v5596
  %v5598 = vpop.f32.mrf.mxu0
  %v5599 = vpop.f32.mrf.mxu0
  %v5600 = vadd.f32 %v5176, %v5599
  %v5601 = vpop.f32.mrf.mxu0
  %5602 = vmatprep.mubr.bf16.mxu0 0
  %5603 = vmatmul.mubr.bf16.gmra.mxu0 %v5150
  %v5604 = vpop.f32.mrf.mxu0
  %v5605 = vadd.f32 %v5176, %v5604
  %v5606 = vpop.f32.mrf.mxu0
  %v5607 = vpop.f32.mrf.mxu0
  %v5608 = vadd.f32 %v5176, %v5607
  %v5609 = vpop.f32.mrf.mxu0
  %5610 = vmatprep.mubr.bf16.mxu0 0
  %5611 = vmatmul.mubr.bf16.gmra.mxu0 %v5151
  %v5612 = vpop.f32.mrf.mxu0
  %v5613 = vadd.f32 %v5176, %v5612
  %v5614 = vpop.f32.mrf.mxu0
  %v5615 = vpop.f32.mrf.mxu0
  %v5616 = vadd.f32 %v5176, %v5615
  %v5617 = vpop.f32.mrf.mxu0
  %5618 = vmatprep.mubr.bf16.mxu0 0
  %5619 = vmatmul.mubr.bf16.gmra.mxu0 %v5152
  %v5620 = vpop.f32.mrf.mxu0
  %v5621 = vadd.f32 %v5176, %v5620
  %v5622 = vpop.f32.mrf.mxu0
  %v5623 = vpop.f32.mrf.mxu0
  %v5624 = vadd.f32 %v5176, %v5623
  %v5625 = vpop.f32.mrf.mxu0
  %5626 = vmatprep.mubr.bf16.mxu0 0
  %5627 = vmatmul.mubr.bf16.gmra.mxu0 %v5153
  %v5628 = vpop.f32.mrf.mxu0
  %v5629 = vadd.f32 %v5176, %v5628
  %v5630 = vpop.f32.mrf.mxu0
  %v5631 = vpop.f32.mrf.mxu0
  %v5632 = vadd.f32 %v5176, %v5631
  %v5633 = vpop.f32.mrf.mxu0
  %5634 = vmatprep.mubr.bf16.mxu0 0
  %5635 = vmatmul.mubr.bf16.gmra.mxu0 %v5154
  %v5636 = vpop.f32.mrf.mxu0
  %v5637 = vadd.f32 %v5176, %v5636
  %v5638 = vpop.f32.mrf.mxu0
  %v5639 = vpop.f32.mrf.mxu0
  %v5640 = vadd.f32 %v5176, %v5639
  %v5641 = vpop.f32.mrf.mxu0
  %5642 = vdwg.mxu0
  %v5643 = vmax.f32 %v5261, 0.0
  %v5644 = vmax.f32 %v5264, 0.0
  %v5645 = vmax.f32 %v5269, 0.0
  %v5646 = vmax.f32 %v5272, 0.0
  %v5647 = vmax.f32 %v5277, 0.0
  %v5648 = vmax.f32 %v5280, 0.0
  %v5649 = vmax.f32 %v5285, 0.0
  %v5650 = vmax.f32 %v5288, 0.0
  %v5651 = vmax.f32 %v5293, 0.0
  %v5652 = vmax.f32 %v5296, 0.0
  %v5653 = vmax.f32 %v5301, 0.0
  %v5654 = vmax.f32 %v5304, 0.0
  %v5655 = vmax.f32 %v5309, 0.0
  %v5656 = vmax.f32 %v5312, 0.0
  %v5657 = vmax.f32 %v5317, 0.0
  %v5658 = vmax.f32 %v5320, 0.0
  %v5659 = vmax.f32 %v5325, 0.0
  %v5660 = vmax.f32 %v5328, 0.0
  %v5661 = vmax.f32 %v5333, 0.0
  %v5662 = vmax.f32 %v5336, 0.0
  %v5663 = vmax.f32 %v5341, 0.0
  %v5664 = vmax.f32 %v5344, 0.0
  %v5665 = vmax.f32 %v5349, 0.0
  %v5666 = vmax.f32 %v5352, 0.0
  %v5667 = vmax.f32 %v5357, 0.0
  %v5668 = vmax.f32 %v5360, 0.0
  %v5669 = vmax.f32 %v5365, 0.0
  %v5670 = vmax.f32 %v5368, 0.0
  %v5671 = vmax.f32 %v5373, 0.0
  %v5672 = vmax.f32 %v5376, 0.0
  %v5673 = vmax.f32 %v5381, 0.0
  %v5674 = vmax.f32 %v5384, 0.0
  %v5675 = vmax.f32 %v5389, 0.0
  %v5676 = vmax.f32 %v5392, 0.0
  %v5677 = vmax.f32 %v5397, 0.0
  %v5678 = vmax.f32 %v5400, 0.0
  %v5679 = vmax.f32 %v5405, 0.0
  %v5680 = vmax.f32 %v5408, 0.0
  %v5681 = vmax.f32 %v5413, 0.0
  %v5682 = vmax.f32 %v5416, 0.0
  %v5683 = vmax.f32 %v5421, 0.0
  %v5684 = vmax.f32 %v5424, 0.0
  %v5685 = vmax.f32 %v5429, 0.0
  %v5686 = vmax.f32 %v5432, 0.0
  %v5687 = vmax.f32 %v5437, 0.0
  %v5688 = vmax.f32 %v5440, 0.0
  %v5689 = vmax.f32 %v5445, 0.0
  %v5690 = vmax.f32 %v5448, 0.0
  %v5691 = vmax.f32 %v5453, 0.0
  %v5692 = vmax.f32 %v5456, 0.0
  %v5693 = vmax.f32 %v5461, 0.0
  %v5694 = vmax.f32 %v5464, 0.0
  %v5695 = vmax.f32 %v5469, 0.0
  %v5696 = vmax.f32 %v5472, 0.0
  %v5697 = vmax.f32 %v5477, 0.0
  %v5698 = vmax.f32 %v5480, 0.0
  %v5699 = vmax.f32 %v5485, 0.0
  %v5700 = vmax.f32 %v5488, 0.0
  %v5701 = vmax.f32 %v5493, 0.0
  %v5702 = vmax.f32 %v5496, 0.0
  %v5703 = vmax.f32 %v5501, 0.0
  %v5704 = vmax.f32 %v5504, 0.0
  %v5705 = vmax.f32 %v5509, 0.0
  %v5706 = vmax.f32 %v5512, 0.0
  %v5707 = vmax.f32 %v5517, 0.0
  %v5708 = vmax.f32 %v5520, 0.0
  %v5709 = vmax.f32 %v5525, 0.0
  %v5710 = vmax.f32 %v5528, 0.0
  %v5711 = vmax.f32 %v5533, 0.0
  %v5712 = vmax.f32 %v5536, 0.0
  %v5713 = vmax.f32 %v5541, 0.0
  %v5714 = vmax.f32 %v5544, 0.0
  %v5715 = vmax.f32 %v5549, 0.0
  %v5716 = vmax.f32 %v5552, 0.0
  %v5717 = vmax.f32 %v5557, 0.0
  %v5718 = vmax.f32 %v5560, 0.0
  %v5719 = vmax.f32 %v5565, 0.0
  %v5720 = vmax.f32 %v5568, 0.0
  %v5721 = vmax.f32 %v5573, 0.0
  %v5722 = vmax.f32 %v5576, 0.0
  %v5723 = vmax.f32 %v5581, 0.0
  %v5724 = vmax.f32 %v5584, 0.0
  %v5725 = vmax.f32 %v5589, 0.0
  %v5726 = vmax.f32 %v5592, 0.0
  %v5727 = vmax.f32 %v5597, 0.0
  %v5728 = vmax.f32 %v5600, 0.0
  %v5729 = vmax.f32 %v5605, 0.0
  %v5730 = vmax.f32 %v5608, 0.0
  %v5731 = vmax.f32 %v5613, 0.0
  %v5732 = vmax.f32 %v5616, 0.0
  %v5733 = vmax.f32 %v5621, 0.0
  %v5734 = vmax.f32 %v5624, 0.0
  %v5735 = vmax.f32 %v5629, 0.0
  %v5736 = vmax.f32 %v5632, 0.0
  %v5737 = vmax.f32 %v5637, 0.0
  %v5738 = vmax.f32 %v5640, 0.0
  %v5739 = vrot.slane %v5643, 4
  %v5740 = vmax.f32 %v5643, %v5739
  %v5741 = vrot.slane %v5740, 2
  %v5742 = vmax.f32 %v5740, %v5741
  %v5743 = vrot.slane %v5742, 1
  %v5744 = vmax.f32 %v5742, %v5743
  %v5745 = vrot.slane %v5644, 4
  %v5746 = vmax.f32 %v5644, %v5745
  %v5747 = vrot.slane %v5746, 2
  %v5748 = vmax.f32 %v5746, %v5747
  %v5749 = vrot.slane %v5748, 1
  %v5750 = vmax.f32 %v5748, %v5749
  %v5751 = vrot.slane %v5645, 4
  %v5752 = vmax.f32 %v5645, %v5751
  %v5753 = vrot.slane %v5752, 2
  %v5754 = vmax.f32 %v5752, %v5753
  %v5755 = vrot.slane %v5754, 1
  %v5756 = vmax.f32 %v5754, %v5755
  %v5757 = vrot.slane %v5646, 4
  %v5758 = vmax.f32 %v5646, %v5757
  %v5759 = vrot.slane %v5758, 2
  %v5760 = vmax.f32 %v5758, %v5759
  %v5761 = vrot.slane %v5760, 1
  %v5762 = vmax.f32 %v5760, %v5761
  %v5763 = vrot.slane %v5647, 4
  %v5764 = vmax.f32 %v5647, %v5763
  %v5765 = vrot.slane %v5764, 2
  %v5766 = vmax.f32 %v5764, %v5765
  %v5767 = vrot.slane %v5766, 1
  %v5768 = vmax.f32 %v5766, %v5767
  %v5769 = vrot.slane %v5648, 4
  %v5770 = vmax.f32 %v5648, %v5769
  %v5771 = vrot.slane %v5770, 2
  %v5772 = vmax.f32 %v5770, %v5771
  %v5773 = vrot.slane %v5772, 1
  %v5774 = vmax.f32 %v5772, %v5773
  %v5775 = vrot.slane %v5649, 4
  %v5776 = vmax.f32 %v5649, %v5775
  %v5777 = vrot.slane %v5776, 2
  %v5778 = vmax.f32 %v5776, %v5777
  %v5779 = vrot.slane %v5778, 1
  %v5780 = vmax.f32 %v5778, %v5779
  %v5781 = vrot.slane %v5650, 4
  %v5782 = vmax.f32 %v5650, %v5781
  %v5783 = vrot.slane %v5782, 2
  %v5784 = vmax.f32 %v5782, %v5783
  %v5785 = vrot.slane %v5784, 1
  %v5786 = vmax.f32 %v5784, %v5785
  %v5787 = vrot.slane %v5651, 4
  %v5788 = vmax.f32 %v5651, %v5787
  %v5789 = vrot.slane %v5788, 2
  %v5790 = vmax.f32 %v5788, %v5789
  %v5791 = vrot.slane %v5790, 1
  %v5792 = vmax.f32 %v5790, %v5791
  %v5793 = vrot.slane %v5652, 4
  %v5794 = vmax.f32 %v5652, %v5793
  %v5795 = vrot.slane %v5794, 2
  %v5796 = vmax.f32 %v5794, %v5795
  %v5797 = vrot.slane %v5796, 1
  %v5798 = vmax.f32 %v5796, %v5797
  %v5799 = vrot.slane %v5653, 4
  %v5800 = vmax.f32 %v5653, %v5799
  %v5801 = vrot.slane %v5800, 2
  %v5802 = vmax.f32 %v5800, %v5801
  %v5803 = vrot.slane %v5802, 1
  %v5804 = vmax.f32 %v5802, %v5803
  %v5805 = vrot.slane %v5654, 4
  %v5806 = vmax.f32 %v5654, %v5805
  %v5807 = vrot.slane %v5806, 2
  %v5808 = vmax.f32 %v5806, %v5807
  %v5809 = vrot.slane %v5808, 1
  %v5810 = vmax.f32 %v5808, %v5809
  %v5811 = vrot.slane %v5655, 4
  %v5812 = vmax.f32 %v5655, %v5811
  %v5813 = vrot.slane %v5812, 2
  %v5814 = vmax.f32 %v5812, %v5813
  %v5815 = vrot.slane %v5814, 1
  %v5816 = vmax.f32 %v5814, %v5815
  %v5817 = vrot.slane %v5656, 4
  %v5818 = vmax.f32 %v5656, %v5817
  %v5819 = vrot.slane %v5818, 2
  %v5820 = vmax.f32 %v5818, %v5819
  %v5821 = vrot.slane %v5820, 1
  %v5822 = vmax.f32 %v5820, %v5821
  %v5823 = vrot.slane %v5657, 4
  %v5824 = vmax.f32 %v5657, %v5823
  %v5825 = vrot.slane %v5824, 2
  %v5826 = vmax.f32 %v5824, %v5825
  %v5827 = vrot.slane %v5826, 1
  %v5828 = vmax.f32 %v5826, %v5827
  %v5829 = vrot.slane %v5658, 4
  %v5830 = vmax.f32 %v5658, %v5829
  %v5831 = vrot.slane %v5830, 2
  %v5832 = vmax.f32 %v5830, %v5831
  %v5833 = vrot.slane %v5832, 1
  %v5834 = vmax.f32 %v5832, %v5833
  %v5835 = vrot.slane %v5659, 4
  %v5836 = vmax.f32 %v5659, %v5835
  %v5837 = vrot.slane %v5836, 2
  %v5838 = vmax.f32 %v5836, %v5837
  %v5839 = vrot.slane %v5838, 1
  %v5840 = vmax.f32 %v5838, %v5839
  %v5841 = vrot.slane %v5660, 4
  %v5842 = vmax.f32 %v5660, %v5841
  %v5843 = vrot.slane %v5842, 2
  %v5844 = vmax.f32 %v5842, %v5843
  %v5845 = vrot.slane %v5844, 1
  %v5846 = vmax.f32 %v5844, %v5845
  %v5847 = vrot.slane %v5661, 4
  %v5848 = vmax.f32 %v5661, %v5847
  %v5849 = vrot.slane %v5848, 2
  %v5850 = vmax.f32 %v5848, %v5849
  %v5851 = vrot.slane %v5850, 1
  %v5852 = vmax.f32 %v5850, %v5851
  %v5853 = vrot.slane %v5662, 4
  %v5854 = vmax.f32 %v5662, %v5853
  %v5855 = vrot.slane %v5854, 2
  %v5856 = vmax.f32 %v5854, %v5855
  %v5857 = vrot.slane %v5856, 1
  %v5858 = vmax.f32 %v5856, %v5857
  %v5859 = vrot.slane %v5663, 4
  %v5860 = vmax.f32 %v5663, %v5859
  %v5861 = vrot.slane %v5860, 2
  %v5862 = vmax.f32 %v5860, %v5861
  %v5863 = vrot.slane %v5862, 1
  %v5864 = vmax.f32 %v5862, %v5863
  %v5865 = vrot.slane %v5664, 4
  %v5866 = vmax.f32 %v5664, %v5865
  %v5867 = vrot.slane %v5866, 2
  %v5868 = vmax.f32 %v5866, %v5867
  %v5869 = vrot.slane %v5868, 1
  %v5870 = vmax.f32 %v5868, %v5869
  %v5871 = vrot.slane %v5665, 4
  %v5872 = vmax.f32 %v5665, %v5871
  %v5873 = vrot.slane %v5872, 2
  %v5874 = vmax.f32 %v5872, %v5873
  %v5875 = vrot.slane %v5874, 1
  %v5876 = vmax.f32 %v5874, %v5875
  %v5877 = vrot.slane %v5666, 4
  %v5878 = vmax.f32 %v5666, %v5877
  %v5879 = vrot.slane %v5878, 2
  %v5880 = vmax.f32 %v5878, %v5879
  %v5881 = vrot.slane %v5880, 1
  %v5882 = vmax.f32 %v5880, %v5881
  %v5883 = vrot.slane %v5667, 4
  %v5884 = vmax.f32 %v5667, %v5883
  %v5885 = vrot.slane %v5884, 2
  %v5886 = vmax.f32 %v5884, %v5885
  %v5887 = vrot.slane %v5886, 1
  %v5888 = vmax.f32 %v5886, %v5887
  %v5889 = vrot.slane %v5668, 4
  %v5890 = vmax.f32 %v5668, %v5889
  %v5891 = vrot.slane %v5890, 2
  %v5892 = vmax.f32 %v5890, %v5891
  %v5893 = vrot.slane %v5892, 1
  %v5894 = vmax.f32 %v5892, %v5893
  %v5895 = vrot.slane %v5669, 4
  %v5896 = vmax.f32 %v5669, %v5895
  %v5897 = vrot.slane %v5896, 2
  %v5898 = vmax.f32 %v5896, %v5897
  %v5899 = vrot.slane %v5898, 1
  %v5900 = vmax.f32 %v5898, %v5899
  %v5901 = vrot.slane %v5670, 4
  %v5902 = vmax.f32 %v5670, %v5901
  %v5903 = vrot.slane %v5902, 2
  %v5904 = vmax.f32 %v5902, %v5903
  %v5905 = vrot.slane %v5904, 1
  %v5906 = vmax.f32 %v5904, %v5905
  %v5907 = vrot.slane %v5671, 4
  %v5908 = vmax.f32 %v5671, %v5907
  %v5909 = vrot.slane %v5908, 2
  %v5910 = vmax.f32 %v5908, %v5909
  %v5911 = vrot.slane %v5910, 1
  %v5912 = vmax.f32 %v5910, %v5911
  %v5913 = vrot.slane %v5672, 4
  %v5914 = vmax.f32 %v5672, %v5913
  %v5915 = vrot.slane %v5914, 2
  %v5916 = vmax.f32 %v5914, %v5915
  %v5917 = vrot.slane %v5916, 1
  %v5918 = vmax.f32 %v5916, %v5917
  %v5919 = vrot.slane %v5673, 4
  %v5920 = vmax.f32 %v5673, %v5919
  %v5921 = vrot.slane %v5920, 2
  %v5922 = vmax.f32 %v5920, %v5921
  %v5923 = vrot.slane %v5922, 1
  %v5924 = vmax.f32 %v5922, %v5923
  %v5925 = vrot.slane %v5674, 4
  %v5926 = vmax.f32 %v5674, %v5925
  %v5927 = vrot.slane %v5926, 2
  %v5928 = vmax.f32 %v5926, %v5927
  %v5929 = vrot.slane %v5928, 1
  %v5930 = vmax.f32 %v5928, %v5929
  %v5931 = vrot.slane %v5675, 4
  %v5932 = vmax.f32 %v5675, %v5931
  %v5933 = vrot.slane %v5932, 2
  %v5934 = vmax.f32 %v5932, %v5933
  %v5935 = vrot.slane %v5934, 1
  %v5936 = vmax.f32 %v5934, %v5935
  %v5937 = vrot.slane %v5676, 4
  %v5938 = vmax.f32 %v5676, %v5937
  %v5939 = vrot.slane %v5938, 2
  %v5940 = vmax.f32 %v5938, %v5939
  %v5941 = vrot.slane %v5940, 1
  %v5942 = vmax.f32 %v5940, %v5941
  %v5943 = vrot.slane %v5677, 4
  %v5944 = vmax.f32 %v5677, %v5943
  %v5945 = vrot.slane %v5944, 2
  %v5946 = vmax.f32 %v5944, %v5945
  %v5947 = vrot.slane %v5946, 1
  %v5948 = vmax.f32 %v5946, %v5947
  %v5949 = vrot.slane %v5678, 4
  %v5950 = vmax.f32 %v5678, %v5949
  %v5951 = vrot.slane %v5950, 2
  %v5952 = vmax.f32 %v5950, %v5951
  %v5953 = vrot.slane %v5952, 1
  %v5954 = vmax.f32 %v5952, %v5953
  %v5955 = vrot.slane %v5679, 4
  %v5956 = vmax.f32 %v5679, %v5955
  %v5957 = vrot.slane %v5956, 2
  %v5958 = vmax.f32 %v5956, %v5957
  %v5959 = vrot.slane %v5958, 1
  %v5960 = vmax.f32 %v5958, %v5959
  %v5961 = vrot.slane %v5680, 4
  %v5962 = vmax.f32 %v5680, %v5961
  %v5963 = vrot.slane %v5962, 2
  %v5964 = vmax.f32 %v5962, %v5963
  %v5965 = vrot.slane %v5964, 1
  %v5966 = vmax.f32 %v5964, %v5965
  %v5967 = vrot.slane %v5681, 4
  %v5968 = vmax.f32 %v5681, %v5967
  %v5969 = vrot.slane %v5968, 2
  %v5970 = vmax.f32 %v5968, %v5969
  %v5971 = vrot.slane %v5970, 1
  %v5972 = vmax.f32 %v5970, %v5971
  %v5973 = vrot.slane %v5682, 4
  %v5974 = vmax.f32 %v5682, %v5973
  %v5975 = vrot.slane %v5974, 2
  %v5976 = vmax.f32 %v5974, %v5975
  %v5977 = vrot.slane %v5976, 1
  %v5978 = vmax.f32 %v5976, %v5977
  %v5979 = vrot.slane %v5683, 4
  %v5980 = vmax.f32 %v5683, %v5979
  %v5981 = vrot.slane %v5980, 2
  %v5982 = vmax.f32 %v5980, %v5981
  %v5983 = vrot.slane %v5982, 1
  %v5984 = vmax.f32 %v5982, %v5983
  %v5985 = vrot.slane %v5684, 4
  %v5986 = vmax.f32 %v5684, %v5985
  %v5987 = vrot.slane %v5986, 2
  %v5988 = vmax.f32 %v5986, %v5987
  %v5989 = vrot.slane %v5988, 1
  %v5990 = vmax.f32 %v5988, %v5989
  %v5991 = vrot.slane %v5685, 4
  %v5992 = vmax.f32 %v5685, %v5991
  %v5993 = vrot.slane %v5992, 2
  %v5994 = vmax.f32 %v5992, %v5993
  %v5995 = vrot.slane %v5994, 1
  %v5996 = vmax.f32 %v5994, %v5995
  %v5997 = vrot.slane %v5686, 4
  %v5998 = vmax.f32 %v5686, %v5997
  %v5999 = vrot.slane %v5998, 2
  %v6000 = vmax.f32 %v5998, %v5999
  %v6001 = vrot.slane %v6000, 1
  %v6002 = vmax.f32 %v6000, %v6001
  %v6003 = vrot.slane %v5687, 4
  %v6004 = vmax.f32 %v5687, %v6003
  %v6005 = vrot.slane %v6004, 2
  %v6006 = vmax.f32 %v6004, %v6005
  %v6007 = vrot.slane %v6006, 1
  %v6008 = vmax.f32 %v6006, %v6007
  %v6009 = vrot.slane %v5688, 4
  %v6010 = vmax.f32 %v5688, %v6009
  %v6011 = vrot.slane %v6010, 2
  %v6012 = vmax.f32 %v6010, %v6011
  %v6013 = vrot.slane %v6012, 1
  %v6014 = vmax.f32 %v6012, %v6013
  %v6015 = vrot.slane %v5689, 4
  %v6016 = vmax.f32 %v5689, %v6015
  %v6017 = vrot.slane %v6016, 2
  %v6018 = vmax.f32 %v6016, %v6017
  %v6019 = vrot.slane %v6018, 1
  %v6020 = vmax.f32 %v6018, %v6019
  %v6021 = vrot.slane %v5690, 4
  %v6022 = vmax.f32 %v5690, %v6021
  %v6023 = vrot.slane %v6022, 2
  %v6024 = vmax.f32 %v6022, %v6023
  %v6025 = vrot.slane %v6024, 1
  %v6026 = vmax.f32 %v6024, %v6025
  %v6027 = vrot.slane %v5691, 4
  %v6028 = vmax.f32 %v5691, %v6027
  %v6029 = vrot.slane %v6028, 2
  %v6030 = vmax.f32 %v6028, %v6029
  %v6031 = vrot.slane %v6030, 1
  %v6032 = vmax.f32 %v6030, %v6031
  %v6033 = vrot.slane %v5692, 4
  %v6034 = vmax.f32 %v5692, %v6033
  %v6035 = vrot.slane %v6034, 2
  %v6036 = vmax.f32 %v6034, %v6035
  %v6037 = vrot.slane %v6036, 1
  %v6038 = vmax.f32 %v6036, %v6037
  %v6039 = vrot.slane %v5693, 4
  %v6040 = vmax.f32 %v5693, %v6039
  %v6041 = vrot.slane %v6040, 2
  %v6042 = vmax.f32 %v6040, %v6041
  %v6043 = vrot.slane %v6042, 1
  %v6044 = vmax.f32 %v6042, %v6043
  %v6045 = vrot.slane %v5694, 4
  %v6046 = vmax.f32 %v5694, %v6045
  %v6047 = vrot.slane %v6046, 2
  %v6048 = vmax.f32 %v6046, %v6047
  %v6049 = vrot.slane %v6048, 1
  %v6050 = vmax.f32 %v6048, %v6049
  %v6051 = vrot.slane %v5695, 4
  %v6052 = vmax.f32 %v5695, %v6051
  %v6053 = vrot.slane %v6052, 2
  %v6054 = vmax.f32 %v6052, %v6053
  %v6055 = vrot.slane %v6054, 1
  %v6056 = vmax.f32 %v6054, %v6055
  %v6057 = vrot.slane %v5696, 4
  %v6058 = vmax.f32 %v5696, %v6057
  %v6059 = vrot.slane %v6058, 2
  %v6060 = vmax.f32 %v6058, %v6059
  %v6061 = vrot.slane %v6060, 1
  %v6062 = vmax.f32 %v6060, %v6061
  %v6063 = vrot.slane %v5697, 4
  %v6064 = vmax.f32 %v5697, %v6063
  %v6065 = vrot.slane %v6064, 2
  %v6066 = vmax.f32 %v6064, %v6065
  %v6067 = vrot.slane %v6066, 1
  %v6068 = vmax.f32 %v6066, %v6067
  %v6069 = vrot.slane %v5698, 4
  %v6070 = vmax.f32 %v5698, %v6069
  %v6071 = vrot.slane %v6070, 2
  %v6072 = vmax.f32 %v6070, %v6071
  %v6073 = vrot.slane %v6072, 1
  %v6074 = vmax.f32 %v6072, %v6073
  %v6075 = vrot.slane %v5699, 4
  %v6076 = vmax.f32 %v5699, %v6075
  %v6077 = vrot.slane %v6076, 2
  %v6078 = vmax.f32 %v6076, %v6077
  %v6079 = vrot.slane %v6078, 1
  %v6080 = vmax.f32 %v6078, %v6079
  %v6081 = vrot.slane %v5700, 4
  %v6082 = vmax.f32 %v5700, %v6081
  %v6083 = vrot.slane %v6082, 2
  %v6084 = vmax.f32 %v6082, %v6083
  %v6085 = vrot.slane %v6084, 1
  %v6086 = vmax.f32 %v6084, %v6085
  %v6087 = vrot.slane %v5701, 4
  %v6088 = vmax.f32 %v5701, %v6087
  %v6089 = vrot.slane %v6088, 2
  %v6090 = vmax.f32 %v6088, %v6089
  %v6091 = vrot.slane %v6090, 1
  %v6092 = vmax.f32 %v6090, %v6091
  %v6093 = vrot.slane %v5702, 4
  %v6094 = vmax.f32 %v5702, %v6093
  %v6095 = vrot.slane %v6094, 2
  %v6096 = vmax.f32 %v6094, %v6095
  %v6097 = vrot.slane %v6096, 1
  %v6098 = vmax.f32 %v6096, %v6097
  %v6099 = vrot.slane %v5703, 4
  %v6100 = vmax.f32 %v5703, %v6099
  %v6101 = vrot.slane %v6100, 2
  %v6102 = vmax.f32 %v6100, %v6101
  %v6103 = vrot.slane %v6102, 1
  %v6104 = vmax.f32 %v6102, %v6103
  %v6105 = vrot.slane %v5704, 4
  %v6106 = vmax.f32 %v5704, %v6105
  %v6107 = vrot.slane %v6106, 2
  %v6108 = vmax.f32 %v6106, %v6107
  %v6109 = vrot.slane %v6108, 1
  %v6110 = vmax.f32 %v6108, %v6109
  %v6111 = vrot.slane %v5705, 4
  %v6112 = vmax.f32 %v5705, %v6111
  %v6113 = vrot.slane %v6112, 2
  %v6114 = vmax.f32 %v6112, %v6113
  %v6115 = vrot.slane %v6114, 1
  %v6116 = vmax.f32 %v6114, %v6115
  %v6117 = vrot.slane %v5706, 4
  %v6118 = vmax.f32 %v5706, %v6117
  %v6119 = vrot.slane %v6118, 2
  %v6120 = vmax.f32 %v6118, %v6119
  %v6121 = vrot.slane %v6120, 1
  %v6122 = vmax.f32 %v6120, %v6121
  %v6123 = vrot.slane %v5707, 4
  %v6124 = vmax.f32 %v5707, %v6123
  %v6125 = vrot.slane %v6124, 2
  %v6126 = vmax.f32 %v6124, %v6125
  %v6127 = vrot.slane %v6126, 1
  %v6128 = vmax.f32 %v6126, %v6127
  %v6129 = vrot.slane %v5708, 4
  %v6130 = vmax.f32 %v5708, %v6129
  %v6131 = vrot.slane %v6130, 2
  %v6132 = vmax.f32 %v6130, %v6131
  %v6133 = vrot.slane %v6132, 1
  %v6134 = vmax.f32 %v6132, %v6133
  %v6135 = vrot.slane %v5709, 4
  %v6136 = vmax.f32 %v5709, %v6135
  %v6137 = vrot.slane %v6136, 2
  %v6138 = vmax.f32 %v6136, %v6137
  %v6139 = vrot.slane %v6138, 1
  %v6140 = vmax.f32 %v6138, %v6139
  %v6141 = vrot.slane %v5710, 4
  %v6142 = vmax.f32 %v5710, %v6141
  %v6143 = vrot.slane %v6142, 2
  %v6144 = vmax.f32 %v6142, %v6143
  %v6145 = vrot.slane %v6144, 1
  %v6146 = vmax.f32 %v6144, %v6145
  %v6147 = vrot.slane %v5711, 4
  %v6148 = vmax.f32 %v5711, %v6147
  %v6149 = vrot.slane %v6148, 2
  %v6150 = vmax.f32 %v6148, %v6149
  %v6151 = vrot.slane %v6150, 1
  %v6152 = vmax.f32 %v6150, %v6151
  %v6153 = vrot.slane %v5712, 4
  %v6154 = vmax.f32 %v5712, %v6153
  %v6155 = vrot.slane %v6154, 2
  %v6156 = vmax.f32 %v6154, %v6155
  %v6157 = vrot.slane %v6156, 1
  %v6158 = vmax.f32 %v6156, %v6157
  %v6159 = vrot.slane %v5713, 4
  %v6160 = vmax.f32 %v5713, %v6159
  %v6161 = vrot.slane %v6160, 2
  %v6162 = vmax.f32 %v6160, %v6161
  %v6163 = vrot.slane %v6162, 1
  %v6164 = vmax.f32 %v6162, %v6163
  %v6165 = vrot.slane %v5714, 4
  %v6166 = vmax.f32 %v5714, %v6165
  %v6167 = vrot.slane %v6166, 2
  %v6168 = vmax.f32 %v6166, %v6167
  %v6169 = vrot.slane %v6168, 1
  %v6170 = vmax.f32 %v6168, %v6169
  %v6171 = vrot.slane %v5715, 4
  %v6172 = vmax.f32 %v5715, %v6171
  %v6173 = vrot.slane %v6172, 2
  %v6174 = vmax.f32 %v6172, %v6173
  %v6175 = vrot.slane %v6174, 1
  %v6176 = vmax.f32 %v6174, %v6175
  %v6177 = vrot.slane %v5716, 4
  %v6178 = vmax.f32 %v5716, %v6177
  %v6179 = vrot.slane %v6178, 2
  %v6180 = vmax.f32 %v6178, %v6179
  %v6181 = vrot.slane %v6180, 1
  %v6182 = vmax.f32 %v6180, %v6181
  %v6183 = vrot.slane %v5717, 4
  %v6184 = vmax.f32 %v5717, %v6183
  %v6185 = vrot.slane %v6184, 2
  %v6186 = vmax.f32 %v6184, %v6185
  %v6187 = vrot.slane %v6186, 1
  %v6188 = vmax.f32 %v6186, %v6187
  %v6189 = vrot.slane %v5718, 4
  %v6190 = vmax.f32 %v5718, %v6189
  %v6191 = vrot.slane %v6190, 2
  %v6192 = vmax.f32 %v6190, %v6191
  %v6193 = vrot.slane %v6192, 1
  %v6194 = vmax.f32 %v6192, %v6193
  %v6195 = vrot.slane %v5719, 4
  %v6196 = vmax.f32 %v5719, %v6195
  %v6197 = vrot.slane %v6196, 2
  %v6198 = vmax.f32 %v6196, %v6197
  %v6199 = vrot.slane %v6198, 1
  %v6200 = vmax.f32 %v6198, %v6199
  %v6201 = vrot.slane %v5720, 4
  %v6202 = vmax.f32 %v5720, %v6201
  %v6203 = vrot.slane %v6202, 2
  %v6204 = vmax.f32 %v6202, %v6203
  %v6205 = vrot.slane %v6204, 1
  %v6206 = vmax.f32 %v6204, %v6205
  %v6207 = vrot.slane %v5721, 4
  %v6208 = vmax.f32 %v5721, %v6207
  %v6209 = vrot.slane %v6208, 2
  %v6210 = vmax.f32 %v6208, %v6209
  %v6211 = vrot.slane %v6210, 1
  %v6212 = vmax.f32 %v6210, %v6211
  %v6213 = vrot.slane %v5722, 4
  %v6214 = vmax.f32 %v5722, %v6213
  %v6215 = vrot.slane %v6214, 2
  %v6216 = vmax.f32 %v6214, %v6215
  %v6217 = vrot.slane %v6216, 1
  %v6218 = vmax.f32 %v6216, %v6217
  %v6219 = vrot.slane %v5723, 4
  %v6220 = vmax.f32 %v5723, %v6219
  %v6221 = vrot.slane %v6220, 2
  %v6222 = vmax.f32 %v6220, %v6221
  %v6223 = vrot.slane %v6222, 1
  %v6224 = vmax.f32 %v6222, %v6223
  %v6225 = vrot.slane %v5724, 4
  %v6226 = vmax.f32 %v5724, %v6225
  %v6227 = vrot.slane %v6226, 2
  %v6228 = vmax.f32 %v6226, %v6227
  %v6229 = vrot.slane %v6228, 1
  %v6230 = vmax.f32 %v6228, %v6229
  %v6231 = vrot.slane %v5725, 4
  %v6232 = vmax.f32 %v5725, %v6231
  %v6233 = vrot.slane %v6232, 2
  %v6234 = vmax.f32 %v6232, %v6233
  %v6235 = vrot.slane %v6234, 1
  %v6236 = vmax.f32 %v6234, %v6235
  %v6237 = vrot.slane %v5726, 4
  %v6238 = vmax.f32 %v5726, %v6237
  %v6239 = vrot.slane %v6238, 2
  %v6240 = vmax.f32 %v6238, %v6239
  %v6241 = vrot.slane %v6240, 1
  %v6242 = vmax.f32 %v6240, %v6241
  %v6243 = vrot.slane %v5727, 4
  %v6244 = vmax.f32 %v5727, %v6243
  %v6245 = vrot.slane %v6244, 2
  %v6246 = vmax.f32 %v6244, %v6245
  %v6247 = vrot.slane %v6246, 1
  %v6248 = vmax.f32 %v6246, %v6247
  %v6249 = vrot.slane %v5728, 4
  %v6250 = vmax.f32 %v5728, %v6249
  %v6251 = vrot.slane %v6250, 2
  %v6252 = vmax.f32 %v6250, %v6251
  %v6253 = vrot.slane %v6252, 1
  %v6254 = vmax.f32 %v6252, %v6253
  %v6255 = vrot.slane %v5729, 4
  %v6256 = vmax.f32 %v5729, %v6255
  %v6257 = vrot.slane %v6256, 2
  %v6258 = vmax.f32 %v6256, %v6257
  %v6259 = vrot.slane %v6258, 1
  %v6260 = vmax.f32 %v6258, %v6259
  %v6261 = vrot.slane %v5730, 4
  %v6262 = vmax.f32 %v5730, %v6261
  %v6263 = vrot.slane %v6262, 2
  %v6264 = vmax.f32 %v6262, %v6263
  %v6265 = vrot.slane %v6264, 1
  %v6266 = vmax.f32 %v6264, %v6265
  %v6267 = vrot.slane %v5731, 4
  %v6268 = vmax.f32 %v5731, %v6267
  %v6269 = vrot.slane %v6268, 2
  %v6270 = vmax.f32 %v6268, %v6269
  %v6271 = vrot.slane %v6270, 1
  %v6272 = vmax.f32 %v6270, %v6271
  %v6273 = vrot.slane %v5732, 4
  %v6274 = vmax.f32 %v5732, %v6273
  %v6275 = vrot.slane %v6274, 2
  %v6276 = vmax.f32 %v6274, %v6275
  %v6277 = vrot.slane %v6276, 1
  %v6278 = vmax.f32 %v6276, %v6277
  %v6279 = vrot.slane %v5733, 4
  %v6280 = vmax.f32 %v5733, %v6279
  %v6281 = vrot.slane %v6280, 2
  %v6282 = vmax.f32 %v6280, %v6281
  %v6283 = vrot.slane %v6282, 1
  %v6284 = vmax.f32 %v6282, %v6283
  %v6285 = vrot.slane %v5734, 4
  %v6286 = vmax.f32 %v5734, %v6285
  %v6287 = vrot.slane %v6286, 2
  %v6288 = vmax.f32 %v6286, %v6287
  %v6289 = vrot.slane %v6288, 1
  %v6290 = vmax.f32 %v6288, %v6289
  %v6291 = vrot.slane %v5735, 4
  %v6292 = vmax.f32 %v5735, %v6291
  %v6293 = vrot.slane %v6292, 2
  %v6294 = vmax.f32 %v6292, %v6293
  %v6295 = vrot.slane %v6294, 1
  %v6296 = vmax.f32 %v6294, %v6295
  %v6297 = vrot.slane %v5736, 4
  %v6298 = vmax.f32 %v5736, %v6297
  %v6299 = vrot.slane %v6298, 2
  %v6300 = vmax.f32 %v6298, %v6299
  %v6301 = vrot.slane %v6300, 1
  %v6302 = vmax.f32 %v6300, %v6301
  %v6303 = vrot.slane %v5737, 4
  %v6304 = vmax.f32 %v5737, %v6303
  %v6305 = vrot.slane %v6304, 2
  %v6306 = vmax.f32 %v6304, %v6305
  %v6307 = vrot.slane %v6306, 1
  %v6308 = vmax.f32 %v6306, %v6307
  %v6309 = vrot.slane %v5738, 4
  %v6310 = vmax.f32 %v5738, %v6309
  %v6311 = vrot.slane %v6310, 2
  %v6312 = vmax.f32 %v6310, %v6311
  %v6313 = vrot.slane %v6312, 1
  %v6314 = vmax.f32 %v6312, %v6313
  %v6315 = vpack.c.bf16 %v5744, %v5744
  %v6316 = vpack.c.bf16 %v5750, %v5750
  %v6317 = vpack.c.bf16 %v5756, %v5756
  %v6318 = vpack.c.bf16 %v5762, %v5762
  %v6319 = vpack.c.bf16 %v5768, %v5768
  %v6320 = vpack.c.bf16 %v5774, %v5774
  %v6321 = vpack.c.bf16 %v5780, %v5780
  %v6322 = vpack.c.bf16 %v5786, %v5786
  %v6323 = vpack.c.bf16 %v5792, %v5792
  %v6324 = vpack.c.bf16 %v5798, %v5798
  %v6325 = vpack.c.bf16 %v5804, %v5804
  %v6326 = vpack.c.bf16 %v5810, %v5810
  %v6327 = vpack.c.bf16 %v5816, %v5816
  %v6328 = vpack.c.bf16 %v5822, %v5822
  %v6329 = vpack.c.bf16 %v5828, %v5828
  %v6330 = vpack.c.bf16 %v5834, %v5834
  %v6331 = vpack.c.bf16 %v5840, %v5840
  %v6332 = vpack.c.bf16 %v5846, %v5846
  %v6333 = vpack.c.bf16 %v5852, %v5852
  %v6334 = vpack.c.bf16 %v5858, %v5858
  %v6335 = vpack.c.bf16 %v5864, %v5864
  %v6336 = vpack.c.bf16 %v5870, %v5870
  %v6337 = vpack.c.bf16 %v5876, %v5876
  %v6338 = vpack.c.bf16 %v5882, %v5882
  %v6339 = vpack.c.bf16 %v5888, %v5888
  %v6340 = vpack.c.bf16 %v5894, %v5894
  %v6341 = vpack.c.bf16 %v5900, %v5900
  %v6342 = vpack.c.bf16 %v5906, %v5906
  %v6343 = vpack.c.bf16 %v5912, %v5912
  %v6344 = vpack.c.bf16 %v5918, %v5918
  %v6345 = vpack.c.bf16 %v5924, %v5924
  %v6346 = vpack.c.bf16 %v5930, %v5930
  %v6347 = vpack.c.bf16 %v5936, %v5936
  %v6348 = vpack.c.bf16 %v5942, %v5942
  %v6349 = vpack.c.bf16 %v5948, %v5948
  %v6350 = vpack.c.bf16 %v5954, %v5954
  %v6351 = vpack.c.bf16 %v5960, %v5960
  %v6352 = vpack.c.bf16 %v5966, %v5966
  %v6353 = vpack.c.bf16 %v5972, %v5972
  %v6354 = vpack.c.bf16 %v5978, %v5978
  %v6355 = vpack.c.bf16 %v5984, %v5984
  %v6356 = vpack.c.bf16 %v5990, %v5990
  %v6357 = vpack.c.bf16 %v5996, %v5996
  %v6358 = vpack.c.bf16 %v6002, %v6002
  %v6359 = vpack.c.bf16 %v6008, %v6008
  %v6360 = vpack.c.bf16 %v6014, %v6014
  %v6361 = vpack.c.bf16 %v6020, %v6020
  %v6362 = vpack.c.bf16 %v6026, %v6026
  %v6363 = vpack.c.bf16 %v6032, %v6032
  %v6364 = vpack.c.bf16 %v6038, %v6038
  %v6365 = vpack.c.bf16 %v6044, %v6044
  %v6366 = vpack.c.bf16 %v6050, %v6050
  %v6367 = vpack.c.bf16 %v6056, %v6056
  %v6368 = vpack.c.bf16 %v6062, %v6062
  %v6369 = vpack.c.bf16 %v6068, %v6068
  %v6370 = vpack.c.bf16 %v6074, %v6074
  %v6371 = vpack.c.bf16 %v6080, %v6080
  %v6372 = vpack.c.bf16 %v6086, %v6086
  %v6373 = vpack.c.bf16 %v6092, %v6092
  %v6374 = vpack.c.bf16 %v6098, %v6098
  %v6375 = vpack.c.bf16 %v6104, %v6104
  %v6376 = vpack.c.bf16 %v6110, %v6110
  %v6377 = vpack.c.bf16 %v6116, %v6116
  %v6378 = vpack.c.bf16 %v6122, %v6122
  %v6379 = vpack.c.bf16 %v6128, %v6128
  %v6380 = vpack.c.bf16 %v6134, %v6134
  %v6381 = vpack.c.bf16 %v6140, %v6140
  %v6382 = vpack.c.bf16 %v6146, %v6146
  %v6383 = vpack.c.bf16 %v6152, %v6152
  %v6384 = vpack.c.bf16 %v6158, %v6158
  %v6385 = vpack.c.bf16 %v6164, %v6164
  %v6386 = vpack.c.bf16 %v6170, %v6170
  %v6387 = vpack.c.bf16 %v6176, %v6176
  %v6388 = vpack.c.bf16 %v6182, %v6182
  %v6389 = vpack.c.bf16 %v6188, %v6188
  %v6390 = vpack.c.bf16 %v6194, %v6194
  %v6391 = vpack.c.bf16 %v6200, %v6200
  %v6392 = vpack.c.bf16 %v6206, %v6206
  %v6393 = vpack.c.bf16 %v6212, %v6212
  %v6394 = vpack.c.bf16 %v6218, %v6218
  %v6395 = vpack.c.bf16 %v6224, %v6224
  %v6396 = vpack.c.bf16 %v6230, %v6230
  %v6397 = vpack.c.bf16 %v6236, %v6236
  %v6398 = vpack.c.bf16 %v6242, %v6242
  %v6399 = vpack.c.bf16 %v6248, %v6248
  %v6400 = vpack.c.bf16 %v6254, %v6254
  %v6401 = vpack.c.bf16 %v6260, %v6260
  %v6402 = vpack.c.bf16 %v6266, %v6266
  %v6403 = vpack.c.bf16 %v6272, %v6272
  %v6404 = vpack.c.bf16 %v6278, %v6278
  %v6405 = vpack.c.bf16 %v6284, %v6284
  %v6406 = vpack.c.bf16 %v6290, %v6290
  %v6407 = vpack.c.bf16 %v6296, %v6296
  %v6408 = vpack.c.bf16 %v6302, %v6302
  %v6409 = vpack.c.bf16 %v6308, %v6308
  %v6410 = vpack.c.bf16 %v6314, %v6314
  %v6411 = vld [vmem:[%s12] sm:$0xf]
  %v6412 = vld [vmem:[%s12 + $0x4] sm:$0xf]
  %v6413 = vld [vmem:[%s12 + $0x8] sm:$0xf]
  %v6414 = vld [vmem:[%s12 + $0xc] sm:$0xf]
  %v6415 = vld [vmem:[%s12 + $0x10] sm:$0xf]
  %v6416 = vld [vmem:[%s12 + $0x14] sm:$0xf]
  %v6417 = vld [vmem:[%s12 + $0x18] sm:$0xf]
  %v6418 = vld [vmem:[%s12 + $0x1c] sm:$0xf]
  %v6419 = vld [vmem:[%s12 + $0x20] sm:$0xf]
  %v6420 = vld [vmem:[%s12 + $0x24] sm:$0xf]
  %v6421 = vld [vmem:[%s12 + $0x28] sm:$0xf]
  %v6422 = vld [vmem:[%s12 + $0x2c] sm:$0xf]
  %v6423 = vld [vmem:[%s12 + $0x30] sm:$0xf]
  %v6424 = vld [vmem:[%s12 + $0x34] sm:$0xf]
  %v6425 = vld [vmem:[%s12 + $0x38] sm:$0xf]
  %v6426 = vld [vmem:[%s12 + $0x3c] sm:$0xf]
  %v6427 = vld [vmem:[%s13] sm:$0x1]
  %v6429 = vlaneseq
  %v6430 = vshrl.u32 %v6429, 7
  %v6431 = vsub.s32 0, %v6430
  %v6432 = vrot.slane %v6427, %v6431
  %v6530 = vunpack.c.l.b16 %v6315
  %v6531 = vunpack.c.l.b16 %v6316
  %v6532 = vunpack.c.l.b16 %v6317
  %v6533 = vunpack.c.l.b16 %v6318
  %v6534 = vunpack.c.l.b16 %v6319
  %v6535 = vunpack.c.l.b16 %v6320
  %v6536 = vunpack.c.l.b16 %v6321
  %v6537 = vunpack.c.l.b16 %v6322
  %v6538 = vunpack.c.l.b16 %v6323
  %v6539 = vunpack.c.l.b16 %v6324
  %v6540 = vunpack.c.l.b16 %v6325
  %v6541 = vunpack.c.l.b16 %v6326
  %v6542 = vunpack.c.l.b16 %v6327
  %v6543 = vunpack.c.l.b16 %v6328
  %v6544 = vunpack.c.l.b16 %v6329
  %v6545 = vunpack.c.l.b16 %v6330
  %v6546 = vunpack.c.l.b16 %v6331
  %v6547 = vunpack.c.l.b16 %v6332
  %v6548 = vunpack.c.l.b16 %v6333
  %v6549 = vunpack.c.l.b16 %v6334
  %v6550 = vunpack.c.l.b16 %v6335
  %v6551 = vunpack.c.l.b16 %v6336
  %v6552 = vunpack.c.l.b16 %v6337
  %v6553 = vunpack.c.l.b16 %v6338
  %v6554 = vunpack.c.l.b16 %v6339
  %v6555 = vunpack.c.l.b16 %v6340
  %v6556 = vunpack.c.l.b16 %v6341
  %v6557 = vunpack.c.l.b16 %v6342
  %v6558 = vunpack.c.l.b16 %v6343
  %v6559 = vunpack.c.l.b16 %v6344
  %v6560 = vunpack.c.l.b16 %v6345
  %v6561 = vunpack.c.l.b16 %v6346
  %v6562 = vunpack.c.l.b16 %v6347
  %v6563 = vunpack.c.l.b16 %v6348
  %v6564 = vunpack.c.l.b16 %v6349
  %v6565 = vunpack.c.l.b16 %v6350
  %v6566 = vunpack.c.l.b16 %v6351
  %v6567 = vunpack.c.l.b16 %v6352
  %v6568 = vunpack.c.l.b16 %v6353
  %v6569 = vunpack.c.l.b16 %v6354
  %v6570 = vunpack.c.l.b16 %v6355
  %v6571 = vunpack.c.l.b16 %v6356
  %v6572 = vunpack.c.l.b16 %v6357
  %v6573 = vunpack.c.l.b16 %v6358
  %v6574 = vunpack.c.l.b16 %v6359
  %v6575 = vunpack.c.l.b16 %v6360
  %v6576 = vunpack.c.l.b16 %v6361
  %v6577 = vunpack.c.l.b16 %v6362
  %v6578 = vunpack.c.l.b16 %v6363
  %v6579 = vunpack.c.l.b16 %v6364
  %v6580 = vunpack.c.l.b16 %v6365
  %v6581 = vunpack.c.l.b16 %v6366
  %v6582 = vunpack.c.l.b16 %v6367
  %v6583 = vunpack.c.l.b16 %v6368
  %v6584 = vunpack.c.l.b16 %v6369
  %v6585 = vunpack.c.l.b16 %v6370
  %v6586 = vunpack.c.l.b16 %v6371
  %v6587 = vunpack.c.l.b16 %v6372
  %v6588 = vunpack.c.l.b16 %v6373
  %v6589 = vunpack.c.l.b16 %v6374
  %v6590 = vunpack.c.l.b16 %v6375
  %v6591 = vunpack.c.l.b16 %v6376
  %v6592 = vunpack.c.l.b16 %v6377
  %v6593 = vunpack.c.l.b16 %v6378
  %v6594 = vunpack.c.l.b16 %v6379
  %v6595 = vunpack.c.l.b16 %v6380
  %v6596 = vunpack.c.l.b16 %v6381
  %v6597 = vunpack.c.l.b16 %v6382
  %v6598 = vunpack.c.l.b16 %v6383
  %v6599 = vunpack.c.l.b16 %v6384
  %v6600 = vunpack.c.l.b16 %v6385
  %v6601 = vunpack.c.l.b16 %v6386
  %v6602 = vunpack.c.l.b16 %v6387
  %v6603 = vunpack.c.l.b16 %v6388
  %v6604 = vunpack.c.l.b16 %v6389
  %v6605 = vunpack.c.l.b16 %v6390
  %v6606 = vunpack.c.l.b16 %v6391
  %v6607 = vunpack.c.l.b16 %v6392
  %v6608 = vunpack.c.l.b16 %v6393
  %v6609 = vunpack.c.l.b16 %v6394
  %v6610 = vunpack.c.l.b16 %v6395
  %v6611 = vunpack.c.l.b16 %v6396
  %v6612 = vunpack.c.l.b16 %v6397
  %v6613 = vunpack.c.l.b16 %v6398
  %v6614 = vunpack.c.l.b16 %v6399
  %v6615 = vunpack.c.l.b16 %v6400
  %v6616 = vunpack.c.l.b16 %v6401
  %v6617 = vunpack.c.l.b16 %v6402
  %v6618 = vunpack.c.l.b16 %v6403
  %v6619 = vunpack.c.l.b16 %v6404
  %v6620 = vunpack.c.l.b16 %v6405
  %v6621 = vunpack.c.l.b16 %v6406
  %v6622 = vunpack.c.l.b16 %v6407
  %v6623 = vunpack.c.l.b16 %v6408
  %v6624 = vunpack.c.l.b16 %v6409
  %v6625 = vunpack.c.l.b16 %v6410
  %vm6626 = vcmask 1041409
  %v6627 = vsel %vm6626, %v6531, %v6530
  %vm6628 = vcmask 1042434
  %v6629 = vsel %vm6628, %v6532, %v6627
  %vm6630 = vcmask 1043459
  %v6631 = vsel %vm6630, %v6533, %v6629
  %vm6632 = vcmask 1044484
  %v6633 = vsel %vm6632, %v6534, %v6631
  %vm6634 = vcmask 1045509
  %v6635 = vsel %vm6634, %v6535, %v6633
  %vm6636 = vcmask 1046534
  %v6637 = vsel %vm6636, %v6536, %v6635
  %vm6638 = vcmask 1047559
  %v6639 = vsel %vm6638, %v6537, %v6637
  %v6640 = vsel %vm6626, %v6539, %v6538
  %v6641 = vsel %vm6628, %v6540, %v6640
  %v6642 = vsel %vm6630, %v6541, %v6641
  %v6643 = vsel %vm6632, %v6542, %v6642
  %v6644 = vsel %vm6634, %v6543, %v6643
  %v6645 = vsel %vm6636, %v6544, %v6644
  %v6646 = vsel %vm6638, %v6545, %v6645
  %v6647 = vsel %vm6626, %v6547, %v6546
  %v6648 = vsel %vm6628, %v6548, %v6647
  %v6649 = vsel %vm6630, %v6549, %v6648
  %v6650 = vsel %vm6632, %v6550, %v6649
  %v6651 = vsel %vm6634, %v6551, %v6650
  %v6652 = vsel %vm6636, %v6552, %v6651
  %v6653 = vsel %vm6638, %v6553, %v6652
  %v6654 = vsel %vm6626, %v6555, %v6554
  %v6655 = vsel %vm6628, %v6556, %v6654
  %v6656 = vsel %vm6630, %v6557, %v6655
  %v6657 = vsel %vm6632, %v6558, %v6656
  %v6658 = vsel %vm6634, %v6559, %v6657
  %v6659 = vsel %vm6636, %v6560, %v6658
  %v6660 = vsel %vm6638, %v6561, %v6659
  %v6661 = vsel %vm6626, %v6563, %v6562
  %v6662 = vsel %vm6628, %v6564, %v6661
  %v6663 = vsel %vm6630, %v6565, %v6662
  %v6664 = vsel %vm6632, %v6566, %v6663
  %v6665 = vsel %vm6634, %v6567, %v6664
  %v6666 = vsel %vm6636, %v6568, %v6665
  %v6667 = vsel %vm6638, %v6569, %v6666
  %v6668 = vsel %vm6626, %v6571, %v6570
  %v6669 = vsel %vm6628, %v6572, %v6668
  %v6670 = vsel %vm6630, %v6573, %v6669
  %v6671 = vsel %vm6632, %v6574, %v6670
  %v6672 = vsel %vm6634, %v6575, %v6671
  %v6673 = vsel %vm6636, %v6576, %v6672
  %v6674 = vsel %vm6638, %v6577, %v6673
  %v6675 = vsel %vm6626, %v6579, %v6578
  %v6676 = vsel %vm6628, %v6580, %v6675
  %v6677 = vsel %vm6630, %v6581, %v6676
  %v6678 = vsel %vm6632, %v6582, %v6677
  %v6679 = vsel %vm6634, %v6583, %v6678
  %v6680 = vsel %vm6636, %v6584, %v6679
  %v6681 = vsel %vm6638, %v6585, %v6680
  %v6682 = vsel %vm6626, %v6587, %v6586
  %v6683 = vsel %vm6628, %v6588, %v6682
  %v6684 = vsel %vm6630, %v6589, %v6683
  %v6685 = vsel %vm6632, %v6590, %v6684
  %v6686 = vsel %vm6634, %v6591, %v6685
  %v6687 = vsel %vm6636, %v6592, %v6686
  %v6688 = vsel %vm6638, %v6593, %v6687
  %v6689 = vsel %vm6626, %v6595, %v6594
  %v6690 = vsel %vm6628, %v6596, %v6689
  %v6691 = vsel %vm6630, %v6597, %v6690
  %v6692 = vsel %vm6632, %v6598, %v6691
  %v6693 = vsel %vm6634, %v6599, %v6692
  %v6694 = vsel %vm6636, %v6600, %v6693
  %v6695 = vsel %vm6638, %v6601, %v6694
  %v6696 = vsel %vm6626, %v6603, %v6602
  %v6697 = vsel %vm6628, %v6604, %v6696
  %v6698 = vsel %vm6630, %v6605, %v6697
  %v6699 = vsel %vm6632, %v6606, %v6698
  %v6700 = vsel %vm6634, %v6607, %v6699
  %v6701 = vsel %vm6636, %v6608, %v6700
  %v6702 = vsel %vm6638, %v6609, %v6701
  %v6703 = vsel %vm6626, %v6611, %v6610
  %v6704 = vsel %vm6628, %v6612, %v6703
  %v6705 = vsel %vm6630, %v6613, %v6704
  %v6706 = vsel %vm6632, %v6614, %v6705
  %v6707 = vsel %vm6634, %v6615, %v6706
  %v6708 = vsel %vm6636, %v6616, %v6707
  %v6709 = vsel %vm6638, %v6617, %v6708
  %v6710 = vsel %vm6626, %v6619, %v6618
  %v6711 = vsel %vm6628, %v6620, %v6710
  %v6712 = vsel %vm6630, %v6621, %v6711
  %v6713 = vsel %vm6632, %v6622, %v6712
  %v6714 = vsel %vm6634, %v6623, %v6713
  %v6715 = vsel %vm6636, %v6624, %v6714
  %v6716 = vsel %vm6638, %v6625, %v6715
  %v6717 = vpack.c.b16 %v6646, %v6639
  %v6718 = vpack.c.b16 %v6660, %v6653
  %v6719 = vpack.c.b16 %v6674, %v6667
  %v6720 = vpack.c.b16 %v6688, %v6681
  %v6721 = vpack.c.b16 %v6702, %v6695
  %v6722 = vpack.c.b16 %v6716, %v6709
  %v6745 = vunpack.c.l.b16 %v6411
  %v6746 = vunpack.c.l.b16 %v6412
  %v6747 = vunpack.c.l.b16 %v6413
  %v6748 = vunpack.c.l.b16 %v6414
  %v6749 = vunpack.c.l.b16 %v6415
  %v6750 = vunpack.c.l.b16 %v6416
  %v6751 = vunpack.c.l.b16 %v6417
  %v6752 = vunpack.c.l.b16 %v6418
  %v6753 = vunpack.c.l.b16 %v6419
  %v6754 = vunpack.c.l.b16 %v6420
  %v6755 = vunpack.c.l.b16 %v6421
  %v6756 = vunpack.c.l.b16 %v6422
  %v6757 = vunpack.c.l.b16 %v6423
  %v6758 = vunpack.c.l.b16 %v6424
  %v6759 = vunpack.c.l.b16 %v6425
  %v6760 = vunpack.c.l.b16 %v6426
  %v6761 = vpack.c.b16 %v6746, %v6745
  %v6762 = vpack.c.b16 %v6748, %v6747
  %v6763 = vpack.c.b16 %v6750, %v6749
  %v6764 = vpack.c.b16 %v6752, %v6751
  %v6765 = vpack.c.b16 %v6754, %v6753
  %v6766 = vpack.c.b16 %v6756, %v6755
  %v6767 = vpack.c.b16 %v6758, %v6757
  %v6768 = vpack.c.b16 %v6760, %v6759
  %6777 = vmatprep.subr.bf16.mxu0 0
  %6778 = vmatpush1.bf16.msra.mxu0 %v6768
  %6779 = vmatprep.subr.bf16.mxu0 0
  %6780 = vmatpush1.bf16.msra.mxu0 %v6767
  %6781 = vmatprep.subr.bf16.mxu0 0
  %6782 = vmatpush1.bf16.msra.mxu0 %v6766
  %6783 = vmatprep.subr.bf16.mxu0 0
  %6784 = vmatpush1.bf16.msra.mxu0 %v6765
  %6785 = vmatprep.subr.bf16.mxu0 0
  %6786 = vmatpush1.bf16.msra.mxu0 %v6764
  %6787 = vmatprep.subr.bf16.mxu0 0
  %6788 = vmatpush1.bf16.msra.mxu0 %v6763
  %6789 = vmatprep.subr.bf16.mxu0 0
  %6790 = vmatpush1.bf16.msra.mxu0 %v6762
  %6791 = vmatprep.subr.bf16.mxu0 0
  %6792 = vmatpush1.bf16.msra.mxu0 %v6761
  %6793 = vmatprep.subr.bf16.mxu0 0
  %6794 = vmatpush2.bf16.msra.mxu0 0
  %6795 = vmatprep.subr.bf16.mxu0 0
  %6796 = vmatpush2.bf16.msra.mxu0 0
  %6797 = vmatprep.subr.bf16.mxu0 0
  %6798 = vmatpush2.bf16.msra.mxu0 0
  %6799 = vmatprep.subr.bf16.mxu0 0
  %6800 = vmatpush2.bf16.msra.mxu0 0
  %6801 = vmatprep.subr.bf16.mxu0 0
  %6802 = vmatpush2.bf16.msra.mxu0 0
  %6803 = vmatprep.subr.bf16.mxu0 0
  %6804 = vmatpush2.bf16.msra.mxu0 0
  %6805 = vmatprep.subr.bf16.mxu0 0
  %6806 = vmatpush2.bf16.msra.mxu0 0
  %6807 = vmatprep.subr.bf16.mxu0 0
  %6808 = vmatpush2.bf16.msra.mxu0 0
  %6809 = vmatprep.mubr.bf16.mxu0 0
  %6810 = vmatmul.mubr.bf16.gmra.mxu0 %v6717
  %v6811 = vpop.f32.mrf.mxu0
  %v6812 = vadd.f32 %v6432, %v6811
  %v6813 = vpop.f32.mrf.mxu0
  %v6814 = vpop.f32.mrf.mxu0
  %v6815 = vadd.f32 %v6432, %v6814
  %v6816 = vpop.f32.mrf.mxu0
  %6817 = vmatprep.mubr.bf16.mxu0 0
  %6818 = vmatmul.mubr.bf16.gmra.mxu0 %v6718
  %v6819 = vpop.f32.mrf.mxu0
  %v6820 = vadd.f32 %v6432, %v6819
  %v6821 = vpop.f32.mrf.mxu0
  %v6822 = vpop.f32.mrf.mxu0
  %v6823 = vadd.f32 %v6432, %v6822
  %v6824 = vpop.f32.mrf.mxu0
  %6825 = vmatprep.mubr.bf16.mxu0 0
  %6826 = vmatmul.mubr.bf16.gmra.mxu0 %v6719
  %v6827 = vpop.f32.mrf.mxu0
  %v6828 = vadd.f32 %v6432, %v6827
  %v6829 = vpop.f32.mrf.mxu0
  %v6830 = vpop.f32.mrf.mxu0
  %v6831 = vadd.f32 %v6432, %v6830
  %v6832 = vpop.f32.mrf.mxu0
  %6833 = vmatprep.mubr.bf16.mxu0 0
  %6834 = vmatmul.mubr.bf16.gmra.mxu0 %v6720
  %v6835 = vpop.f32.mrf.mxu0
  %v6836 = vadd.f32 %v6432, %v6835
  %v6837 = vpop.f32.mrf.mxu0
  %v6838 = vpop.f32.mrf.mxu0
  %v6839 = vadd.f32 %v6432, %v6838
  %v6840 = vpop.f32.mrf.mxu0
  %6841 = vmatprep.mubr.bf16.mxu0 0
  %6842 = vmatmul.mubr.bf16.gmra.mxu0 %v6721
  %v6843 = vpop.f32.mrf.mxu0
  %v6844 = vadd.f32 %v6432, %v6843
  %v6845 = vpop.f32.mrf.mxu0
  %v6846 = vpop.f32.mrf.mxu0
  %v6847 = vadd.f32 %v6432, %v6846
  %v6848 = vpop.f32.mrf.mxu0
  %6849 = vmatprep.mubr.bf16.mxu0 0
  %6850 = vmatmul.mubr.bf16.gmra.mxu0 %v6722
  %v6851 = vpop.f32.mrf.mxu0
  %v6852 = vadd.f32 %v6432, %v6851
  %v6853 = vpop.f32.mrf.mxu0
  %v6854 = vpop.f32.mrf.mxu0
  %v6855 = vadd.f32 %v6432, %v6854
  %v6856 = vpop.f32.mrf.mxu0
  %6857 = vdwg.mxu0
  %v6858 = vmax.f32 %v6812, 0.0
  %v6859 = vmax.f32 %v6815, 0.0
  %v6860 = vmax.f32 %v6820, 0.0
  %v6861 = vmax.f32 %v6823, 0.0
  %v6862 = vmax.f32 %v6828, 0.0
  %v6863 = vmax.f32 %v6831, 0.0
  %v6864 = vmax.f32 %v6836, 0.0
  %v6865 = vmax.f32 %v6839, 0.0
  %v6866 = vmax.f32 %v6844, 0.0
  %v6867 = vmax.f32 %v6847, 0.0
  %v6868 = vmax.f32 %v6852, 0.0
  %v6869 = vmax.f32 %v6855, 0.0
  %6870 = vst [vmem:[%s14] sm:$0xff] %v6858
  %6871 = vst [vmem:[%s14 + $0x8] sm:$0xff] %v6859
  %6872 = vst [vmem:[%s14 + $0x10] sm:$0xff] %v6860
  %6873 = vst [vmem:[%s14 + $0x18] sm:$0xff] %v6861
  %6874 = vst [vmem:[%s14 + $0x20] sm:$0xff] %v6862
  %6875 = vst [vmem:[%s14 + $0x28] sm:$0xff] %v6863
  %6876 = vst [vmem:[%s14 + $0x30] sm:$0xff] %v6864
  %6877 = vst [vmem:[%s14 + $0x38] sm:$0xff] %v6865
  %6878 = vst [vmem:[%s14 + $0x40] sm:$0xff] %v6866
  %6879 = vst [vmem:[%s14 + $0x48] sm:$0xff] %v6867
  %6880 = vst [vmem:[%s14 + $0x50] sm:$0xff] %v6868
  %6881 = vst [vmem:[%s14 + $0x58] sm:$0xff] %v6869
  // Predicated region
  $region58: #{_lambda_.11} parent=0 // pred_check
    _
  $region59: #{_lambda_.11} parent=0 // pred_check_branch
    %6883 = sbr.rel (0) target = $region61
  $region60: #{_lambda_.11} parent=0 // pred_region
    _
  $region61: #{_lambda_.11} parent=0 // pred_fallthru
    _
  // Predicated region
  $region62: #{_lambda_.11} parent=0 // pred_check
    _
  $region63: #{_lambda_.11} parent=0 // pred_check_branch
    %6885 = sbr.rel (0) target = $region65
  $region64: #{_lambda_.11} parent=0 // pred_region
    _
  $region65: #{_lambda_.11} parent=0 // pred_fallthru
    _

</llo_original>
